<compile_context>
chip_gen: v7x
topology: tpu7x:2x2x1
jax: 0.10.0
libtpu: 0.0.40
codegen_flags: <defaults>
</compile_context>

<pallas_src>
import jax
import jax.numpy as jnp
from jax import lax
from jax.experimental import pallas as pl
from jax.experimental.pallas import tpu as pltpu

C_PAD = 128  # lane-padded channel / feature width
BB = 8       # batch block (fills the 8 sublanes of a (8,128) tile)


# ---------------------------------------------------------------------------
# Fused LeNet kernel
# ---------------------------------------------------------------------------
def _lenet_kernel(x_ref, w1_ref, b1_ref, w2_ref, b2_ref,
                  wf1_ref, bf1_ref, wf2_ref, bf2_ref, wf3_ref, bf3_ref,
                  o_ref, p1_ref):
    # x_ref : (28, 28, BB, 1)      input block, layout (H, W, batch, Cin)
    # w1_ref: (3, 3, 1, 128)       conv1 weights (kh, kw, cin, cout_pad)
    # w2_ref: (3, 3, 128, 128)     conv2 weights (kh, kw, cin_pad, cout_pad)
    # wf1   : (25, 128, 128)       fc1 weights, index = h*5 + w, (cin, out)
    # wf2/3 : (128, 128)           fc2/fc3 padded weights
    # biases: (1, 128)             zero-padded
    # o_ref : (BB, 128)            padded logits (first 10 lanes valid)
    # p1_ref: (13, 13, BB, 128)    pooled/ReLU'd conv1 activation (VMEM scratch)
    bb = x_ref.shape[2]

    # ---- conv1 + bias + ReLU + 2x2 max-pool, fused one pooled row at a time
    def conv1_row(cr):
        # conv row `cr` (26 wide); 9 taps accumulate in registers; pool W
        # (26 -> 13) before returning -> (13, BB, 128).
        acc = jnp.zeros((26, bb, C_PAD), jnp.float32)
        for di in range(3):                       # fully unrolled taps
            for dj in range(3):
                xs = x_ref[cr + di, pl.ds(dj, 26), :, :]      # (26, BB, 1)
                acc = acc + xs * w1_ref[di, dj]               # bcast (1,128)
        r = acc.reshape(13, 2, bb, C_PAD)                     # leading split
        return jnp.maximum(r[:, 0], r[:, 1])

    def pool1_row(ph, carry):
        # relu(maxpool(conv)+b) == relu(maxpool(conv+b)): pool first (cheaper).
        row = jnp.maximum(conv1_row(2 * ph), conv1_row(2 * ph + 1))
        p1_ref[ph] = jnp.maximum(row + b1_ref[...], 0.0)      # one VMEM write
        return carry

    lax.fori_loop(0, 13, pool1_row, 0)

    # ---- conv2 (MXU) + bias + ReLU + 2x2 pool + fc1 partial sums, fused ----
    def conv2_row(cr):
        # conv2 output row `cr`; only the 10 columns the floor-mode pool uses
        # are computed.  One MXU dot per tap.  Returns (5, BB, 128), W-pooled.
        acc = jnp.zeros((10 * bb, C_PAD), jnp.float32)
        for di in range(3):                       # fully unrolled taps
            for dj in range(3):
                win = p1_ref[cr + di, pl.ds(dj, 10), :, :]    # (10, BB, 128)
                acc = acc + jnp.dot(win.reshape(10 * bb, C_PAD),
                                    w2_ref[di, dj],
                                    preferred_element_type=jnp.float32)
        r = acc.reshape(5, 2, bb, C_PAD)                      # pool over W
        return jnp.maximum(r[:, 0], r[:, 1])

    def pool2_fc1_row(ph, fc_acc):
        row = jnp.maximum(conv2_row(2 * ph), conv2_row(2 * ph + 1))
        p2row = jnp.maximum(row + b2_ref[...], 0.0)           # (5, BB, 128)
        for w in range(5):                                    # fc1 partials
            fc_acc = fc_acc + jnp.dot(p2row[w], wf1_ref[ph * 5 + w],
                                      preferred_element_type=jnp.float32)
        return fc_acc

    fc_acc = lax.fori_loop(0, 5, pool2_fc1_row,
                           jnp.zeros((bb, C_PAD), jnp.float32))

    # ---- fc1 bias/ReLU, fc2 (ReLU), fc3 -------------------------------------
    h1 = jnp.maximum(fc_acc + bf1_ref[...], 0.0)
    h2 = jnp.maximum(
        jnp.dot(h1, wf2_ref[...], preferred_element_type=jnp.float32)
        + bf2_ref[...], 0.0)
    o_ref[...] = (jnp.dot(h2, wf3_ref[...], preferred_element_type=jnp.float32)
                  + bf3_ref[...])


# ---------------------------------------------------------------------------
# One-time parameter re-layout / zero padding (outside the kernel)
# ---------------------------------------------------------------------------
def _pad_to(a, shape):
    return jnp.pad(a, [(0, t - s) for s, t in zip(a.shape, shape)])


def prepare_params(params):
    w1 = jnp.transpose(params["conv1_w"], (2, 3, 1, 0))           # (3,3,1,6)
    w1p = _pad_to(w1, (3, 3, 1, C_PAD))
    b1p = _pad_to(params["conv1_b"], (C_PAD,)).reshape(1, C_PAD)

    # conv2 as per-tap cin->cout matrices for the MXU.
    w2 = jnp.transpose(params["conv2_w"], (2, 3, 1, 0))           # (3,3,6,16)
    w2p = _pad_to(w2, (3, 3, C_PAD, C_PAD))
    b2p = _pad_to(params["conv2_b"], (C_PAD,)).reshape(1, C_PAD)

    # fc1 input feature k = c*25 + h*5 + w (PyTorch NCHW flatten order);
    # re-order once to the kernel's (h, w, c) layout and flatten (h, w) so the
    # kernel indexes one (128,128) matrix per pooled-conv2 pixel.
    wf1 = params["fc1_w"].reshape(16, 5, 5, 120).transpose(1, 2, 0, 3)
    wf1p = _pad_to(wf1, (5, 5, C_PAD, C_PAD)).reshape(25, C_PAD, C_PAD)
    bf1p = _pad_to(params["fc1_b"], (C_PAD,)).reshape(1, C_PAD)

    wf2p = _pad_to(params["fc2_w"], (C_PAD, C_PAD))
    bf2p = _pad_to(params["fc2_b"], (C_PAD,)).reshape(1, C_PAD)
    wf3p = _pad_to(params["fc3_w"], (C_PAD, C_PAD))
    bf3p = _pad_to(params["fc3_b"], (C_PAD,)).reshape(1, C_PAD)

    return (w1p, b1p, w2p, b2p, wf1p, bf1p, wf2p, bf2p, wf3p, bf3p)


# ---------------------------------------------------------------------------
# Forward wrapper: single fused pallas_call
# ---------------------------------------------------------------------------
def _const_spec(shape):
    zeros = (0,) * len(shape)
    # Constant index_map -> no pipelining benefit; single-buffer to save VMEM.
    return pl.BlockSpec(shape, lambda i: zeros, pipeline_mode=pl.Buffered(1))


@jax.jit
def lenet_forward(x, prepped):
    # x: (N, 1, 28, 28) NCHW, float32
    N = x.shape[0]
    assert x.shape[1:] == (1, 28, 28)
    n_pad = (-N) % BB                        # pad batch to a multiple of BB
    n_tot = N + n_pad
    xt = jnp.transpose(x[:, 0], (1, 2, 0))[..., None]     # (28, 28, N, 1)
    if n_pad:
        xt = jnp.pad(xt, ((0, 0), (0, 0), (0, n_pad), (0, 0)))

    in_specs = [pl.BlockSpec((28, 28, BB, 1), lambda i: (0, 0, i, 0))]
    in_specs += [_const_spec(p.shape) for p in prepped]

    out = pl.pallas_call(
        _lenet_kernel,
        out_shape=jax.ShapeDtypeStruct((n_tot, C_PAD), jnp.float32),
        grid_spec=pltpu.PrefetchScalarGridSpec(
            num_scalar_prefetch=0,
            grid=(n_tot // BB,),
            in_specs=in_specs,
            out_specs=pl.BlockSpec((BB, C_PAD), lambda i: (i, 0)),
            scratch_shapes=[
                pltpu.VMEM((13, 13, BB, C_PAD), jnp.float32),  # pooled conv1
            ]),
        compiler_params=pltpu.CompilerParams(
            dimension_semantics=("parallel",),   # batch blocks -> both TCs (v7x)
            vmem_limit_bytes=40 * 1024 * 1024),  # ~9.5 MB used; fits v7x 64 MiB
    )(xt, *prepped)
    return out[:N, :10]                      # strip batch pad + 128-lane pad


# ---------------------------------------------------------------------------
# Deterministic synthetic init (uniform +-1/sqrt(fan_in), PyTorch-style)
# ---------------------------------------------------------------------------
def init_params(key):
    ks = jax.random.split(key, 10)

    def u(k, shape, fan_in):
        bound = 1.0 / jnp.sqrt(jnp.float32(fan_in))
        return jax.random.uniform(k, shape, jnp.float32, -bound, bound)

    return {
        "conv1_w": u(ks[0], (6, 1, 3, 3), 1 * 3 * 3),
        "conv1_b": u(ks[1], (6,), 1 * 3 * 3),
        "conv2_w": u(ks[2], (16, 6, 3, 3), 6 * 3 * 3),
        "conv2_b": u(ks[3], (16,), 6 * 3 * 3),
        "fc1_w": u(ks[4], (16 * 5 * 5, 120), 16 * 5 * 5),   # stored (in, out)
        "fc1_b": u(ks[5], (120,), 16 * 5 * 5),
        "fc2_w": u(ks[6], (120, 84), 120),
        "fc2_b": u(ks[7], (84,), 120),
        "fc3_w": u(ks[8], (84, 10), 84),
        "fc3_b": u(ks[9], (10,), 84),
    }


if __name__ == "__main__":
    key = jax.random.PRNGKey(0)
    pk, xk = jax.random.split(key)
    params = init_params(pk)
    prepped = prepare_params(params)          # one-time weight re-layout/padding
    # LeNet's fc1 expects 16*5*5 = 400 features, which implies 28x28 input.
    x = jax.random.normal(xk, (2, 1, 28, 28), dtype=jnp.float32)
    out = lenet_forward(x, prepped)
    out = jax.block_until_ready(out)
    assert out.shape == (2, 10)
    print("KERNEL_OK")
</pallas_src>

<mosaic_0001>
module attributes {stable_mosaic.version = 11 : i64} {
  func.func @_lenet_kernel(%arg0: i32, %arg1: memref<28x28x8x1xf32, #tpu.memory_space<vmem>>, %arg2: memref<3x3x1x128xf32, #tpu.memory_space<vmem>>, %arg3: memref<1x128xf32, #tpu.memory_space<vmem>>, %arg4: memref<3x3x128x128xf32, #tpu.memory_space<vmem>>, %arg5: memref<1x128xf32, #tpu.memory_space<vmem>>, %arg6: memref<25x128x128xf32, #tpu.memory_space<vmem>>, %arg7: memref<1x128xf32, #tpu.memory_space<vmem>>, %arg8: memref<128x128xf32, #tpu.memory_space<vmem>>, %arg9: memref<1x128xf32, #tpu.memory_space<vmem>>, %arg10: memref<128x128xf32, #tpu.memory_space<vmem>>, %arg11: memref<1x128xf32, #tpu.memory_space<vmem>>, %arg12: memref<8x128xf32, #tpu.memory_space<vmem>>, %arg13: memref<13x13x8x128xf32, #tpu.memory_space<vmem>>) attributes {dimension_semantics = [#tpu.dimension_semantics<parallel>], iteration_bounds = array<i64: 1>, scalar_prefetch = 0 : i64, scratch_operands = 1 : i64, tpu.core_type = #tpu.core_type<tc>, window_params = [{transform_indices = @transform_0, window_bounds = array<i64: 28, 28, 8, 1>}, {pipeline_mode = #tpu.pipeline_mode<synchronous>, transform_indices = @transform_1, window_bounds = array<i64: 3, 3, 1, 128>}, {pipeline_mode = #tpu.pipeline_mode<synchronous>, transform_indices = @transform_2, window_bounds = array<i64: 1, 128>}, {pipeline_mode = #tpu.pipeline_mode<synchronous>, transform_indices = @transform_3, window_bounds = array<i64: 3, 3, 128, 128>}, {pipeline_mode = #tpu.pipeline_mode<synchronous>, transform_indices = @transform_4, window_bounds = array<i64: 1, 128>}, {pipeline_mode = #tpu.pipeline_mode<synchronous>, transform_indices = @transform_5, window_bounds = array<i64: 25, 128, 128>}, {pipeline_mode = #tpu.pipeline_mode<synchronous>, transform_indices = @transform_6, window_bounds = array<i64: 1, 128>}, {pipeline_mode = #tpu.pipeline_mode<synchronous>, transform_indices = @transform_7, window_bounds = array<i64: 128, 128>}, {pipeline_mode = #tpu.pipeline_mode<synchronous>, transform_indices = @transform_8, window_bounds = array<i64: 1, 128>}, {pipeline_mode = #tpu.pipeline_mode<synchronous>, transform_indices = @transform_9, window_bounds = array<i64: 128, 128>}, {pipeline_mode = #tpu.pipeline_mode<synchronous>, transform_indices = @transform_10, window_bounds = array<i64: 1, 128>}, {transform_indices = @transform_11, window_bounds = array<i64: 8, 128>}]} {
    %c0_i32 = arith.constant 0 : i32
    %c13_i32 = arith.constant 13 : i32
    %0 = arith.addi %c0_i32, %c13_i32 : i32
    %c1_i32 = arith.constant 1 : i32
    scf.for %arg14 = %c0_i32 to %0 step %c1_i32  : i32 {
      %c2_i32 = arith.constant 2 : i32
      %22 = arith.muli %c2_i32, %arg14 : i32
      %cst_19 = arith.constant 0.000000e+00 : f32
      %23 = vector.broadcast %cst_19 : f32 to vector<26x8x128xf32>
      %c0_i32_20 = arith.constant 0 : i32
      %24 = arith.addi %22, %c0_i32_20 : i32
      %25 = arith.index_cast %24 : i32 to index
      %c0_21 = arith.constant 0 : index
      %c0_22 = arith.constant 0 : index
      %c0_23 = arith.constant 0 : index
      %26 = vector.load %arg1[%25, %c0_21, %c0_22, %c0_23] : memref<28x28x8x1xf32, #tpu.memory_space<vmem>>, vector<1x26x8x1xf32>
      %27 = vector.shape_cast %26 : vector<1x26x8x1xf32> to vector<26x8x1xf32>
      %c0_24 = arith.constant 0 : index
      %c0_25 = arith.constant 0 : index
      %c0_26 = arith.constant 0 : index
      %c0_27 = arith.constant 0 : index
      %28 = vector.load %arg2[%c0_24, %c0_25, %c0_26, %c0_27] : memref<3x3x1x128xf32, #tpu.memory_space<vmem>>, vector<1x1x1x128xf32>
      %29 = vector.shape_cast %28 : vector<1x1x1x128xf32> to vector<1x128xf32>
      %30 = vector.shape_cast %29 : vector<1x128xf32> to vector<1x1x128xf32>
      %31 = vector.broadcast %27 : vector<26x8x1xf32> to vector<26x8x128xf32>
      %32 = vector.broadcast %30 : vector<1x1x128xf32> to vector<26x8x128xf32>
      %33 = arith.mulf %31, %32 : vector<26x8x128xf32>
      %34 = arith.addf %23, %33 : vector<26x8x128xf32>
      %c0_i32_28 = arith.constant 0 : i32
      %35 = arith.addi %22, %c0_i32_28 : i32
      %36 = arith.index_cast %35 : i32 to index
      %c1 = arith.constant 1 : index
      %c0_29 = arith.constant 0 : index
      %c0_30 = arith.constant 0 : index
      %37 = vector.load %arg1[%36, %c1, %c0_29, %c0_30] : memref<28x28x8x1xf32, #tpu.memory_space<vmem>>, vector<1x26x8x1xf32>
      %38 = vector.shape_cast %37 : vector<1x26x8x1xf32> to vector<26x8x1xf32>
      %c0_31 = arith.constant 0 : index
      %c1_32 = arith.constant 1 : index
      %c0_33 = arith.constant 0 : index
      %c0_34 = arith.constant 0 : index
      %39 = vector.load %arg2[%c0_31, %c1_32, %c0_33, %c0_34] : memref<3x3x1x128xf32, #tpu.memory_space<vmem>>, vector<1x1x1x128xf32>
      %40 = vector.shape_cast %39 : vector<1x1x1x128xf32> to vector<1x128xf32>
      %41 = vector.shape_cast %40 : vector<1x128xf32> to vector<1x1x128xf32>
      %42 = vector.broadcast %38 : vector<26x8x1xf32> to vector<26x8x128xf32>
      %43 = vector.broadcast %41 : vector<1x1x128xf32> to vector<26x8x128xf32>
      %44 = arith.mulf %42, %43 : vector<26x8x128xf32>
      %45 = arith.addf %34, %44 : vector<26x8x128xf32>
      %c0_i32_35 = arith.constant 0 : i32
      %46 = arith.addi %22, %c0_i32_35 : i32
      %47 = arith.index_cast %46 : i32 to index
      %c2 = arith.constant 2 : index
      %c0_36 = arith.constant 0 : index
      %c0_37 = arith.constant 0 : index
      %48 = vector.load %arg1[%47, %c2, %c0_36, %c0_37] : memref<28x28x8x1xf32, #tpu.memory_space<vmem>>, vector<1x26x8x1xf32>
      %49 = vector.shape_cast %48 : vector<1x26x8x1xf32> to vector<26x8x1xf32>
      %c0_38 = arith.constant 0 : index
      %c2_39 = arith.constant 2 : index
      %c0_40 = arith.constant 0 : index
      %c0_41 = arith.constant 0 : index
      %50 = vector.load %arg2[%c0_38, %c2_39, %c0_40, %c0_41] : memref<3x3x1x128xf32, #tpu.memory_space<vmem>>, vector<1x1x1x128xf32>
      %51 = vector.shape_cast %50 : vector<1x1x1x128xf32> to vector<1x128xf32>
      %52 = vector.shape_cast %51 : vector<1x128xf32> to vector<1x1x128xf32>
      %53 = vector.broadcast %49 : vector<26x8x1xf32> to vector<26x8x128xf32>
      %54 = vector.broadcast %52 : vector<1x1x128xf32> to vector<26x8x128xf32>
      %55 = arith.mulf %53, %54 : vector<26x8x128xf32>
      %56 = arith.addf %45, %55 : vector<26x8x128xf32>
      %c1_i32_42 = arith.constant 1 : i32
      %57 = arith.addi %22, %c1_i32_42 : i32
      %58 = arith.index_cast %57 : i32 to index
      %c0_43 = arith.constant 0 : index
      %c0_44 = arith.constant 0 : index
      %c0_45 = arith.constant 0 : index
      %59 = vector.load %arg1[%58, %c0_43, %c0_44, %c0_45] : memref<28x28x8x1xf32, #tpu.memory_space<vmem>>, vector<1x26x8x1xf32>
      %60 = vector.shape_cast %59 : vector<1x26x8x1xf32> to vector<26x8x1xf32>
      %c1_46 = arith.constant 1 : index
      %c0_47 = arith.constant 0 : index
      %c0_48 = arith.constant 0 : index
      %c0_49 = arith.constant 0 : index
      %61 = vector.load %arg2[%c1_46, %c0_47, %c0_48, %c0_49] : memref<3x3x1x128xf32, #tpu.memory_space<vmem>>, vector<1x1x1x128xf32>
      %62 = vector.shape_cast %61 : vector<1x1x1x128xf32> to vector<1x128xf32>
      %63 = vector.shape_cast %62 : vector<1x128xf32> to vector<1x1x128xf32>
      %64 = vector.broadcast %60 : vector<26x8x1xf32> to vector<26x8x128xf32>
      %65 = vector.broadcast %63 : vector<1x1x128xf32> to vector<26x8x128xf32>
      %66 = arith.mulf %64, %65 : vector<26x8x128xf32>
      %67 = arith.addf %56, %66 : vector<26x8x128xf32>
      %c1_i32_50 = arith.constant 1 : i32
      %68 = arith.addi %22, %c1_i32_50 : i32
      %69 = arith.index_cast %68 : i32 to index
      %c1_51 = arith.constant 1 : index
      %c0_52 = arith.constant 0 : index
      %c0_53 = arith.constant 0 : index
      %70 = vector.load %arg1[%69, %c1_51, %c0_52, %c0_53] : memref<28x28x8x1xf32, #tpu.memory_space<vmem>>, vector<1x26x8x1xf32>
      %71 = vector.shape_cast %70 : vector<1x26x8x1xf32> to vector<26x8x1xf32>
      %c1_54 = arith.constant 1 : index
      %c1_55 = arith.constant 1 : index
      %c0_56 = arith.constant 0 : index
      %c0_57 = arith.constant 0 : index
      %72 = vector.load %arg2[%c1_54, %c1_55, %c0_56, %c0_57] : memref<3x3x1x128xf32, #tpu.memory_space<vmem>>, vector<1x1x1x128xf32>
      %73 = vector.shape_cast %72 : vector<1x1x1x128xf32> to vector<1x128xf32>
      %74 = vector.shape_cast %73 : vector<1x128xf32> to vector<1x1x128xf32>
      %75 = vector.broadcast %71 : vector<26x8x1xf32> to vector<26x8x128xf32>
      %76 = vector.broadcast %74 : vector<1x1x128xf32> to vector<26x8x128xf32>
      %77 = arith.mulf %75, %76 : vector<26x8x128xf32>
      %78 = arith.addf %67, %77 : vector<26x8x128xf32>
      %c1_i32_58 = arith.constant 1 : i32
      %79 = arith.addi %22, %c1_i32_58 : i32
      %80 = arith.index_cast %79 : i32 to index
      %c2_59 = arith.constant 2 : index
      %c0_60 = arith.constant 0 : index
      %c0_61 = arith.constant 0 : index
      %81 = vector.load %arg1[%80, %c2_59, %c0_60, %c0_61] : memref<28x28x8x1xf32, #tpu.memory_space<vmem>>, vector<1x26x8x1xf32>
      %82 = vector.shape_cast %81 : vector<1x26x8x1xf32> to vector<26x8x1xf32>
      %c1_62 = arith.constant 1 : index
      %c2_63 = arith.constant 2 : index
      %c0_64 = arith.constant 0 : index
      %c0_65 = arith.constant 0 : index
      %83 = vector.load %arg2[%c1_62, %c2_63, %c0_64, %c0_65] : memref<3x3x1x128xf32, #tpu.memory_space<vmem>>, vector<1x1x1x128xf32>
      %84 = vector.shape_cast %83 : vector<1x1x1x128xf32> to vector<1x128xf32>
      %85 = vector.shape_cast %84 : vector<1x128xf32> to vector<1x1x128xf32>
      %86 = vector.broadcast %82 : vector<26x8x1xf32> to vector<26x8x128xf32>
      %87 = vector.broadcast %85 : vector<1x1x128xf32> to vector<26x8x128xf32>
      %88 = arith.mulf %86, %87 : vector<26x8x128xf32>
      %89 = arith.addf %78, %88 : vector<26x8x128xf32>
      %c2_i32_66 = arith.constant 2 : i32
      %90 = arith.addi %22, %c2_i32_66 : i32
      %91 = arith.index_cast %90 : i32 to index
      %c0_67 = arith.constant 0 : index
      %c0_68 = arith.constant 0 : index
      %c0_69 = arith.constant 0 : index
      %92 = vector.load %arg1[%91, %c0_67, %c0_68, %c0_69] : memref<28x28x8x1xf32, #tpu.memory_space<vmem>>, vector<1x26x8x1xf32>
      %93 = vector.shape_cast %92 : vector<1x26x8x1xf32> to vector<26x8x1xf32>
      %c2_70 = arith.constant 2 : index
      %c0_71 = arith.constant 0 : index
      %c0_72 = arith.constant 0 : index
      %c0_73 = arith.constant 0 : index
      %94 = vector.load %arg2[%c2_70, %c0_71, %c0_72, %c0_73] : memref<3x3x1x128xf32, #tpu.memory_space<vmem>>, vector<1x1x1x128xf32>
      %95 = vector.shape_cast %94 : vector<1x1x1x128xf32> to vector<1x128xf32>
      %96 = vector.shape_cast %95 : vector<1x128xf32> to vector<1x1x128xf32>
      %97 = vector.broadcast %93 : vector<26x8x1xf32> to vector<26x8x128xf32>
      %98 = vector.broadcast %96 : vector<1x1x128xf32> to vector<26x8x128xf32>
      %99 = arith.mulf %97, %98 : vector<26x8x128xf32>
      %100 = arith.addf %89, %99 : vector<26x8x128xf32>
      %c2_i32_74 = arith.constant 2 : i32
      %101 = arith.addi %22, %c2_i32_74 : i32
      %102 = arith.index_cast %101 : i32 to index
      %c1_75 = arith.constant 1 : index
      %c0_76 = arith.constant 0 : index
      %c0_77 = arith.constant 0 : index
      %103 = vector.load %arg1[%102, %c1_75, %c0_76, %c0_77] : memref<28x28x8x1xf32, #tpu.memory_space<vmem>>, vector<1x26x8x1xf32>
      %104 = vector.shape_cast %103 : vector<1x26x8x1xf32> to vector<26x8x1xf32>
      %c2_78 = arith.constant 2 : index
      %c1_79 = arith.constant 1 : index
      %c0_80 = arith.constant 0 : index
      %c0_81 = arith.constant 0 : index
      %105 = vector.load %arg2[%c2_78, %c1_79, %c0_80, %c0_81] : memref<3x3x1x128xf32, #tpu.memory_space<vmem>>, vector<1x1x1x128xf32>
      %106 = vector.shape_cast %105 : vector<1x1x1x128xf32> to vector<1x128xf32>
      %107 = vector.shape_cast %106 : vector<1x128xf32> to vector<1x1x128xf32>
      %108 = vector.broadcast %104 : vector<26x8x1xf32> to vector<26x8x128xf32>
      %109 = vector.broadcast %107 : vector<1x1x128xf32> to vector<26x8x128xf32>
      %110 = arith.mulf %108, %109 : vector<26x8x128xf32>
      %111 = arith.addf %100, %110 : vector<26x8x128xf32>
      %c2_i32_82 = arith.constant 2 : i32
      %112 = arith.addi %22, %c2_i32_82 : i32
      %113 = arith.index_cast %112 : i32 to index
      %c2_83 = arith.constant 2 : index
      %c0_84 = arith.constant 0 : index
      %c0_85 = arith.constant 0 : index
      %114 = vector.load %arg1[%113, %c2_83, %c0_84, %c0_85] : memref<28x28x8x1xf32, #tpu.memory_space<vmem>>, vector<1x26x8x1xf32>
      %115 = vector.shape_cast %114 : vector<1x26x8x1xf32> to vector<26x8x1xf32>
      %c2_86 = arith.constant 2 : index
      %c2_87 = arith.constant 2 : index
      %c0_88 = arith.constant 0 : index
      %c0_89 = arith.constant 0 : index
      %116 = vector.load %arg2[%c2_86, %c2_87, %c0_88, %c0_89] : memref<3x3x1x128xf32, #tpu.memory_space<vmem>>, vector<1x1x1x128xf32>
      %117 = vector.shape_cast %116 : vector<1x1x1x128xf32> to vector<1x128xf32>
      %118 = vector.shape_cast %117 : vector<1x128xf32> to vector<1x1x128xf32>
      %119 = vector.broadcast %115 : vector<26x8x1xf32> to vector<26x8x128xf32>
      %120 = vector.broadcast %118 : vector<1x1x128xf32> to vector<26x8x128xf32>
      %121 = arith.mulf %119, %120 : vector<26x8x128xf32>
      %122 = arith.addf %111, %121 : vector<26x8x128xf32>
      %123 = vector.shape_cast %122 : vector<26x8x128xf32> to vector<13x2x8x128xf32>
      %124 = vector.extract_strided_slice %123 {offsets = [0, 0, 0, 0], sizes = [13, 1, 8, 128], strides = [1, 1, 1, 1]} : vector<13x2x8x128xf32> to vector<13x1x8x128xf32>
      %125 = vector.shape_cast %124 : vector<13x1x8x128xf32> to vector<13x8x128xf32>
      %126 = vector.extract_strided_slice %123 {offsets = [0, 1, 0, 0], sizes = [13, 1, 8, 128], strides = [1, 1, 1, 1]} : vector<13x2x8x128xf32> to vector<13x1x8x128xf32>
      %127 = vector.shape_cast %126 : vector<13x1x8x128xf32> to vector<13x8x128xf32>
      %128 = arith.maximumf %125, %127 : vector<13x8x128xf32>
      %c2_i32_90 = arith.constant 2 : i32
      %129 = arith.muli %c2_i32_90, %arg14 : i32
      %c1_i32_91 = arith.constant 1 : i32
      %130 = arith.addi %129, %c1_i32_91 : i32
      %cst_92 = arith.constant 0.000000e+00 : f32
      %131 = vector.broadcast %cst_92 : f32 to vector<26x8x128xf32>
      %c0_i32_93 = arith.constant 0 : i32
      %132 = arith.addi %130, %c0_i32_93 : i32
      %133 = arith.index_cast %132 : i32 to index
      %c0_94 = arith.constant 0 : index
      %c0_95 = arith.constant 0 : index
      %c0_96 = arith.constant 0 : index
      %134 = vector.load %arg1[%133, %c0_94, %c0_95, %c0_96] : memref<28x28x8x1xf32, #tpu.memory_space<vmem>>, vector<1x26x8x1xf32>
      %135 = vector.shape_cast %134 : vector<1x26x8x1xf32> to vector<26x8x1xf32>
      %c0_97 = arith.constant 0 : index
      %c0_98 = arith.constant 0 : index
      %c0_99 = arith.constant 0 : index
      %c0_100 = arith.constant 0 : index
      %136 = vector.load %arg2[%c0_97, %c0_98, %c0_99, %c0_100] : memref<3x3x1x128xf32, #tpu.memory_space<vmem>>, vector<1x1x1x128xf32>
      %137 = vector.shape_cast %136 : vector<1x1x1x128xf32> to vector<1x128xf32>
      %138 = vector.shape_cast %137 : vector<1x128xf32> to vector<1x1x128xf32>
      %139 = vector.broadcast %135 : vector<26x8x1xf32> to vector<26x8x128xf32>
      %140 = vector.broadcast %138 : vector<1x1x128xf32> to vector<26x8x128xf32>
      %141 = arith.mulf %139, %140 : vector<26x8x128xf32>
      %142 = arith.addf %131, %141 : vector<26x8x128xf32>
      %c0_i32_101 = arith.constant 0 : i32
      %143 = arith.addi %130, %c0_i32_101 : i32
      %144 = arith.index_cast %143 : i32 to index
      %c1_102 = arith.constant 1 : index
      %c0_103 = arith.constant 0 : index
      %c0_104 = arith.constant 0 : index
      %145 = vector.load %arg1[%144, %c1_102, %c0_103, %c0_104] : memref<28x28x8x1xf32, #tpu.memory_space<vmem>>, vector<1x26x8x1xf32>
      %146 = vector.shape_cast %145 : vector<1x26x8x1xf32> to vector<26x8x1xf32>
      %c0_105 = arith.constant 0 : index
      %c1_106 = arith.constant 1 : index
      %c0_107 = arith.constant 0 : index
      %c0_108 = arith.constant 0 : index
      %147 = vector.load %arg2[%c0_105, %c1_106, %c0_107, %c0_108] : memref<3x3x1x128xf32, #tpu.memory_space<vmem>>, vector<1x1x1x128xf32>
      %148 = vector.shape_cast %147 : vector<1x1x1x128xf32> to vector<1x128xf32>
      %149 = vector.shape_cast %148 : vector<1x128xf32> to vector<1x1x128xf32>
      %150 = vector.broadcast %146 : vector<26x8x1xf32> to vector<26x8x128xf32>
      %151 = vector.broadcast %149 : vector<1x1x128xf32> to vector<26x8x128xf32>
      %152 = arith.mulf %150, %151 : vector<26x8x128xf32>
      %153 = arith.addf %142, %152 : vector<26x8x128xf32>
      %c0_i32_109 = arith.constant 0 : i32
      %154 = arith.addi %130, %c0_i32_109 : i32
      %155 = arith.index_cast %154 : i32 to index
      %c2_110 = arith.constant 2 : index
      %c0_111 = arith.constant 0 : index
      %c0_112 = arith.constant 0 : index
      %156 = vector.load %arg1[%155, %c2_110, %c0_111, %c0_112] : memref<28x28x8x1xf32, #tpu.memory_space<vmem>>, vector<1x26x8x1xf32>
      %157 = vector.shape_cast %156 : vector<1x26x8x1xf32> to vector<26x8x1xf32>
      %c0_113 = arith.constant 0 : index
      %c2_114 = arith.constant 2 : index
      %c0_115 = arith.constant 0 : index
      %c0_116 = arith.constant 0 : index
      %158 = vector.load %arg2[%c0_113, %c2_114, %c0_115, %c0_116] : memref<3x3x1x128xf32, #tpu.memory_space<vmem>>, vector<1x1x1x128xf32>
      %159 = vector.shape_cast %158 : vector<1x1x1x128xf32> to vector<1x128xf32>
      %160 = vector.shape_cast %159 : vector<1x128xf32> to vector<1x1x128xf32>
      %161 = vector.broadcast %157 : vector<26x8x1xf32> to vector<26x8x128xf32>
      %162 = vector.broadcast %160 : vector<1x1x128xf32> to vector<26x8x128xf32>
      %163 = arith.mulf %161, %162 : vector<26x8x128xf32>
      %164 = arith.addf %153, %163 : vector<26x8x128xf32>
      %c1_i32_117 = arith.constant 1 : i32
      %165 = arith.addi %130, %c1_i32_117 : i32
      %166 = arith.index_cast %165 : i32 to index
      %c0_118 = arith.constant 0 : index
      %c0_119 = arith.constant 0 : index
      %c0_120 = arith.constant 0 : index
      %167 = vector.load %arg1[%166, %c0_118, %c0_119, %c0_120] : memref<28x28x8x1xf32, #tpu.memory_space<vmem>>, vector<1x26x8x1xf32>
      %168 = vector.shape_cast %167 : vector<1x26x8x1xf32> to vector<26x8x1xf32>
      %c1_121 = arith.constant 1 : index
      %c0_122 = arith.constant 0 : index
      %c0_123 = arith.constant 0 : index
      %c0_124 = arith.constant 0 : index
      %169 = vector.load %arg2[%c1_121, %c0_122, %c0_123, %c0_124] : memref<3x3x1x128xf32, #tpu.memory_space<vmem>>, vector<1x1x1x128xf32>
      %170 = vector.shape_cast %169 : vector<1x1x1x128xf32> to vector<1x128xf32>
      %171 = vector.shape_cast %170 : vector<1x128xf32> to vector<1x1x128xf32>
      %172 = vector.broadcast %168 : vector<26x8x1xf32> to vector<26x8x128xf32>
      %173 = vector.broadcast %171 : vector<1x1x128xf32> to vector<26x8x128xf32>
      %174 = arith.mulf %172, %173 : vector<26x8x128xf32>
      %175 = arith.addf %164, %174 : vector<26x8x128xf32>
      %c1_i32_125 = arith.constant 1 : i32
      %176 = arith.addi %130, %c1_i32_125 : i32
      %177 = arith.index_cast %176 : i32 to index
      %c1_126 = arith.constant 1 : index
      %c0_127 = arith.constant 0 : index
      %c0_128 = arith.constant 0 : index
      %178 = vector.load %arg1[%177, %c1_126, %c0_127, %c0_128] : memref<28x28x8x1xf32, #tpu.memory_space<vmem>>, vector<1x26x8x1xf32>
      %179 = vector.shape_cast %178 : vector<1x26x8x1xf32> to vector<26x8x1xf32>
      %c1_129 = arith.constant 1 : index
      %c1_130 = arith.constant 1 : index
      %c0_131 = arith.constant 0 : index
      %c0_132 = arith.constant 0 : index
      %180 = vector.load %arg2[%c1_129, %c1_130, %c0_131, %c0_132] : memref<3x3x1x128xf32, #tpu.memory_space<vmem>>, vector<1x1x1x128xf32>
      %181 = vector.shape_cast %180 : vector<1x1x1x128xf32> to vector<1x128xf32>
      %182 = vector.shape_cast %181 : vector<1x128xf32> to vector<1x1x128xf32>
      %183 = vector.broadcast %179 : vector<26x8x1xf32> to vector<26x8x128xf32>
      %184 = vector.broadcast %182 : vector<1x1x128xf32> to vector<26x8x128xf32>
      %185 = arith.mulf %183, %184 : vector<26x8x128xf32>
      %186 = arith.addf %175, %185 : vector<26x8x128xf32>
      %c1_i32_133 = arith.constant 1 : i32
      %187 = arith.addi %130, %c1_i32_133 : i32
      %188 = arith.index_cast %187 : i32 to index
      %c2_134 = arith.constant 2 : index
      %c0_135 = arith.constant 0 : index
      %c0_136 = arith.constant 0 : index
      %189 = vector.load %arg1[%188, %c2_134, %c0_135, %c0_136] : memref<28x28x8x1xf32, #tpu.memory_space<vmem>>, vector<1x26x8x1xf32>
      %190 = vector.shape_cast %189 : vector<1x26x8x1xf32> to vector<26x8x1xf32>
      %c1_137 = arith.constant 1 : index
      %c2_138 = arith.constant 2 : index
      %c0_139 = arith.constant 0 : index
      %c0_140 = arith.constant 0 : index
      %191 = vector.load %arg2[%c1_137, %c2_138, %c0_139, %c0_140] : memref<3x3x1x128xf32, #tpu.memory_space<vmem>>, vector<1x1x1x128xf32>
      %192 = vector.shape_cast %191 : vector<1x1x1x128xf32> to vector<1x128xf32>
      %193 = vector.shape_cast %192 : vector<1x128xf32> to vector<1x1x128xf32>
      %194 = vector.broadcast %190 : vector<26x8x1xf32> to vector<26x8x128xf32>
      %195 = vector.broadcast %193 : vector<1x1x128xf32> to vector<26x8x128xf32>
      %196 = arith.mulf %194, %195 : vector<26x8x128xf32>
      %197 = arith.addf %186, %196 : vector<26x8x128xf32>
      %c2_i32_141 = arith.constant 2 : i32
      %198 = arith.addi %130, %c2_i32_141 : i32
      %199 = arith.index_cast %198 : i32 to index
      %c0_142 = arith.constant 0 : index
      %c0_143 = arith.constant 0 : index
      %c0_144 = arith.constant 0 : index
      %200 = vector.load %arg1[%199, %c0_142, %c0_143, %c0_144] : memref<28x28x8x1xf32, #tpu.memory_space<vmem>>, vector<1x26x8x1xf32>
      %201 = vector.shape_cast %200 : vector<1x26x8x1xf32> to vector<26x8x1xf32>
      %c2_145 = arith.constant 2 : index
      %c0_146 = arith.constant 0 : index
      %c0_147 = arith.constant 0 : index
      %c0_148 = arith.constant 0 : index
      %202 = vector.load %arg2[%c2_145, %c0_146, %c0_147, %c0_148] : memref<3x3x1x128xf32, #tpu.memory_space<vmem>>, vector<1x1x1x128xf32>
      %203 = vector.shape_cast %202 : vector<1x1x1x128xf32> to vector<1x128xf32>
      %204 = vector.shape_cast %203 : vector<1x128xf32> to vector<1x1x128xf32>
      %205 = vector.broadcast %201 : vector<26x8x1xf32> to vector<26x8x128xf32>
      %206 = vector.broadcast %204 : vector<1x1x128xf32> to vector<26x8x128xf32>
      %207 = arith.mulf %205, %206 : vector<26x8x128xf32>
      %208 = arith.addf %197, %207 : vector<26x8x128xf32>
      %c2_i32_149 = arith.constant 2 : i32
      %209 = arith.addi %130, %c2_i32_149 : i32
      %210 = arith.index_cast %209 : i32 to index
      %c1_150 = arith.constant 1 : index
      %c0_151 = arith.constant 0 : index
      %c0_152 = arith.constant 0 : index
      %211 = vector.load %arg1[%210, %c1_150, %c0_151, %c0_152] : memref<28x28x8x1xf32, #tpu.memory_space<vmem>>, vector<1x26x8x1xf32>
      %212 = vector.shape_cast %211 : vector<1x26x8x1xf32> to vector<26x8x1xf32>
      %c2_153 = arith.constant 2 : index
      %c1_154 = arith.constant 1 : index
      %c0_155 = arith.constant 0 : index
      %c0_156 = arith.constant 0 : index
      %213 = vector.load %arg2[%c2_153, %c1_154, %c0_155, %c0_156] : memref<3x3x1x128xf32, #tpu.memory_space<vmem>>, vector<1x1x1x128xf32>
      %214 = vector.shape_cast %213 : vector<1x1x1x128xf32> to vector<1x128xf32>
      %215 = vector.shape_cast %214 : vector<1x128xf32> to vector<1x1x128xf32>
      %216 = vector.broadcast %212 : vector<26x8x1xf32> to vector<26x8x128xf32>
      %217 = vector.broadcast %215 : vector<1x1x128xf32> to vector<26x8x128xf32>
      %218 = arith.mulf %216, %217 : vector<26x8x128xf32>
      %219 = arith.addf %208, %218 : vector<26x8x128xf32>
      %c2_i32_157 = arith.constant 2 : i32
      %220 = arith.addi %130, %c2_i32_157 : i32
      %221 = arith.index_cast %220 : i32 to index
      %c2_158 = arith.constant 2 : index
      %c0_159 = arith.constant 0 : index
      %c0_160 = arith.constant 0 : index
      %222 = vector.load %arg1[%221, %c2_158, %c0_159, %c0_160] : memref<28x28x8x1xf32, #tpu.memory_space<vmem>>, vector<1x26x8x1xf32>
      %223 = vector.shape_cast %222 : vector<1x26x8x1xf32> to vector<26x8x1xf32>
      %c2_161 = arith.constant 2 : index
      %c2_162 = arith.constant 2 : index
      %c0_163 = arith.constant 0 : index
      %c0_164 = arith.constant 0 : index
      %224 = vector.load %arg2[%c2_161, %c2_162, %c0_163, %c0_164] : memref<3x3x1x128xf32, #tpu.memory_space<vmem>>, vector<1x1x1x128xf32>
      %225 = vector.shape_cast %224 : vector<1x1x1x128xf32> to vector<1x128xf32>
      %226 = vector.shape_cast %225 : vector<1x128xf32> to vector<1x1x128xf32>
      %227 = vector.broadcast %223 : vector<26x8x1xf32> to vector<26x8x128xf32>
      %228 = vector.broadcast %226 : vector<1x1x128xf32> to vector<26x8x128xf32>
      %229 = arith.mulf %227, %228 : vector<26x8x128xf32>
      %230 = arith.addf %219, %229 : vector<26x8x128xf32>
      %231 = vector.shape_cast %230 : vector<26x8x128xf32> to vector<13x2x8x128xf32>
      %232 = vector.extract_strided_slice %231 {offsets = [0, 0, 0, 0], sizes = [13, 1, 8, 128], strides = [1, 1, 1, 1]} : vector<13x2x8x128xf32> to vector<13x1x8x128xf32>
      %233 = vector.shape_cast %232 : vector<13x1x8x128xf32> to vector<13x8x128xf32>
      %234 = vector.extract_strided_slice %231 {offsets = [0, 1, 0, 0], sizes = [13, 1, 8, 128], strides = [1, 1, 1, 1]} : vector<13x2x8x128xf32> to vector<13x1x8x128xf32>
      %235 = vector.shape_cast %234 : vector<13x1x8x128xf32> to vector<13x8x128xf32>
      %236 = arith.maximumf %233, %235 : vector<13x8x128xf32>
      %237 = arith.maximumf %128, %236 : vector<13x8x128xf32>
      %c0_165 = arith.constant 0 : index
      %c0_166 = arith.constant 0 : index
      %238 = vector.load %arg3[%c0_165, %c0_166] : memref<1x128xf32, #tpu.memory_space<vmem>>, vector<1x128xf32>
      %239 = vector.shape_cast %238 : vector<1x128xf32> to vector<1x1x128xf32>
      %240 = vector.broadcast %239 : vector<1x1x128xf32> to vector<13x8x128xf32>
      %241 = arith.addf %237, %240 : vector<13x8x128xf32>
      %cst_167 = arith.constant 0.000000e+00 : f32
      %242 = vector.broadcast %cst_167 : f32 to vector<13x8x128xf32>
      %243 = arith.maximumf %241, %242 : vector<13x8x128xf32>
      %244 = arith.index_cast %arg14 : i32 to index
      %c0_168 = arith.constant 0 : index
      %c0_169 = arith.constant 0 : index
      %c0_170 = arith.constant 0 : index
      %245 = vector.load %arg13[%244, %c0_168, %c0_169, %c0_170] : memref<13x13x8x128xf32, #tpu.memory_space<vmem>>, vector<1x13x8x128xf32>
      %246 = vector.shape_cast %245 : vector<1x13x8x128xf32> to vector<13x8x128xf32>
      %247 = vector.shape_cast %243 : vector<13x8x128xf32> to vector<1x13x8x128xf32>
      tpu.vector_store %arg13[%244, %c0_168, %c0_169, %c0_170], %247 {strides = array<i32>} : memref<13x13x8x128xf32, #tpu.memory_space<vmem>>, vector<1x13x8x128xf32>,
    }
    %c13_i32_0 = arith.constant 13 : i32
    %cst = arith.constant 0.000000e+00 : f32
    %1 = vector.broadcast %cst : f32 to vector<8x128xf32>
    %c0_i32_1 = arith.constant 0 : i32
    %c5_i32 = arith.constant 5 : i32
    %2 = arith.addi %c0_i32_1, %c5_i32 : i32
    %c1_i32_2 = arith.constant 1 : i32
    %3 = scf.for %arg14 = %c0_i32_1 to %2 step %c1_i32_2 iter_args(%arg15 = %1) -> (vector<8x128xf32>)  : i32 {
      %c2_i32 = arith.constant 2 : i32
      %22 = arith.muli %c2_i32, %arg14 : i32
      %cst_19 = arith.constant 0.000000e+00 : f32
      %23 = vector.broadcast %cst_19 : f32 to vector<80x128xf32>
      %c0_i32_20 = arith.constant 0 : i32
      %24 = arith.addi %22, %c0_i32_20 : i32
      %25 = arith.index_cast %24 : i32 to index
      %c0_21 = arith.constant 0 : index
      %c0_22 = arith.constant 0 : index
      %c0_23 = arith.constant 0 : index
      %26 = vector.load %arg13[%25, %c0_21, %c0_22, %c0_23] : memref<13x13x8x128xf32, #tpu.memory_space<vmem>>, vector<1x10x8x128xf32>
      %27 = vector.shape_cast %26 : vector<1x10x8x128xf32> to vector<10x8x128xf32>
      %28 = vector.shape_cast %27 : vector<10x8x128xf32> to vector<80x128xf32>
      %c0_24 = arith.constant 0 : index
      %c0_25 = arith.constant 0 : index
      %c0_26 = arith.constant 0 : index
      %c0_27 = arith.constant 0 : index
      %29 = vector.load %arg4[%c0_24, %c0_25, %c0_26, %c0_27] : memref<3x3x128x128xf32, #tpu.memory_space<vmem>>, vector<1x1x128x128xf32>
      %30 = vector.shape_cast %29 : vector<1x1x128x128xf32> to vector<128x128xf32>
      %cst_28 = arith.constant dense<0.000000e+00> : vector<80x128xf32>
      %31 = tpu.matmul %28, %30, %cst_28 {dimension_numbers = #tpu.dot_dimension_numbers<[1], [0], [0], [1], [0, 0, 1, 1], [], []>} : vector<80x128xf32>, vector<128x128xf32>, vector<80x128xf32> -> vector<80x128xf32>
      %32 = arith.addf %23, %31 : vector<80x128xf32>
      %c0_i32_29 = arith.constant 0 : i32
      %33 = arith.addi %22, %c0_i32_29 : i32
      %34 = arith.index_cast %33 : i32 to index
      %c1 = arith.constant 1 : index
      %c0_30 = arith.constant 0 : index
      %c0_31 = arith.constant 0 : index
      %35 = vector.load %arg13[%34, %c1, %c0_30, %c0_31] : memref<13x13x8x128xf32, #tpu.memory_space<vmem>>, vector<1x10x8x128xf32>
      %36 = vector.shape_cast %35 : vector<1x10x8x128xf32> to vector<10x8x128xf32>
      %37 = vector.shape_cast %36 : vector<10x8x128xf32> to vector<80x128xf32>
      %c0_32 = arith.constant 0 : index
      %c1_33 = arith.constant 1 : index
      %c0_34 = arith.constant 0 : index
      %c0_35 = arith.constant 0 : index
      %38 = vector.load %arg4[%c0_32, %c1_33, %c0_34, %c0_35] : memref<3x3x128x128xf32, #tpu.memory_space<vmem>>, vector<1x1x128x128xf32>
      %39 = vector.shape_cast %38 : vector<1x1x128x128xf32> to vector<128x128xf32>
      %cst_36 = arith.constant dense<0.000000e+00> : vector<80x128xf32>
      %40 = tpu.matmul %37, %39, %cst_36 {dimension_numbers = #tpu.dot_dimension_numbers<[1], [0], [0], [1], [0, 0, 1, 1], [], []>} : vector<80x128xf32>, vector<128x128xf32>, vector<80x128xf32> -> vector<80x128xf32>
      %41 = arith.addf %32, %40 : vector<80x128xf32>
      %c0_i32_37 = arith.constant 0 : i32
      %42 = arith.addi %22, %c0_i32_37 : i32
      %43 = arith.index_cast %42 : i32 to index
      %c2 = arith.constant 2 : index
      %c0_38 = arith.constant 0 : index
      %c0_39 = arith.constant 0 : index
      %44 = vector.load %arg13[%43, %c2, %c0_38, %c0_39] : memref<13x13x8x128xf32, #tpu.memory_space<vmem>>, vector<1x10x8x128xf32>
      %45 = vector.shape_cast %44 : vector<1x10x8x128xf32> to vector<10x8x128xf32>
      %46 = vector.shape_cast %45 : vector<10x8x128xf32> to vector<80x128xf32>
      %c0_40 = arith.constant 0 : index
      %c2_41 = arith.constant 2 : index
      %c0_42 = arith.constant 0 : index
      %c0_43 = arith.constant 0 : index
      %47 = vector.load %arg4[%c0_40, %c2_41, %c0_42, %c0_43] : memref<3x3x128x128xf32, #tpu.memory_space<vmem>>, vector<1x1x128x128xf32>
      %48 = vector.shape_cast %47 : vector<1x1x128x128xf32> to vector<128x128xf32>
      %cst_44 = arith.constant dense<0.000000e+00> : vector<80x128xf32>
      %49 = tpu.matmul %46, %48, %cst_44 {dimension_numbers = #tpu.dot_dimension_numbers<[1], [0], [0], [1], [0, 0, 1, 1], [], []>} : vector<80x128xf32>, vector<128x128xf32>, vector<80x128xf32> -> vector<80x128xf32>
      %50 = arith.addf %41, %49 : vector<80x128xf32>
      %c1_i32_45 = arith.constant 1 : i32
      %51 = arith.addi %22, %c1_i32_45 : i32
      %52 = arith.index_cast %51 : i32 to index
      %c0_46 = arith.constant 0 : index
      %c0_47 = arith.constant 0 : index
      %c0_48 = arith.constant 0 : index
      %53 = vector.load %arg13[%52, %c0_46, %c0_47, %c0_48] : memref<13x13x8x128xf32, #tpu.memory_space<vmem>>, vector<1x10x8x128xf32>
      %54 = vector.shape_cast %53 : vector<1x10x8x128xf32> to vector<10x8x128xf32>
      %55 = vector.shape_cast %54 : vector<10x8x128xf32> to vector<80x128xf32>
      %c1_49 = arith.constant 1 : index
      %c0_50 = arith.constant 0 : index
      %c0_51 = arith.constant 0 : index
      %c0_52 = arith.constant 0 : index
      %56 = vector.load %arg4[%c1_49, %c0_50, %c0_51, %c0_52] : memref<3x3x128x128xf32, #tpu.memory_space<vmem>>, vector<1x1x128x128xf32>
      %57 = vector.shape_cast %56 : vector<1x1x128x128xf32> to vector<128x128xf32>
      %cst_53 = arith.constant dense<0.000000e+00> : vector<80x128xf32>
      %58 = tpu.matmul %55, %57, %cst_53 {dimension_numbers = #tpu.dot_dimension_numbers<[1], [0], [0], [1], [0, 0, 1, 1], [], []>} : vector<80x128xf32>, vector<128x128xf32>, vector<80x128xf32> -> vector<80x128xf32>
      %59 = arith.addf %50, %58 : vector<80x128xf32>
      %c1_i32_54 = arith.constant 1 : i32
      %60 = arith.addi %22, %c1_i32_54 : i32
      %61 = arith.index_cast %60 : i32 to index
      %c1_55 = arith.constant 1 : index
      %c0_56 = arith.constant 0 : index
      %c0_57 = arith.constant 0 : index
      %62 = vector.load %arg13[%61, %c1_55, %c0_56, %c0_57] : memref<13x13x8x128xf32, #tpu.memory_space<vmem>>, vector<1x10x8x128xf32>
      %63 = vector.shape_cast %62 : vector<1x10x8x128xf32> to vector<10x8x128xf32>
      %64 = vector.shape_cast %63 : vector<10x8x128xf32> to vector<80x128xf32>
      %c1_58 = arith.constant 1 : index
      %c1_59 = arith.constant 1 : index
      %c0_60 = arith.constant 0 : index
      %c0_61 = arith.constant 0 : index
      %65 = vector.load %arg4[%c1_58, %c1_59, %c0_60, %c0_61] : memref<3x3x128x128xf32, #tpu.memory_space<vmem>>, vector<1x1x128x128xf32>
      %66 = vector.shape_cast %65 : vector<1x1x128x128xf32> to vector<128x128xf32>
      %cst_62 = arith.constant dense<0.000000e+00> : vector<80x128xf32>
      %67 = tpu.matmul %64, %66, %cst_62 {dimension_numbers = #tpu.dot_dimension_numbers<[1], [0], [0], [1], [0, 0, 1, 1], [], []>} : vector<80x128xf32>, vector<128x128xf32>, vector<80x128xf32> -> vector<80x128xf32>
      %68 = arith.addf %59, %67 : vector<80x128xf32>
      %c1_i32_63 = arith.constant 1 : i32
      %69 = arith.addi %22, %c1_i32_63 : i32
      %70 = arith.index_cast %69 : i32 to index
      %c2_64 = arith.constant 2 : index
      %c0_65 = arith.constant 0 : index
      %c0_66 = arith.constant 0 : index
      %71 = vector.load %arg13[%70, %c2_64, %c0_65, %c0_66] : memref<13x13x8x128xf32, #tpu.memory_space<vmem>>, vector<1x10x8x128xf32>
      %72 = vector.shape_cast %71 : vector<1x10x8x128xf32> to vector<10x8x128xf32>
      %73 = vector.shape_cast %72 : vector<10x8x128xf32> to vector<80x128xf32>
      %c1_67 = arith.constant 1 : index
      %c2_68 = arith.constant 2 : index
      %c0_69 = arith.constant 0 : index
      %c0_70 = arith.constant 0 : index
      %74 = vector.load %arg4[%c1_67, %c2_68, %c0_69, %c0_70] : memref<3x3x128x128xf32, #tpu.memory_space<vmem>>, vector<1x1x128x128xf32>
      %75 = vector.shape_cast %74 : vector<1x1x128x128xf32> to vector<128x128xf32>
      %cst_71 = arith.constant dense<0.000000e+00> : vector<80x128xf32>
      %76 = tpu.matmul %73, %75, %cst_71 {dimension_numbers = #tpu.dot_dimension_numbers<[1], [0], [0], [1], [0, 0, 1, 1], [], []>} : vector<80x128xf32>, vector<128x128xf32>, vector<80x128xf32> -> vector<80x128xf32>
      %77 = arith.addf %68, %76 : vector<80x128xf32>
      %c2_i32_72 = arith.constant 2 : i32
      %78 = arith.addi %22, %c2_i32_72 : i32
      %79 = arith.index_cast %78 : i32 to index
      %c0_73 = arith.constant 0 : index
      %c0_74 = arith.constant 0 : index
      %c0_75 = arith.constant 0 : index
      %80 = vector.load %arg13[%79, %c0_73, %c0_74, %c0_75] : memref<13x13x8x128xf32, #tpu.memory_space<vmem>>, vector<1x10x8x128xf32>
      %81 = vector.shape_cast %80 : vector<1x10x8x128xf32> to vector<10x8x128xf32>
      %82 = vector.shape_cast %81 : vector<10x8x128xf32> to vector<80x128xf32>
      %c2_76 = arith.constant 2 : index
      %c0_77 = arith.constant 0 : index
      %c0_78 = arith.constant 0 : index
      %c0_79 = arith.constant 0 : index
      %83 = vector.load %arg4[%c2_76, %c0_77, %c0_78, %c0_79] : memref<3x3x128x128xf32, #tpu.memory_space<vmem>>, vector<1x1x128x128xf32>
      %84 = vector.shape_cast %83 : vector<1x1x128x128xf32> to vector<128x128xf32>
      %cst_80 = arith.constant dense<0.000000e+00> : vector<80x128xf32>
      %85 = tpu.matmul %82, %84, %cst_80 {dimension_numbers = #tpu.dot_dimension_numbers<[1], [0], [0], [1], [0, 0, 1, 1], [], []>} : vector<80x128xf32>, vector<128x128xf32>, vector<80x128xf32> -> vector<80x128xf32>
      %86 = arith.addf %77, %85 : vector<80x128xf32>
      %c2_i32_81 = arith.constant 2 : i32
      %87 = arith.addi %22, %c2_i32_81 : i32
      %88 = arith.index_cast %87 : i32 to index
      %c1_82 = arith.constant 1 : index
      %c0_83 = arith.constant 0 : index
      %c0_84 = arith.constant 0 : index
      %89 = vector.load %arg13[%88, %c1_82, %c0_83, %c0_84] : memref<13x13x8x128xf32, #tpu.memory_space<vmem>>, vector<1x10x8x128xf32>
      %90 = vector.shape_cast %89 : vector<1x10x8x128xf32> to vector<10x8x128xf32>
      %91 = vector.shape_cast %90 : vector<10x8x128xf32> to vector<80x128xf32>
      %c2_85 = arith.constant 2 : index
      %c1_86 = arith.constant 1 : index
      %c0_87 = arith.constant 0 : index
      %c0_88 = arith.constant 0 : index
      %92 = vector.load %arg4[%c2_85, %c1_86, %c0_87, %c0_88] : memref<3x3x128x128xf32, #tpu.memory_space<vmem>>, vector<1x1x128x128xf32>
      %93 = vector.shape_cast %92 : vector<1x1x128x128xf32> to vector<128x128xf32>
      %cst_89 = arith.constant dense<0.000000e+00> : vector<80x128xf32>
      %94 = tpu.matmul %91, %93, %cst_89 {dimension_numbers = #tpu.dot_dimension_numbers<[1], [0], [0], [1], [0, 0, 1, 1], [], []>} : vector<80x128xf32>, vector<128x128xf32>, vector<80x128xf32> -> vector<80x128xf32>
      %95 = arith.addf %86, %94 : vector<80x128xf32>
      %c2_i32_90 = arith.constant 2 : i32
      %96 = arith.addi %22, %c2_i32_90 : i32
      %97 = arith.index_cast %96 : i32 to index
      %c2_91 = arith.constant 2 : index
      %c0_92 = arith.constant 0 : index
      %c0_93 = arith.constant 0 : index
      %98 = vector.load %arg13[%97, %c2_91, %c0_92, %c0_93] : memref<13x13x8x128xf32, #tpu.memory_space<vmem>>, vector<1x10x8x128xf32>
      %99 = vector.shape_cast %98 : vector<1x10x8x128xf32> to vector<10x8x128xf32>
      %100 = vector.shape_cast %99 : vector<10x8x128xf32> to vector<80x128xf32>
      %c2_94 = arith.constant 2 : index
      %c2_95 = arith.constant 2 : index
      %c0_96 = arith.constant 0 : index
      %c0_97 = arith.constant 0 : index
      %101 = vector.load %arg4[%c2_94, %c2_95, %c0_96, %c0_97] : memref<3x3x128x128xf32, #tpu.memory_space<vmem>>, vector<1x1x128x128xf32>
      %102 = vector.shape_cast %101 : vector<1x1x128x128xf32> to vector<128x128xf32>
      %cst_98 = arith.constant dense<0.000000e+00> : vector<80x128xf32>
      %103 = tpu.matmul %100, %102, %cst_98 {dimension_numbers = #tpu.dot_dimension_numbers<[1], [0], [0], [1], [0, 0, 1, 1], [], []>} : vector<80x128xf32>, vector<128x128xf32>, vector<80x128xf32> -> vector<80x128xf32>
      %104 = arith.addf %95, %103 : vector<80x128xf32>
      %105 = vector.shape_cast %104 : vector<80x128xf32> to vector<5x2x8x128xf32>
      %106 = vector.extract_strided_slice %105 {offsets = [0, 0, 0, 0], sizes = [5, 1, 8, 128], strides = [1, 1, 1, 1]} : vector<5x2x8x128xf32> to vector<5x1x8x128xf32>
      %107 = vector.shape_cast %106 : vector<5x1x8x128xf32> to vector<5x8x128xf32>
      %108 = vector.extract_strided_slice %105 {offsets = [0, 1, 0, 0], sizes = [5, 1, 8, 128], strides = [1, 1, 1, 1]} : vector<5x2x8x128xf32> to vector<5x1x8x128xf32>
      %109 = vector.shape_cast %108 : vector<5x1x8x128xf32> to vector<5x8x128xf32>
      %110 = arith.maximumf %107, %109 : vector<5x8x128xf32>
      %c2_i32_99 = arith.constant 2 : i32
      %111 = arith.muli %c2_i32_99, %arg14 : i32
      %c1_i32_100 = arith.constant 1 : i32
      %112 = arith.addi %111, %c1_i32_100 : i32
      %cst_101 = arith.constant 0.000000e+00 : f32
      %113 = vector.broadcast %cst_101 : f32 to vector<80x128xf32>
      %c0_i32_102 = arith.constant 0 : i32
      %114 = arith.addi %112, %c0_i32_102 : i32
      %115 = arith.index_cast %114 : i32 to index
      %c0_103 = arith.constant 0 : index
      %c0_104 = arith.constant 0 : index
      %c0_105 = arith.constant 0 : index
      %116 = vector.load %arg13[%115, %c0_103, %c0_104, %c0_105] : memref<13x13x8x128xf32, #tpu.memory_space<vmem>>, vector<1x10x8x128xf32>
      %117 = vector.shape_cast %116 : vector<1x10x8x128xf32> to vector<10x8x128xf32>
      %118 = vector.shape_cast %117 : vector<10x8x128xf32> to vector<80x128xf32>
      %c0_106 = arith.constant 0 : index
      %c0_107 = arith.constant 0 : index
      %c0_108 = arith.constant 0 : index
      %c0_109 = arith.constant 0 : index
      %119 = vector.load %arg4[%c0_106, %c0_107, %c0_108, %c0_109] : memref<3x3x128x128xf32, #tpu.memory_space<vmem>>, vector<1x1x128x128xf32>
      %120 = vector.shape_cast %119 : vector<1x1x128x128xf32> to vector<128x128xf32>
      %cst_110 = arith.constant dense<0.000000e+00> : vector<80x128xf32>
      %121 = tpu.matmul %118, %120, %cst_110 {dimension_numbers = #tpu.dot_dimension_numbers<[1], [0], [0], [1], [0, 0, 1, 1], [], []>} : vector<80x128xf32>, vector<128x128xf32>, vector<80x128xf32> -> vector<80x128xf32>
      %122 = arith.addf %113, %121 : vector<80x128xf32>
      %c0_i32_111 = arith.constant 0 : i32
      %123 = arith.addi %112, %c0_i32_111 : i32
      %124 = arith.index_cast %123 : i32 to index
      %c1_112 = arith.constant 1 : index
      %c0_113 = arith.constant 0 : index
      %c0_114 = arith.constant 0 : index
      %125 = vector.load %arg13[%124, %c1_112, %c0_113, %c0_114] : memref<13x13x8x128xf32, #tpu.memory_space<vmem>>, vector<1x10x8x128xf32>
      %126 = vector.shape_cast %125 : vector<1x10x8x128xf32> to vector<10x8x128xf32>
      %127 = vector.shape_cast %126 : vector<10x8x128xf32> to vector<80x128xf32>
      %c0_115 = arith.constant 0 : index
      %c1_116 = arith.constant 1 : index
      %c0_117 = arith.constant 0 : index
      %c0_118 = arith.constant 0 : index
      %128 = vector.load %arg4[%c0_115, %c1_116, %c0_117, %c0_118] : memref<3x3x128x128xf32, #tpu.memory_space<vmem>>, vector<1x1x128x128xf32>
      %129 = vector.shape_cast %128 : vector<1x1x128x128xf32> to vector<128x128xf32>
      %cst_119 = arith.constant dense<0.000000e+00> : vector<80x128xf32>
      %130 = tpu.matmul %127, %129, %cst_119 {dimension_numbers = #tpu.dot_dimension_numbers<[1], [0], [0], [1], [0, 0, 1, 1], [], []>} : vector<80x128xf32>, vector<128x128xf32>, vector<80x128xf32> -> vector<80x128xf32>
      %131 = arith.addf %122, %130 : vector<80x128xf32>
      %c0_i32_120 = arith.constant 0 : i32
      %132 = arith.addi %112, %c0_i32_120 : i32
      %133 = arith.index_cast %132 : i32 to index
      %c2_121 = arith.constant 2 : index
      %c0_122 = arith.constant 0 : index
      %c0_123 = arith.constant 0 : index
      %134 = vector.load %arg13[%133, %c2_121, %c0_122, %c0_123] : memref<13x13x8x128xf32, #tpu.memory_space<vmem>>, vector<1x10x8x128xf32>
      %135 = vector.shape_cast %134 : vector<1x10x8x128xf32> to vector<10x8x128xf32>
      %136 = vector.shape_cast %135 : vector<10x8x128xf32> to vector<80x128xf32>
      %c0_124 = arith.constant 0 : index
      %c2_125 = arith.constant 2 : index
      %c0_126 = arith.constant 0 : index
      %c0_127 = arith.constant 0 : index
      %137 = vector.load %arg4[%c0_124, %c2_125, %c0_126, %c0_127] : memref<3x3x128x128xf32, #tpu.memory_space<vmem>>, vector<1x1x128x128xf32>
      %138 = vector.shape_cast %137 : vector<1x1x128x128xf32> to vector<128x128xf32>
      %cst_128 = arith.constant dense<0.000000e+00> : vector<80x128xf32>
      %139 = tpu.matmul %136, %138, %cst_128 {dimension_numbers = #tpu.dot_dimension_numbers<[1], [0], [0], [1], [0, 0, 1, 1], [], []>} : vector<80x128xf32>, vector<128x128xf32>, vector<80x128xf32> -> vector<80x128xf32>
      %140 = arith.addf %131, %139 : vector<80x128xf32>
      %c1_i32_129 = arith.constant 1 : i32
      %141 = arith.addi %112, %c1_i32_129 : i32
      %142 = arith.index_cast %141 : i32 to index
      %c0_130 = arith.constant 0 : index
      %c0_131 = arith.constant 0 : index
      %c0_132 = arith.constant 0 : index
      %143 = vector.load %arg13[%142, %c0_130, %c0_131, %c0_132] : memref<13x13x8x128xf32, #tpu.memory_space<vmem>>, vector<1x10x8x128xf32>
      %144 = vector.shape_cast %143 : vector<1x10x8x128xf32> to vector<10x8x128xf32>
      %145 = vector.shape_cast %144 : vector<10x8x128xf32> to vector<80x128xf32>
      %c1_133 = arith.constant 1 : index
      %c0_134 = arith.constant 0 : index
      %c0_135 = arith.constant 0 : index
      %c0_136 = arith.constant 0 : index
      %146 = vector.load %arg4[%c1_133, %c0_134, %c0_135, %c0_136] : memref<3x3x128x128xf32, #tpu.memory_space<vmem>>, vector<1x1x128x128xf32>
      %147 = vector.shape_cast %146 : vector<1x1x128x128xf32> to vector<128x128xf32>
      %cst_137 = arith.constant dense<0.000000e+00> : vector<80x128xf32>
      %148 = tpu.matmul %145, %147, %cst_137 {dimension_numbers = #tpu.dot_dimension_numbers<[1], [0], [0], [1], [0, 0, 1, 1], [], []>} : vector<80x128xf32>, vector<128x128xf32>, vector<80x128xf32> -> vector<80x128xf32>
      %149 = arith.addf %140, %148 : vector<80x128xf32>
      %c1_i32_138 = arith.constant 1 : i32
      %150 = arith.addi %112, %c1_i32_138 : i32
      %151 = arith.index_cast %150 : i32 to index
      %c1_139 = arith.constant 1 : index
      %c0_140 = arith.constant 0 : index
      %c0_141 = arith.constant 0 : index
      %152 = vector.load %arg13[%151, %c1_139, %c0_140, %c0_141] : memref<13x13x8x128xf32, #tpu.memory_space<vmem>>, vector<1x10x8x128xf32>
      %153 = vector.shape_cast %152 : vector<1x10x8x128xf32> to vector<10x8x128xf32>
      %154 = vector.shape_cast %153 : vector<10x8x128xf32> to vector<80x128xf32>
      %c1_142 = arith.constant 1 : index
      %c1_143 = arith.constant 1 : index
      %c0_144 = arith.constant 0 : index
      %c0_145 = arith.constant 0 : index
      %155 = vector.load %arg4[%c1_142, %c1_143, %c0_144, %c0_145] : memref<3x3x128x128xf32, #tpu.memory_space<vmem>>, vector<1x1x128x128xf32>
      %156 = vector.shape_cast %155 : vector<1x1x128x128xf32> to vector<128x128xf32>
      %cst_146 = arith.constant dense<0.000000e+00> : vector<80x128xf32>
      %157 = tpu.matmul %154, %156, %cst_146 {dimension_numbers = #tpu.dot_dimension_numbers<[1], [0], [0], [1], [0, 0, 1, 1], [], []>} : vector<80x128xf32>, vector<128x128xf32>, vector<80x128xf32> -> vector<80x128xf32>
      %158 = arith.addf %149, %157 : vector<80x128xf32>
      %c1_i32_147 = arith.constant 1 : i32
      %159 = arith.addi %112, %c1_i32_147 : i32
      %160 = arith.index_cast %159 : i32 to index
      %c2_148 = arith.constant 2 : index
      %c0_149 = arith.constant 0 : index
      %c0_150 = arith.constant 0 : index
      %161 = vector.load %arg13[%160, %c2_148, %c0_149, %c0_150] : memref<13x13x8x128xf32, #tpu.memory_space<vmem>>, vector<1x10x8x128xf32>
      %162 = vector.shape_cast %161 : vector<1x10x8x128xf32> to vector<10x8x128xf32>
      %163 = vector.shape_cast %162 : vector<10x8x128xf32> to vector<80x128xf32>
      %c1_151 = arith.constant 1 : index
      %c2_152 = arith.constant 2 : index
      %c0_153 = arith.constant 0 : index
      %c0_154 = arith.constant 0 : index
      %164 = vector.load %arg4[%c1_151, %c2_152, %c0_153, %c0_154] : memref<3x3x128x128xf32, #tpu.memory_space<vmem>>, vector<1x1x128x128xf32>
      %165 = vector.shape_cast %164 : vector<1x1x128x128xf32> to vector<128x128xf32>
      %cst_155 = arith.constant dense<0.000000e+00> : vector<80x128xf32>
      %166 = tpu.matmul %163, %165, %cst_155 {dimension_numbers = #tpu.dot_dimension_numbers<[1], [0], [0], [1], [0, 0, 1, 1], [], []>} : vector<80x128xf32>, vector<128x128xf32>, vector<80x128xf32> -> vector<80x128xf32>
      %167 = arith.addf %158, %166 : vector<80x128xf32>
      %c2_i32_156 = arith.constant 2 : i32
      %168 = arith.addi %112, %c2_i32_156 : i32
      %169 = arith.index_cast %168 : i32 to index
      %c0_157 = arith.constant 0 : index
      %c0_158 = arith.constant 0 : index
      %c0_159 = arith.constant 0 : index
      %170 = vector.load %arg13[%169, %c0_157, %c0_158, %c0_159] : memref<13x13x8x128xf32, #tpu.memory_space<vmem>>, vector<1x10x8x128xf32>
      %171 = vector.shape_cast %170 : vector<1x10x8x128xf32> to vector<10x8x128xf32>
      %172 = vector.shape_cast %171 : vector<10x8x128xf32> to vector<80x128xf32>
      %c2_160 = arith.constant 2 : index
      %c0_161 = arith.constant 0 : index
      %c0_162 = arith.constant 0 : index
      %c0_163 = arith.constant 0 : index
      %173 = vector.load %arg4[%c2_160, %c0_161, %c0_162, %c0_163] : memref<3x3x128x128xf32, #tpu.memory_space<vmem>>, vector<1x1x128x128xf32>
      %174 = vector.shape_cast %173 : vector<1x1x128x128xf32> to vector<128x128xf32>
      %cst_164 = arith.constant dense<0.000000e+00> : vector<80x128xf32>
      %175 = tpu.matmul %172, %174, %cst_164 {dimension_numbers = #tpu.dot_dimension_numbers<[1], [0], [0], [1], [0, 0, 1, 1], [], []>} : vector<80x128xf32>, vector<128x128xf32>, vector<80x128xf32> -> vector<80x128xf32>
      %176 = arith.addf %167, %175 : vector<80x128xf32>
      %c2_i32_165 = arith.constant 2 : i32
      %177 = arith.addi %112, %c2_i32_165 : i32
      %178 = arith.index_cast %177 : i32 to index
      %c1_166 = arith.constant 1 : index
      %c0_167 = arith.constant 0 : index
      %c0_168 = arith.constant 0 : index
      %179 = vector.load %arg13[%178, %c1_166, %c0_167, %c0_168] : memref<13x13x8x128xf32, #tpu.memory_space<vmem>>, vector<1x10x8x128xf32>
      %180 = vector.shape_cast %179 : vector<1x10x8x128xf32> to vector<10x8x128xf32>
      %181 = vector.shape_cast %180 : vector<10x8x128xf32> to vector<80x128xf32>
      %c2_169 = arith.constant 2 : index
      %c1_170 = arith.constant 1 : index
      %c0_171 = arith.constant 0 : index
      %c0_172 = arith.constant 0 : index
      %182 = vector.load %arg4[%c2_169, %c1_170, %c0_171, %c0_172] : memref<3x3x128x128xf32, #tpu.memory_space<vmem>>, vector<1x1x128x128xf32>
      %183 = vector.shape_cast %182 : vector<1x1x128x128xf32> to vector<128x128xf32>
      %cst_173 = arith.constant dense<0.000000e+00> : vector<80x128xf32>
      %184 = tpu.matmul %181, %183, %cst_173 {dimension_numbers = #tpu.dot_dimension_numbers<[1], [0], [0], [1], [0, 0, 1, 1], [], []>} : vector<80x128xf32>, vector<128x128xf32>, vector<80x128xf32> -> vector<80x128xf32>
      %185 = arith.addf %176, %184 : vector<80x128xf32>
      %c2_i32_174 = arith.constant 2 : i32
      %186 = arith.addi %112, %c2_i32_174 : i32
      %187 = arith.index_cast %186 : i32 to index
      %c2_175 = arith.constant 2 : index
      %c0_176 = arith.constant 0 : index
      %c0_177 = arith.constant 0 : index
      %188 = vector.load %arg13[%187, %c2_175, %c0_176, %c0_177] : memref<13x13x8x128xf32, #tpu.memory_space<vmem>>, vector<1x10x8x128xf32>
      %189 = vector.shape_cast %188 : vector<1x10x8x128xf32> to vector<10x8x128xf32>
      %190 = vector.shape_cast %189 : vector<10x8x128xf32> to vector<80x128xf32>
      %c2_178 = arith.constant 2 : index
      %c2_179 = arith.constant 2 : index
      %c0_180 = arith.constant 0 : index
      %c0_181 = arith.constant 0 : index
      %191 = vector.load %arg4[%c2_178, %c2_179, %c0_180, %c0_181] : memref<3x3x128x128xf32, #tpu.memory_space<vmem>>, vector<1x1x128x128xf32>
      %192 = vector.shape_cast %191 : vector<1x1x128x128xf32> to vector<128x128xf32>
      %cst_182 = arith.constant dense<0.000000e+00> : vector<80x128xf32>
      %193 = tpu.matmul %190, %192, %cst_182 {dimension_numbers = #tpu.dot_dimension_numbers<[1], [0], [0], [1], [0, 0, 1, 1], [], []>} : vector<80x128xf32>, vector<128x128xf32>, vector<80x128xf32> -> vector<80x128xf32>
      %194 = arith.addf %185, %193 : vector<80x128xf32>
      %195 = vector.shape_cast %194 : vector<80x128xf32> to vector<5x2x8x128xf32>
      %196 = vector.extract_strided_slice %195 {offsets = [0, 0, 0, 0], sizes = [5, 1, 8, 128], strides = [1, 1, 1, 1]} : vector<5x2x8x128xf32> to vector<5x1x8x128xf32>
      %197 = vector.shape_cast %196 : vector<5x1x8x128xf32> to vector<5x8x128xf32>
      %198 = vector.extract_strided_slice %195 {offsets = [0, 1, 0, 0], sizes = [5, 1, 8, 128], strides = [1, 1, 1, 1]} : vector<5x2x8x128xf32> to vector<5x1x8x128xf32>
      %199 = vector.shape_cast %198 : vector<5x1x8x128xf32> to vector<5x8x128xf32>
      %200 = arith.maximumf %197, %199 : vector<5x8x128xf32>
      %201 = arith.maximumf %110, %200 : vector<5x8x128xf32>
      %c0_183 = arith.constant 0 : index
      %c0_184 = arith.constant 0 : index
      %202 = vector.load %arg5[%c0_183, %c0_184] : memref<1x128xf32, #tpu.memory_space<vmem>>, vector<1x128xf32>
      %203 = vector.shape_cast %202 : vector<1x128xf32> to vector<1x1x128xf32>
      %204 = vector.broadcast %203 : vector<1x1x128xf32> to vector<5x8x128xf32>
      %205 = arith.addf %201, %204 : vector<5x8x128xf32>
      %cst_185 = arith.constant 0.000000e+00 : f32
      %206 = vector.broadcast %cst_185 : f32 to vector<5x8x128xf32>
      %207 = arith.maximumf %205, %206 : vector<5x8x128xf32>
      %208 = vector.extract_strided_slice %207 {offsets = [0, 0, 0], sizes = [1, 8, 128], strides = [1, 1, 1]} : vector<5x8x128xf32> to vector<1x8x128xf32>
      %209 = vector.shape_cast %208 : vector<1x8x128xf32> to vector<8x128xf32>
      %c5_i32_186 = arith.constant 5 : i32
      %210 = arith.muli %arg14, %c5_i32_186 : i32
      %c0_i32_187 = arith.constant 0 : i32
      %211 = arith.addi %210, %c0_i32_187 : i32
      %212 = arith.index_cast %211 : i32 to index
      %c0_188 = arith.constant 0 : index
      %c0_189 = arith.constant 0 : index
      %213 = vector.load %arg6[%212, %c0_188, %c0_189] : memref<25x128x128xf32, #tpu.memory_space<vmem>>, vector<1x128x128xf32>
      %214 = vector.shape_cast %213 : vector<1x128x128xf32> to vector<128x128xf32>
      %cst_190 = arith.constant dense<0.000000e+00> : vector<8x128xf32>
      %215 = tpu.matmul %209, %214, %cst_190 {dimension_numbers = #tpu.dot_dimension_numbers<[1], [0], [0], [1], [0, 0, 1, 1], [], []>} : vector<8x128xf32>, vector<128x128xf32>, vector<8x128xf32> -> vector<8x128xf32>
      %216 = arith.addf %arg15, %215 : vector<8x128xf32>
      %217 = vector.extract_strided_slice %207 {offsets = [1, 0, 0], sizes = [1, 8, 128], strides = [1, 1, 1]} : vector<5x8x128xf32> to vector<1x8x128xf32>
      %218 = vector.shape_cast %217 : vector<1x8x128xf32> to vector<8x128xf32>
      %c5_i32_191 = arith.constant 5 : i32
      %219 = arith.muli %arg14, %c5_i32_191 : i32
      %c1_i32_192 = arith.constant 1 : i32
      %220 = arith.addi %219, %c1_i32_192 : i32
      %221 = arith.index_cast %220 : i32 to index
      %c0_193 = arith.constant 0 : index
      %c0_194 = arith.constant 0 : index
      %222 = vector.load %arg6[%221, %c0_193, %c0_194] : memref<25x128x128xf32, #tpu.memory_space<vmem>>, vector<1x128x128xf32>
      %223 = vector.shape_cast %222 : vector<1x128x128xf32> to vector<128x128xf32>
      %cst_195 = arith.constant dense<0.000000e+00> : vector<8x128xf32>
      %224 = tpu.matmul %218, %223, %cst_195 {dimension_numbers = #tpu.dot_dimension_numbers<[1], [0], [0], [1], [0, 0, 1, 1], [], []>} : vector<8x128xf32>, vector<128x128xf32>, vector<8x128xf32> -> vector<8x128xf32>
      %225 = arith.addf %216, %224 : vector<8x128xf32>
      %226 = vector.extract_strided_slice %207 {offsets = [2, 0, 0], sizes = [1, 8, 128], strides = [1, 1, 1]} : vector<5x8x128xf32> to vector<1x8x128xf32>
      %227 = vector.shape_cast %226 : vector<1x8x128xf32> to vector<8x128xf32>
      %c5_i32_196 = arith.constant 5 : i32
      %228 = arith.muli %arg14, %c5_i32_196 : i32
      %c2_i32_197 = arith.constant 2 : i32
      %229 = arith.addi %228, %c2_i32_197 : i32
      %230 = arith.index_cast %229 : i32 to index
      %c0_198 = arith.constant 0 : index
      %c0_199 = arith.constant 0 : index
      %231 = vector.load %arg6[%230, %c0_198, %c0_199] : memref<25x128x128xf32, #tpu.memory_space<vmem>>, vector<1x128x128xf32>
      %232 = vector.shape_cast %231 : vector<1x128x128xf32> to vector<128x128xf32>
      %cst_200 = arith.constant dense<0.000000e+00> : vector<8x128xf32>
      %233 = tpu.matmul %227, %232, %cst_200 {dimension_numbers = #tpu.dot_dimension_numbers<[1], [0], [0], [1], [0, 0, 1, 1], [], []>} : vector<8x128xf32>, vector<128x128xf32>, vector<8x128xf32> -> vector<8x128xf32>
      %234 = arith.addf %225, %233 : vector<8x128xf32>
      %235 = vector.extract_strided_slice %207 {offsets = [3, 0, 0], sizes = [1, 8, 128], strides = [1, 1, 1]} : vector<5x8x128xf32> to vector<1x8x128xf32>
      %236 = vector.shape_cast %235 : vector<1x8x128xf32> to vector<8x128xf32>
      %c5_i32_201 = arith.constant 5 : i32
      %237 = arith.muli %arg14, %c5_i32_201 : i32
      %c3_i32 = arith.constant 3 : i32
      %238 = arith.addi %237, %c3_i32 : i32
      %239 = arith.index_cast %238 : i32 to index
      %c0_202 = arith.constant 0 : index
      %c0_203 = arith.constant 0 : index
      %240 = vector.load %arg6[%239, %c0_202, %c0_203] : memref<25x128x128xf32, #tpu.memory_space<vmem>>, vector<1x128x128xf32>
      %241 = vector.shape_cast %240 : vector<1x128x128xf32> to vector<128x128xf32>
      %cst_204 = arith.constant dense<0.000000e+00> : vector<8x128xf32>
      %242 = tpu.matmul %236, %241, %cst_204 {dimension_numbers = #tpu.dot_dimension_numbers<[1], [0], [0], [1], [0, 0, 1, 1], [], []>} : vector<8x128xf32>, vector<128x128xf32>, vector<8x128xf32> -> vector<8x128xf32>
      %243 = arith.addf %234, %242 : vector<8x128xf32>
      %244 = vector.extract_strided_slice %207 {offsets = [4, 0, 0], sizes = [1, 8, 128], strides = [1, 1, 1]} : vector<5x8x128xf32> to vector<1x8x128xf32>
      %245 = vector.shape_cast %244 : vector<1x8x128xf32> to vector<8x128xf32>
      %c5_i32_205 = arith.constant 5 : i32
      %246 = arith.muli %arg14, %c5_i32_205 : i32
      %c4_i32 = arith.constant 4 : i32
      %247 = arith.addi %246, %c4_i32 : i32
      %248 = arith.index_cast %247 : i32 to index
      %c0_206 = arith.constant 0 : index
      %c0_207 = arith.constant 0 : index
      %249 = vector.load %arg6[%248, %c0_206, %c0_207] : memref<25x128x128xf32, #tpu.memory_space<vmem>>, vector<1x128x128xf32>
      %250 = vector.shape_cast %249 : vector<1x128x128xf32> to vector<128x128xf32>
      %cst_208 = arith.constant dense<0.000000e+00> : vector<8x128xf32>
      %251 = tpu.matmul %245, %250, %cst_208 {dimension_numbers = #tpu.dot_dimension_numbers<[1], [0], [0], [1], [0, 0, 1, 1], [], []>} : vector<8x128xf32>, vector<128x128xf32>, vector<8x128xf32> -> vector<8x128xf32>
      %252 = arith.addf %243, %251 : vector<8x128xf32>
      scf.yield %252 : vector<8x128xf32>
    }
    %c5_i32_3 = arith.constant 5 : i32
    %c0 = arith.constant 0 : index
    %c0_4 = arith.constant 0 : index
    %4 = vector.load %arg7[%c0, %c0_4] : memref<1x128xf32, #tpu.memory_space<vmem>>, vector<1x128xf32>
    %5 = vector.broadcast %4 : vector<1x128xf32> to vector<8x128xf32>
    %6 = arith.addf %3, %5 : vector<8x128xf32>
    %cst_5 = arith.constant 0.000000e+00 : f32
    %7 = vector.broadcast %cst_5 : f32 to vector<8x128xf32>
    %8 = arith.maximumf %6, %7 : vector<8x128xf32>
    %c0_6 = arith.constant 0 : index
    %c0_7 = arith.constant 0 : index
    %9 = vector.load %arg8[%c0_6, %c0_7] : memref<128x128xf32, #tpu.memory_space<vmem>>, vector<128x128xf32>
    %cst_8 = arith.constant dense<0.000000e+00> : vector<8x128xf32>
    %10 = tpu.matmul %8, %9, %cst_8 {dimension_numbers = #tpu.dot_dimension_numbers<[1], [0], [0], [1], [0, 0, 1, 1], [], []>} : vector<8x128xf32>, vector<128x128xf32>, vector<8x128xf32> -> vector<8x128xf32>
    %c0_9 = arith.constant 0 : index
    %c0_10 = arith.constant 0 : index
    %11 = vector.load %arg9[%c0_9, %c0_10] : memref<1x128xf32, #tpu.memory_space<vmem>>, vector<1x128xf32>
    %12 = vector.broadcast %11 : vector<1x128xf32> to vector<8x128xf32>
    %13 = arith.addf %10, %12 : vector<8x128xf32>
    %cst_11 = arith.constant 0.000000e+00 : f32
    %14 = vector.broadcast %cst_11 : f32 to vector<8x128xf32>
    %15 = arith.maximumf %13, %14 : vector<8x128xf32>
    %c0_12 = arith.constant 0 : index
    %c0_13 = arith.constant 0 : index
    %16 = vector.load %arg10[%c0_12, %c0_13] : memref<128x128xf32, #tpu.memory_space<vmem>>, vector<128x128xf32>
    %cst_14 = arith.constant dense<0.000000e+00> : vector<8x128xf32>
    %17 = tpu.matmul %15, %16, %cst_14 {dimension_numbers = #tpu.dot_dimension_numbers<[1], [0], [0], [1], [0, 0, 1, 1], [], []>} : vector<8x128xf32>, vector<128x128xf32>, vector<8x128xf32> -> vector<8x128xf32>
    %c0_15 = arith.constant 0 : index
    %c0_16 = arith.constant 0 : index
    %18 = vector.load %arg11[%c0_15, %c0_16] : memref<1x128xf32, #tpu.memory_space<vmem>>, vector<1x128xf32>
    %19 = vector.broadcast %18 : vector<1x128xf32> to vector<8x128xf32>
    %20 = arith.addf %17, %19 : vector<8x128xf32>
    %c0_17 = arith.constant 0 : index
    %c0_18 = arith.constant 0 : index
    %21 = vector.load %arg12[%c0_17, %c0_18] : memref<8x128xf32, #tpu.memory_space<vmem>>, vector<8x128xf32>
    tpu.vector_store %arg12[%c0_17, %c0_18], %20 {strides = array<i32>} : memref<8x128xf32, #tpu.memory_space<vmem>>, vector<8x128xf32>,
    return
  }
  func.func @transform_0(%arg0: i32) -> (i32, i32, i32, i32) {
    %c0_i32 = arith.constant 0 : i32
    %c0_i32_0 = arith.constant 0 : i32
    %c0_i32_1 = arith.constant 0 : i32
    %c0_i32_2 = arith.constant 0 : i32
    return %c0_i32, %c0_i32_0, %arg0, %c0_i32_1 : i32, i32, i32, i32
  }
  func.func @transform_1(%arg0: i32) -> (i32, i32, i32, i32) {
    %c0_i32 = arith.constant 0 : i32
    %c0_i32_0 = arith.constant 0 : i32
    %c0_i32_1 = arith.constant 0 : i32
    %c0_i32_2 = arith.constant 0 : i32
    %c0_i32_3 = arith.constant 0 : i32
    return %c0_i32, %c0_i32_0, %c0_i32_1, %c0_i32_2 : i32, i32, i32, i32
  }
  func.func @transform_2(%arg0: i32) -> (i32, i32) {
    %c0_i32 = arith.constant 0 : i32
    %c0_i32_0 = arith.constant 0 : i32
    %c0_i32_1 = arith.constant 0 : i32
    return %c0_i32, %c0_i32_0 : i32, i32
  }
  func.func @transform_3(%arg0: i32) -> (i32, i32, i32, i32) {
    %c0_i32 = arith.constant 0 : i32
    %c0_i32_0 = arith.constant 0 : i32
    %c0_i32_1 = arith.constant 0 : i32
    %c0_i32_2 = arith.constant 0 : i32
    %c0_i32_3 = arith.constant 0 : i32
    return %c0_i32, %c0_i32_0, %c0_i32_1, %c0_i32_2 : i32, i32, i32, i32
  }
  func.func @transform_4(%arg0: i32) -> (i32, i32) {
    %c0_i32 = arith.constant 0 : i32
    %c0_i32_0 = arith.constant 0 : i32
    %c0_i32_1 = arith.constant 0 : i32
    return %c0_i32, %c0_i32_0 : i32, i32
  }
  func.func @transform_5(%arg0: i32) -> (i32, i32, i32) {
    %c0_i32 = arith.constant 0 : i32
    %c0_i32_0 = arith.constant 0 : i32
    %c0_i32_1 = arith.constant 0 : i32
    %c0_i32_2 = arith.constant 0 : i32
    return %c0_i32, %c0_i32_0, %c0_i32_1 : i32, i32, i32
  }
  func.func @transform_6(%arg0: i32) -> (i32, i32) {
    %c0_i32 = arith.constant 0 : i32
    %c0_i32_0 = arith.constant 0 : i32
    %c0_i32_1 = arith.constant 0 : i32
    return %c0_i32, %c0_i32_0 : i32, i32
  }
  func.func @transform_7(%arg0: i32) -> (i32, i32) {
    %c0_i32 = arith.constant 0 : i32
    %c0_i32_0 = arith.constant 0 : i32
    %c0_i32_1 = arith.constant 0 : i32
    return %c0_i32, %c0_i32_0 : i32, i32
  }
  func.func @transform_8(%arg0: i32) -> (i32, i32) {
    %c0_i32 = arith.constant 0 : i32
    %c0_i32_0 = arith.constant 0 : i32
    %c0_i32_1 = arith.constant 0 : i32
    return %c0_i32, %c0_i32_0 : i32, i32
  }
  func.func @transform_9(%arg0: i32) -> (i32, i32) {
    %c0_i32 = arith.constant 0 : i32
    %c0_i32_0 = arith.constant 0 : i32
    %c0_i32_1 = arith.constant 0 : i32
    return %c0_i32, %c0_i32_0 : i32, i32
  }
  func.func @transform_10(%arg0: i32) -> (i32, i32) {
    %c0_i32 = arith.constant 0 : i32
    %c0_i32_0 = arith.constant 0 : i32
    %c0_i32_1 = arith.constant 0 : i32
    return %c0_i32, %c0_i32_0 : i32, i32
  }
  func.func @transform_11(%arg0: i32) -> (i32, i32) {
    %c0_i32 = arith.constant 0 : i32
    %c0_i32_0 = arith.constant 0 : i32
    return %arg0, %c0_i32 : i32, i32
  }
}

</mosaic_0001>

<llo_original>
// kernel: lenet_forward.1
$region0: #{lenet_forward.1}
  #allocation0 [shape = 'u32[]', space=smem, size = 0x4, offset = 0x4, fixed_abs, tag = 'smem constant byte address 0x4 - core index']
  #allocation1 [shape = 'u32[144,128]{1,0:T(1,128)}', space=vmem, size = 0x12000, scoped, tag = 'internal scratch']
  #allocation2 [shape = 'f32[13,13,8,128]{3,2,1,0:T(8,128)}', space=vmem, size = 0xa9000, scoped, tag = 'scratch operand']
  %s0 = inlined_call_operand.vmem [shape: f32[28,28,8,1], index: 0, kind: input, shape index: {}]
  %s1 = inlined_call_operand.vmem [shape: f32[3,3,1,128], index: 1, kind: input, shape index: {}]
  %s2 = inlined_call_operand.vmem [shape: f32[1,128], index: 2, kind: input, shape index: {}]
  %s3 = inlined_call_operand.vmem [shape: f32[3,3,128,128], index: 3, kind: input, shape index: {}]
  %s4 = inlined_call_operand.vmem [shape: f32[1,128], index: 4, kind: input, shape index: {}]
  %s5 = inlined_call_operand.vmem [shape: f32[25,128,128], index: 5, kind: input, shape index: {}]
  %s6 = inlined_call_operand.vmem [shape: f32[1,128], index: 6, kind: input, shape index: {}]
  %s7 = inlined_call_operand.vmem [shape: f32[128,128], index: 7, kind: input, shape index: {}]
  %s8 = inlined_call_operand.vmem [shape: f32[1,128], index: 8, kind: input, shape index: {}]
  %s9 = inlined_call_operand.vmem [shape: f32[128,128], index: 9, kind: input, shape index: {}]
  %s10 = inlined_call_operand.vmem [shape: f32[1,128], index: 10, kind: input, shape index: {}]
  %s11 = inlined_call_operand.vmem [shape: f32[8,128], index: 11, kind: output, shape index: {}]
  %s12 = sld [smem:[#allocation0]]
  $region68: #{lenet_forward.1} parent=0
    _
  %s14 = ssub.s32 1, %s12
  %s15 = scalar_select 0, %s14, %s12
  // Predicated region
  $region2: #{lenet_forward.1} parent=0 // pred_check
    _
  $region3: #{lenet_forward.1} parent=0 // pred_check_branch
    %17 = sbr.rel (0) target = $region5
  $region4: #{lenet_forward.1} parent=0 // pred_region
    _
  $region5: #{lenet_forward.1} parent=0 // pred_fallthru
    _
  // Predicated region
  $region6: #{lenet_forward.1} parent=0 // pred_check
    _
  $region7: #{lenet_forward.1} parent=0 // pred_check_branch
    %19 = sbr.rel (0) target = $region9
  $region8: #{lenet_forward.1} parent=0 // pred_region
    _
  $region9: #{lenet_forward.1} parent=0 // pred_fallthru
    _
  // Predicated region
  $region10: #{lenet_forward.1} parent=0 // pred_check
    _
  $region11: #{lenet_forward.1} parent=0 // pred_check_branch
    %21 = sbr.rel (0) target = $region13
  $region12: #{lenet_forward.1} parent=0 // pred_region
    _
  $region13: #{lenet_forward.1} parent=0 // pred_fallthru
    _
  // Predicated region
  $region14: #{lenet_forward.1} parent=0 // pred_check
    _
  $region15: #{lenet_forward.1} parent=0 // pred_check_branch
    %23 = sbr.rel (0) target = $region17
  $region16: #{lenet_forward.1} parent=0 // pred_region
    _
  $region17: #{lenet_forward.1} parent=0 // pred_fallthru
    _
  // Predicated region
  $region18: #{lenet_forward.1} parent=0 // pred_check
    _
  $region19: #{lenet_forward.1} parent=0 // pred_check_branch
    %25 = sbr.rel (0) target = $region21
  $region20: #{lenet_forward.1} parent=0 // pred_region
    _
  $region21: #{lenet_forward.1} parent=0 // pred_fallthru
    _
  // Predicated region
  $region22: #{lenet_forward.1} parent=0 // pred_check
    _
  $region23: #{lenet_forward.1} parent=0 // pred_check_branch
    %27 = sbr.rel (0) target = $region25
  $region24: #{lenet_forward.1} parent=0 // pred_region
    _
  $region25: #{lenet_forward.1} parent=0 // pred_fallthru
    _
  // Predicated region
  $region26: #{lenet_forward.1} parent=0 // pred_check
    _
  $region27: #{lenet_forward.1} parent=0 // pred_check_branch
    %29 = sbr.rel (0) target = $region29
  $region28: #{lenet_forward.1} parent=0 // pred_region
    _
  $region29: #{lenet_forward.1} parent=0 // pred_fallthru
    _
  // Predicated region
  $region30: #{lenet_forward.1} parent=0 // pred_check
    _
  $region31: #{lenet_forward.1} parent=0 // pred_check_branch
    %31 = sbr.rel (0) target = $region33
  $region32: #{lenet_forward.1} parent=0 // pred_region
    _
  $region33: #{lenet_forward.1} parent=0 // pred_fallthru
    _
  // Predicated region
  $region34: #{lenet_forward.1} parent=0 // pred_check
    _
  $region35: #{lenet_forward.1} parent=0 // pred_check_branch
    %33 = sbr.rel (0) target = $region37
  $region36: #{lenet_forward.1} parent=0 // pred_region
    _
  $region37: #{lenet_forward.1} parent=0 // pred_fallthru
    _
  // Predicated region
  $region38: #{lenet_forward.1} parent=0 // pred_check
    _
  $region39: #{lenet_forward.1} parent=0 // pred_check_branch
    %35 = sbr.rel (0) target = $region41
  $region40: #{lenet_forward.1} parent=0 // pred_region
    _
  $region41: #{lenet_forward.1} parent=0 // pred_fallthru
    _
  // Predicated region
  $region42: #{lenet_forward.1} parent=0 // pred_check
    _
  $region43: #{lenet_forward.1} parent=0 // pred_check_branch
    %37 = sbr.rel (0) target = $region45
  $region44: #{lenet_forward.1} parent=0 // pred_region
    _
  $region45: #{lenet_forward.1} parent=0 // pred_fallthru
    _
  loop: start=0, step=1, limit=13
  $region46: #{lenet_forward.1} parent=0 // loop_pre_header
    _
  $region47: #{lenet_forward.1} parent=0 // loop_header
    %s39 = sphi 0, %s43
    %p40 = scmp.ge.s32.totalorder %s39, 13
  $region48: #{lenet_forward.1} parent=0 // loop_header_branch
    %42 = sbr.rel (%p40) target = $region52
  $region49: #{lenet_forward.1} parent=0 // loop_body
    %s44 = smul.u32 %s39, 2
    %s45 = smul.u32 %s44, 224
    %s46 = scalar_lea.vmem %s0, %s45
    %v47 = vld [vmem:[%s46] sm:$0xff]
    %v48 = vld [vmem:[%s46 + $0x8] sm:$0xff]
    %v49 = vld [vmem:[%s46 + $0x10] sm:$0xff]
    %v50 = vld [vmem:[%s46 + $0x18] sm:$0xff]
    %v51 = vld [vmem:[%s46 + $0x20] sm:$0xff]
    %v52 = vld [vmem:[%s46 + $0x28] sm:$0xff]
    %v53 = vld [vmem:[%s46 + $0x30] sm:$0xff]
    %v54 = vld [vmem:[%s46 + $0x38] sm:$0xff]
    %v55 = vld [vmem:[%s46 + $0x40] sm:$0xff]
    %v56 = vld [vmem:[%s46 + $0x48] sm:$0xff]
    %v57 = vld [vmem:[%s46 + $0x50] sm:$0xff]
    %v58 = vld [vmem:[%s46 + $0x58] sm:$0xff]
    %v59 = vld [vmem:[%s46 + $0x60] sm:$0xff]
    %v60 = vld [vmem:[%s46 + $0x68] sm:$0xff]
    %v61 = vld [vmem:[%s46 + $0x70] sm:$0xff]
    %v62 = vld [vmem:[%s46 + $0x78] sm:$0xff]
    %v63 = vld [vmem:[%s46 + $0x80] sm:$0xff]
    %v64 = vld [vmem:[%s46 + $0x88] sm:$0xff]
    %v65 = vld [vmem:[%s46 + $0x90] sm:$0xff]
    %v66 = vld [vmem:[%s46 + $0x98] sm:$0xff]
    %v67 = vld [vmem:[%s46 + $0xa0] sm:$0xff]
    %v68 = vld [vmem:[%s46 + $0xa8] sm:$0xff]
    %v69 = vld [vmem:[%s46 + $0xb0] sm:$0xff]
    %v70 = vld [vmem:[%s46 + $0xb8] sm:$0xff]
    %v71 = vld [vmem:[%s46 + $0xc0] sm:$0xff]
    %v72 = vld [vmem:[%s46 + $0xc8] sm:$0xff]
    %v73 = vld [vmem:[%s1] sm:$0x1]
    %75 = vset.pattern.permute.xlu0 0
    %76 = vperm.xlu0 %75, %v47
    %v77 = vpop.permute.xlu0 %76
    %80 = vset.pattern.permute.xlu0 0
    %81 = vperm.xlu0 %80, %v48
    %v82 = vpop.permute.xlu0 %81
    %85 = vset.pattern.permute.xlu0 0
    %86 = vperm.xlu0 %85, %v49
    %v87 = vpop.permute.xlu0 %86
    %90 = vset.pattern.permute.xlu0 0
    %91 = vperm.xlu0 %90, %v50
    %v92 = vpop.permute.xlu0 %91
    %95 = vset.pattern.permute.xlu0 0
    %96 = vperm.xlu0 %95, %v51
    %v97 = vpop.permute.xlu0 %96
    %100 = vset.pattern.permute.xlu0 0
    %101 = vperm.xlu0 %100, %v52
    %v102 = vpop.permute.xlu0 %101
    %105 = vset.pattern.permute.xlu0 0
    %106 = vperm.xlu0 %105, %v53
    %v107 = vpop.permute.xlu0 %106
    %110 = vset.pattern.permute.xlu0 0
    %111 = vperm.xlu0 %110, %v54
    %v112 = vpop.permute.xlu0 %111
    %115 = vset.pattern.permute.xlu0 0
    %116 = vperm.xlu0 %115, %v55
    %v117 = vpop.permute.xlu0 %116
    %120 = vset.pattern.permute.xlu0 0
    %121 = vperm.xlu0 %120, %v56
    %v122 = vpop.permute.xlu0 %121
    %125 = vset.pattern.permute.xlu0 0
    %126 = vperm.xlu0 %125, %v57
    %v127 = vpop.permute.xlu0 %126
    %130 = vset.pattern.permute.xlu0 0
    %131 = vperm.xlu0 %130, %v58
    %v132 = vpop.permute.xlu0 %131
    %135 = vset.pattern.permute.xlu0 0
    %136 = vperm.xlu0 %135, %v59
    %v137 = vpop.permute.xlu0 %136
    %140 = vset.pattern.permute.xlu0 0
    %141 = vperm.xlu0 %140, %v60
    %v142 = vpop.permute.xlu0 %141
    %145 = vset.pattern.permute.xlu0 0
    %146 = vperm.xlu0 %145, %v61
    %v147 = vpop.permute.xlu0 %146
    %150 = vset.pattern.permute.xlu0 0
    %151 = vperm.xlu0 %150, %v62
    %v152 = vpop.permute.xlu0 %151
    %155 = vset.pattern.permute.xlu0 0
    %156 = vperm.xlu0 %155, %v63
    %v157 = vpop.permute.xlu0 %156
    %160 = vset.pattern.permute.xlu0 0
    %161 = vperm.xlu0 %160, %v64
    %v162 = vpop.permute.xlu0 %161
    %165 = vset.pattern.permute.xlu0 0
    %166 = vperm.xlu0 %165, %v65
    %v167 = vpop.permute.xlu0 %166
    %170 = vset.pattern.permute.xlu0 0
    %171 = vperm.xlu0 %170, %v66
    %v172 = vpop.permute.xlu0 %171
    %175 = vset.pattern.permute.xlu0 0
    %176 = vperm.xlu0 %175, %v67
    %v177 = vpop.permute.xlu0 %176
    %180 = vset.pattern.permute.xlu0 0
    %181 = vperm.xlu0 %180, %v68
    %v182 = vpop.permute.xlu0 %181
    %185 = vset.pattern.permute.xlu0 0
    %186 = vperm.xlu0 %185, %v69
    %v187 = vpop.permute.xlu0 %186
    %190 = vset.pattern.permute.xlu0 0
    %191 = vperm.xlu0 %190, %v70
    %v192 = vpop.permute.xlu0 %191
    %195 = vset.pattern.permute.xlu0 0
    %196 = vperm.xlu0 %195, %v71
    %v197 = vpop.permute.xlu0 %196
    %200 = vset.pattern.permute.xlu0 0
    %201 = vperm.xlu0 %200, %v72
    %v202 = vpop.permute.xlu0 %201
    %v205 = vlaneseq
    %v206 = vshrl.u32 %v205, 7
    %v207 = vsub.s32 0, %v206
    %v208 = vrot.slane %v73, %v207
    %v210 = vmul.f32 %v77, %v208
    %v211 = vmul.f32 %v82, %v208
    %v212 = vmul.f32 %v87, %v208
    %v213 = vmul.f32 %v92, %v208
    %v214 = vmul.f32 %v97, %v208
    %v215 = vmul.f32 %v102, %v208
    %v216 = vmul.f32 %v107, %v208
    %v217 = vmul.f32 %v112, %v208
    %v218 = vmul.f32 %v117, %v208
    %v219 = vmul.f32 %v122, %v208
    %v220 = vmul.f32 %v127, %v208
    %v221 = vmul.f32 %v132, %v208
    %v222 = vmul.f32 %v137, %v208
    %v223 = vmul.f32 %v142, %v208
    %v224 = vmul.f32 %v147, %v208
    %v225 = vmul.f32 %v152, %v208
    %v226 = vmul.f32 %v157, %v208
    %v227 = vmul.f32 %v162, %v208
    %v228 = vmul.f32 %v167, %v208
    %v229 = vmul.f32 %v172, %v208
    %v230 = vmul.f32 %v177, %v208
    %v231 = vmul.f32 %v182, %v208
    %v232 = vmul.f32 %v187, %v208
    %v233 = vmul.f32 %v192, %v208
    %v234 = vmul.f32 %v197, %v208
    %v235 = vmul.f32 %v202, %v208
    %v236 = vadd.f32 %v210, 0.0
    %v237 = vadd.f32 %v211, 0.0
    %v238 = vadd.f32 %v212, 0.0
    %v239 = vadd.f32 %v213, 0.0
    %v240 = vadd.f32 %v214, 0.0
    %v241 = vadd.f32 %v215, 0.0
    %v242 = vadd.f32 %v216, 0.0
    %v243 = vadd.f32 %v217, 0.0
    %v244 = vadd.f32 %v218, 0.0
    %v245 = vadd.f32 %v219, 0.0
    %v246 = vadd.f32 %v220, 0.0
    %v247 = vadd.f32 %v221, 0.0
    %v248 = vadd.f32 %v222, 0.0
    %v249 = vadd.f32 %v223, 0.0
    %v250 = vadd.f32 %v224, 0.0
    %v251 = vadd.f32 %v225, 0.0
    %v252 = vadd.f32 %v226, 0.0
    %v253 = vadd.f32 %v227, 0.0
    %v254 = vadd.f32 %v228, 0.0
    %v255 = vadd.f32 %v229, 0.0
    %v256 = vadd.f32 %v230, 0.0
    %v257 = vadd.f32 %v231, 0.0
    %v258 = vadd.f32 %v232, 0.0
    %v259 = vadd.f32 %v233, 0.0
    %v260 = vadd.f32 %v234, 0.0
    %v261 = vadd.f32 %v235, 0.0
    %s262 = sadd.s32 8, %s45
    %s263 = scalar_lea.vmem %s0, %s262
    %v264 = vld [vmem:[%s263] sm:$0xff]
    %v265 = vld [vmem:[%s263 + $0x8] sm:$0xff]
    %v266 = vld [vmem:[%s263 + $0x10] sm:$0xff]
    %v267 = vld [vmem:[%s263 + $0x18] sm:$0xff]
    %v268 = vld [vmem:[%s263 + $0x20] sm:$0xff]
    %v269 = vld [vmem:[%s263 + $0x28] sm:$0xff]
    %v270 = vld [vmem:[%s263 + $0x30] sm:$0xff]
    %v271 = vld [vmem:[%s263 + $0x38] sm:$0xff]
    %v272 = vld [vmem:[%s263 + $0x40] sm:$0xff]
    %v273 = vld [vmem:[%s263 + $0x48] sm:$0xff]
    %v274 = vld [vmem:[%s263 + $0x50] sm:$0xff]
    %v275 = vld [vmem:[%s263 + $0x58] sm:$0xff]
    %v276 = vld [vmem:[%s263 + $0x60] sm:$0xff]
    %v277 = vld [vmem:[%s263 + $0x68] sm:$0xff]
    %v278 = vld [vmem:[%s263 + $0x70] sm:$0xff]
    %v279 = vld [vmem:[%s263 + $0x78] sm:$0xff]
    %v280 = vld [vmem:[%s263 + $0x80] sm:$0xff]
    %v281 = vld [vmem:[%s263 + $0x88] sm:$0xff]
    %v282 = vld [vmem:[%s263 + $0x90] sm:$0xff]
    %v283 = vld [vmem:[%s263 + $0x98] sm:$0xff]
    %v284 = vld [vmem:[%s263 + $0xa0] sm:$0xff]
    %v285 = vld [vmem:[%s263 + $0xa8] sm:$0xff]
    %v286 = vld [vmem:[%s263 + $0xb0] sm:$0xff]
    %v287 = vld [vmem:[%s263 + $0xb8] sm:$0xff]
    %v288 = vld [vmem:[%s263 + $0xc0] sm:$0xff]
    %v289 = vld [vmem:[%s263 + $0xc8] sm:$0xff]
    %s290 = scalar_lea.vmem %s1, 1
    %v291 = vld [vmem:[%s290] sm:$0x1]
    %293 = vset.pattern.permute.xlu0 0
    %294 = vperm.xlu0 %293, %v264
    %v295 = vpop.permute.xlu0 %294
    %298 = vset.pattern.permute.xlu0 0
    %299 = vperm.xlu0 %298, %v265
    %v300 = vpop.permute.xlu0 %299
    %303 = vset.pattern.permute.xlu0 0
    %304 = vperm.xlu0 %303, %v266
    %v305 = vpop.permute.xlu0 %304
    %308 = vset.pattern.permute.xlu0 0
    %309 = vperm.xlu0 %308, %v267
    %v310 = vpop.permute.xlu0 %309
    %313 = vset.pattern.permute.xlu0 0
    %314 = vperm.xlu0 %313, %v268
    %v315 = vpop.permute.xlu0 %314
    %318 = vset.pattern.permute.xlu0 0
    %319 = vperm.xlu0 %318, %v269
    %v320 = vpop.permute.xlu0 %319
    %323 = vset.pattern.permute.xlu0 0
    %324 = vperm.xlu0 %323, %v270
    %v325 = vpop.permute.xlu0 %324
    %328 = vset.pattern.permute.xlu0 0
    %329 = vperm.xlu0 %328, %v271
    %v330 = vpop.permute.xlu0 %329
    %333 = vset.pattern.permute.xlu0 0
    %334 = vperm.xlu0 %333, %v272
    %v335 = vpop.permute.xlu0 %334
    %338 = vset.pattern.permute.xlu0 0
    %339 = vperm.xlu0 %338, %v273
    %v340 = vpop.permute.xlu0 %339
    %343 = vset.pattern.permute.xlu0 0
    %344 = vperm.xlu0 %343, %v274
    %v345 = vpop.permute.xlu0 %344
    %348 = vset.pattern.permute.xlu0 0
    %349 = vperm.xlu0 %348, %v275
    %v350 = vpop.permute.xlu0 %349
    %353 = vset.pattern.permute.xlu0 0
    %354 = vperm.xlu0 %353, %v276
    %v355 = vpop.permute.xlu0 %354
    %358 = vset.pattern.permute.xlu0 0
    %359 = vperm.xlu0 %358, %v277
    %v360 = vpop.permute.xlu0 %359
    %363 = vset.pattern.permute.xlu0 0
    %364 = vperm.xlu0 %363, %v278
    %v365 = vpop.permute.xlu0 %364
    %368 = vset.pattern.permute.xlu0 0
    %369 = vperm.xlu0 %368, %v279
    %v370 = vpop.permute.xlu0 %369
    %373 = vset.pattern.permute.xlu0 0
    %374 = vperm.xlu0 %373, %v280
    %v375 = vpop.permute.xlu0 %374
    %378 = vset.pattern.permute.xlu0 0
    %379 = vperm.xlu0 %378, %v281
    %v380 = vpop.permute.xlu0 %379
    %383 = vset.pattern.permute.xlu0 0
    %384 = vperm.xlu0 %383, %v282
    %v385 = vpop.permute.xlu0 %384
    %388 = vset.pattern.permute.xlu0 0
    %389 = vperm.xlu0 %388, %v283
    %v390 = vpop.permute.xlu0 %389
    %393 = vset.pattern.permute.xlu0 0
    %394 = vperm.xlu0 %393, %v284
    %v395 = vpop.permute.xlu0 %394
    %398 = vset.pattern.permute.xlu0 0
    %399 = vperm.xlu0 %398, %v285
    %v400 = vpop.permute.xlu0 %399
    %403 = vset.pattern.permute.xlu0 0
    %404 = vperm.xlu0 %403, %v286
    %v405 = vpop.permute.xlu0 %404
    %408 = vset.pattern.permute.xlu0 0
    %409 = vperm.xlu0 %408, %v287
    %v410 = vpop.permute.xlu0 %409
    %413 = vset.pattern.permute.xlu0 0
    %414 = vperm.xlu0 %413, %v288
    %v415 = vpop.permute.xlu0 %414
    %418 = vset.pattern.permute.xlu0 0
    %419 = vperm.xlu0 %418, %v289
    %v420 = vpop.permute.xlu0 %419
    %v423 = vlaneseq
    %v424 = vshrl.u32 %v423, 7
    %v425 = vsub.s32 0, %v424
    %v426 = vrot.slane %v291, %v425
    %v428 = vmul.f32 %v295, %v426
    %v429 = vmul.f32 %v300, %v426
    %v430 = vmul.f32 %v305, %v426
    %v431 = vmul.f32 %v310, %v426
    %v432 = vmul.f32 %v315, %v426
    %v433 = vmul.f32 %v320, %v426
    %v434 = vmul.f32 %v325, %v426
    %v435 = vmul.f32 %v330, %v426
    %v436 = vmul.f32 %v335, %v426
    %v437 = vmul.f32 %v340, %v426
    %v438 = vmul.f32 %v345, %v426
    %v439 = vmul.f32 %v350, %v426
    %v440 = vmul.f32 %v355, %v426
    %v441 = vmul.f32 %v360, %v426
    %v442 = vmul.f32 %v365, %v426
    %v443 = vmul.f32 %v370, %v426
    %v444 = vmul.f32 %v375, %v426
    %v445 = vmul.f32 %v380, %v426
    %v446 = vmul.f32 %v385, %v426
    %v447 = vmul.f32 %v390, %v426
    %v448 = vmul.f32 %v395, %v426
    %v449 = vmul.f32 %v400, %v426
    %v450 = vmul.f32 %v405, %v426
    %v451 = vmul.f32 %v410, %v426
    %v452 = vmul.f32 %v415, %v426
    %v453 = vmul.f32 %v420, %v426
    %v454 = vadd.f32 %v236, %v428
    %v455 = vadd.f32 %v237, %v429
    %v456 = vadd.f32 %v238, %v430
    %v457 = vadd.f32 %v239, %v431
    %v458 = vadd.f32 %v240, %v432
    %v459 = vadd.f32 %v241, %v433
    %v460 = vadd.f32 %v242, %v434
    %v461 = vadd.f32 %v243, %v435
    %v462 = vadd.f32 %v244, %v436
    %v463 = vadd.f32 %v245, %v437
    %v464 = vadd.f32 %v246, %v438
    %v465 = vadd.f32 %v247, %v439
    %v466 = vadd.f32 %v248, %v440
    %v467 = vadd.f32 %v249, %v441
    %v468 = vadd.f32 %v250, %v442
    %v469 = vadd.f32 %v251, %v443
    %v470 = vadd.f32 %v252, %v444
    %v471 = vadd.f32 %v253, %v445
    %v472 = vadd.f32 %v254, %v446
    %v473 = vadd.f32 %v255, %v447
    %v474 = vadd.f32 %v256, %v448
    %v475 = vadd.f32 %v257, %v449
    %v476 = vadd.f32 %v258, %v450
    %v477 = vadd.f32 %v259, %v451
    %v478 = vadd.f32 %v260, %v452
    %v479 = vadd.f32 %v261, %v453
    %s480 = sadd.s32 16, %s45
    %s481 = scalar_lea.vmem %s0, %s480
    %v482 = vld [vmem:[%s481] sm:$0xff]
    %v483 = vld [vmem:[%s481 + $0x8] sm:$0xff]
    %v484 = vld [vmem:[%s481 + $0x10] sm:$0xff]
    %v485 = vld [vmem:[%s481 + $0x18] sm:$0xff]
    %v486 = vld [vmem:[%s481 + $0x20] sm:$0xff]
    %v487 = vld [vmem:[%s481 + $0x28] sm:$0xff]
    %v488 = vld [vmem:[%s481 + $0x30] sm:$0xff]
    %v489 = vld [vmem:[%s481 + $0x38] sm:$0xff]
    %v490 = vld [vmem:[%s481 + $0x40] sm:$0xff]
    %v491 = vld [vmem:[%s481 + $0x48] sm:$0xff]
    %v492 = vld [vmem:[%s481 + $0x50] sm:$0xff]
    %v493 = vld [vmem:[%s481 + $0x58] sm:$0xff]
    %v494 = vld [vmem:[%s481 + $0x60] sm:$0xff]
    %v495 = vld [vmem:[%s481 + $0x68] sm:$0xff]
    %v496 = vld [vmem:[%s481 + $0x70] sm:$0xff]
    %v497 = vld [vmem:[%s481 + $0x78] sm:$0xff]
    %v498 = vld [vmem:[%s481 + $0x80] sm:$0xff]
    %v499 = vld [vmem:[%s481 + $0x88] sm:$0xff]
    %v500 = vld [vmem:[%s481 + $0x90] sm:$0xff]
    %v501 = vld [vmem:[%s481 + $0x98] sm:$0xff]
    %v502 = vld [vmem:[%s481 + $0xa0] sm:$0xff]
    %v503 = vld [vmem:[%s481 + $0xa8] sm:$0xff]
    %v504 = vld [vmem:[%s481 + $0xb0] sm:$0xff]
    %v505 = vld [vmem:[%s481 + $0xb8] sm:$0xff]
    %v506 = vld [vmem:[%s481 + $0xc0] sm:$0xff]
    %v507 = vld [vmem:[%s481 + $0xc8] sm:$0xff]
    %s508 = scalar_lea.vmem %s1, 2
    %v509 = vld [vmem:[%s508] sm:$0x1]
    %511 = vset.pattern.permute.xlu0 0
    %512 = vperm.xlu0 %511, %v482
    %v513 = vpop.permute.xlu0 %512
    %516 = vset.pattern.permute.xlu0 0
    %517 = vperm.xlu0 %516, %v483
    %v518 = vpop.permute.xlu0 %517
    %521 = vset.pattern.permute.xlu0 0
    %522 = vperm.xlu0 %521, %v484
    %v523 = vpop.permute.xlu0 %522
    %526 = vset.pattern.permute.xlu0 0
    %527 = vperm.xlu0 %526, %v485
    %v528 = vpop.permute.xlu0 %527
    %531 = vset.pattern.permute.xlu0 0
    %532 = vperm.xlu0 %531, %v486
    %v533 = vpop.permute.xlu0 %532
    %536 = vset.pattern.permute.xlu0 0
    %537 = vperm.xlu0 %536, %v487
    %v538 = vpop.permute.xlu0 %537
    %541 = vset.pattern.permute.xlu0 0
    %542 = vperm.xlu0 %541, %v488
    %v543 = vpop.permute.xlu0 %542
    %546 = vset.pattern.permute.xlu0 0
    %547 = vperm.xlu0 %546, %v489
    %v548 = vpop.permute.xlu0 %547
    %551 = vset.pattern.permute.xlu0 0
    %552 = vperm.xlu0 %551, %v490
    %v553 = vpop.permute.xlu0 %552
    %556 = vset.pattern.permute.xlu0 0
    %557 = vperm.xlu0 %556, %v491
    %v558 = vpop.permute.xlu0 %557
    %561 = vset.pattern.permute.xlu0 0
    %562 = vperm.xlu0 %561, %v492
    %v563 = vpop.permute.xlu0 %562
    %566 = vset.pattern.permute.xlu0 0
    %567 = vperm.xlu0 %566, %v493
    %v568 = vpop.permute.xlu0 %567
    %571 = vset.pattern.permute.xlu0 0
    %572 = vperm.xlu0 %571, %v494
    %v573 = vpop.permute.xlu0 %572
    %576 = vset.pattern.permute.xlu0 0
    %577 = vperm.xlu0 %576, %v495
    %v578 = vpop.permute.xlu0 %577
    %581 = vset.pattern.permute.xlu0 0
    %582 = vperm.xlu0 %581, %v496
    %v583 = vpop.permute.xlu0 %582
    %586 = vset.pattern.permute.xlu0 0
    %587 = vperm.xlu0 %586, %v497
    %v588 = vpop.permute.xlu0 %587
    %591 = vset.pattern.permute.xlu0 0
    %592 = vperm.xlu0 %591, %v498
    %v593 = vpop.permute.xlu0 %592
    %596 = vset.pattern.permute.xlu0 0
    %597 = vperm.xlu0 %596, %v499
    %v598 = vpop.permute.xlu0 %597
    %601 = vset.pattern.permute.xlu0 0
    %602 = vperm.xlu0 %601, %v500
    %v603 = vpop.permute.xlu0 %602
    %606 = vset.pattern.permute.xlu0 0
    %607 = vperm.xlu0 %606, %v501
    %v608 = vpop.permute.xlu0 %607
    %611 = vset.pattern.permute.xlu0 0
    %612 = vperm.xlu0 %611, %v502
    %v613 = vpop.permute.xlu0 %612
    %616 = vset.pattern.permute.xlu0 0
    %617 = vperm.xlu0 %616, %v503
    %v618 = vpop.permute.xlu0 %617
    %621 = vset.pattern.permute.xlu0 0
    %622 = vperm.xlu0 %621, %v504
    %v623 = vpop.permute.xlu0 %622
    %626 = vset.pattern.permute.xlu0 0
    %627 = vperm.xlu0 %626, %v505
    %v628 = vpop.permute.xlu0 %627
    %631 = vset.pattern.permute.xlu0 0
    %632 = vperm.xlu0 %631, %v506
    %v633 = vpop.permute.xlu0 %632
    %636 = vset.pattern.permute.xlu0 0
    %637 = vperm.xlu0 %636, %v507
    %v638 = vpop.permute.xlu0 %637
    %v641 = vlaneseq
    %v642 = vshrl.u32 %v641, 7
    %v643 = vsub.s32 0, %v642
    %v644 = vrot.slane %v509, %v643
    %v646 = vmul.f32 %v513, %v644
    %v647 = vmul.f32 %v518, %v644
    %v648 = vmul.f32 %v523, %v644
    %v649 = vmul.f32 %v528, %v644
    %v650 = vmul.f32 %v533, %v644
    %v651 = vmul.f32 %v538, %v644
    %v652 = vmul.f32 %v543, %v644
    %v653 = vmul.f32 %v548, %v644
    %v654 = vmul.f32 %v553, %v644
    %v655 = vmul.f32 %v558, %v644
    %v656 = vmul.f32 %v563, %v644
    %v657 = vmul.f32 %v568, %v644
    %v658 = vmul.f32 %v573, %v644
    %v659 = vmul.f32 %v578, %v644
    %v660 = vmul.f32 %v583, %v644
    %v661 = vmul.f32 %v588, %v644
    %v662 = vmul.f32 %v593, %v644
    %v663 = vmul.f32 %v598, %v644
    %v664 = vmul.f32 %v603, %v644
    %v665 = vmul.f32 %v608, %v644
    %v666 = vmul.f32 %v613, %v644
    %v667 = vmul.f32 %v618, %v644
    %v668 = vmul.f32 %v623, %v644
    %v669 = vmul.f32 %v628, %v644
    %v670 = vmul.f32 %v633, %v644
    %v671 = vmul.f32 %v638, %v644
    %v672 = vadd.f32 %v454, %v646
    %v673 = vadd.f32 %v455, %v647
    %v674 = vadd.f32 %v456, %v648
    %v675 = vadd.f32 %v457, %v649
    %v676 = vadd.f32 %v458, %v650
    %v677 = vadd.f32 %v459, %v651
    %v678 = vadd.f32 %v460, %v652
    %v679 = vadd.f32 %v461, %v653
    %v680 = vadd.f32 %v462, %v654
    %v681 = vadd.f32 %v463, %v655
    %v682 = vadd.f32 %v464, %v656
    %v683 = vadd.f32 %v465, %v657
    %v684 = vadd.f32 %v466, %v658
    %v685 = vadd.f32 %v467, %v659
    %v686 = vadd.f32 %v468, %v660
    %v687 = vadd.f32 %v469, %v661
    %v688 = vadd.f32 %v470, %v662
    %v689 = vadd.f32 %v471, %v663
    %v690 = vadd.f32 %v472, %v664
    %v691 = vadd.f32 %v473, %v665
    %v692 = vadd.f32 %v474, %v666
    %v693 = vadd.f32 %v475, %v667
    %v694 = vadd.f32 %v476, %v668
    %v695 = vadd.f32 %v477, %v669
    %v696 = vadd.f32 %v478, %v670
    %v697 = vadd.f32 %v479, %v671
    %s698 = sadd.s32 %s44, 1
    %s699 = smul.u32 %s698, 224
    %s700 = scalar_lea.vmem %s0, %s699
    %v701 = vld [vmem:[%s700] sm:$0xff]
    %v702 = vld [vmem:[%s700 + $0x8] sm:$0xff]
    %v703 = vld [vmem:[%s700 + $0x10] sm:$0xff]
    %v704 = vld [vmem:[%s700 + $0x18] sm:$0xff]
    %v705 = vld [vmem:[%s700 + $0x20] sm:$0xff]
    %v706 = vld [vmem:[%s700 + $0x28] sm:$0xff]
    %v707 = vld [vmem:[%s700 + $0x30] sm:$0xff]
    %v708 = vld [vmem:[%s700 + $0x38] sm:$0xff]
    %v709 = vld [vmem:[%s700 + $0x40] sm:$0xff]
    %v710 = vld [vmem:[%s700 + $0x48] sm:$0xff]
    %v711 = vld [vmem:[%s700 + $0x50] sm:$0xff]
    %v712 = vld [vmem:[%s700 + $0x58] sm:$0xff]
    %v713 = vld [vmem:[%s700 + $0x60] sm:$0xff]
    %v714 = vld [vmem:[%s700 + $0x68] sm:$0xff]
    %v715 = vld [vmem:[%s700 + $0x70] sm:$0xff]
    %v716 = vld [vmem:[%s700 + $0x78] sm:$0xff]
    %v717 = vld [vmem:[%s700 + $0x80] sm:$0xff]
    %v718 = vld [vmem:[%s700 + $0x88] sm:$0xff]
    %v719 = vld [vmem:[%s700 + $0x90] sm:$0xff]
    %v720 = vld [vmem:[%s700 + $0x98] sm:$0xff]
    %v721 = vld [vmem:[%s700 + $0xa0] sm:$0xff]
    %v722 = vld [vmem:[%s700 + $0xa8] sm:$0xff]
    %v723 = vld [vmem:[%s700 + $0xb0] sm:$0xff]
    %v724 = vld [vmem:[%s700 + $0xb8] sm:$0xff]
    %v725 = vld [vmem:[%s700 + $0xc0] sm:$0xff]
    %v726 = vld [vmem:[%s700 + $0xc8] sm:$0xff]
    %s727 = scalar_lea.vmem %s1, 3
    %v728 = vld [vmem:[%s727] sm:$0x1]
    %730 = vset.pattern.permute.xlu0 0
    %731 = vperm.xlu0 %730, %v701
    %v732 = vpop.permute.xlu0 %731
    %735 = vset.pattern.permute.xlu0 0
    %736 = vperm.xlu0 %735, %v702
    %v737 = vpop.permute.xlu0 %736
    %740 = vset.pattern.permute.xlu0 0
    %741 = vperm.xlu0 %740, %v703
    %v742 = vpop.permute.xlu0 %741
    %745 = vset.pattern.permute.xlu0 0
    %746 = vperm.xlu0 %745, %v704
    %v747 = vpop.permute.xlu0 %746
    %750 = vset.pattern.permute.xlu0 0
    %751 = vperm.xlu0 %750, %v705
    %v752 = vpop.permute.xlu0 %751
    %755 = vset.pattern.permute.xlu0 0
    %756 = vperm.xlu0 %755, %v706
    %v757 = vpop.permute.xlu0 %756
    %760 = vset.pattern.permute.xlu0 0
    %761 = vperm.xlu0 %760, %v707
    %v762 = vpop.permute.xlu0 %761
    %765 = vset.pattern.permute.xlu0 0
    %766 = vperm.xlu0 %765, %v708
    %v767 = vpop.permute.xlu0 %766
    %770 = vset.pattern.permute.xlu0 0
    %771 = vperm.xlu0 %770, %v709
    %v772 = vpop.permute.xlu0 %771
    %775 = vset.pattern.permute.xlu0 0
    %776 = vperm.xlu0 %775, %v710
    %v777 = vpop.permute.xlu0 %776
    %780 = vset.pattern.permute.xlu0 0
    %781 = vperm.xlu0 %780, %v711
    %v782 = vpop.permute.xlu0 %781
    %785 = vset.pattern.permute.xlu0 0
    %786 = vperm.xlu0 %785, %v712
    %v787 = vpop.permute.xlu0 %786
    %790 = vset.pattern.permute.xlu0 0
    %791 = vperm.xlu0 %790, %v713
    %v792 = vpop.permute.xlu0 %791
    %795 = vset.pattern.permute.xlu0 0
    %796 = vperm.xlu0 %795, %v714
    %v797 = vpop.permute.xlu0 %796
    %800 = vset.pattern.permute.xlu0 0
    %801 = vperm.xlu0 %800, %v715
    %v802 = vpop.permute.xlu0 %801
    %805 = vset.pattern.permute.xlu0 0
    %806 = vperm.xlu0 %805, %v716
    %v807 = vpop.permute.xlu0 %806
    %810 = vset.pattern.permute.xlu0 0
    %811 = vperm.xlu0 %810, %v717
    %v812 = vpop.permute.xlu0 %811
    %815 = vset.pattern.permute.xlu0 0
    %816 = vperm.xlu0 %815, %v718
    %v817 = vpop.permute.xlu0 %816
    %820 = vset.pattern.permute.xlu0 0
    %821 = vperm.xlu0 %820, %v719
    %v822 = vpop.permute.xlu0 %821
    %825 = vset.pattern.permute.xlu0 0
    %826 = vperm.xlu0 %825, %v720
    %v827 = vpop.permute.xlu0 %826
    %830 = vset.pattern.permute.xlu0 0
    %831 = vperm.xlu0 %830, %v721
    %v832 = vpop.permute.xlu0 %831
    %835 = vset.pattern.permute.xlu0 0
    %836 = vperm.xlu0 %835, %v722
    %v837 = vpop.permute.xlu0 %836
    %840 = vset.pattern.permute.xlu0 0
    %841 = vperm.xlu0 %840, %v723
    %v842 = vpop.permute.xlu0 %841
    %845 = vset.pattern.permute.xlu0 0
    %846 = vperm.xlu0 %845, %v724
    %v847 = vpop.permute.xlu0 %846
    %850 = vset.pattern.permute.xlu0 0
    %851 = vperm.xlu0 %850, %v725
    %v852 = vpop.permute.xlu0 %851
    %855 = vset.pattern.permute.xlu0 0
    %856 = vperm.xlu0 %855, %v726
    %v857 = vpop.permute.xlu0 %856
    %v860 = vlaneseq
    %v861 = vshrl.u32 %v860, 7
    %v862 = vsub.s32 0, %v861
    %v863 = vrot.slane %v728, %v862
    %v865 = vmul.f32 %v732, %v863
    %v866 = vmul.f32 %v737, %v863
    %v867 = vmul.f32 %v742, %v863
    %v868 = vmul.f32 %v747, %v863
    %v869 = vmul.f32 %v752, %v863
    %v870 = vmul.f32 %v757, %v863
    %v871 = vmul.f32 %v762, %v863
    %v872 = vmul.f32 %v767, %v863
    %v873 = vmul.f32 %v772, %v863
    %v874 = vmul.f32 %v777, %v863
    %v875 = vmul.f32 %v782, %v863
    %v876 = vmul.f32 %v787, %v863
    %v877 = vmul.f32 %v792, %v863
    %v878 = vmul.f32 %v797, %v863
    %v879 = vmul.f32 %v802, %v863
    %v880 = vmul.f32 %v807, %v863
    %v881 = vmul.f32 %v812, %v863
    %v882 = vmul.f32 %v817, %v863
    %v883 = vmul.f32 %v822, %v863
    %v884 = vmul.f32 %v827, %v863
    %v885 = vmul.f32 %v832, %v863
    %v886 = vmul.f32 %v837, %v863
    %v887 = vmul.f32 %v842, %v863
    %v888 = vmul.f32 %v847, %v863
    %v889 = vmul.f32 %v852, %v863
    %v890 = vmul.f32 %v857, %v863
    %v891 = vadd.f32 %v672, %v865
    %v892 = vadd.f32 %v673, %v866
    %v893 = vadd.f32 %v674, %v867
    %v894 = vadd.f32 %v675, %v868
    %v895 = vadd.f32 %v676, %v869
    %v896 = vadd.f32 %v677, %v870
    %v897 = vadd.f32 %v678, %v871
    %v898 = vadd.f32 %v679, %v872
    %v899 = vadd.f32 %v680, %v873
    %v900 = vadd.f32 %v681, %v874
    %v901 = vadd.f32 %v682, %v875
    %v902 = vadd.f32 %v683, %v876
    %v903 = vadd.f32 %v684, %v877
    %v904 = vadd.f32 %v685, %v878
    %v905 = vadd.f32 %v686, %v879
    %v906 = vadd.f32 %v687, %v880
    %v907 = vadd.f32 %v688, %v881
    %v908 = vadd.f32 %v689, %v882
    %v909 = vadd.f32 %v690, %v883
    %v910 = vadd.f32 %v691, %v884
    %v911 = vadd.f32 %v692, %v885
    %v912 = vadd.f32 %v693, %v886
    %v913 = vadd.f32 %v694, %v887
    %v914 = vadd.f32 %v695, %v888
    %v915 = vadd.f32 %v696, %v889
    %v916 = vadd.f32 %v697, %v890
    %s917 = sadd.s32 8, %s699
    %s918 = scalar_lea.vmem %s0, %s917
    %v919 = vld [vmem:[%s918] sm:$0xff]
    %v920 = vld [vmem:[%s918 + $0x8] sm:$0xff]
    %v921 = vld [vmem:[%s918 + $0x10] sm:$0xff]
    %v922 = vld [vmem:[%s918 + $0x18] sm:$0xff]
    %v923 = vld [vmem:[%s918 + $0x20] sm:$0xff]
    %v924 = vld [vmem:[%s918 + $0x28] sm:$0xff]
    %v925 = vld [vmem:[%s918 + $0x30] sm:$0xff]
    %v926 = vld [vmem:[%s918 + $0x38] sm:$0xff]
    %v927 = vld [vmem:[%s918 + $0x40] sm:$0xff]
    %v928 = vld [vmem:[%s918 + $0x48] sm:$0xff]
    %v929 = vld [vmem:[%s918 + $0x50] sm:$0xff]
    %v930 = vld [vmem:[%s918 + $0x58] sm:$0xff]
    %v931 = vld [vmem:[%s918 + $0x60] sm:$0xff]
    %v932 = vld [vmem:[%s918 + $0x68] sm:$0xff]
    %v933 = vld [vmem:[%s918 + $0x70] sm:$0xff]
    %v934 = vld [vmem:[%s918 + $0x78] sm:$0xff]
    %v935 = vld [vmem:[%s918 + $0x80] sm:$0xff]
    %v936 = vld [vmem:[%s918 + $0x88] sm:$0xff]
    %v937 = vld [vmem:[%s918 + $0x90] sm:$0xff]
    %v938 = vld [vmem:[%s918 + $0x98] sm:$0xff]
    %v939 = vld [vmem:[%s918 + $0xa0] sm:$0xff]
    %v940 = vld [vmem:[%s918 + $0xa8] sm:$0xff]
    %v941 = vld [vmem:[%s918 + $0xb0] sm:$0xff]
    %v942 = vld [vmem:[%s918 + $0xb8] sm:$0xff]
    %v943 = vld [vmem:[%s918 + $0xc0] sm:$0xff]
    %v944 = vld [vmem:[%s918 + $0xc8] sm:$0xff]
    %s945 = scalar_lea.vmem %s1, 4
    %v946 = vld [vmem:[%s945] sm:$0x1]
    %948 = vset.pattern.permute.xlu0 0
    %949 = vperm.xlu0 %948, %v919
    %v950 = vpop.permute.xlu0 %949
    %953 = vset.pattern.permute.xlu0 0
    %954 = vperm.xlu0 %953, %v920
    %v955 = vpop.permute.xlu0 %954
    %958 = vset.pattern.permute.xlu0 0
    %959 = vperm.xlu0 %958, %v921
    %v960 = vpop.permute.xlu0 %959
    %963 = vset.pattern.permute.xlu0 0
    %964 = vperm.xlu0 %963, %v922
    %v965 = vpop.permute.xlu0 %964
    %968 = vset.pattern.permute.xlu0 0
    %969 = vperm.xlu0 %968, %v923
    %v970 = vpop.permute.xlu0 %969
    %973 = vset.pattern.permute.xlu0 0
    %974 = vperm.xlu0 %973, %v924
    %v975 = vpop.permute.xlu0 %974
    %978 = vset.pattern.permute.xlu0 0
    %979 = vperm.xlu0 %978, %v925
    %v980 = vpop.permute.xlu0 %979
    %983 = vset.pattern.permute.xlu0 0
    %984 = vperm.xlu0 %983, %v926
    %v985 = vpop.permute.xlu0 %984
    %988 = vset.pattern.permute.xlu0 0
    %989 = vperm.xlu0 %988, %v927
    %v990 = vpop.permute.xlu0 %989
    %993 = vset.pattern.permute.xlu0 0
    %994 = vperm.xlu0 %993, %v928
    %v995 = vpop.permute.xlu0 %994
    %998 = vset.pattern.permute.xlu0 0
    %999 = vperm.xlu0 %998, %v929
    %v1000 = vpop.permute.xlu0 %999
    %1003 = vset.pattern.permute.xlu0 0
    %1004 = vperm.xlu0 %1003, %v930
    %v1005 = vpop.permute.xlu0 %1004
    %1008 = vset.pattern.permute.xlu0 0
    %1009 = vperm.xlu0 %1008, %v931
    %v1010 = vpop.permute.xlu0 %1009
    %1013 = vset.pattern.permute.xlu0 0
    %1014 = vperm.xlu0 %1013, %v932
    %v1015 = vpop.permute.xlu0 %1014
    %1018 = vset.pattern.permute.xlu0 0
    %1019 = vperm.xlu0 %1018, %v933
    %v1020 = vpop.permute.xlu0 %1019
    %1023 = vset.pattern.permute.xlu0 0
    %1024 = vperm.xlu0 %1023, %v934
    %v1025 = vpop.permute.xlu0 %1024
    %1028 = vset.pattern.permute.xlu0 0
    %1029 = vperm.xlu0 %1028, %v935
    %v1030 = vpop.permute.xlu0 %1029
    %1033 = vset.pattern.permute.xlu0 0
    %1034 = vperm.xlu0 %1033, %v936
    %v1035 = vpop.permute.xlu0 %1034
    %1038 = vset.pattern.permute.xlu0 0
    %1039 = vperm.xlu0 %1038, %v937
    %v1040 = vpop.permute.xlu0 %1039
    %1043 = vset.pattern.permute.xlu0 0
    %1044 = vperm.xlu0 %1043, %v938
    %v1045 = vpop.permute.xlu0 %1044
    %1048 = vset.pattern.permute.xlu0 0
    %1049 = vperm.xlu0 %1048, %v939
    %v1050 = vpop.permute.xlu0 %1049
    %1053 = vset.pattern.permute.xlu0 0
    %1054 = vperm.xlu0 %1053, %v940
    %v1055 = vpop.permute.xlu0 %1054
    %1058 = vset.pattern.permute.xlu0 0
    %1059 = vperm.xlu0 %1058, %v941
    %v1060 = vpop.permute.xlu0 %1059
    %1063 = vset.pattern.permute.xlu0 0
    %1064 = vperm.xlu0 %1063, %v942
    %v1065 = vpop.permute.xlu0 %1064
    %1068 = vset.pattern.permute.xlu0 0
    %1069 = vperm.xlu0 %1068, %v943
    %v1070 = vpop.permute.xlu0 %1069
    %1073 = vset.pattern.permute.xlu0 0
    %1074 = vperm.xlu0 %1073, %v944
    %v1075 = vpop.permute.xlu0 %1074
    %v1078 = vlaneseq
    %v1079 = vshrl.u32 %v1078, 7
    %v1080 = vsub.s32 0, %v1079
    %v1081 = vrot.slane %v946, %v1080
    %v1083 = vmul.f32 %v950, %v1081
    %v1084 = vmul.f32 %v955, %v1081
    %v1085 = vmul.f32 %v960, %v1081
    %v1086 = vmul.f32 %v965, %v1081
    %v1087 = vmul.f32 %v970, %v1081
    %v1088 = vmul.f32 %v975, %v1081
    %v1089 = vmul.f32 %v980, %v1081
    %v1090 = vmul.f32 %v985, %v1081
    %v1091 = vmul.f32 %v990, %v1081
    %v1092 = vmul.f32 %v995, %v1081
    %v1093 = vmul.f32 %v1000, %v1081
    %v1094 = vmul.f32 %v1005, %v1081
    %v1095 = vmul.f32 %v1010, %v1081
    %v1096 = vmul.f32 %v1015, %v1081
    %v1097 = vmul.f32 %v1020, %v1081
    %v1098 = vmul.f32 %v1025, %v1081
    %v1099 = vmul.f32 %v1030, %v1081
    %v1100 = vmul.f32 %v1035, %v1081
    %v1101 = vmul.f32 %v1040, %v1081
    %v1102 = vmul.f32 %v1045, %v1081
    %v1103 = vmul.f32 %v1050, %v1081
    %v1104 = vmul.f32 %v1055, %v1081
    %v1105 = vmul.f32 %v1060, %v1081
    %v1106 = vmul.f32 %v1065, %v1081
    %v1107 = vmul.f32 %v1070, %v1081
    %v1108 = vmul.f32 %v1075, %v1081
    %v1109 = vadd.f32 %v891, %v1083
    %v1110 = vadd.f32 %v892, %v1084
    %v1111 = vadd.f32 %v893, %v1085
    %v1112 = vadd.f32 %v894, %v1086
    %v1113 = vadd.f32 %v895, %v1087
    %v1114 = vadd.f32 %v896, %v1088
    %v1115 = vadd.f32 %v897, %v1089
    %v1116 = vadd.f32 %v898, %v1090
    %v1117 = vadd.f32 %v899, %v1091
    %v1118 = vadd.f32 %v900, %v1092
    %v1119 = vadd.f32 %v901, %v1093
    %v1120 = vadd.f32 %v902, %v1094
    %v1121 = vadd.f32 %v903, %v1095
    %v1122 = vadd.f32 %v904, %v1096
    %v1123 = vadd.f32 %v905, %v1097
    %v1124 = vadd.f32 %v906, %v1098
    %v1125 = vadd.f32 %v907, %v1099
    %v1126 = vadd.f32 %v908, %v1100
    %v1127 = vadd.f32 %v909, %v1101
    %v1128 = vadd.f32 %v910, %v1102
    %v1129 = vadd.f32 %v911, %v1103
    %v1130 = vadd.f32 %v912, %v1104
    %v1131 = vadd.f32 %v913, %v1105
    %v1132 = vadd.f32 %v914, %v1106
    %v1133 = vadd.f32 %v915, %v1107
    %v1134 = vadd.f32 %v916, %v1108
    %s1135 = sadd.s32 16, %s699
    %s1136 = scalar_lea.vmem %s0, %s1135
    %v1137 = vld [vmem:[%s1136] sm:$0xff]
    %v1138 = vld [vmem:[%s1136 + $0x8] sm:$0xff]
    %v1139 = vld [vmem:[%s1136 + $0x10] sm:$0xff]
    %v1140 = vld [vmem:[%s1136 + $0x18] sm:$0xff]
    %v1141 = vld [vmem:[%s1136 + $0x20] sm:$0xff]
    %v1142 = vld [vmem:[%s1136 + $0x28] sm:$0xff]
    %v1143 = vld [vmem:[%s1136 + $0x30] sm:$0xff]
    %v1144 = vld [vmem:[%s1136 + $0x38] sm:$0xff]
    %v1145 = vld [vmem:[%s1136 + $0x40] sm:$0xff]
    %v1146 = vld [vmem:[%s1136 + $0x48] sm:$0xff]
    %v1147 = vld [vmem:[%s1136 + $0x50] sm:$0xff]
    %v1148 = vld [vmem:[%s1136 + $0x58] sm:$0xff]
    %v1149 = vld [vmem:[%s1136 + $0x60] sm:$0xff]
    %v1150 = vld [vmem:[%s1136 + $0x68] sm:$0xff]
    %v1151 = vld [vmem:[%s1136 + $0x70] sm:$0xff]
    %v1152 = vld [vmem:[%s1136 + $0x78] sm:$0xff]
    %v1153 = vld [vmem:[%s1136 + $0x80] sm:$0xff]
    %v1154 = vld [vmem:[%s1136 + $0x88] sm:$0xff]
    %v1155 = vld [vmem:[%s1136 + $0x90] sm:$0xff]
    %v1156 = vld [vmem:[%s1136 + $0x98] sm:$0xff]
    %v1157 = vld [vmem:[%s1136 + $0xa0] sm:$0xff]
    %v1158 = vld [vmem:[%s1136 + $0xa8] sm:$0xff]
    %v1159 = vld [vmem:[%s1136 + $0xb0] sm:$0xff]
    %v1160 = vld [vmem:[%s1136 + $0xb8] sm:$0xff]
    %v1161 = vld [vmem:[%s1136 + $0xc0] sm:$0xff]
    %v1162 = vld [vmem:[%s1136 + $0xc8] sm:$0xff]
    %s1163 = scalar_lea.vmem %s1, 5
    %v1164 = vld [vmem:[%s1163] sm:$0x1]
    %1166 = vset.pattern.permute.xlu0 0
    %1167 = vperm.xlu0 %1166, %v1137
    %v1168 = vpop.permute.xlu0 %1167
    %1171 = vset.pattern.permute.xlu0 0
    %1172 = vperm.xlu0 %1171, %v1138
    %v1173 = vpop.permute.xlu0 %1172
    %1176 = vset.pattern.permute.xlu0 0
    %1177 = vperm.xlu0 %1176, %v1139
    %v1178 = vpop.permute.xlu0 %1177
    %1181 = vset.pattern.permute.xlu0 0
    %1182 = vperm.xlu0 %1181, %v1140
    %v1183 = vpop.permute.xlu0 %1182
    %1186 = vset.pattern.permute.xlu0 0
    %1187 = vperm.xlu0 %1186, %v1141
    %v1188 = vpop.permute.xlu0 %1187
    %1191 = vset.pattern.permute.xlu0 0
    %1192 = vperm.xlu0 %1191, %v1142
    %v1193 = vpop.permute.xlu0 %1192
    %1196 = vset.pattern.permute.xlu0 0
    %1197 = vperm.xlu0 %1196, %v1143
    %v1198 = vpop.permute.xlu0 %1197
    %1201 = vset.pattern.permute.xlu0 0
    %1202 = vperm.xlu0 %1201, %v1144
    %v1203 = vpop.permute.xlu0 %1202
    %1206 = vset.pattern.permute.xlu0 0
    %1207 = vperm.xlu0 %1206, %v1145
    %v1208 = vpop.permute.xlu0 %1207
    %1211 = vset.pattern.permute.xlu0 0
    %1212 = vperm.xlu0 %1211, %v1146
    %v1213 = vpop.permute.xlu0 %1212
    %1216 = vset.pattern.permute.xlu0 0
    %1217 = vperm.xlu0 %1216, %v1147
    %v1218 = vpop.permute.xlu0 %1217
    %1221 = vset.pattern.permute.xlu0 0
    %1222 = vperm.xlu0 %1221, %v1148
    %v1223 = vpop.permute.xlu0 %1222
    %1226 = vset.pattern.permute.xlu0 0
    %1227 = vperm.xlu0 %1226, %v1149
    %v1228 = vpop.permute.xlu0 %1227
    %1231 = vset.pattern.permute.xlu0 0
    %1232 = vperm.xlu0 %1231, %v1150
    %v1233 = vpop.permute.xlu0 %1232
    %1236 = vset.pattern.permute.xlu0 0
    %1237 = vperm.xlu0 %1236, %v1151
    %v1238 = vpop.permute.xlu0 %1237
    %1241 = vset.pattern.permute.xlu0 0
    %1242 = vperm.xlu0 %1241, %v1152
    %v1243 = vpop.permute.xlu0 %1242
    %1246 = vset.pattern.permute.xlu0 0
    %1247 = vperm.xlu0 %1246, %v1153
    %v1248 = vpop.permute.xlu0 %1247
    %1251 = vset.pattern.permute.xlu0 0
    %1252 = vperm.xlu0 %1251, %v1154
    %v1253 = vpop.permute.xlu0 %1252
    %1256 = vset.pattern.permute.xlu0 0
    %1257 = vperm.xlu0 %1256, %v1155
    %v1258 = vpop.permute.xlu0 %1257
    %1261 = vset.pattern.permute.xlu0 0
    %1262 = vperm.xlu0 %1261, %v1156
    %v1263 = vpop.permute.xlu0 %1262
    %1266 = vset.pattern.permute.xlu0 0
    %1267 = vperm.xlu0 %1266, %v1157
    %v1268 = vpop.permute.xlu0 %1267
    %1271 = vset.pattern.permute.xlu0 0
    %1272 = vperm.xlu0 %1271, %v1158
    %v1273 = vpop.permute.xlu0 %1272
    %1276 = vset.pattern.permute.xlu0 0
    %1277 = vperm.xlu0 %1276, %v1159
    %v1278 = vpop.permute.xlu0 %1277
    %1281 = vset.pattern.permute.xlu0 0
    %1282 = vperm.xlu0 %1281, %v1160
    %v1283 = vpop.permute.xlu0 %1282
    %1286 = vset.pattern.permute.xlu0 0
    %1287 = vperm.xlu0 %1286, %v1161
    %v1288 = vpop.permute.xlu0 %1287
    %1291 = vset.pattern.permute.xlu0 0
    %1292 = vperm.xlu0 %1291, %v1162
    %v1293 = vpop.permute.xlu0 %1292
    %v1296 = vlaneseq
    %v1297 = vshrl.u32 %v1296, 7
    %v1298 = vsub.s32 0, %v1297
    %v1299 = vrot.slane %v1164, %v1298
    %v1301 = vmul.f32 %v1168, %v1299
    %v1302 = vmul.f32 %v1173, %v1299
    %v1303 = vmul.f32 %v1178, %v1299
    %v1304 = vmul.f32 %v1183, %v1299
    %v1305 = vmul.f32 %v1188, %v1299
    %v1306 = vmul.f32 %v1193, %v1299
    %v1307 = vmul.f32 %v1198, %v1299
    %v1308 = vmul.f32 %v1203, %v1299
    %v1309 = vmul.f32 %v1208, %v1299
    %v1310 = vmul.f32 %v1213, %v1299
    %v1311 = vmul.f32 %v1218, %v1299
    %v1312 = vmul.f32 %v1223, %v1299
    %v1313 = vmul.f32 %v1228, %v1299
    %v1314 = vmul.f32 %v1233, %v1299
    %v1315 = vmul.f32 %v1238, %v1299
    %v1316 = vmul.f32 %v1243, %v1299
    %v1317 = vmul.f32 %v1248, %v1299
    %v1318 = vmul.f32 %v1253, %v1299
    %v1319 = vmul.f32 %v1258, %v1299
    %v1320 = vmul.f32 %v1263, %v1299
    %v1321 = vmul.f32 %v1268, %v1299
    %v1322 = vmul.f32 %v1273, %v1299
    %v1323 = vmul.f32 %v1278, %v1299
    %v1324 = vmul.f32 %v1283, %v1299
    %v1325 = vmul.f32 %v1288, %v1299
    %v1326 = vmul.f32 %v1293, %v1299
    %v1327 = vadd.f32 %v1109, %v1301
    %v1328 = vadd.f32 %v1110, %v1302
    %v1329 = vadd.f32 %v1111, %v1303
    %v1330 = vadd.f32 %v1112, %v1304
    %v1331 = vadd.f32 %v1113, %v1305
    %v1332 = vadd.f32 %v1114, %v1306
    %v1333 = vadd.f32 %v1115, %v1307
    %v1334 = vadd.f32 %v1116, %v1308
    %v1335 = vadd.f32 %v1117, %v1309
    %v1336 = vadd.f32 %v1118, %v1310
    %v1337 = vadd.f32 %v1119, %v1311
    %v1338 = vadd.f32 %v1120, %v1312
    %v1339 = vadd.f32 %v1121, %v1313
    %v1340 = vadd.f32 %v1122, %v1314
    %v1341 = vadd.f32 %v1123, %v1315
    %v1342 = vadd.f32 %v1124, %v1316
    %v1343 = vadd.f32 %v1125, %v1317
    %v1344 = vadd.f32 %v1126, %v1318
    %v1345 = vadd.f32 %v1127, %v1319
    %v1346 = vadd.f32 %v1128, %v1320
    %v1347 = vadd.f32 %v1129, %v1321
    %v1348 = vadd.f32 %v1130, %v1322
    %v1349 = vadd.f32 %v1131, %v1323
    %v1350 = vadd.f32 %v1132, %v1324
    %v1351 = vadd.f32 %v1133, %v1325
    %v1352 = vadd.f32 %v1134, %v1326
    %s1353 = sadd.s32 %s44, 2
    %s1354 = smul.u32 %s1353, 224
    %s1355 = scalar_lea.vmem %s0, %s1354
    %v1356 = vld [vmem:[%s1355] sm:$0xff]
    %v1357 = vld [vmem:[%s1355 + $0x8] sm:$0xff]
    %v1358 = vld [vmem:[%s1355 + $0x10] sm:$0xff]
    %v1359 = vld [vmem:[%s1355 + $0x18] sm:$0xff]
    %v1360 = vld [vmem:[%s1355 + $0x20] sm:$0xff]
    %v1361 = vld [vmem:[%s1355 + $0x28] sm:$0xff]
    %v1362 = vld [vmem:[%s1355 + $0x30] sm:$0xff]
    %v1363 = vld [vmem:[%s1355 + $0x38] sm:$0xff]
    %v1364 = vld [vmem:[%s1355 + $0x40] sm:$0xff]
    %v1365 = vld [vmem:[%s1355 + $0x48] sm:$0xff]
    %v1366 = vld [vmem:[%s1355 + $0x50] sm:$0xff]
    %v1367 = vld [vmem:[%s1355 + $0x58] sm:$0xff]
    %v1368 = vld [vmem:[%s1355 + $0x60] sm:$0xff]
    %v1369 = vld [vmem:[%s1355 + $0x68] sm:$0xff]
    %v1370 = vld [vmem:[%s1355 + $0x70] sm:$0xff]
    %v1371 = vld [vmem:[%s1355 + $0x78] sm:$0xff]
    %v1372 = vld [vmem:[%s1355 + $0x80] sm:$0xff]
    %v1373 = vld [vmem:[%s1355 + $0x88] sm:$0xff]
    %v1374 = vld [vmem:[%s1355 + $0x90] sm:$0xff]
    %v1375 = vld [vmem:[%s1355 + $0x98] sm:$0xff]
    %v1376 = vld [vmem:[%s1355 + $0xa0] sm:$0xff]
    %v1377 = vld [vmem:[%s1355 + $0xa8] sm:$0xff]
    %v1378 = vld [vmem:[%s1355 + $0xb0] sm:$0xff]
    %v1379 = vld [vmem:[%s1355 + $0xb8] sm:$0xff]
    %v1380 = vld [vmem:[%s1355 + $0xc0] sm:$0xff]
    %v1381 = vld [vmem:[%s1355 + $0xc8] sm:$0xff]
    %s1382 = scalar_lea.vmem %s1, 6
    %v1383 = vld [vmem:[%s1382] sm:$0x1]
    %1385 = vset.pattern.permute.xlu0 0
    %1386 = vperm.xlu0 %1385, %v1356
    %v1387 = vpop.permute.xlu0 %1386
    %1390 = vset.pattern.permute.xlu0 0
    %1391 = vperm.xlu0 %1390, %v1357
    %v1392 = vpop.permute.xlu0 %1391
    %1395 = vset.pattern.permute.xlu0 0
    %1396 = vperm.xlu0 %1395, %v1358
    %v1397 = vpop.permute.xlu0 %1396
    %1400 = vset.pattern.permute.xlu0 0
    %1401 = vperm.xlu0 %1400, %v1359
    %v1402 = vpop.permute.xlu0 %1401
    %1405 = vset.pattern.permute.xlu0 0
    %1406 = vperm.xlu0 %1405, %v1360
    %v1407 = vpop.permute.xlu0 %1406
    %1410 = vset.pattern.permute.xlu0 0
    %1411 = vperm.xlu0 %1410, %v1361
    %v1412 = vpop.permute.xlu0 %1411
    %1415 = vset.pattern.permute.xlu0 0
    %1416 = vperm.xlu0 %1415, %v1362
    %v1417 = vpop.permute.xlu0 %1416
    %1420 = vset.pattern.permute.xlu0 0
    %1421 = vperm.xlu0 %1420, %v1363
    %v1422 = vpop.permute.xlu0 %1421
    %1425 = vset.pattern.permute.xlu0 0
    %1426 = vperm.xlu0 %1425, %v1364
    %v1427 = vpop.permute.xlu0 %1426
    %1430 = vset.pattern.permute.xlu0 0
    %1431 = vperm.xlu0 %1430, %v1365
    %v1432 = vpop.permute.xlu0 %1431
    %1435 = vset.pattern.permute.xlu0 0
    %1436 = vperm.xlu0 %1435, %v1366
    %v1437 = vpop.permute.xlu0 %1436
    %1440 = vset.pattern.permute.xlu0 0
    %1441 = vperm.xlu0 %1440, %v1367
    %v1442 = vpop.permute.xlu0 %1441
    %1445 = vset.pattern.permute.xlu0 0
    %1446 = vperm.xlu0 %1445, %v1368
    %v1447 = vpop.permute.xlu0 %1446
    %1450 = vset.pattern.permute.xlu0 0
    %1451 = vperm.xlu0 %1450, %v1369
    %v1452 = vpop.permute.xlu0 %1451
    %1455 = vset.pattern.permute.xlu0 0
    %1456 = vperm.xlu0 %1455, %v1370
    %v1457 = vpop.permute.xlu0 %1456
    %1460 = vset.pattern.permute.xlu0 0
    %1461 = vperm.xlu0 %1460, %v1371
    %v1462 = vpop.permute.xlu0 %1461
    %1465 = vset.pattern.permute.xlu0 0
    %1466 = vperm.xlu0 %1465, %v1372
    %v1467 = vpop.permute.xlu0 %1466
    %1470 = vset.pattern.permute.xlu0 0
    %1471 = vperm.xlu0 %1470, %v1373
    %v1472 = vpop.permute.xlu0 %1471
    %1475 = vset.pattern.permute.xlu0 0
    %1476 = vperm.xlu0 %1475, %v1374
    %v1477 = vpop.permute.xlu0 %1476
    %1480 = vset.pattern.permute.xlu0 0
    %1481 = vperm.xlu0 %1480, %v1375
    %v1482 = vpop.permute.xlu0 %1481
    %1485 = vset.pattern.permute.xlu0 0
    %1486 = vperm.xlu0 %1485, %v1376
    %v1487 = vpop.permute.xlu0 %1486
    %1490 = vset.pattern.permute.xlu0 0
    %1491 = vperm.xlu0 %1490, %v1377
    %v1492 = vpop.permute.xlu0 %1491
    %1495 = vset.pattern.permute.xlu0 0
    %1496 = vperm.xlu0 %1495, %v1378
    %v1497 = vpop.permute.xlu0 %1496
    %1500 = vset.pattern.permute.xlu0 0
    %1501 = vperm.xlu0 %1500, %v1379
    %v1502 = vpop.permute.xlu0 %1501
    %1505 = vset.pattern.permute.xlu0 0
    %1506 = vperm.xlu0 %1505, %v1380
    %v1507 = vpop.permute.xlu0 %1506
    %1510 = vset.pattern.permute.xlu0 0
    %1511 = vperm.xlu0 %1510, %v1381
    %v1512 = vpop.permute.xlu0 %1511
    %v1515 = vlaneseq
    %v1516 = vshrl.u32 %v1515, 7
    %v1517 = vsub.s32 0, %v1516
    %v1518 = vrot.slane %v1383, %v1517
    %v1520 = vmul.f32 %v1387, %v1518
    %v1521 = vmul.f32 %v1392, %v1518
    %v1522 = vmul.f32 %v1397, %v1518
    %v1523 = vmul.f32 %v1402, %v1518
    %v1524 = vmul.f32 %v1407, %v1518
    %v1525 = vmul.f32 %v1412, %v1518
    %v1526 = vmul.f32 %v1417, %v1518
    %v1527 = vmul.f32 %v1422, %v1518
    %v1528 = vmul.f32 %v1427, %v1518
    %v1529 = vmul.f32 %v1432, %v1518
    %v1530 = vmul.f32 %v1437, %v1518
    %v1531 = vmul.f32 %v1442, %v1518
    %v1532 = vmul.f32 %v1447, %v1518
    %v1533 = vmul.f32 %v1452, %v1518
    %v1534 = vmul.f32 %v1457, %v1518
    %v1535 = vmul.f32 %v1462, %v1518
    %v1536 = vmul.f32 %v1467, %v1518
    %v1537 = vmul.f32 %v1472, %v1518
    %v1538 = vmul.f32 %v1477, %v1518
    %v1539 = vmul.f32 %v1482, %v1518
    %v1540 = vmul.f32 %v1487, %v1518
    %v1541 = vmul.f32 %v1492, %v1518
    %v1542 = vmul.f32 %v1497, %v1518
    %v1543 = vmul.f32 %v1502, %v1518
    %v1544 = vmul.f32 %v1507, %v1518
    %v1545 = vmul.f32 %v1512, %v1518
    %v1546 = vadd.f32 %v1327, %v1520
    %v1547 = vadd.f32 %v1328, %v1521
    %v1548 = vadd.f32 %v1329, %v1522
    %v1549 = vadd.f32 %v1330, %v1523
    %v1550 = vadd.f32 %v1331, %v1524
    %v1551 = vadd.f32 %v1332, %v1525
    %v1552 = vadd.f32 %v1333, %v1526
    %v1553 = vadd.f32 %v1334, %v1527
    %v1554 = vadd.f32 %v1335, %v1528
    %v1555 = vadd.f32 %v1336, %v1529
    %v1556 = vadd.f32 %v1337, %v1530
    %v1557 = vadd.f32 %v1338, %v1531
    %v1558 = vadd.f32 %v1339, %v1532
    %v1559 = vadd.f32 %v1340, %v1533
    %v1560 = vadd.f32 %v1341, %v1534
    %v1561 = vadd.f32 %v1342, %v1535
    %v1562 = vadd.f32 %v1343, %v1536
    %v1563 = vadd.f32 %v1344, %v1537
    %v1564 = vadd.f32 %v1345, %v1538
    %v1565 = vadd.f32 %v1346, %v1539
    %v1566 = vadd.f32 %v1347, %v1540
    %v1567 = vadd.f32 %v1348, %v1541
    %v1568 = vadd.f32 %v1349, %v1542
    %v1569 = vadd.f32 %v1350, %v1543
    %v1570 = vadd.f32 %v1351, %v1544
    %v1571 = vadd.f32 %v1352, %v1545
    %s1572 = sadd.s32 8, %s1354
    %s1573 = scalar_lea.vmem %s0, %s1572
    %v1574 = vld [vmem:[%s1573] sm:$0xff]
    %v1575 = vld [vmem:[%s1573 + $0x8] sm:$0xff]
    %v1576 = vld [vmem:[%s1573 + $0x10] sm:$0xff]
    %v1577 = vld [vmem:[%s1573 + $0x18] sm:$0xff]
    %v1578 = vld [vmem:[%s1573 + $0x20] sm:$0xff]
    %v1579 = vld [vmem:[%s1573 + $0x28] sm:$0xff]
    %v1580 = vld [vmem:[%s1573 + $0x30] sm:$0xff]
    %v1581 = vld [vmem:[%s1573 + $0x38] sm:$0xff]
    %v1582 = vld [vmem:[%s1573 + $0x40] sm:$0xff]
    %v1583 = vld [vmem:[%s1573 + $0x48] sm:$0xff]
    %v1584 = vld [vmem:[%s1573 + $0x50] sm:$0xff]
    %v1585 = vld [vmem:[%s1573 + $0x58] sm:$0xff]
    %v1586 = vld [vmem:[%s1573 + $0x60] sm:$0xff]
    %v1587 = vld [vmem:[%s1573 + $0x68] sm:$0xff]
    %v1588 = vld [vmem:[%s1573 + $0x70] sm:$0xff]
    %v1589 = vld [vmem:[%s1573 + $0x78] sm:$0xff]
    %v1590 = vld [vmem:[%s1573 + $0x80] sm:$0xff]
    %v1591 = vld [vmem:[%s1573 + $0x88] sm:$0xff]
    %v1592 = vld [vmem:[%s1573 + $0x90] sm:$0xff]
    %v1593 = vld [vmem:[%s1573 + $0x98] sm:$0xff]
    %v1594 = vld [vmem:[%s1573 + $0xa0] sm:$0xff]
    %v1595 = vld [vmem:[%s1573 + $0xa8] sm:$0xff]
    %v1596 = vld [vmem:[%s1573 + $0xb0] sm:$0xff]
    %v1597 = vld [vmem:[%s1573 + $0xb8] sm:$0xff]
    %v1598 = vld [vmem:[%s1573 + $0xc0] sm:$0xff]
    %v1599 = vld [vmem:[%s1573 + $0xc8] sm:$0xff]
    %s1600 = scalar_lea.vmem %s1, 7
    %v1601 = vld [vmem:[%s1600] sm:$0x1]
    %1603 = vset.pattern.permute.xlu0 0
    %1604 = vperm.xlu0 %1603, %v1574
    %v1605 = vpop.permute.xlu0 %1604
    %1608 = vset.pattern.permute.xlu0 0
    %1609 = vperm.xlu0 %1608, %v1575
    %v1610 = vpop.permute.xlu0 %1609
    %1613 = vset.pattern.permute.xlu0 0
    %1614 = vperm.xlu0 %1613, %v1576
    %v1615 = vpop.permute.xlu0 %1614
    %1618 = vset.pattern.permute.xlu0 0
    %1619 = vperm.xlu0 %1618, %v1577
    %v1620 = vpop.permute.xlu0 %1619
    %1623 = vset.pattern.permute.xlu0 0
    %1624 = vperm.xlu0 %1623, %v1578
    %v1625 = vpop.permute.xlu0 %1624
    %1628 = vset.pattern.permute.xlu0 0
    %1629 = vperm.xlu0 %1628, %v1579
    %v1630 = vpop.permute.xlu0 %1629
    %1633 = vset.pattern.permute.xlu0 0
    %1634 = vperm.xlu0 %1633, %v1580
    %v1635 = vpop.permute.xlu0 %1634
    %1638 = vset.pattern.permute.xlu0 0
    %1639 = vperm.xlu0 %1638, %v1581
    %v1640 = vpop.permute.xlu0 %1639
    %1643 = vset.pattern.permute.xlu0 0
    %1644 = vperm.xlu0 %1643, %v1582
    %v1645 = vpop.permute.xlu0 %1644
    %1648 = vset.pattern.permute.xlu0 0
    %1649 = vperm.xlu0 %1648, %v1583
    %v1650 = vpop.permute.xlu0 %1649
    %1653 = vset.pattern.permute.xlu0 0
    %1654 = vperm.xlu0 %1653, %v1584
    %v1655 = vpop.permute.xlu0 %1654
    %1658 = vset.pattern.permute.xlu0 0
    %1659 = vperm.xlu0 %1658, %v1585
    %v1660 = vpop.permute.xlu0 %1659
    %1663 = vset.pattern.permute.xlu0 0
    %1664 = vperm.xlu0 %1663, %v1586
    %v1665 = vpop.permute.xlu0 %1664
    %1668 = vset.pattern.permute.xlu0 0
    %1669 = vperm.xlu0 %1668, %v1587
    %v1670 = vpop.permute.xlu0 %1669
    %1673 = vset.pattern.permute.xlu0 0
    %1674 = vperm.xlu0 %1673, %v1588
    %v1675 = vpop.permute.xlu0 %1674
    %1678 = vset.pattern.permute.xlu0 0
    %1679 = vperm.xlu0 %1678, %v1589
    %v1680 = vpop.permute.xlu0 %1679
    %1683 = vset.pattern.permute.xlu0 0
    %1684 = vperm.xlu0 %1683, %v1590
    %v1685 = vpop.permute.xlu0 %1684
    %1688 = vset.pattern.permute.xlu0 0
    %1689 = vperm.xlu0 %1688, %v1591
    %v1690 = vpop.permute.xlu0 %1689
    %1693 = vset.pattern.permute.xlu0 0
    %1694 = vperm.xlu0 %1693, %v1592
    %v1695 = vpop.permute.xlu0 %1694
    %1698 = vset.pattern.permute.xlu0 0
    %1699 = vperm.xlu0 %1698, %v1593
    %v1700 = vpop.permute.xlu0 %1699
    %1703 = vset.pattern.permute.xlu0 0
    %1704 = vperm.xlu0 %1703, %v1594
    %v1705 = vpop.permute.xlu0 %1704
    %1708 = vset.pattern.permute.xlu0 0
    %1709 = vperm.xlu0 %1708, %v1595
    %v1710 = vpop.permute.xlu0 %1709
    %1713 = vset.pattern.permute.xlu0 0
    %1714 = vperm.xlu0 %1713, %v1596
    %v1715 = vpop.permute.xlu0 %1714
    %1718 = vset.pattern.permute.xlu0 0
    %1719 = vperm.xlu0 %1718, %v1597
    %v1720 = vpop.permute.xlu0 %1719
    %1723 = vset.pattern.permute.xlu0 0
    %1724 = vperm.xlu0 %1723, %v1598
    %v1725 = vpop.permute.xlu0 %1724
    %1728 = vset.pattern.permute.xlu0 0
    %1729 = vperm.xlu0 %1728, %v1599
    %v1730 = vpop.permute.xlu0 %1729
    %v1733 = vlaneseq
    %v1734 = vshrl.u32 %v1733, 7
    %v1735 = vsub.s32 0, %v1734
    %v1736 = vrot.slane %v1601, %v1735
    %v1738 = vmul.f32 %v1605, %v1736
    %v1739 = vmul.f32 %v1610, %v1736
    %v1740 = vmul.f32 %v1615, %v1736
    %v1741 = vmul.f32 %v1620, %v1736
    %v1742 = vmul.f32 %v1625, %v1736
    %v1743 = vmul.f32 %v1630, %v1736
    %v1744 = vmul.f32 %v1635, %v1736
    %v1745 = vmul.f32 %v1640, %v1736
    %v1746 = vmul.f32 %v1645, %v1736
    %v1747 = vmul.f32 %v1650, %v1736
    %v1748 = vmul.f32 %v1655, %v1736
    %v1749 = vmul.f32 %v1660, %v1736
    %v1750 = vmul.f32 %v1665, %v1736
    %v1751 = vmul.f32 %v1670, %v1736
    %v1752 = vmul.f32 %v1675, %v1736
    %v1753 = vmul.f32 %v1680, %v1736
    %v1754 = vmul.f32 %v1685, %v1736
    %v1755 = vmul.f32 %v1690, %v1736
    %v1756 = vmul.f32 %v1695, %v1736
    %v1757 = vmul.f32 %v1700, %v1736
    %v1758 = vmul.f32 %v1705, %v1736
    %v1759 = vmul.f32 %v1710, %v1736
    %v1760 = vmul.f32 %v1715, %v1736
    %v1761 = vmul.f32 %v1720, %v1736
    %v1762 = vmul.f32 %v1725, %v1736
    %v1763 = vmul.f32 %v1730, %v1736
    %v1764 = vadd.f32 %v1546, %v1738
    %v1765 = vadd.f32 %v1547, %v1739
    %v1766 = vadd.f32 %v1548, %v1740
    %v1767 = vadd.f32 %v1549, %v1741
    %v1768 = vadd.f32 %v1550, %v1742
    %v1769 = vadd.f32 %v1551, %v1743
    %v1770 = vadd.f32 %v1552, %v1744
    %v1771 = vadd.f32 %v1553, %v1745
    %v1772 = vadd.f32 %v1554, %v1746
    %v1773 = vadd.f32 %v1555, %v1747
    %v1774 = vadd.f32 %v1556, %v1748
    %v1775 = vadd.f32 %v1557, %v1749
    %v1776 = vadd.f32 %v1558, %v1750
    %v1777 = vadd.f32 %v1559, %v1751
    %v1778 = vadd.f32 %v1560, %v1752
    %v1779 = vadd.f32 %v1561, %v1753
    %v1780 = vadd.f32 %v1562, %v1754
    %v1781 = vadd.f32 %v1563, %v1755
    %v1782 = vadd.f32 %v1564, %v1756
    %v1783 = vadd.f32 %v1565, %v1757
    %v1784 = vadd.f32 %v1566, %v1758
    %v1785 = vadd.f32 %v1567, %v1759
    %v1786 = vadd.f32 %v1568, %v1760
    %v1787 = vadd.f32 %v1569, %v1761
    %v1788 = vadd.f32 %v1570, %v1762
    %v1789 = vadd.f32 %v1571, %v1763
    %s1790 = sadd.s32 16, %s1354
    %s1791 = scalar_lea.vmem %s0, %s1790
    %v1792 = vld [vmem:[%s1791] sm:$0xff]
    %v1793 = vld [vmem:[%s1791 + $0x8] sm:$0xff]
    %v1794 = vld [vmem:[%s1791 + $0x10] sm:$0xff]
    %v1795 = vld [vmem:[%s1791 + $0x18] sm:$0xff]
    %v1796 = vld [vmem:[%s1791 + $0x20] sm:$0xff]
    %v1797 = vld [vmem:[%s1791 + $0x28] sm:$0xff]
    %v1798 = vld [vmem:[%s1791 + $0x30] sm:$0xff]
    %v1799 = vld [vmem:[%s1791 + $0x38] sm:$0xff]
    %v1800 = vld [vmem:[%s1791 + $0x40] sm:$0xff]
    %v1801 = vld [vmem:[%s1791 + $0x48] sm:$0xff]
    %v1802 = vld [vmem:[%s1791 + $0x50] sm:$0xff]
    %v1803 = vld [vmem:[%s1791 + $0x58] sm:$0xff]
    %v1804 = vld [vmem:[%s1791 + $0x60] sm:$0xff]
    %v1805 = vld [vmem:[%s1791 + $0x68] sm:$0xff]
    %v1806 = vld [vmem:[%s1791 + $0x70] sm:$0xff]
    %v1807 = vld [vmem:[%s1791 + $0x78] sm:$0xff]
    %v1808 = vld [vmem:[%s1791 + $0x80] sm:$0xff]
    %v1809 = vld [vmem:[%s1791 + $0x88] sm:$0xff]
    %v1810 = vld [vmem:[%s1791 + $0x90] sm:$0xff]
    %v1811 = vld [vmem:[%s1791 + $0x98] sm:$0xff]
    %v1812 = vld [vmem:[%s1791 + $0xa0] sm:$0xff]
    %v1813 = vld [vmem:[%s1791 + $0xa8] sm:$0xff]
    %v1814 = vld [vmem:[%s1791 + $0xb0] sm:$0xff]
    %v1815 = vld [vmem:[%s1791 + $0xb8] sm:$0xff]
    %v1816 = vld [vmem:[%s1791 + $0xc0] sm:$0xff]
    %v1817 = vld [vmem:[%s1791 + $0xc8] sm:$0xff]
    %s1818 = scalar_lea.vmem %s1, 8
    %v1819 = vld [vmem:[%s1818] sm:$0x1]
    %1821 = vset.pattern.permute.xlu0 0
    %1822 = vperm.xlu0 %1821, %v1792
    %v1823 = vpop.permute.xlu0 %1822
    %1826 = vset.pattern.permute.xlu0 0
    %1827 = vperm.xlu0 %1826, %v1793
    %v1828 = vpop.permute.xlu0 %1827
    %1831 = vset.pattern.permute.xlu0 0
    %1832 = vperm.xlu0 %1831, %v1794
    %v1833 = vpop.permute.xlu0 %1832
    %1836 = vset.pattern.permute.xlu0 0
    %1837 = vperm.xlu0 %1836, %v1795
    %v1838 = vpop.permute.xlu0 %1837
    %1841 = vset.pattern.permute.xlu0 0
    %1842 = vperm.xlu0 %1841, %v1796
    %v1843 = vpop.permute.xlu0 %1842
    %1846 = vset.pattern.permute.xlu0 0
    %1847 = vperm.xlu0 %1846, %v1797
    %v1848 = vpop.permute.xlu0 %1847
    %1851 = vset.pattern.permute.xlu0 0
    %1852 = vperm.xlu0 %1851, %v1798
    %v1853 = vpop.permute.xlu0 %1852
    %1856 = vset.pattern.permute.xlu0 0
    %1857 = vperm.xlu0 %1856, %v1799
    %v1858 = vpop.permute.xlu0 %1857
    %1861 = vset.pattern.permute.xlu0 0
    %1862 = vperm.xlu0 %1861, %v1800
    %v1863 = vpop.permute.xlu0 %1862
    %1866 = vset.pattern.permute.xlu0 0
    %1867 = vperm.xlu0 %1866, %v1801
    %v1868 = vpop.permute.xlu0 %1867
    %1871 = vset.pattern.permute.xlu0 0
    %1872 = vperm.xlu0 %1871, %v1802
    %v1873 = vpop.permute.xlu0 %1872
    %1876 = vset.pattern.permute.xlu0 0
    %1877 = vperm.xlu0 %1876, %v1803
    %v1878 = vpop.permute.xlu0 %1877
    %1881 = vset.pattern.permute.xlu0 0
    %1882 = vperm.xlu0 %1881, %v1804
    %v1883 = vpop.permute.xlu0 %1882
    %1886 = vset.pattern.permute.xlu0 0
    %1887 = vperm.xlu0 %1886, %v1805
    %v1888 = vpop.permute.xlu0 %1887
    %1891 = vset.pattern.permute.xlu0 0
    %1892 = vperm.xlu0 %1891, %v1806
    %v1893 = vpop.permute.xlu0 %1892
    %1896 = vset.pattern.permute.xlu0 0
    %1897 = vperm.xlu0 %1896, %v1807
    %v1898 = vpop.permute.xlu0 %1897
    %1901 = vset.pattern.permute.xlu0 0
    %1902 = vperm.xlu0 %1901, %v1808
    %v1903 = vpop.permute.xlu0 %1902
    %1906 = vset.pattern.permute.xlu0 0
    %1907 = vperm.xlu0 %1906, %v1809
    %v1908 = vpop.permute.xlu0 %1907
    %1911 = vset.pattern.permute.xlu0 0
    %1912 = vperm.xlu0 %1911, %v1810
    %v1913 = vpop.permute.xlu0 %1912
    %1916 = vset.pattern.permute.xlu0 0
    %1917 = vperm.xlu0 %1916, %v1811
    %v1918 = vpop.permute.xlu0 %1917
    %1921 = vset.pattern.permute.xlu0 0
    %1922 = vperm.xlu0 %1921, %v1812
    %v1923 = vpop.permute.xlu0 %1922
    %1926 = vset.pattern.permute.xlu0 0
    %1927 = vperm.xlu0 %1926, %v1813
    %v1928 = vpop.permute.xlu0 %1927
    %1931 = vset.pattern.permute.xlu0 0
    %1932 = vperm.xlu0 %1931, %v1814
    %v1933 = vpop.permute.xlu0 %1932
    %1936 = vset.pattern.permute.xlu0 0
    %1937 = vperm.xlu0 %1936, %v1815
    %v1938 = vpop.permute.xlu0 %1937
    %1941 = vset.pattern.permute.xlu0 0
    %1942 = vperm.xlu0 %1941, %v1816
    %v1943 = vpop.permute.xlu0 %1942
    %1946 = vset.pattern.permute.xlu0 0
    %1947 = vperm.xlu0 %1946, %v1817
    %v1948 = vpop.permute.xlu0 %1947
    %v1951 = vlaneseq
    %v1952 = vshrl.u32 %v1951, 7
    %v1953 = vsub.s32 0, %v1952
    %v1954 = vrot.slane %v1819, %v1953
    %v1956 = vmul.f32 %v1823, %v1954
    %v1957 = vmul.f32 %v1828, %v1954
    %v1958 = vmul.f32 %v1833, %v1954
    %v1959 = vmul.f32 %v1838, %v1954
    %v1960 = vmul.f32 %v1843, %v1954
    %v1961 = vmul.f32 %v1848, %v1954
    %v1962 = vmul.f32 %v1853, %v1954
    %v1963 = vmul.f32 %v1858, %v1954
    %v1964 = vmul.f32 %v1863, %v1954
    %v1965 = vmul.f32 %v1868, %v1954
    %v1966 = vmul.f32 %v1873, %v1954
    %v1967 = vmul.f32 %v1878, %v1954
    %v1968 = vmul.f32 %v1883, %v1954
    %v1969 = vmul.f32 %v1888, %v1954
    %v1970 = vmul.f32 %v1893, %v1954
    %v1971 = vmul.f32 %v1898, %v1954
    %v1972 = vmul.f32 %v1903, %v1954
    %v1973 = vmul.f32 %v1908, %v1954
    %v1974 = vmul.f32 %v1913, %v1954
    %v1975 = vmul.f32 %v1918, %v1954
    %v1976 = vmul.f32 %v1923, %v1954
    %v1977 = vmul.f32 %v1928, %v1954
    %v1978 = vmul.f32 %v1933, %v1954
    %v1979 = vmul.f32 %v1938, %v1954
    %v1980 = vmul.f32 %v1943, %v1954
    %v1981 = vmul.f32 %v1948, %v1954
    %v1982 = vadd.f32 %v1764, %v1956
    %v1983 = vadd.f32 %v1765, %v1957
    %v1984 = vadd.f32 %v1766, %v1958
    %v1985 = vadd.f32 %v1767, %v1959
    %v1986 = vadd.f32 %v1768, %v1960
    %v1987 = vadd.f32 %v1769, %v1961
    %v1988 = vadd.f32 %v1770, %v1962
    %v1989 = vadd.f32 %v1771, %v1963
    %v1990 = vadd.f32 %v1772, %v1964
    %v1991 = vadd.f32 %v1773, %v1965
    %v1992 = vadd.f32 %v1774, %v1966
    %v1993 = vadd.f32 %v1775, %v1967
    %v1994 = vadd.f32 %v1776, %v1968
    %v1995 = vadd.f32 %v1777, %v1969
    %v1996 = vadd.f32 %v1778, %v1970
    %v1997 = vadd.f32 %v1779, %v1971
    %v1998 = vadd.f32 %v1780, %v1972
    %v1999 = vadd.f32 %v1781, %v1973
    %v2000 = vadd.f32 %v1782, %v1974
    %v2001 = vadd.f32 %v1783, %v1975
    %v2002 = vadd.f32 %v1784, %v1976
    %v2003 = vadd.f32 %v1785, %v1977
    %v2004 = vadd.f32 %v1786, %v1978
    %v2005 = vadd.f32 %v1787, %v1979
    %v2006 = vadd.f32 %v1788, %v1980
    %v2007 = vadd.f32 %v1789, %v1981
    %v2008 = vmax.f32 %v1982, %v1983
    %v2009 = vmax.f32 %v1984, %v1985
    %v2010 = vmax.f32 %v1986, %v1987
    %v2011 = vmax.f32 %v1988, %v1989
    %v2012 = vmax.f32 %v1990, %v1991
    %v2013 = vmax.f32 %v1992, %v1993
    %v2014 = vmax.f32 %v1994, %v1995
    %v2015 = vmax.f32 %v1996, %v1997
    %v2016 = vmax.f32 %v1998, %v1999
    %v2017 = vmax.f32 %v2000, %v2001
    %v2018 = vmax.f32 %v2002, %v2003
    %v2019 = vmax.f32 %v2004, %v2005
    %v2020 = vmax.f32 %v2006, %v2007
    %v2021 = vmul.f32 %v732, %v208
    %v2022 = vmul.f32 %v737, %v208
    %v2023 = vmul.f32 %v742, %v208
    %v2024 = vmul.f32 %v747, %v208
    %v2025 = vmul.f32 %v752, %v208
    %v2026 = vmul.f32 %v757, %v208
    %v2027 = vmul.f32 %v762, %v208
    %v2028 = vmul.f32 %v767, %v208
    %v2029 = vmul.f32 %v772, %v208
    %v2030 = vmul.f32 %v777, %v208
    %v2031 = vmul.f32 %v782, %v208
    %v2032 = vmul.f32 %v787, %v208
    %v2033 = vmul.f32 %v792, %v208
    %v2034 = vmul.f32 %v797, %v208
    %v2035 = vmul.f32 %v802, %v208
    %v2036 = vmul.f32 %v807, %v208
    %v2037 = vmul.f32 %v812, %v208
    %v2038 = vmul.f32 %v817, %v208
    %v2039 = vmul.f32 %v822, %v208
    %v2040 = vmul.f32 %v827, %v208
    %v2041 = vmul.f32 %v832, %v208
    %v2042 = vmul.f32 %v837, %v208
    %v2043 = vmul.f32 %v842, %v208
    %v2044 = vmul.f32 %v847, %v208
    %v2045 = vmul.f32 %v852, %v208
    %v2046 = vmul.f32 %v857, %v208
    %v2047 = vadd.f32 %v2021, 0.0
    %v2048 = vadd.f32 %v2022, 0.0
    %v2049 = vadd.f32 %v2023, 0.0
    %v2050 = vadd.f32 %v2024, 0.0
    %v2051 = vadd.f32 %v2025, 0.0
    %v2052 = vadd.f32 %v2026, 0.0
    %v2053 = vadd.f32 %v2027, 0.0
    %v2054 = vadd.f32 %v2028, 0.0
    %v2055 = vadd.f32 %v2029, 0.0
    %v2056 = vadd.f32 %v2030, 0.0
    %v2057 = vadd.f32 %v2031, 0.0
    %v2058 = vadd.f32 %v2032, 0.0
    %v2059 = vadd.f32 %v2033, 0.0
    %v2060 = vadd.f32 %v2034, 0.0
    %v2061 = vadd.f32 %v2035, 0.0
    %v2062 = vadd.f32 %v2036, 0.0
    %v2063 = vadd.f32 %v2037, 0.0
    %v2064 = vadd.f32 %v2038, 0.0
    %v2065 = vadd.f32 %v2039, 0.0
    %v2066 = vadd.f32 %v2040, 0.0
    %v2067 = vadd.f32 %v2041, 0.0
    %v2068 = vadd.f32 %v2042, 0.0
    %v2069 = vadd.f32 %v2043, 0.0
    %v2070 = vadd.f32 %v2044, 0.0
    %v2071 = vadd.f32 %v2045, 0.0
    %v2072 = vadd.f32 %v2046, 0.0
    %v2073 = vmul.f32 %v950, %v426
    %v2074 = vmul.f32 %v955, %v426
    %v2075 = vmul.f32 %v960, %v426
    %v2076 = vmul.f32 %v965, %v426
    %v2077 = vmul.f32 %v970, %v426
    %v2078 = vmul.f32 %v975, %v426
    %v2079 = vmul.f32 %v980, %v426
    %v2080 = vmul.f32 %v985, %v426
    %v2081 = vmul.f32 %v990, %v426
    %v2082 = vmul.f32 %v995, %v426
    %v2083 = vmul.f32 %v1000, %v426
    %v2084 = vmul.f32 %v1005, %v426
    %v2085 = vmul.f32 %v1010, %v426
    %v2086 = vmul.f32 %v1015, %v426
    %v2087 = vmul.f32 %v1020, %v426
    %v2088 = vmul.f32 %v1025, %v426
    %v2089 = vmul.f32 %v1030, %v426
    %v2090 = vmul.f32 %v1035, %v426
    %v2091 = vmul.f32 %v1040, %v426
    %v2092 = vmul.f32 %v1045, %v426
    %v2093 = vmul.f32 %v1050, %v426
    %v2094 = vmul.f32 %v1055, %v426
    %v2095 = vmul.f32 %v1060, %v426
    %v2096 = vmul.f32 %v1065, %v426
    %v2097 = vmul.f32 %v1070, %v426
    %v2098 = vmul.f32 %v1075, %v426
    %v2099 = vadd.f32 %v2047, %v2073
    %v2100 = vadd.f32 %v2048, %v2074
    %v2101 = vadd.f32 %v2049, %v2075
    %v2102 = vadd.f32 %v2050, %v2076
    %v2103 = vadd.f32 %v2051, %v2077
    %v2104 = vadd.f32 %v2052, %v2078
    %v2105 = vadd.f32 %v2053, %v2079
    %v2106 = vadd.f32 %v2054, %v2080
    %v2107 = vadd.f32 %v2055, %v2081
    %v2108 = vadd.f32 %v2056, %v2082
    %v2109 = vadd.f32 %v2057, %v2083
    %v2110 = vadd.f32 %v2058, %v2084
    %v2111 = vadd.f32 %v2059, %v2085
    %v2112 = vadd.f32 %v2060, %v2086
    %v2113 = vadd.f32 %v2061, %v2087
    %v2114 = vadd.f32 %v2062, %v2088
    %v2115 = vadd.f32 %v2063, %v2089
    %v2116 = vadd.f32 %v2064, %v2090
    %v2117 = vadd.f32 %v2065, %v2091
    %v2118 = vadd.f32 %v2066, %v2092
    %v2119 = vadd.f32 %v2067, %v2093
    %v2120 = vadd.f32 %v2068, %v2094
    %v2121 = vadd.f32 %v2069, %v2095
    %v2122 = vadd.f32 %v2070, %v2096
    %v2123 = vadd.f32 %v2071, %v2097
    %v2124 = vadd.f32 %v2072, %v2098
    %v2125 = vmul.f32 %v1168, %v644
    %v2126 = vmul.f32 %v1173, %v644
    %v2127 = vmul.f32 %v1178, %v644
    %v2128 = vmul.f32 %v1183, %v644
    %v2129 = vmul.f32 %v1188, %v644
    %v2130 = vmul.f32 %v1193, %v644
    %v2131 = vmul.f32 %v1198, %v644
    %v2132 = vmul.f32 %v1203, %v644
    %v2133 = vmul.f32 %v1208, %v644
    %v2134 = vmul.f32 %v1213, %v644
    %v2135 = vmul.f32 %v1218, %v644
    %v2136 = vmul.f32 %v1223, %v644
    %v2137 = vmul.f32 %v1228, %v644
    %v2138 = vmul.f32 %v1233, %v644
    %v2139 = vmul.f32 %v1238, %v644
    %v2140 = vmul.f32 %v1243, %v644
    %v2141 = vmul.f32 %v1248, %v644
    %v2142 = vmul.f32 %v1253, %v644
    %v2143 = vmul.f32 %v1258, %v644
    %v2144 = vmul.f32 %v1263, %v644
    %v2145 = vmul.f32 %v1268, %v644
    %v2146 = vmul.f32 %v1273, %v644
    %v2147 = vmul.f32 %v1278, %v644
    %v2148 = vmul.f32 %v1283, %v644
    %v2149 = vmul.f32 %v1288, %v644
    %v2150 = vmul.f32 %v1293, %v644
    %v2151 = vadd.f32 %v2099, %v2125
    %v2152 = vadd.f32 %v2100, %v2126
    %v2153 = vadd.f32 %v2101, %v2127
    %v2154 = vadd.f32 %v2102, %v2128
    %v2155 = vadd.f32 %v2103, %v2129
    %v2156 = vadd.f32 %v2104, %v2130
    %v2157 = vadd.f32 %v2105, %v2131
    %v2158 = vadd.f32 %v2106, %v2132
    %v2159 = vadd.f32 %v2107, %v2133
    %v2160 = vadd.f32 %v2108, %v2134
    %v2161 = vadd.f32 %v2109, %v2135
    %v2162 = vadd.f32 %v2110, %v2136
    %v2163 = vadd.f32 %v2111, %v2137
    %v2164 = vadd.f32 %v2112, %v2138
    %v2165 = vadd.f32 %v2113, %v2139
    %v2166 = vadd.f32 %v2114, %v2140
    %v2167 = vadd.f32 %v2115, %v2141
    %v2168 = vadd.f32 %v2116, %v2142
    %v2169 = vadd.f32 %v2117, %v2143
    %v2170 = vadd.f32 %v2118, %v2144
    %v2171 = vadd.f32 %v2119, %v2145
    %v2172 = vadd.f32 %v2120, %v2146
    %v2173 = vadd.f32 %v2121, %v2147
    %v2174 = vadd.f32 %v2122, %v2148
    %v2175 = vadd.f32 %v2123, %v2149
    %v2176 = vadd.f32 %v2124, %v2150
    %v2177 = vmul.f32 %v1387, %v863
    %v2178 = vmul.f32 %v1392, %v863
    %v2179 = vmul.f32 %v1397, %v863
    %v2180 = vmul.f32 %v1402, %v863
    %v2181 = vmul.f32 %v1407, %v863
    %v2182 = vmul.f32 %v1412, %v863
    %v2183 = vmul.f32 %v1417, %v863
    %v2184 = vmul.f32 %v1422, %v863
    %v2185 = vmul.f32 %v1427, %v863
    %v2186 = vmul.f32 %v1432, %v863
    %v2187 = vmul.f32 %v1437, %v863
    %v2188 = vmul.f32 %v1442, %v863
    %v2189 = vmul.f32 %v1447, %v863
    %v2190 = vmul.f32 %v1452, %v863
    %v2191 = vmul.f32 %v1457, %v863
    %v2192 = vmul.f32 %v1462, %v863
    %v2193 = vmul.f32 %v1467, %v863
    %v2194 = vmul.f32 %v1472, %v863
    %v2195 = vmul.f32 %v1477, %v863
    %v2196 = vmul.f32 %v1482, %v863
    %v2197 = vmul.f32 %v1487, %v863
    %v2198 = vmul.f32 %v1492, %v863
    %v2199 = vmul.f32 %v1497, %v863
    %v2200 = vmul.f32 %v1502, %v863
    %v2201 = vmul.f32 %v1507, %v863
    %v2202 = vmul.f32 %v1512, %v863
    %v2203 = vadd.f32 %v2151, %v2177
    %v2204 = vadd.f32 %v2152, %v2178
    %v2205 = vadd.f32 %v2153, %v2179
    %v2206 = vadd.f32 %v2154, %v2180
    %v2207 = vadd.f32 %v2155, %v2181
    %v2208 = vadd.f32 %v2156, %v2182
    %v2209 = vadd.f32 %v2157, %v2183
    %v2210 = vadd.f32 %v2158, %v2184
    %v2211 = vadd.f32 %v2159, %v2185
    %v2212 = vadd.f32 %v2160, %v2186
    %v2213 = vadd.f32 %v2161, %v2187
    %v2214 = vadd.f32 %v2162, %v2188
    %v2215 = vadd.f32 %v2163, %v2189
    %v2216 = vadd.f32 %v2164, %v2190
    %v2217 = vadd.f32 %v2165, %v2191
    %v2218 = vadd.f32 %v2166, %v2192
    %v2219 = vadd.f32 %v2167, %v2193
    %v2220 = vadd.f32 %v2168, %v2194
    %v2221 = vadd.f32 %v2169, %v2195
    %v2222 = vadd.f32 %v2170, %v2196
    %v2223 = vadd.f32 %v2171, %v2197
    %v2224 = vadd.f32 %v2172, %v2198
    %v2225 = vadd.f32 %v2173, %v2199
    %v2226 = vadd.f32 %v2174, %v2200
    %v2227 = vadd.f32 %v2175, %v2201
    %v2228 = vadd.f32 %v2176, %v2202
    %v2229 = vmul.f32 %v1605, %v1081
    %v2230 = vmul.f32 %v1610, %v1081
    %v2231 = vmul.f32 %v1615, %v1081
    %v2232 = vmul.f32 %v1620, %v1081
    %v2233 = vmul.f32 %v1625, %v1081
    %v2234 = vmul.f32 %v1630, %v1081
    %v2235 = vmul.f32 %v1635, %v1081
    %v2236 = vmul.f32 %v1640, %v1081
    %v2237 = vmul.f32 %v1645, %v1081
    %v2238 = vmul.f32 %v1650, %v1081
    %v2239 = vmul.f32 %v1655, %v1081
    %v2240 = vmul.f32 %v1660, %v1081
    %v2241 = vmul.f32 %v1665, %v1081
    %v2242 = vmul.f32 %v1670, %v1081
    %v2243 = vmul.f32 %v1675, %v1081
    %v2244 = vmul.f32 %v1680, %v1081
    %v2245 = vmul.f32 %v1685, %v1081
    %v2246 = vmul.f32 %v1690, %v1081
    %v2247 = vmul.f32 %v1695, %v1081
    %v2248 = vmul.f32 %v1700, %v1081
    %v2249 = vmul.f32 %v1705, %v1081
    %v2250 = vmul.f32 %v1710, %v1081
    %v2251 = vmul.f32 %v1715, %v1081
    %v2252 = vmul.f32 %v1720, %v1081
    %v2253 = vmul.f32 %v1725, %v1081
    %v2254 = vmul.f32 %v1730, %v1081
    %v2255 = vadd.f32 %v2203, %v2229
    %v2256 = vadd.f32 %v2204, %v2230
    %v2257 = vadd.f32 %v2205, %v2231
    %v2258 = vadd.f32 %v2206, %v2232
    %v2259 = vadd.f32 %v2207, %v2233
    %v2260 = vadd.f32 %v2208, %v2234
    %v2261 = vadd.f32 %v2209, %v2235
    %v2262 = vadd.f32 %v2210, %v2236
    %v2263 = vadd.f32 %v2211, %v2237
    %v2264 = vadd.f32 %v2212, %v2238
    %v2265 = vadd.f32 %v2213, %v2239
    %v2266 = vadd.f32 %v2214, %v2240
    %v2267 = vadd.f32 %v2215, %v2241
    %v2268 = vadd.f32 %v2216, %v2242
    %v2269 = vadd.f32 %v2217, %v2243
    %v2270 = vadd.f32 %v2218, %v2244
    %v2271 = vadd.f32 %v2219, %v2245
    %v2272 = vadd.f32 %v2220, %v2246
    %v2273 = vadd.f32 %v2221, %v2247
    %v2274 = vadd.f32 %v2222, %v2248
    %v2275 = vadd.f32 %v2223, %v2249
    %v2276 = vadd.f32 %v2224, %v2250
    %v2277 = vadd.f32 %v2225, %v2251
    %v2278 = vadd.f32 %v2226, %v2252
    %v2279 = vadd.f32 %v2227, %v2253
    %v2280 = vadd.f32 %v2228, %v2254
    %v2281 = vmul.f32 %v1823, %v1299
    %v2282 = vmul.f32 %v1828, %v1299
    %v2283 = vmul.f32 %v1833, %v1299
    %v2284 = vmul.f32 %v1838, %v1299
    %v2285 = vmul.f32 %v1843, %v1299
    %v2286 = vmul.f32 %v1848, %v1299
    %v2287 = vmul.f32 %v1853, %v1299
    %v2288 = vmul.f32 %v1858, %v1299
    %v2289 = vmul.f32 %v1863, %v1299
    %v2290 = vmul.f32 %v1868, %v1299
    %v2291 = vmul.f32 %v1873, %v1299
    %v2292 = vmul.f32 %v1878, %v1299
    %v2293 = vmul.f32 %v1883, %v1299
    %v2294 = vmul.f32 %v1888, %v1299
    %v2295 = vmul.f32 %v1893, %v1299
    %v2296 = vmul.f32 %v1898, %v1299
    %v2297 = vmul.f32 %v1903, %v1299
    %v2298 = vmul.f32 %v1908, %v1299
    %v2299 = vmul.f32 %v1913, %v1299
    %v2300 = vmul.f32 %v1918, %v1299
    %v2301 = vmul.f32 %v1923, %v1299
    %v2302 = vmul.f32 %v1928, %v1299
    %v2303 = vmul.f32 %v1933, %v1299
    %v2304 = vmul.f32 %v1938, %v1299
    %v2305 = vmul.f32 %v1943, %v1299
    %v2306 = vmul.f32 %v1948, %v1299
    %v2307 = vadd.f32 %v2255, %v2281
    %v2308 = vadd.f32 %v2256, %v2282
    %v2309 = vadd.f32 %v2257, %v2283
    %v2310 = vadd.f32 %v2258, %v2284
    %v2311 = vadd.f32 %v2259, %v2285
    %v2312 = vadd.f32 %v2260, %v2286
    %v2313 = vadd.f32 %v2261, %v2287
    %v2314 = vadd.f32 %v2262, %v2288
    %v2315 = vadd.f32 %v2263, %v2289
    %v2316 = vadd.f32 %v2264, %v2290
    %v2317 = vadd.f32 %v2265, %v2291
    %v2318 = vadd.f32 %v2266, %v2292
    %v2319 = vadd.f32 %v2267, %v2293
    %v2320 = vadd.f32 %v2268, %v2294
    %v2321 = vadd.f32 %v2269, %v2295
    %v2322 = vadd.f32 %v2270, %v2296
    %v2323 = vadd.f32 %v2271, %v2297
    %v2324 = vadd.f32 %v2272, %v2298
    %v2325 = vadd.f32 %v2273, %v2299
    %v2326 = vadd.f32 %v2274, %v2300
    %v2327 = vadd.f32 %v2275, %v2301
    %v2328 = vadd.f32 %v2276, %v2302
    %v2329 = vadd.f32 %v2277, %v2303
    %v2330 = vadd.f32 %v2278, %v2304
    %v2331 = vadd.f32 %v2279, %v2305
    %v2332 = vadd.f32 %v2280, %v2306
    %s2333 = sadd.s32 %s44, 3
    %s2334 = smul.u32 %s2333, 224
    %s2335 = scalar_lea.vmem %s0, %s2334
    %v2336 = vld [vmem:[%s2335] sm:$0xff]
    %v2337 = vld [vmem:[%s2335 + $0x8] sm:$0xff]
    %v2338 = vld [vmem:[%s2335 + $0x10] sm:$0xff]
    %v2339 = vld [vmem:[%s2335 + $0x18] sm:$0xff]
    %v2340 = vld [vmem:[%s2335 + $0x20] sm:$0xff]
    %v2341 = vld [vmem:[%s2335 + $0x28] sm:$0xff]
    %v2342 = vld [vmem:[%s2335 + $0x30] sm:$0xff]
    %v2343 = vld [vmem:[%s2335 + $0x38] sm:$0xff]
    %v2344 = vld [vmem:[%s2335 + $0x40] sm:$0xff]
    %v2345 = vld [vmem:[%s2335 + $0x48] sm:$0xff]
    %v2346 = vld [vmem:[%s2335 + $0x50] sm:$0xff]
    %v2347 = vld [vmem:[%s2335 + $0x58] sm:$0xff]
    %v2348 = vld [vmem:[%s2335 + $0x60] sm:$0xff]
    %v2349 = vld [vmem:[%s2335 + $0x68] sm:$0xff]
    %v2350 = vld [vmem:[%s2335 + $0x70] sm:$0xff]
    %v2351 = vld [vmem:[%s2335 + $0x78] sm:$0xff]
    %v2352 = vld [vmem:[%s2335 + $0x80] sm:$0xff]
    %v2353 = vld [vmem:[%s2335 + $0x88] sm:$0xff]
    %v2354 = vld [vmem:[%s2335 + $0x90] sm:$0xff]
    %v2355 = vld [vmem:[%s2335 + $0x98] sm:$0xff]
    %v2356 = vld [vmem:[%s2335 + $0xa0] sm:$0xff]
    %v2357 = vld [vmem:[%s2335 + $0xa8] sm:$0xff]
    %v2358 = vld [vmem:[%s2335 + $0xb0] sm:$0xff]
    %v2359 = vld [vmem:[%s2335 + $0xb8] sm:$0xff]
    %v2360 = vld [vmem:[%s2335 + $0xc0] sm:$0xff]
    %v2361 = vld [vmem:[%s2335 + $0xc8] sm:$0xff]
    %2363 = vset.pattern.permute.xlu0 0
    %2364 = vperm.xlu0 %2363, %v2336
    %v2365 = vpop.permute.xlu0 %2364
    %2368 = vset.pattern.permute.xlu0 0
    %2369 = vperm.xlu0 %2368, %v2337
    %v2370 = vpop.permute.xlu0 %2369
    %2373 = vset.pattern.permute.xlu0 0
    %2374 = vperm.xlu0 %2373, %v2338
    %v2375 = vpop.permute.xlu0 %2374
    %2378 = vset.pattern.permute.xlu0 0
    %2379 = vperm.xlu0 %2378, %v2339
    %v2380 = vpop.permute.xlu0 %2379
    %2383 = vset.pattern.permute.xlu0 0
    %2384 = vperm.xlu0 %2383, %v2340
    %v2385 = vpop.permute.xlu0 %2384
    %2388 = vset.pattern.permute.xlu0 0
    %2389 = vperm.xlu0 %2388, %v2341
    %v2390 = vpop.permute.xlu0 %2389
    %2393 = vset.pattern.permute.xlu0 0
    %2394 = vperm.xlu0 %2393, %v2342
    %v2395 = vpop.permute.xlu0 %2394
    %2398 = vset.pattern.permute.xlu0 0
    %2399 = vperm.xlu0 %2398, %v2343
    %v2400 = vpop.permute.xlu0 %2399
    %2403 = vset.pattern.permute.xlu0 0
    %2404 = vperm.xlu0 %2403, %v2344
    %v2405 = vpop.permute.xlu0 %2404
    %2408 = vset.pattern.permute.xlu0 0
    %2409 = vperm.xlu0 %2408, %v2345
    %v2410 = vpop.permute.xlu0 %2409
    %2413 = vset.pattern.permute.xlu0 0
    %2414 = vperm.xlu0 %2413, %v2346
    %v2415 = vpop.permute.xlu0 %2414
    %2418 = vset.pattern.permute.xlu0 0
    %2419 = vperm.xlu0 %2418, %v2347
    %v2420 = vpop.permute.xlu0 %2419
    %2423 = vset.pattern.permute.xlu0 0
    %2424 = vperm.xlu0 %2423, %v2348
    %v2425 = vpop.permute.xlu0 %2424
    %2428 = vset.pattern.permute.xlu0 0
    %2429 = vperm.xlu0 %2428, %v2349
    %v2430 = vpop.permute.xlu0 %2429
    %2433 = vset.pattern.permute.xlu0 0
    %2434 = vperm.xlu0 %2433, %v2350
    %v2435 = vpop.permute.xlu0 %2434
    %2438 = vset.pattern.permute.xlu0 0
    %2439 = vperm.xlu0 %2438, %v2351
    %v2440 = vpop.permute.xlu0 %2439
    %2443 = vset.pattern.permute.xlu0 0
    %2444 = vperm.xlu0 %2443, %v2352
    %v2445 = vpop.permute.xlu0 %2444
    %2448 = vset.pattern.permute.xlu0 0
    %2449 = vperm.xlu0 %2448, %v2353
    %v2450 = vpop.permute.xlu0 %2449
    %2453 = vset.pattern.permute.xlu0 0
    %2454 = vperm.xlu0 %2453, %v2354
    %v2455 = vpop.permute.xlu0 %2454
    %2458 = vset.pattern.permute.xlu0 0
    %2459 = vperm.xlu0 %2458, %v2355
    %v2460 = vpop.permute.xlu0 %2459
    %2463 = vset.pattern.permute.xlu0 0
    %2464 = vperm.xlu0 %2463, %v2356
    %v2465 = vpop.permute.xlu0 %2464
    %2468 = vset.pattern.permute.xlu0 0
    %2469 = vperm.xlu0 %2468, %v2357
    %v2470 = vpop.permute.xlu0 %2469
    %2473 = vset.pattern.permute.xlu0 0
    %2474 = vperm.xlu0 %2473, %v2358
    %v2475 = vpop.permute.xlu0 %2474
    %2478 = vset.pattern.permute.xlu0 0
    %2479 = vperm.xlu0 %2478, %v2359
    %v2480 = vpop.permute.xlu0 %2479
    %2483 = vset.pattern.permute.xlu0 0
    %2484 = vperm.xlu0 %2483, %v2360
    %v2485 = vpop.permute.xlu0 %2484
    %2488 = vset.pattern.permute.xlu0 0
    %2489 = vperm.xlu0 %2488, %v2361
    %v2490 = vpop.permute.xlu0 %2489
    %v2492 = vmul.f32 %v2365, %v1518
    %v2493 = vmul.f32 %v2370, %v1518
    %v2494 = vmul.f32 %v2375, %v1518
    %v2495 = vmul.f32 %v2380, %v1518
    %v2496 = vmul.f32 %v2385, %v1518
    %v2497 = vmul.f32 %v2390, %v1518
    %v2498 = vmul.f32 %v2395, %v1518
    %v2499 = vmul.f32 %v2400, %v1518
    %v2500 = vmul.f32 %v2405, %v1518
    %v2501 = vmul.f32 %v2410, %v1518
    %v2502 = vmul.f32 %v2415, %v1518
    %v2503 = vmul.f32 %v2420, %v1518
    %v2504 = vmul.f32 %v2425, %v1518
    %v2505 = vmul.f32 %v2430, %v1518
    %v2506 = vmul.f32 %v2435, %v1518
    %v2507 = vmul.f32 %v2440, %v1518
    %v2508 = vmul.f32 %v2445, %v1518
    %v2509 = vmul.f32 %v2450, %v1518
    %v2510 = vmul.f32 %v2455, %v1518
    %v2511 = vmul.f32 %v2460, %v1518
    %v2512 = vmul.f32 %v2465, %v1518
    %v2513 = vmul.f32 %v2470, %v1518
    %v2514 = vmul.f32 %v2475, %v1518
    %v2515 = vmul.f32 %v2480, %v1518
    %v2516 = vmul.f32 %v2485, %v1518
    %v2517 = vmul.f32 %v2490, %v1518
    %v2518 = vadd.f32 %v2307, %v2492
    %v2519 = vadd.f32 %v2308, %v2493
    %v2520 = vadd.f32 %v2309, %v2494
    %v2521 = vadd.f32 %v2310, %v2495
    %v2522 = vadd.f32 %v2311, %v2496
    %v2523 = vadd.f32 %v2312, %v2497
    %v2524 = vadd.f32 %v2313, %v2498
    %v2525 = vadd.f32 %v2314, %v2499
    %v2526 = vadd.f32 %v2315, %v2500
    %v2527 = vadd.f32 %v2316, %v2501
    %v2528 = vadd.f32 %v2317, %v2502
    %v2529 = vadd.f32 %v2318, %v2503
    %v2530 = vadd.f32 %v2319, %v2504
    %v2531 = vadd.f32 %v2320, %v2505
    %v2532 = vadd.f32 %v2321, %v2506
    %v2533 = vadd.f32 %v2322, %v2507
    %v2534 = vadd.f32 %v2323, %v2508
    %v2535 = vadd.f32 %v2324, %v2509
    %v2536 = vadd.f32 %v2325, %v2510
    %v2537 = vadd.f32 %v2326, %v2511
    %v2538 = vadd.f32 %v2327, %v2512
    %v2539 = vadd.f32 %v2328, %v2513
    %v2540 = vadd.f32 %v2329, %v2514
    %v2541 = vadd.f32 %v2330, %v2515
    %v2542 = vadd.f32 %v2331, %v2516
    %v2543 = vadd.f32 %v2332, %v2517
    %s2544 = sadd.s32 8, %s2334
    %s2545 = scalar_lea.vmem %s0, %s2544
    %v2546 = vld [vmem:[%s2545] sm:$0xff]
    %v2547 = vld [vmem:[%s2545 + $0x8] sm:$0xff]
    %v2548 = vld [vmem:[%s2545 + $0x10] sm:$0xff]
    %v2549 = vld [vmem:[%s2545 + $0x18] sm:$0xff]
    %v2550 = vld [vmem:[%s2545 + $0x20] sm:$0xff]
    %v2551 = vld [vmem:[%s2545 + $0x28] sm:$0xff]
    %v2552 = vld [vmem:[%s2545 + $0x30] sm:$0xff]
    %v2553 = vld [vmem:[%s2545 + $0x38] sm:$0xff]
    %v2554 = vld [vmem:[%s2545 + $0x40] sm:$0xff]
    %v2555 = vld [vmem:[%s2545 + $0x48] sm:$0xff]
    %v2556 = vld [vmem:[%s2545 + $0x50] sm:$0xff]
    %v2557 = vld [vmem:[%s2545 + $0x58] sm:$0xff]
    %v2558 = vld [vmem:[%s2545 + $0x60] sm:$0xff]
    %v2559 = vld [vmem:[%s2545 + $0x68] sm:$0xff]
    %v2560 = vld [vmem:[%s2545 + $0x70] sm:$0xff]
    %v2561 = vld [vmem:[%s2545 + $0x78] sm:$0xff]
    %v2562 = vld [vmem:[%s2545 + $0x80] sm:$0xff]
    %v2563 = vld [vmem:[%s2545 + $0x88] sm:$0xff]
    %v2564 = vld [vmem:[%s2545 + $0x90] sm:$0xff]
    %v2565 = vld [vmem:[%s2545 + $0x98] sm:$0xff]
    %v2566 = vld [vmem:[%s2545 + $0xa0] sm:$0xff]
    %v2567 = vld [vmem:[%s2545 + $0xa8] sm:$0xff]
    %v2568 = vld [vmem:[%s2545 + $0xb0] sm:$0xff]
    %v2569 = vld [vmem:[%s2545 + $0xb8] sm:$0xff]
    %v2570 = vld [vmem:[%s2545 + $0xc0] sm:$0xff]
    %v2571 = vld [vmem:[%s2545 + $0xc8] sm:$0xff]
    %2573 = vset.pattern.permute.xlu0 0
    %2574 = vperm.xlu0 %2573, %v2546
    %v2575 = vpop.permute.xlu0 %2574
    %2578 = vset.pattern.permute.xlu0 0
    %2579 = vperm.xlu0 %2578, %v2547
    %v2580 = vpop.permute.xlu0 %2579
    %2583 = vset.pattern.permute.xlu0 0
    %2584 = vperm.xlu0 %2583, %v2548
    %v2585 = vpop.permute.xlu0 %2584
    %2588 = vset.pattern.permute.xlu0 0
    %2589 = vperm.xlu0 %2588, %v2549
    %v2590 = vpop.permute.xlu0 %2589
    %2593 = vset.pattern.permute.xlu0 0
    %2594 = vperm.xlu0 %2593, %v2550
    %v2595 = vpop.permute.xlu0 %2594
    %2598 = vset.pattern.permute.xlu0 0
    %2599 = vperm.xlu0 %2598, %v2551
    %v2600 = vpop.permute.xlu0 %2599
    %2603 = vset.pattern.permute.xlu0 0
    %2604 = vperm.xlu0 %2603, %v2552
    %v2605 = vpop.permute.xlu0 %2604
    %2608 = vset.pattern.permute.xlu0 0
    %2609 = vperm.xlu0 %2608, %v2553
    %v2610 = vpop.permute.xlu0 %2609
    %2613 = vset.pattern.permute.xlu0 0
    %2614 = vperm.xlu0 %2613, %v2554
    %v2615 = vpop.permute.xlu0 %2614
    %2618 = vset.pattern.permute.xlu0 0
    %2619 = vperm.xlu0 %2618, %v2555
    %v2620 = vpop.permute.xlu0 %2619
    %2623 = vset.pattern.permute.xlu0 0
    %2624 = vperm.xlu0 %2623, %v2556
    %v2625 = vpop.permute.xlu0 %2624
    %2628 = vset.pattern.permute.xlu0 0
    %2629 = vperm.xlu0 %2628, %v2557
    %v2630 = vpop.permute.xlu0 %2629
    %2633 = vset.pattern.permute.xlu0 0
    %2634 = vperm.xlu0 %2633, %v2558
    %v2635 = vpop.permute.xlu0 %2634
    %2638 = vset.pattern.permute.xlu0 0
    %2639 = vperm.xlu0 %2638, %v2559
    %v2640 = vpop.permute.xlu0 %2639
    %2643 = vset.pattern.permute.xlu0 0
    %2644 = vperm.xlu0 %2643, %v2560
    %v2645 = vpop.permute.xlu0 %2644
    %2648 = vset.pattern.permute.xlu0 0
    %2649 = vperm.xlu0 %2648, %v2561
    %v2650 = vpop.permute.xlu0 %2649
    %2653 = vset.pattern.permute.xlu0 0
    %2654 = vperm.xlu0 %2653, %v2562
    %v2655 = vpop.permute.xlu0 %2654
    %2658 = vset.pattern.permute.xlu0 0
    %2659 = vperm.xlu0 %2658, %v2563
    %v2660 = vpop.permute.xlu0 %2659
    %2663 = vset.pattern.permute.xlu0 0
    %2664 = vperm.xlu0 %2663, %v2564
    %v2665 = vpop.permute.xlu0 %2664
    %2668 = vset.pattern.permute.xlu0 0
    %2669 = vperm.xlu0 %2668, %v2565
    %v2670 = vpop.permute.xlu0 %2669
    %2673 = vset.pattern.permute.xlu0 0
    %2674 = vperm.xlu0 %2673, %v2566
    %v2675 = vpop.permute.xlu0 %2674
    %2678 = vset.pattern.permute.xlu0 0
    %2679 = vperm.xlu0 %2678, %v2567
    %v2680 = vpop.permute.xlu0 %2679
    %2683 = vset.pattern.permute.xlu0 0
    %2684 = vperm.xlu0 %2683, %v2568
    %v2685 = vpop.permute.xlu0 %2684
    %2688 = vset.pattern.permute.xlu0 0
    %2689 = vperm.xlu0 %2688, %v2569
    %v2690 = vpop.permute.xlu0 %2689
    %2693 = vset.pattern.permute.xlu0 0
    %2694 = vperm.xlu0 %2693, %v2570
    %v2695 = vpop.permute.xlu0 %2694
    %2698 = vset.pattern.permute.xlu0 0
    %2699 = vperm.xlu0 %2698, %v2571
    %v2700 = vpop.permute.xlu0 %2699
    %v2702 = vmul.f32 %v2575, %v1736
    %v2703 = vmul.f32 %v2580, %v1736
    %v2704 = vmul.f32 %v2585, %v1736
    %v2705 = vmul.f32 %v2590, %v1736
    %v2706 = vmul.f32 %v2595, %v1736
    %v2707 = vmul.f32 %v2600, %v1736
    %v2708 = vmul.f32 %v2605, %v1736
    %v2709 = vmul.f32 %v2610, %v1736
    %v2710 = vmul.f32 %v2615, %v1736
    %v2711 = vmul.f32 %v2620, %v1736
    %v2712 = vmul.f32 %v2625, %v1736
    %v2713 = vmul.f32 %v2630, %v1736
    %v2714 = vmul.f32 %v2635, %v1736
    %v2715 = vmul.f32 %v2640, %v1736
    %v2716 = vmul.f32 %v2645, %v1736
    %v2717 = vmul.f32 %v2650, %v1736
    %v2718 = vmul.f32 %v2655, %v1736
    %v2719 = vmul.f32 %v2660, %v1736
    %v2720 = vmul.f32 %v2665, %v1736
    %v2721 = vmul.f32 %v2670, %v1736
    %v2722 = vmul.f32 %v2675, %v1736
    %v2723 = vmul.f32 %v2680, %v1736
    %v2724 = vmul.f32 %v2685, %v1736
    %v2725 = vmul.f32 %v2690, %v1736
    %v2726 = vmul.f32 %v2695, %v1736
    %v2727 = vmul.f32 %v2700, %v1736
    %v2728 = vadd.f32 %v2518, %v2702
    %v2729 = vadd.f32 %v2519, %v2703
    %v2730 = vadd.f32 %v2520, %v2704
    %v2731 = vadd.f32 %v2521, %v2705
    %v2732 = vadd.f32 %v2522, %v2706
    %v2733 = vadd.f32 %v2523, %v2707
    %v2734 = vadd.f32 %v2524, %v2708
    %v2735 = vadd.f32 %v2525, %v2709
    %v2736 = vadd.f32 %v2526, %v2710
    %v2737 = vadd.f32 %v2527, %v2711
    %v2738 = vadd.f32 %v2528, %v2712
    %v2739 = vadd.f32 %v2529, %v2713
    %v2740 = vadd.f32 %v2530, %v2714
    %v2741 = vadd.f32 %v2531, %v2715
    %v2742 = vadd.f32 %v2532, %v2716
    %v2743 = vadd.f32 %v2533, %v2717
    %v2744 = vadd.f32 %v2534, %v2718
    %v2745 = vadd.f32 %v2535, %v2719
    %v2746 = vadd.f32 %v2536, %v2720
    %v2747 = vadd.f32 %v2537, %v2721
    %v2748 = vadd.f32 %v2538, %v2722
    %v2749 = vadd.f32 %v2539, %v2723
    %v2750 = vadd.f32 %v2540, %v2724
    %v2751 = vadd.f32 %v2541, %v2725
    %v2752 = vadd.f32 %v2542, %v2726
    %v2753 = vadd.f32 %v2543, %v2727
    %s2754 = sadd.s32 16, %s2334
    %s2755 = scalar_lea.vmem %s0, %s2754
    %v2756 = vld [vmem:[%s2755] sm:$0xff]
    %v2757 = vld [vmem:[%s2755 + $0x8] sm:$0xff]
    %v2758 = vld [vmem:[%s2755 + $0x10] sm:$0xff]
    %v2759 = vld [vmem:[%s2755 + $0x18] sm:$0xff]
    %v2760 = vld [vmem:[%s2755 + $0x20] sm:$0xff]
    %v2761 = vld [vmem:[%s2755 + $0x28] sm:$0xff]
    %v2762 = vld [vmem:[%s2755 + $0x30] sm:$0xff]
    %v2763 = vld [vmem:[%s2755 + $0x38] sm:$0xff]
    %v2764 = vld [vmem:[%s2755 + $0x40] sm:$0xff]
    %v2765 = vld [vmem:[%s2755 + $0x48] sm:$0xff]
    %v2766 = vld [vmem:[%s2755 + $0x50] sm:$0xff]
    %v2767 = vld [vmem:[%s2755 + $0x58] sm:$0xff]
    %v2768 = vld [vmem:[%s2755 + $0x60] sm:$0xff]
    %v2769 = vld [vmem:[%s2755 + $0x68] sm:$0xff]
    %v2770 = vld [vmem:[%s2755 + $0x70] sm:$0xff]
    %v2771 = vld [vmem:[%s2755 + $0x78] sm:$0xff]
    %v2772 = vld [vmem:[%s2755 + $0x80] sm:$0xff]
    %v2773 = vld [vmem:[%s2755 + $0x88] sm:$0xff]
    %v2774 = vld [vmem:[%s2755 + $0x90] sm:$0xff]
    %v2775 = vld [vmem:[%s2755 + $0x98] sm:$0xff]
    %v2776 = vld [vmem:[%s2755 + $0xa0] sm:$0xff]
    %v2777 = vld [vmem:[%s2755 + $0xa8] sm:$0xff]
    %v2778 = vld [vmem:[%s2755 + $0xb0] sm:$0xff]
    %v2779 = vld [vmem:[%s2755 + $0xb8] sm:$0xff]
    %v2780 = vld [vmem:[%s2755 + $0xc0] sm:$0xff]
    %v2781 = vld [vmem:[%s2755 + $0xc8] sm:$0xff]
    %2783 = vset.pattern.permute.xlu0 0
    %2784 = vperm.xlu0 %2783, %v2756
    %v2785 = vpop.permute.xlu0 %2784
    %2788 = vset.pattern.permute.xlu0 0
    %2789 = vperm.xlu0 %2788, %v2757
    %v2790 = vpop.permute.xlu0 %2789
    %2793 = vset.pattern.permute.xlu0 0
    %2794 = vperm.xlu0 %2793, %v2758
    %v2795 = vpop.permute.xlu0 %2794
    %2798 = vset.pattern.permute.xlu0 0
    %2799 = vperm.xlu0 %2798, %v2759
    %v2800 = vpop.permute.xlu0 %2799
    %2803 = vset.pattern.permute.xlu0 0
    %2804 = vperm.xlu0 %2803, %v2760
    %v2805 = vpop.permute.xlu0 %2804
    %2808 = vset.pattern.permute.xlu0 0
    %2809 = vperm.xlu0 %2808, %v2761
    %v2810 = vpop.permute.xlu0 %2809
    %2813 = vset.pattern.permute.xlu0 0
    %2814 = vperm.xlu0 %2813, %v2762
    %v2815 = vpop.permute.xlu0 %2814
    %2818 = vset.pattern.permute.xlu0 0
    %2819 = vperm.xlu0 %2818, %v2763
    %v2820 = vpop.permute.xlu0 %2819
    %2823 = vset.pattern.permute.xlu0 0
    %2824 = vperm.xlu0 %2823, %v2764
    %v2825 = vpop.permute.xlu0 %2824
    %2828 = vset.pattern.permute.xlu0 0
    %2829 = vperm.xlu0 %2828, %v2765
    %v2830 = vpop.permute.xlu0 %2829
    %2833 = vset.pattern.permute.xlu0 0
    %2834 = vperm.xlu0 %2833, %v2766
    %v2835 = vpop.permute.xlu0 %2834
    %2838 = vset.pattern.permute.xlu0 0
    %2839 = vperm.xlu0 %2838, %v2767
    %v2840 = vpop.permute.xlu0 %2839
    %2843 = vset.pattern.permute.xlu0 0
    %2844 = vperm.xlu0 %2843, %v2768
    %v2845 = vpop.permute.xlu0 %2844
    %2848 = vset.pattern.permute.xlu0 0
    %2849 = vperm.xlu0 %2848, %v2769
    %v2850 = vpop.permute.xlu0 %2849
    %2853 = vset.pattern.permute.xlu0 0
    %2854 = vperm.xlu0 %2853, %v2770
    %v2855 = vpop.permute.xlu0 %2854
    %2858 = vset.pattern.permute.xlu0 0
    %2859 = vperm.xlu0 %2858, %v2771
    %v2860 = vpop.permute.xlu0 %2859
    %2863 = vset.pattern.permute.xlu0 0
    %2864 = vperm.xlu0 %2863, %v2772
    %v2865 = vpop.permute.xlu0 %2864
    %2868 = vset.pattern.permute.xlu0 0
    %2869 = vperm.xlu0 %2868, %v2773
    %v2870 = vpop.permute.xlu0 %2869
    %2873 = vset.pattern.permute.xlu0 0
    %2874 = vperm.xlu0 %2873, %v2774
    %v2875 = vpop.permute.xlu0 %2874
    %2878 = vset.pattern.permute.xlu0 0
    %2879 = vperm.xlu0 %2878, %v2775
    %v2880 = vpop.permute.xlu0 %2879
    %2883 = vset.pattern.permute.xlu0 0
    %2884 = vperm.xlu0 %2883, %v2776
    %v2885 = vpop.permute.xlu0 %2884
    %2888 = vset.pattern.permute.xlu0 0
    %2889 = vperm.xlu0 %2888, %v2777
    %v2890 = vpop.permute.xlu0 %2889
    %2893 = vset.pattern.permute.xlu0 0
    %2894 = vperm.xlu0 %2893, %v2778
    %v2895 = vpop.permute.xlu0 %2894
    %2898 = vset.pattern.permute.xlu0 0
    %2899 = vperm.xlu0 %2898, %v2779
    %v2900 = vpop.permute.xlu0 %2899
    %2903 = vset.pattern.permute.xlu0 0
    %2904 = vperm.xlu0 %2903, %v2780
    %v2905 = vpop.permute.xlu0 %2904
    %2908 = vset.pattern.permute.xlu0 0
    %2909 = vperm.xlu0 %2908, %v2781
    %v2910 = vpop.permute.xlu0 %2909
    %v2912 = vmul.f32 %v2785, %v1954
    %v2913 = vmul.f32 %v2790, %v1954
    %v2914 = vmul.f32 %v2795, %v1954
    %v2915 = vmul.f32 %v2800, %v1954
    %v2916 = vmul.f32 %v2805, %v1954
    %v2917 = vmul.f32 %v2810, %v1954
    %v2918 = vmul.f32 %v2815, %v1954
    %v2919 = vmul.f32 %v2820, %v1954
    %v2920 = vmul.f32 %v2825, %v1954
    %v2921 = vmul.f32 %v2830, %v1954
    %v2922 = vmul.f32 %v2835, %v1954
    %v2923 = vmul.f32 %v2840, %v1954
    %v2924 = vmul.f32 %v2845, %v1954
    %v2925 = vmul.f32 %v2850, %v1954
    %v2926 = vmul.f32 %v2855, %v1954
    %v2927 = vmul.f32 %v2860, %v1954
    %v2928 = vmul.f32 %v2865, %v1954
    %v2929 = vmul.f32 %v2870, %v1954
    %v2930 = vmul.f32 %v2875, %v1954
    %v2931 = vmul.f32 %v2880, %v1954
    %v2932 = vmul.f32 %v2885, %v1954
    %v2933 = vmul.f32 %v2890, %v1954
    %v2934 = vmul.f32 %v2895, %v1954
    %v2935 = vmul.f32 %v2900, %v1954
    %v2936 = vmul.f32 %v2905, %v1954
    %v2937 = vmul.f32 %v2910, %v1954
    %v2938 = vadd.f32 %v2728, %v2912
    %v2939 = vadd.f32 %v2729, %v2913
    %v2940 = vadd.f32 %v2730, %v2914
    %v2941 = vadd.f32 %v2731, %v2915
    %v2942 = vadd.f32 %v2732, %v2916
    %v2943 = vadd.f32 %v2733, %v2917
    %v2944 = vadd.f32 %v2734, %v2918
    %v2945 = vadd.f32 %v2735, %v2919
    %v2946 = vadd.f32 %v2736, %v2920
    %v2947 = vadd.f32 %v2737, %v2921
    %v2948 = vadd.f32 %v2738, %v2922
    %v2949 = vadd.f32 %v2739, %v2923
    %v2950 = vadd.f32 %v2740, %v2924
    %v2951 = vadd.f32 %v2741, %v2925
    %v2952 = vadd.f32 %v2742, %v2926
    %v2953 = vadd.f32 %v2743, %v2927
    %v2954 = vadd.f32 %v2744, %v2928
    %v2955 = vadd.f32 %v2745, %v2929
    %v2956 = vadd.f32 %v2746, %v2930
    %v2957 = vadd.f32 %v2747, %v2931
    %v2958 = vadd.f32 %v2748, %v2932
    %v2959 = vadd.f32 %v2749, %v2933
    %v2960 = vadd.f32 %v2750, %v2934
    %v2961 = vadd.f32 %v2751, %v2935
    %v2962 = vadd.f32 %v2752, %v2936
    %v2963 = vadd.f32 %v2753, %v2937
    %v2964 = vmax.f32 %v2938, %v2939
    %v2965 = vmax.f32 %v2940, %v2941
    %v2966 = vmax.f32 %v2942, %v2943
    %v2967 = vmax.f32 %v2944, %v2945
    %v2968 = vmax.f32 %v2946, %v2947
    %v2969 = vmax.f32 %v2948, %v2949
    %v2970 = vmax.f32 %v2950, %v2951
    %v2971 = vmax.f32 %v2952, %v2953
    %v2972 = vmax.f32 %v2954, %v2955
    %v2973 = vmax.f32 %v2956, %v2957
    %v2974 = vmax.f32 %v2958, %v2959
    %v2975 = vmax.f32 %v2960, %v2961
    %v2976 = vmax.f32 %v2962, %v2963
    %v2977 = vmax.f32 %v2008, %v2964
    %v2978 = vmax.f32 %v2009, %v2965
    %v2979 = vmax.f32 %v2010, %v2966
    %v2980 = vmax.f32 %v2011, %v2967
    %v2981 = vmax.f32 %v2012, %v2968
    %v2982 = vmax.f32 %v2013, %v2969
    %v2983 = vmax.f32 %v2014, %v2970
    %v2984 = vmax.f32 %v2015, %v2971
    %v2985 = vmax.f32 %v2016, %v2972
    %v2986 = vmax.f32 %v2017, %v2973
    %v2987 = vmax.f32 %v2018, %v2974
    %v2988 = vmax.f32 %v2019, %v2975
    %v2989 = vmax.f32 %v2020, %v2976
    %v2990 = vld [vmem:[%s2] sm:$0x1]
    %v2992 = vlaneseq
    %v2993 = vshrl.u32 %v2992, 7
    %v2994 = vsub.s32 0, %v2993
    %v2995 = vrot.slane %v2990, %v2994
    %v2997 = vadd.f32 %v2977, %v2995
    %v2998 = vadd.f32 %v2978, %v2995
    %v2999 = vadd.f32 %v2979, %v2995
    %v3000 = vadd.f32 %v2980, %v2995
    %v3001 = vadd.f32 %v2981, %v2995
    %v3002 = vadd.f32 %v2982, %v2995
    %v3003 = vadd.f32 %v2983, %v2995
    %v3004 = vadd.f32 %v2984, %v2995
    %v3005 = vadd.f32 %v2985, %v2995
    %v3006 = vadd.f32 %v2986, %v2995
    %v3007 = vadd.f32 %v2987, %v2995
    %v3008 = vadd.f32 %v2988, %v2995
    %v3009 = vadd.f32 %v2989, %v2995
    %v3010 = vmax.f32 %v2997, 0.0
    %v3011 = vmax.f32 %v2998, 0.0
    %v3012 = vmax.f32 %v2999, 0.0
    %v3013 = vmax.f32 %v3000, 0.0
    %v3014 = vmax.f32 %v3001, 0.0
    %v3015 = vmax.f32 %v3002, 0.0
    %v3016 = vmax.f32 %v3003, 0.0
    %v3017 = vmax.f32 %v3004, 0.0
    %v3018 = vmax.f32 %v3005, 0.0
    %v3019 = vmax.f32 %v3006, 0.0
    %v3020 = vmax.f32 %v3007, 0.0
    %v3021 = vmax.f32 %v3008, 0.0
    %v3022 = vmax.f32 %v3009, 0.0
    %s3023 = smul.u32 %s39, 104
    %s3024 = scalar_lea.vmem [#allocation2], %s3023
    %3025 = vst [vmem:[%s3024] sm:$0xff] %v3010
    %3026 = vst [vmem:[%s3024 + $0x8] sm:$0xff] %v3011
    %3027 = vst [vmem:[%s3024 + $0x10] sm:$0xff] %v3012
    %3028 = vst [vmem:[%s3024 + $0x18] sm:$0xff] %v3013
    %3029 = vst [vmem:[%s3024 + $0x20] sm:$0xff] %v3014
    %3030 = vst [vmem:[%s3024 + $0x28] sm:$0xff] %v3015
    %3031 = vst [vmem:[%s3024 + $0x30] sm:$0xff] %v3016
    %3032 = vst [vmem:[%s3024 + $0x38] sm:$0xff] %v3017
    %3033 = vst [vmem:[%s3024 + $0x40] sm:$0xff] %v3018
    %3034 = vst [vmem:[%s3024 + $0x48] sm:$0xff] %v3019
    %3035 = vst [vmem:[%s3024 + $0x50] sm:$0xff] %v3020
    %3036 = vst [vmem:[%s3024 + $0x58] sm:$0xff] %v3021
    %3037 = vst [vmem:[%s3024 + $0x60] sm:$0xff] %v3022
  $region50: #{lenet_forward.1} parent=0 // loop_footer
    %s43 = sadd.s32 1, %s39
  $region51: #{lenet_forward.1} parent=0 // loop_footer_branch
    %38 = sbr.rel target = $region47
  $region52: #{lenet_forward.1} parent=0 // loop_exit
    _
  loop: start=0, step=1, limit=5
  $region53: #{lenet_forward.1} parent=0 // loop_pre_header
    _
  $region54: #{lenet_forward.1} parent=0 // loop_header
    %s3039 = sphi 0, %s3043
    %p3040 = scmp.ge.s32.totalorder %s3039, 5
    %v3044 = vphi 0.0, %v6036
  $region55: #{lenet_forward.1} parent=0 // loop_header_branch
    %3042 = sbr.rel (%p3040) target = $region59
  $region56: #{lenet_forward.1} parent=0 // loop_body
    %s3045 = smul.u32 %s3039, 2
    %s3046 = smul.u32 %s3045, 104
    %s3047 = scalar_lea.vmem [#allocation2], %s3046
    %v3048 = vld [vmem:[%s3047] sm:$0xff]
    %v3049 = vld [vmem:[%s3047 + $0x8] sm:$0xff]
    %v3050 = vld [vmem:[%s3047 + $0x10] sm:$0xff]
    %v3051 = vld [vmem:[%s3047 + $0x18] sm:$0xff]
    %v3052 = vld [vmem:[%s3047 + $0x20] sm:$0xff]
    %v3053 = vld [vmem:[%s3047 + $0x28] sm:$0xff]
    %v3054 = vld [vmem:[%s3047 + $0x30] sm:$0xff]
    %v3055 = vld [vmem:[%s3047 + $0x38] sm:$0xff]
    %v3056 = vld [vmem:[%s3047 + $0x40] sm:$0xff]
    %v3057 = vld [vmem:[%s3047 + $0x48] sm:$0xff]
    %v3058 = vld [vmem:[%s3] sm:$0xff]
    %v3059 = vld [vmem:[%s3 + $0x8] sm:$0xff]
    %v3060 = vld [vmem:[%s3 + $0x10] sm:$0xff]
    %v3061 = vld [vmem:[%s3 + $0x18] sm:$0xff]
    %v3062 = vld [vmem:[%s3 + $0x20] sm:$0xff]
    %v3063 = vld [vmem:[%s3 + $0x28] sm:$0xff]
    %v3064 = vld [vmem:[%s3 + $0x30] sm:$0xff]
    %v3065 = vld [vmem:[%s3 + $0x38] sm:$0xff]
    %v3066 = vld [vmem:[%s3 + $0x40] sm:$0xff]
    %v3067 = vld [vmem:[%s3 + $0x48] sm:$0xff]
    %v3068 = vld [vmem:[%s3 + $0x50] sm:$0xff]
    %v3069 = vld [vmem:[%s3 + $0x58] sm:$0xff]
    %v3070 = vld [vmem:[%s3 + $0x60] sm:$0xff]
    %v3071 = vld [vmem:[%s3 + $0x68] sm:$0xff]
    %v3072 = vld [vmem:[%s3 + $0x70] sm:$0xff]
    %v3073 = vld [vmem:[%s3 + $0x78] sm:$0xff]
    %s3074 = sadd.s32 8, %s3046
    %s3075 = scalar_lea.vmem [#allocation2], %s3074
    %v3076 = vld [vmem:[%s3075] sm:$0xff]
    %v3077 = vld [vmem:[%s3075 + $0x8] sm:$0xff]
    %v3078 = vld [vmem:[%s3075 + $0x10] sm:$0xff]
    %v3079 = vld [vmem:[%s3075 + $0x18] sm:$0xff]
    %v3080 = vld [vmem:[%s3075 + $0x20] sm:$0xff]
    %v3081 = vld [vmem:[%s3075 + $0x28] sm:$0xff]
    %v3082 = vld [vmem:[%s3075 + $0x30] sm:$0xff]
    %v3083 = vld [vmem:[%s3075 + $0x38] sm:$0xff]
    %v3084 = vld [vmem:[%s3075 + $0x40] sm:$0xff]
    %v3085 = vld [vmem:[%s3075 + $0x48] sm:$0xff]
    %s3086 = scalar_lea.vmem %s3, 128
    %v3087 = vld [vmem:[%s3086] sm:$0xff]
    %v3088 = vld [vmem:[%s3086 + $0x8] sm:$0xff]
    %v3089 = vld [vmem:[%s3086 + $0x10] sm:$0xff]
    %v3090 = vld [vmem:[%s3086 + $0x18] sm:$0xff]
    %v3091 = vld [vmem:[%s3086 + $0x20] sm:$0xff]
    %v3092 = vld [vmem:[%s3086 + $0x28] sm:$0xff]
    %v3093 = vld [vmem:[%s3086 + $0x30] sm:$0xff]
    %v3094 = vld [vmem:[%s3086 + $0x38] sm:$0xff]
    %v3095 = vld [vmem:[%s3086 + $0x40] sm:$0xff]
    %v3096 = vld [vmem:[%s3086 + $0x48] sm:$0xff]
    %v3097 = vld [vmem:[%s3086 + $0x50] sm:$0xff]
    %v3098 = vld [vmem:[%s3086 + $0x58] sm:$0xff]
    %v3099 = vld [vmem:[%s3086 + $0x60] sm:$0xff]
    %v3100 = vld [vmem:[%s3086 + $0x68] sm:$0xff]
    %v3101 = vld [vmem:[%s3086 + $0x70] sm:$0xff]
    %v3102 = vld [vmem:[%s3086 + $0x78] sm:$0xff]
    %3103 = vmatprep.subr.mxu0 0.0
    %3104 = vmatpush1.msra.mxu0 %v3087
    %3105 = vmatprep.subr.mxu0 0.0
    %3106 = vmatpush1.msra.mxu0 %v3088
    %3107 = vmatprep.subr.mxu0 0.0
    %3108 = vmatpush1.msra.mxu0 %v3089
    %3109 = vmatprep.subr.mxu0 0.0
    %3110 = vmatpush1.msra.mxu0 %v3090
    %3111 = vmatprep.subr.mxu0 0.0
    %3112 = vmatpush1.msra.mxu0 %v3091
    %3113 = vmatprep.subr.mxu0 0.0
    %3114 = vmatpush1.msra.mxu0 %v3092
    %3115 = vmatprep.subr.mxu0 0.0
    %3116 = vmatpush1.msra.mxu0 %v3093
    %3117 = vmatprep.subr.mxu0 0.0
    %3118 = vmatpush1.msra.mxu0 %v3094
    %3119 = vmatprep.subr.mxu0 0.0
    %3120 = vmatpush1.msra.mxu0 %v3095
    %3121 = vmatprep.subr.mxu0 0.0
    %3122 = vmatpush1.msra.mxu0 %v3096
    %3123 = vmatprep.subr.mxu0 0.0
    %3124 = vmatpush1.msra.mxu0 %v3097
    %3125 = vmatprep.subr.mxu0 0.0
    %3126 = vmatpush1.msra.mxu0 %v3098
    %3127 = vmatprep.subr.mxu0 0.0
    %3128 = vmatpush1.msra.mxu0 %v3099
    %3129 = vmatprep.subr.mxu0 0.0
    %3130 = vmatpush1.msra.mxu0 %v3100
    %3131 = vmatprep.subr.mxu0 0.0
    %3132 = vmatpush1.msra.mxu0 %v3101
    %3133 = vmatprep.subr.mxu0 0.0
    %3134 = vmatpush1.msra.mxu0 %v3102
    %3135 = vmatprep.subr.mxu0 0.0
    %3136 = vmatpush1.msra.mxu0 0.0
    %3137 = vmatprep.subr.mxu0 0.0
    %3138 = vmatpush1.msra.mxu0 0.0
    %3139 = vmatprep.subr.mxu0 0.0
    %3140 = vmatpush1.msra.mxu0 0.0
    %3141 = vmatprep.subr.mxu0 0.0
    %3142 = vmatpush1.msra.mxu0 0.0
    %3143 = vmatprep.subr.mxu0 0.0
    %3144 = vmatpush1.msra.mxu0 0.0
    %3145 = vmatprep.subr.mxu0 0.0
    %3146 = vmatpush1.msra.mxu0 0.0
    %3147 = vmatprep.subr.mxu0 0.0
    %3148 = vmatpush1.msra.mxu0 0.0
    %3149 = vmatprep.subr.mxu0 0.0
    %3150 = vmatpush1.msra.mxu0 0.0
    %3151 = vmatprep.subr.mxu0 0.0
    %3152 = vmatpush1.msra.mxu0 0.0
    %3153 = vmatprep.subr.mxu0 0.0
    %3154 = vmatpush1.msra.mxu0 0.0
    %3155 = vmatprep.subr.mxu0 0.0
    %3156 = vmatpush1.msra.mxu0 0.0
    %3157 = vmatprep.subr.mxu0 0.0
    %3158 = vmatpush1.msra.mxu0 0.0
    %3159 = vmatprep.subr.mxu0 0.0
    %3160 = vmatpush1.msra.mxu0 0.0
    %3161 = vmatprep.subr.mxu0 0.0
    %3162 = vmatpush1.msra.mxu0 0.0
    %3163 = vmatprep.subr.mxu0 0.0
    %3164 = vmatpush1.msra.mxu0 0.0
    %3165 = vmatprep.subr.mxu0 0.0
    %3166 = vmatpush1.msra.mxu0 0.0
    %3167 = vmatprep.mubr.f32.mxu0 0.0
    %3168 = vmatmul.mubr.f32.gmra.mrb[0].mxu0 %v3076
    %v3169 = vpop.f32.mrb[0].mxu0
    %v3170 = vadd.f32 0.0, %v3169
    %v3171 = vpop.f32.mrb[0].mxu0
    %3172 = vmatprep.mubr.f32.mxu0 0.0
    %3173 = vmatmul.mubr.f32.gmra.mrb[0].mxu0 %v3077
    %v3174 = vpop.f32.mrb[0].mxu0
    %v3175 = vadd.f32 0.0, %v3174
    %v3176 = vpop.f32.mrb[0].mxu0
    %3177 = vmatprep.mubr.f32.mxu0 0.0
    %3178 = vmatmul.mubr.f32.gmra.mrb[0].mxu0 %v3078
    %v3179 = vpop.f32.mrb[0].mxu0
    %v3180 = vadd.f32 0.0, %v3179
    %v3181 = vpop.f32.mrb[0].mxu0
    %3182 = vmatprep.mubr.f32.mxu0 0.0
    %3183 = vmatmul.mubr.f32.gmra.mrb[0].mxu0 %v3079
    %v3184 = vpop.f32.mrb[0].mxu0
    %v3185 = vadd.f32 0.0, %v3184
    %v3186 = vpop.f32.mrb[0].mxu0
    %3187 = vmatprep.mubr.f32.mxu0 0.0
    %3188 = vmatmul.mubr.f32.gmra.mrb[0].mxu0 %v3080
    %v3189 = vpop.f32.mrb[0].mxu0
    %v3190 = vadd.f32 0.0, %v3189
    %v3191 = vpop.f32.mrb[0].mxu0
    %3192 = vmatprep.mubr.f32.mxu0 0.0
    %3193 = vmatmul.mubr.f32.gmra.mrb[0].mxu0 %v3081
    %v3194 = vpop.f32.mrb[0].mxu0
    %v3195 = vadd.f32 0.0, %v3194
    %v3196 = vpop.f32.mrb[0].mxu0
    %3197 = vmatprep.mubr.f32.mxu0 0.0
    %3198 = vmatmul.mubr.f32.gmra.mrb[0].mxu0 %v3082
    %v3199 = vpop.f32.mrb[0].mxu0
    %v3200 = vadd.f32 0.0, %v3199
    %v3201 = vpop.f32.mrb[0].mxu0
    %3202 = vmatprep.mubr.f32.mxu0 0.0
    %3203 = vmatmul.mubr.f32.gmra.mrb[0].mxu0 %v3083
    %v3204 = vpop.f32.mrb[0].mxu0
    %v3205 = vadd.f32 0.0, %v3204
    %v3206 = vpop.f32.mrb[0].mxu0
    %3207 = vmatprep.mubr.f32.mxu0 0.0
    %3208 = vmatmul.mubr.f32.gmra.mrb[0].mxu0 %v3084
    %v3209 = vpop.f32.mrb[0].mxu0
    %v3210 = vadd.f32 0.0, %v3209
    %v3211 = vpop.f32.mrb[0].mxu0
    %3212 = vmatprep.mubr.f32.mxu0 0.0
    %3213 = vmatmul.mubr.f32.gmra.mrb[0].mxu0 %v3085
    %v3214 = vpop.f32.mrb[0].mxu0
    %v3215 = vadd.f32 0.0, %v3214
    %v3216 = vpop.f32.mrb[0].mxu0
    %3217 = vdwg.mxu0
    %3218 = vmatprep.subr.mxu0 0.0
    %3219 = vmatpush1.msra.mxu0 %v3058
    %3220 = vmatprep.subr.mxu0 0.0
    %3221 = vmatpush1.msra.mxu0 %v3059
    %3222 = vmatprep.subr.mxu0 0.0
    %3223 = vmatpush1.msra.mxu0 %v3060
    %3224 = vmatprep.subr.mxu0 0.0
    %3225 = vmatpush1.msra.mxu0 %v3061
    %3226 = vmatprep.subr.mxu0 0.0
    %3227 = vmatpush1.msra.mxu0 %v3062
    %3228 = vmatprep.subr.mxu0 0.0
    %3229 = vmatpush1.msra.mxu0 %v3063
    %3230 = vmatprep.subr.mxu0 0.0
    %3231 = vmatpush1.msra.mxu0 %v3064
    %3232 = vmatprep.subr.mxu0 0.0
    %3233 = vmatpush1.msra.mxu0 %v3065
    %3234 = vmatprep.subr.mxu0 0.0
    %3235 = vmatpush1.msra.mxu0 %v3066
    %3236 = vmatprep.subr.mxu0 0.0
    %3237 = vmatpush1.msra.mxu0 %v3067
    %3238 = vmatprep.subr.mxu0 0.0
    %3239 = vmatpush1.msra.mxu0 %v3068
    %3240 = vmatprep.subr.mxu0 0.0
    %3241 = vmatpush1.msra.mxu0 %v3069
    %3242 = vmatprep.subr.mxu0 0.0
    %3243 = vmatpush1.msra.mxu0 %v3070
    %3244 = vmatprep.subr.mxu0 0.0
    %3245 = vmatpush1.msra.mxu0 %v3071
    %3246 = vmatprep.subr.mxu0 0.0
    %3247 = vmatpush1.msra.mxu0 %v3072
    %3248 = vmatprep.subr.mxu0 0.0
    %3249 = vmatpush1.msra.mxu0 %v3073
    %3250 = vmatprep.subr.mxu0 0.0
    %3251 = vmatpush1.msra.mxu0 0.0
    %3252 = vmatprep.subr.mxu0 0.0
    %3253 = vmatpush1.msra.mxu0 0.0
    %3254 = vmatprep.subr.mxu0 0.0
    %3255 = vmatpush1.msra.mxu0 0.0
    %3256 = vmatprep.subr.mxu0 0.0
    %3257 = vmatpush1.msra.mxu0 0.0
    %3258 = vmatprep.subr.mxu0 0.0
    %3259 = vmatpush1.msra.mxu0 0.0
    %3260 = vmatprep.subr.mxu0 0.0
    %3261 = vmatpush1.msra.mxu0 0.0
    %3262 = vmatprep.subr.mxu0 0.0
    %3263 = vmatpush1.msra.mxu0 0.0
    %3264 = vmatprep.subr.mxu0 0.0
    %3265 = vmatpush1.msra.mxu0 0.0
    %3266 = vmatprep.subr.mxu0 0.0
    %3267 = vmatpush1.msra.mxu0 0.0
    %3268 = vmatprep.subr.mxu0 0.0
    %3269 = vmatpush1.msra.mxu0 0.0
    %3270 = vmatprep.subr.mxu0 0.0
    %3271 = vmatpush1.msra.mxu0 0.0
    %3272 = vmatprep.subr.mxu0 0.0
    %3273 = vmatpush1.msra.mxu0 0.0
    %3274 = vmatprep.subr.mxu0 0.0
    %3275 = vmatpush1.msra.mxu0 0.0
    %3276 = vmatprep.subr.mxu0 0.0
    %3277 = vmatpush1.msra.mxu0 0.0
    %3278 = vmatprep.subr.mxu0 0.0
    %3279 = vmatpush1.msra.mxu0 0.0
    %3280 = vmatprep.subr.mxu0 0.0
    %3281 = vmatpush1.msra.mxu0 0.0
    %3282 = vmatprep.mubr.f32.mxu0 0.0
    %3283 = vmatmul.mubr.f32.gmra.mrb[0].mxu0 %v3048
    %v3284 = vpop.f32.mrb[0].mxu0
    %v3285 = vadd.f32 %v3170, %v3284
    %v3286 = vpop.f32.mrb[0].mxu0
    %3287 = vmatprep.mubr.f32.mxu0 0.0
    %3288 = vmatmul.mubr.f32.gmra.mrb[0].mxu0 %v3049
    %v3289 = vpop.f32.mrb[0].mxu0
    %v3290 = vadd.f32 %v3175, %v3289
    %v3291 = vpop.f32.mrb[0].mxu0
    %3292 = vmatprep.mubr.f32.mxu0 0.0
    %3293 = vmatmul.mubr.f32.gmra.mrb[0].mxu0 %v3050
    %v3294 = vpop.f32.mrb[0].mxu0
    %v3295 = vadd.f32 %v3180, %v3294
    %v3296 = vpop.f32.mrb[0].mxu0
    %3297 = vmatprep.mubr.f32.mxu0 0.0
    %3298 = vmatmul.mubr.f32.gmra.mrb[0].mxu0 %v3051
    %v3299 = vpop.f32.mrb[0].mxu0
    %v3300 = vadd.f32 %v3185, %v3299
    %v3301 = vpop.f32.mrb[0].mxu0
    %3302 = vmatprep.mubr.f32.mxu0 0.0
    %3303 = vmatmul.mubr.f32.gmra.mrb[0].mxu0 %v3052
    %v3304 = vpop.f32.mrb[0].mxu0
    %v3305 = vadd.f32 %v3190, %v3304
    %v3306 = vpop.f32.mrb[0].mxu0
    %3307 = vmatprep.mubr.f32.mxu0 0.0
    %3308 = vmatmul.mubr.f32.gmra.mrb[0].mxu0 %v3053
    %v3309 = vpop.f32.mrb[0].mxu0
    %v3310 = vadd.f32 %v3195, %v3309
    %v3311 = vpop.f32.mrb[0].mxu0
    %3312 = vmatprep.mubr.f32.mxu0 0.0
    %3313 = vmatmul.mubr.f32.gmra.mrb[0].mxu0 %v3054
    %v3314 = vpop.f32.mrb[0].mxu0
    %v3315 = vadd.f32 %v3200, %v3314
    %v3316 = vpop.f32.mrb[0].mxu0
    %3317 = vmatprep.mubr.f32.mxu0 0.0
    %3318 = vmatmul.mubr.f32.gmra.mrb[0].mxu0 %v3055
    %v3319 = vpop.f32.mrb[0].mxu0
    %v3320 = vadd.f32 %v3205, %v3319
    %v3321 = vpop.f32.mrb[0].mxu0
    %3322 = vmatprep.mubr.f32.mxu0 0.0
    %3323 = vmatmul.mubr.f32.gmra.mrb[0].mxu0 %v3056
    %v3324 = vpop.f32.mrb[0].mxu0
    %v3325 = vadd.f32 %v3210, %v3324
    %v3326 = vpop.f32.mrb[0].mxu0
    %3327 = vmatprep.mubr.f32.mxu0 0.0
    %3328 = vmatmul.mubr.f32.gmra.mrb[0].mxu0 %v3057
    %v3329 = vpop.f32.mrb[0].mxu0
    %v3330 = vadd.f32 %v3215, %v3329
    %v3331 = vpop.f32.mrb[0].mxu0
    %3332 = vdwg.mxu0
    %s3333 = sadd.s32 16, %s3046
    %s3334 = scalar_lea.vmem [#allocation2], %s3333
    %v3335 = vld [vmem:[%s3334] sm:$0xff]
    %v3336 = vld [vmem:[%s3334 + $0x8] sm:$0xff]
    %v3337 = vld [vmem:[%s3334 + $0x10] sm:$0xff]
    %v3338 = vld [vmem:[%s3334 + $0x18] sm:$0xff]
    %v3339 = vld [vmem:[%s3334 + $0x20] sm:$0xff]
    %v3340 = vld [vmem:[%s3334 + $0x28] sm:$0xff]
    %v3341 = vld [vmem:[%s3334 + $0x30] sm:$0xff]
    %v3342 = vld [vmem:[%s3334 + $0x38] sm:$0xff]
    %v3343 = vld [vmem:[%s3334 + $0x40] sm:$0xff]
    %v3344 = vld [vmem:[%s3334 + $0x48] sm:$0xff]
    %s3345 = scalar_lea.vmem %s3, 256
    %v3346 = vld [vmem:[%s3345] sm:$0xff]
    %v3347 = vld [vmem:[%s3345 + $0x8] sm:$0xff]
    %v3348 = vld [vmem:[%s3345 + $0x10] sm:$0xff]
    %v3349 = vld [vmem:[%s3345 + $0x18] sm:$0xff]
    %v3350 = vld [vmem:[%s3345 + $0x20] sm:$0xff]
    %v3351 = vld [vmem:[%s3345 + $0x28] sm:$0xff]
    %v3352 = vld [vmem:[%s3345 + $0x30] sm:$0xff]
    %v3353 = vld [vmem:[%s3345 + $0x38] sm:$0xff]
    %v3354 = vld [vmem:[%s3345 + $0x40] sm:$0xff]
    %v3355 = vld [vmem:[%s3345 + $0x48] sm:$0xff]
    %v3356 = vld [vmem:[%s3345 + $0x50] sm:$0xff]
    %v3357 = vld [vmem:[%s3345 + $0x58] sm:$0xff]
    %v3358 = vld [vmem:[%s3345 + $0x60] sm:$0xff]
    %v3359 = vld [vmem:[%s3345 + $0x68] sm:$0xff]
    %v3360 = vld [vmem:[%s3345 + $0x70] sm:$0xff]
    %v3361 = vld [vmem:[%s3345 + $0x78] sm:$0xff]
    %3362 = vmatprep.subr.mxu0 0.0
    %3363 = vmatpush1.msra.mxu0 %v3346
    %3364 = vmatprep.subr.mxu0 0.0
    %3365 = vmatpush1.msra.mxu0 %v3347
    %3366 = vmatprep.subr.mxu0 0.0
    %3367 = vmatpush1.msra.mxu0 %v3348
    %3368 = vmatprep.subr.mxu0 0.0
    %3369 = vmatpush1.msra.mxu0 %v3349
    %3370 = vmatprep.subr.mxu0 0.0
    %3371 = vmatpush1.msra.mxu0 %v3350
    %3372 = vmatprep.subr.mxu0 0.0
    %3373 = vmatpush1.msra.mxu0 %v3351
    %3374 = vmatprep.subr.mxu0 0.0
    %3375 = vmatpush1.msra.mxu0 %v3352
    %3376 = vmatprep.subr.mxu0 0.0
    %3377 = vmatpush1.msra.mxu0 %v3353
    %3378 = vmatprep.subr.mxu0 0.0
    %3379 = vmatpush1.msra.mxu0 %v3354
    %3380 = vmatprep.subr.mxu0 0.0
    %3381 = vmatpush1.msra.mxu0 %v3355
    %3382 = vmatprep.subr.mxu0 0.0
    %3383 = vmatpush1.msra.mxu0 %v3356
    %3384 = vmatprep.subr.mxu0 0.0
    %3385 = vmatpush1.msra.mxu0 %v3357
    %3386 = vmatprep.subr.mxu0 0.0
    %3387 = vmatpush1.msra.mxu0 %v3358
    %3388 = vmatprep.subr.mxu0 0.0
    %3389 = vmatpush1.msra.mxu0 %v3359
    %3390 = vmatprep.subr.mxu0 0.0
    %3391 = vmatpush1.msra.mxu0 %v3360
    %3392 = vmatprep.subr.mxu0 0.0
    %3393 = vmatpush1.msra.mxu0 %v3361
    %3394 = vmatprep.subr.mxu0 0.0
    %3395 = vmatpush1.msra.mxu0 0.0
    %3396 = vmatprep.subr.mxu0 0.0
    %3397 = vmatpush1.msra.mxu0 0.0
    %3398 = vmatprep.subr.mxu0 0.0
    %3399 = vmatpush1.msra.mxu0 0.0
    %3400 = vmatprep.subr.mxu0 0.0
    %3401 = vmatpush1.msra.mxu0 0.0
    %3402 = vmatprep.subr.mxu0 0.0
    %3403 = vmatpush1.msra.mxu0 0.0
    %3404 = vmatprep.subr.mxu0 0.0
    %3405 = vmatpush1.msra.mxu0 0.0
    %3406 = vmatprep.subr.mxu0 0.0
    %3407 = vmatpush1.msra.mxu0 0.0
    %3408 = vmatprep.subr.mxu0 0.0
    %3409 = vmatpush1.msra.mxu0 0.0
    %3410 = vmatprep.subr.mxu0 0.0
    %3411 = vmatpush1.msra.mxu0 0.0
    %3412 = vmatprep.subr.mxu0 0.0
    %3413 = vmatpush1.msra.mxu0 0.0
    %3414 = vmatprep.subr.mxu0 0.0
    %3415 = vmatpush1.msra.mxu0 0.0
    %3416 = vmatprep.subr.mxu0 0.0
    %3417 = vmatpush1.msra.mxu0 0.0
    %3418 = vmatprep.subr.mxu0 0.0
    %3419 = vmatpush1.msra.mxu0 0.0
    %3420 = vmatprep.subr.mxu0 0.0
    %3421 = vmatpush1.msra.mxu0 0.0
    %3422 = vmatprep.subr.mxu0 0.0
    %3423 = vmatpush1.msra.mxu0 0.0
    %3424 = vmatprep.subr.mxu0 0.0
    %3425 = vmatpush1.msra.mxu0 0.0
    %3426 = vmatprep.mubr.f32.mxu0 0.0
    %3427 = vmatmul.mubr.f32.gmra.mrb[0].mxu0 %v3335
    %v3428 = vpop.f32.mrb[0].mxu0
    %v3429 = vadd.f32 0.0, %v3428
    %v3430 = vpop.f32.mrb[0].mxu0
    %3431 = vmatprep.mubr.f32.mxu0 0.0
    %3432 = vmatmul.mubr.f32.gmra.mrb[0].mxu0 %v3336
    %v3433 = vpop.f32.mrb[0].mxu0
    %v3434 = vadd.f32 0.0, %v3433
    %v3435 = vpop.f32.mrb[0].mxu0
    %3436 = vmatprep.mubr.f32.mxu0 0.0
    %3437 = vmatmul.mubr.f32.gmra.mrb[0].mxu0 %v3337
    %v3438 = vpop.f32.mrb[0].mxu0
    %v3439 = vadd.f32 0.0, %v3438
    %v3440 = vpop.f32.mrb[0].mxu0
    %3441 = vmatprep.mubr.f32.mxu0 0.0
    %3442 = vmatmul.mubr.f32.gmra.mrb[0].mxu0 %v3338
    %v3443 = vpop.f32.mrb[0].mxu0
    %v3444 = vadd.f32 0.0, %v3443
    %v3445 = vpop.f32.mrb[0].mxu0
    %3446 = vmatprep.mubr.f32.mxu0 0.0
    %3447 = vmatmul.mubr.f32.gmra.mrb[0].mxu0 %v3339
    %v3448 = vpop.f32.mrb[0].mxu0
    %v3449 = vadd.f32 0.0, %v3448
    %v3450 = vpop.f32.mrb[0].mxu0
    %3451 = vmatprep.mubr.f32.mxu0 0.0
    %3452 = vmatmul.mubr.f32.gmra.mrb[0].mxu0 %v3340
    %v3453 = vpop.f32.mrb[0].mxu0
    %v3454 = vadd.f32 0.0, %v3453
    %v3455 = vpop.f32.mrb[0].mxu0
    %3456 = vmatprep.mubr.f32.mxu0 0.0
    %3457 = vmatmul.mubr.f32.gmra.mrb[0].mxu0 %v3341
    %v3458 = vpop.f32.mrb[0].mxu0
    %v3459 = vadd.f32 0.0, %v3458
    %v3460 = vpop.f32.mrb[0].mxu0
    %3461 = vmatprep.mubr.f32.mxu0 0.0
    %3462 = vmatmul.mubr.f32.gmra.mrb[0].mxu0 %v3342
    %v3463 = vpop.f32.mrb[0].mxu0
    %v3464 = vadd.f32 0.0, %v3463
    %v3465 = vpop.f32.mrb[0].mxu0
    %3466 = vmatprep.mubr.f32.mxu0 0.0
    %3467 = vmatmul.mubr.f32.gmra.mrb[0].mxu0 %v3343
    %v3468 = vpop.f32.mrb[0].mxu0
    %v3469 = vadd.f32 0.0, %v3468
    %v3470 = vpop.f32.mrb[0].mxu0
    %3471 = vmatprep.mubr.f32.mxu0 0.0
    %3472 = vmatmul.mubr.f32.gmra.mrb[0].mxu0 %v3344
    %v3473 = vpop.f32.mrb[0].mxu0
    %v3474 = vadd.f32 0.0, %v3473
    %v3475 = vpop.f32.mrb[0].mxu0
    %3476 = vdwg.mxu0
    %v3477 = vadd.f32 %v3285, %v3429
    %v3478 = vadd.f32 %v3290, %v3434
    %v3479 = vadd.f32 %v3295, %v3439
    %v3480 = vadd.f32 %v3300, %v3444
    %v3481 = vadd.f32 %v3305, %v3449
    %v3482 = vadd.f32 %v3310, %v3454
    %v3483 = vadd.f32 %v3315, %v3459
    %v3484 = vadd.f32 %v3320, %v3464
    %v3485 = vadd.f32 %v3325, %v3469
    %v3486 = vadd.f32 %v3330, %v3474
    %s3487 = sadd.s32 %s3045, 1
    %s3488 = smul.u32 %s3487, 104
    %s3489 = scalar_lea.vmem [#allocation2], %s3488
    %v3490 = vld [vmem:[%s3489] sm:$0xff]
    %v3491 = vld [vmem:[%s3489 + $0x8] sm:$0xff]
    %v3492 = vld [vmem:[%s3489 + $0x10] sm:$0xff]
    %v3493 = vld [vmem:[%s3489 + $0x18] sm:$0xff]
    %v3494 = vld [vmem:[%s3489 + $0x20] sm:$0xff]
    %v3495 = vld [vmem:[%s3489 + $0x28] sm:$0xff]
    %v3496 = vld [vmem:[%s3489 + $0x30] sm:$0xff]
    %v3497 = vld [vmem:[%s3489 + $0x38] sm:$0xff]
    %v3498 = vld [vmem:[%s3489 + $0x40] sm:$0xff]
    %v3499 = vld [vmem:[%s3489 + $0x48] sm:$0xff]
    %s3500 = scalar_lea.vmem %s3, 384
    %v3501 = vld [vmem:[%s3500] sm:$0xff]
    %v3502 = vld [vmem:[%s3500 + $0x8] sm:$0xff]
    %v3503 = vld [vmem:[%s3500 + $0x10] sm:$0xff]
    %v3504 = vld [vmem:[%s3500 + $0x18] sm:$0xff]
    %v3505 = vld [vmem:[%s3500 + $0x20] sm:$0xff]
    %v3506 = vld [vmem:[%s3500 + $0x28] sm:$0xff]
    %v3507 = vld [vmem:[%s3500 + $0x30] sm:$0xff]
    %v3508 = vld [vmem:[%s3500 + $0x38] sm:$0xff]
    %v3509 = vld [vmem:[%s3500 + $0x40] sm:$0xff]
    %v3510 = vld [vmem:[%s3500 + $0x48] sm:$0xff]
    %v3511 = vld [vmem:[%s3500 + $0x50] sm:$0xff]
    %v3512 = vld [vmem:[%s3500 + $0x58] sm:$0xff]
    %v3513 = vld [vmem:[%s3500 + $0x60] sm:$0xff]
    %v3514 = vld [vmem:[%s3500 + $0x68] sm:$0xff]
    %v3515 = vld [vmem:[%s3500 + $0x70] sm:$0xff]
    %v3516 = vld [vmem:[%s3500 + $0x78] sm:$0xff]
    %3517 = vmatprep.subr.mxu0 0.0
    %3518 = vmatpush1.msra.mxu0 %v3501
    %3519 = vmatprep.subr.mxu0 0.0
    %3520 = vmatpush1.msra.mxu0 %v3502
    %3521 = vmatprep.subr.mxu0 0.0
    %3522 = vmatpush1.msra.mxu0 %v3503
    %3523 = vmatprep.subr.mxu0 0.0
    %3524 = vmatpush1.msra.mxu0 %v3504
    %3525 = vmatprep.subr.mxu0 0.0
    %3526 = vmatpush1.msra.mxu0 %v3505
    %3527 = vmatprep.subr.mxu0 0.0
    %3528 = vmatpush1.msra.mxu0 %v3506
    %3529 = vmatprep.subr.mxu0 0.0
    %3530 = vmatpush1.msra.mxu0 %v3507
    %3531 = vmatprep.subr.mxu0 0.0
    %3532 = vmatpush1.msra.mxu0 %v3508
    %3533 = vmatprep.subr.mxu0 0.0
    %3534 = vmatpush1.msra.mxu0 %v3509
    %3535 = vmatprep.subr.mxu0 0.0
    %3536 = vmatpush1.msra.mxu0 %v3510
    %3537 = vmatprep.subr.mxu0 0.0
    %3538 = vmatpush1.msra.mxu0 %v3511
    %3539 = vmatprep.subr.mxu0 0.0
    %3540 = vmatpush1.msra.mxu0 %v3512
    %3541 = vmatprep.subr.mxu0 0.0
    %3542 = vmatpush1.msra.mxu0 %v3513
    %3543 = vmatprep.subr.mxu0 0.0
    %3544 = vmatpush1.msra.mxu0 %v3514
    %3545 = vmatprep.subr.mxu0 0.0
    %3546 = vmatpush1.msra.mxu0 %v3515
    %3547 = vmatprep.subr.mxu0 0.0
    %3548 = vmatpush1.msra.mxu0 %v3516
    %3549 = vmatprep.subr.mxu0 0.0
    %3550 = vmatpush1.msra.mxu0 0.0
    %3551 = vmatprep.subr.mxu0 0.0
    %3552 = vmatpush1.msra.mxu0 0.0
    %3553 = vmatprep.subr.mxu0 0.0
    %3554 = vmatpush1.msra.mxu0 0.0
    %3555 = vmatprep.subr.mxu0 0.0
    %3556 = vmatpush1.msra.mxu0 0.0
    %3557 = vmatprep.subr.mxu0 0.0
    %3558 = vmatpush1.msra.mxu0 0.0
    %3559 = vmatprep.subr.mxu0 0.0
    %3560 = vmatpush1.msra.mxu0 0.0
    %3561 = vmatprep.subr.mxu0 0.0
    %3562 = vmatpush1.msra.mxu0 0.0
    %3563 = vmatprep.subr.mxu0 0.0
    %3564 = vmatpush1.msra.mxu0 0.0
    %3565 = vmatprep.subr.mxu0 0.0
    %3566 = vmatpush1.msra.mxu0 0.0
    %3567 = vmatprep.subr.mxu0 0.0
    %3568 = vmatpush1.msra.mxu0 0.0
    %3569 = vmatprep.subr.mxu0 0.0
    %3570 = vmatpush1.msra.mxu0 0.0
    %3571 = vmatprep.subr.mxu0 0.0
    %3572 = vmatpush1.msra.mxu0 0.0
    %3573 = vmatprep.subr.mxu0 0.0
    %3574 = vmatpush1.msra.mxu0 0.0
    %3575 = vmatprep.subr.mxu0 0.0
    %3576 = vmatpush1.msra.mxu0 0.0
    %3577 = vmatprep.subr.mxu0 0.0
    %3578 = vmatpush1.msra.mxu0 0.0
    %3579 = vmatprep.subr.mxu0 0.0
    %3580 = vmatpush1.msra.mxu0 0.0
    %3581 = vmatprep.mubr.f32.mxu0 0.0
    %3582 = vmatmul.mubr.f32.gmra.mrb[0].mxu0 %v3490
    %v3583 = vpop.f32.mrb[0].mxu0
    %v3584 = vadd.f32 0.0, %v3583
    %v3585 = vpop.f32.mrb[0].mxu0
    %3586 = vmatprep.mubr.f32.mxu0 0.0
    %3587 = vmatmul.mubr.f32.gmra.mrb[0].mxu0 %v3491
    %v3588 = vpop.f32.mrb[0].mxu0
    %v3589 = vadd.f32 0.0, %v3588
    %v3590 = vpop.f32.mrb[0].mxu0
    %3591 = vmatprep.mubr.f32.mxu0 0.0
    %3592 = vmatmul.mubr.f32.gmra.mrb[0].mxu0 %v3492
    %v3593 = vpop.f32.mrb[0].mxu0
    %v3594 = vadd.f32 0.0, %v3593
    %v3595 = vpop.f32.mrb[0].mxu0
    %3596 = vmatprep.mubr.f32.mxu0 0.0
    %3597 = vmatmul.mubr.f32.gmra.mrb[0].mxu0 %v3493
    %v3598 = vpop.f32.mrb[0].mxu0
    %v3599 = vadd.f32 0.0, %v3598
    %v3600 = vpop.f32.mrb[0].mxu0
    %3601 = vmatprep.mubr.f32.mxu0 0.0
    %3602 = vmatmul.mubr.f32.gmra.mrb[0].mxu0 %v3494
    %v3603 = vpop.f32.mrb[0].mxu0
    %v3604 = vadd.f32 0.0, %v3603
    %v3605 = vpop.f32.mrb[0].mxu0
    %3606 = vmatprep.mubr.f32.mxu0 0.0
    %3607 = vmatmul.mubr.f32.gmra.mrb[0].mxu0 %v3495
    %v3608 = vpop.f32.mrb[0].mxu0
    %v3609 = vadd.f32 0.0, %v3608
    %v3610 = vpop.f32.mrb[0].mxu0
    %3611 = vmatprep.mubr.f32.mxu0 0.0
    %3612 = vmatmul.mubr.f32.gmra.mrb[0].mxu0 %v3496
    %v3613 = vpop.f32.mrb[0].mxu0
    %v3614 = vadd.f32 0.0, %v3613
    %v3615 = vpop.f32.mrb[0].mxu0
    %3616 = vmatprep.mubr.f32.mxu0 0.0
    %3617 = vmatmul.mubr.f32.gmra.mrb[0].mxu0 %v3497
    %v3618 = vpop.f32.mrb[0].mxu0
    %v3619 = vadd.f32 0.0, %v3618
    %v3620 = vpop.f32.mrb[0].mxu0
    %3621 = vmatprep.mubr.f32.mxu0 0.0
    %3622 = vmatmul.mubr.f32.gmra.mrb[0].mxu0 %v3498
    %v3623 = vpop.f32.mrb[0].mxu0
    %v3624 = vadd.f32 0.0, %v3623
    %v3625 = vpop.f32.mrb[0].mxu0
    %3626 = vmatprep.mubr.f32.mxu0 0.0
    %3627 = vmatmul.mubr.f32.gmra.mrb[0].mxu0 %v3499
    %v3628 = vpop.f32.mrb[0].mxu0
    %v3629 = vadd.f32 0.0, %v3628
    %v3630 = vpop.f32.mrb[0].mxu0
    %3631 = vdwg.mxu0
    %v3632 = vadd.f32 %v3477, %v3584
    %v3633 = vadd.f32 %v3478, %v3589
    %v3634 = vadd.f32 %v3479, %v3594
    %v3635 = vadd.f32 %v3480, %v3599
    %v3636 = vadd.f32 %v3481, %v3604
    %v3637 = vadd.f32 %v3482, %v3609
    %v3638 = vadd.f32 %v3483, %v3614
    %v3639 = vadd.f32 %v3484, %v3619
    %v3640 = vadd.f32 %v3485, %v3624
    %v3641 = vadd.f32 %v3486, %v3629
    %s3642 = sadd.s32 8, %s3488
    %s3643 = scalar_lea.vmem [#allocation2], %s3642
    %v3644 = vld [vmem:[%s3643] sm:$0xff]
    %v3645 = vld [vmem:[%s3643 + $0x8] sm:$0xff]
    %v3646 = vld [vmem:[%s3643 + $0x10] sm:$0xff]
    %v3647 = vld [vmem:[%s3643 + $0x18] sm:$0xff]
    %v3648 = vld [vmem:[%s3643 + $0x20] sm:$0xff]
    %v3649 = vld [vmem:[%s3643 + $0x28] sm:$0xff]
    %v3650 = vld [vmem:[%s3643 + $0x30] sm:$0xff]
    %v3651 = vld [vmem:[%s3643 + $0x38] sm:$0xff]
    %v3652 = vld [vmem:[%s3643 + $0x40] sm:$0xff]
    %v3653 = vld [vmem:[%s3643 + $0x48] sm:$0xff]
    %s3654 = scalar_lea.vmem %s3, 512
    %v3655 = vld [vmem:[%s3654] sm:$0xff]
    %v3656 = vld [vmem:[%s3654 + $0x8] sm:$0xff]
    %v3657 = vld [vmem:[%s3654 + $0x10] sm:$0xff]
    %v3658 = vld [vmem:[%s3654 + $0x18] sm:$0xff]
    %v3659 = vld [vmem:[%s3654 + $0x20] sm:$0xff]
    %v3660 = vld [vmem:[%s3654 + $0x28] sm:$0xff]
    %v3661 = vld [vmem:[%s3654 + $0x30] sm:$0xff]
    %v3662 = vld [vmem:[%s3654 + $0x38] sm:$0xff]
    %v3663 = vld [vmem:[%s3654 + $0x40] sm:$0xff]
    %v3664 = vld [vmem:[%s3654 + $0x48] sm:$0xff]
    %v3665 = vld [vmem:[%s3654 + $0x50] sm:$0xff]
    %v3666 = vld [vmem:[%s3654 + $0x58] sm:$0xff]
    %v3667 = vld [vmem:[%s3654 + $0x60] sm:$0xff]
    %v3668 = vld [vmem:[%s3654 + $0x68] sm:$0xff]
    %v3669 = vld [vmem:[%s3654 + $0x70] sm:$0xff]
    %v3670 = vld [vmem:[%s3654 + $0x78] sm:$0xff]
    %3671 = vmatprep.subr.mxu0 0.0
    %3672 = vmatpush1.msra.mxu0 %v3655
    %3673 = vmatprep.subr.mxu0 0.0
    %3674 = vmatpush1.msra.mxu0 %v3656
    %3675 = vmatprep.subr.mxu0 0.0
    %3676 = vmatpush1.msra.mxu0 %v3657
    %3677 = vmatprep.subr.mxu0 0.0
    %3678 = vmatpush1.msra.mxu0 %v3658
    %3679 = vmatprep.subr.mxu0 0.0
    %3680 = vmatpush1.msra.mxu0 %v3659
    %3681 = vmatprep.subr.mxu0 0.0
    %3682 = vmatpush1.msra.mxu0 %v3660
    %3683 = vmatprep.subr.mxu0 0.0
    %3684 = vmatpush1.msra.mxu0 %v3661
    %3685 = vmatprep.subr.mxu0 0.0
    %3686 = vmatpush1.msra.mxu0 %v3662
    %3687 = vmatprep.subr.mxu0 0.0
    %3688 = vmatpush1.msra.mxu0 %v3663
    %3689 = vmatprep.subr.mxu0 0.0
    %3690 = vmatpush1.msra.mxu0 %v3664
    %3691 = vmatprep.subr.mxu0 0.0
    %3692 = vmatpush1.msra.mxu0 %v3665
    %3693 = vmatprep.subr.mxu0 0.0
    %3694 = vmatpush1.msra.mxu0 %v3666
    %3695 = vmatprep.subr.mxu0 0.0
    %3696 = vmatpush1.msra.mxu0 %v3667
    %3697 = vmatprep.subr.mxu0 0.0
    %3698 = vmatpush1.msra.mxu0 %v3668
    %3699 = vmatprep.subr.mxu0 0.0
    %3700 = vmatpush1.msra.mxu0 %v3669
    %3701 = vmatprep.subr.mxu0 0.0
    %3702 = vmatpush1.msra.mxu0 %v3670
    %3703 = vmatprep.subr.mxu0 0.0
    %3704 = vmatpush1.msra.mxu0 0.0
    %3705 = vmatprep.subr.mxu0 0.0
    %3706 = vmatpush1.msra.mxu0 0.0
    %3707 = vmatprep.subr.mxu0 0.0
    %3708 = vmatpush1.msra.mxu0 0.0
    %3709 = vmatprep.subr.mxu0 0.0
    %3710 = vmatpush1.msra.mxu0 0.0
    %3711 = vmatprep.subr.mxu0 0.0
    %3712 = vmatpush1.msra.mxu0 0.0
    %3713 = vmatprep.subr.mxu0 0.0
    %3714 = vmatpush1.msra.mxu0 0.0
    %3715 = vmatprep.subr.mxu0 0.0
    %3716 = vmatpush1.msra.mxu0 0.0
    %3717 = vmatprep.subr.mxu0 0.0
    %3718 = vmatpush1.msra.mxu0 0.0
    %3719 = vmatprep.subr.mxu0 0.0
    %3720 = vmatpush1.msra.mxu0 0.0
    %3721 = vmatprep.subr.mxu0 0.0
    %3722 = vmatpush1.msra.mxu0 0.0
    %3723 = vmatprep.subr.mxu0 0.0
    %3724 = vmatpush1.msra.mxu0 0.0
    %3725 = vmatprep.subr.mxu0 0.0
    %3726 = vmatpush1.msra.mxu0 0.0
    %3727 = vmatprep.subr.mxu0 0.0
    %3728 = vmatpush1.msra.mxu0 0.0
    %3729 = vmatprep.subr.mxu0 0.0
    %3730 = vmatpush1.msra.mxu0 0.0
    %3731 = vmatprep.subr.mxu0 0.0
    %3732 = vmatpush1.msra.mxu0 0.0
    %3733 = vmatprep.subr.mxu0 0.0
    %3734 = vmatpush1.msra.mxu0 0.0
    %3735 = vmatprep.mubr.f32.mxu0 0.0
    %3736 = vmatmul.mubr.f32.gmra.mrb[0].mxu0 %v3644
    %v3737 = vpop.f32.mrb[0].mxu0
    %v3738 = vadd.f32 0.0, %v3737
    %v3739 = vpop.f32.mrb[0].mxu0
    %3740 = vmatprep.mubr.f32.mxu0 0.0
    %3741 = vmatmul.mubr.f32.gmra.mrb[0].mxu0 %v3645
    %v3742 = vpop.f32.mrb[0].mxu0
    %v3743 = vadd.f32 0.0, %v3742
    %v3744 = vpop.f32.mrb[0].mxu0
    %3745 = vmatprep.mubr.f32.mxu0 0.0
    %3746 = vmatmul.mubr.f32.gmra.mrb[0].mxu0 %v3646
    %v3747 = vpop.f32.mrb[0].mxu0
    %v3748 = vadd.f32 0.0, %v3747
    %v3749 = vpop.f32.mrb[0].mxu0
    %3750 = vmatprep.mubr.f32.mxu0 0.0
    %3751 = vmatmul.mubr.f32.gmra.mrb[0].mxu0 %v3647
    %v3752 = vpop.f32.mrb[0].mxu0
    %v3753 = vadd.f32 0.0, %v3752
    %v3754 = vpop.f32.mrb[0].mxu0
    %3755 = vmatprep.mubr.f32.mxu0 0.0
    %3756 = vmatmul.mubr.f32.gmra.mrb[0].mxu0 %v3648
    %v3757 = vpop.f32.mrb[0].mxu0
    %v3758 = vadd.f32 0.0, %v3757
    %v3759 = vpop.f32.mrb[0].mxu0
    %3760 = vmatprep.mubr.f32.mxu0 0.0
    %3761 = vmatmul.mubr.f32.gmra.mrb[0].mxu0 %v3649
    %v3762 = vpop.f32.mrb[0].mxu0
    %v3763 = vadd.f32 0.0, %v3762
    %v3764 = vpop.f32.mrb[0].mxu0
    %3765 = vmatprep.mubr.f32.mxu0 0.0
    %3766 = vmatmul.mubr.f32.gmra.mrb[0].mxu0 %v3650
    %v3767 = vpop.f32.mrb[0].mxu0
    %v3768 = vadd.f32 0.0, %v3767
    %v3769 = vpop.f32.mrb[0].mxu0
    %3770 = vmatprep.mubr.f32.mxu0 0.0
    %3771 = vmatmul.mubr.f32.gmra.mrb[0].mxu0 %v3651
    %v3772 = vpop.f32.mrb[0].mxu0
    %v3773 = vadd.f32 0.0, %v3772
    %v3774 = vpop.f32.mrb[0].mxu0
    %3775 = vmatprep.mubr.f32.mxu0 0.0
    %3776 = vmatmul.mubr.f32.gmra.mrb[0].mxu0 %v3652
    %v3777 = vpop.f32.mrb[0].mxu0
    %v3778 = vadd.f32 0.0, %v3777
    %v3779 = vpop.f32.mrb[0].mxu0
    %3780 = vmatprep.mubr.f32.mxu0 0.0
    %3781 = vmatmul.mubr.f32.gmra.mrb[0].mxu0 %v3653
    %v3782 = vpop.f32.mrb[0].mxu0
    %v3783 = vadd.f32 0.0, %v3782
    %v3784 = vpop.f32.mrb[0].mxu0
    %3785 = vdwg.mxu0
    %v3786 = vadd.f32 %v3632, %v3738
    %v3787 = vadd.f32 %v3633, %v3743
    %v3788 = vadd.f32 %v3634, %v3748
    %v3789 = vadd.f32 %v3635, %v3753
    %v3790 = vadd.f32 %v3636, %v3758
    %v3791 = vadd.f32 %v3637, %v3763
    %v3792 = vadd.f32 %v3638, %v3768
    %v3793 = vadd.f32 %v3639, %v3773
    %v3794 = vadd.f32 %v3640, %v3778
    %v3795 = vadd.f32 %v3641, %v3783
    %s3796 = sadd.s32 16, %s3488
    %s3797 = scalar_lea.vmem [#allocation2], %s3796
    %v3798 = vld [vmem:[%s3797] sm:$0xff]
    %v3799 = vld [vmem:[%s3797 + $0x8] sm:$0xff]
    %v3800 = vld [vmem:[%s3797 + $0x10] sm:$0xff]
    %v3801 = vld [vmem:[%s3797 + $0x18] sm:$0xff]
    %v3802 = vld [vmem:[%s3797 + $0x20] sm:$0xff]
    %v3803 = vld [vmem:[%s3797 + $0x28] sm:$0xff]
    %v3804 = vld [vmem:[%s3797 + $0x30] sm:$0xff]
    %v3805 = vld [vmem:[%s3797 + $0x38] sm:$0xff]
    %v3806 = vld [vmem:[%s3797 + $0x40] sm:$0xff]
    %v3807 = vld [vmem:[%s3797 + $0x48] sm:$0xff]
    %s3808 = scalar_lea.vmem %s3, 640
    %v3809 = vld [vmem:[%s3808] sm:$0xff]
    %v3810 = vld [vmem:[%s3808 + $0x8] sm:$0xff]
    %v3811 = vld [vmem:[%s3808 + $0x10] sm:$0xff]
    %v3812 = vld [vmem:[%s3808 + $0x18] sm:$0xff]
    %v3813 = vld [vmem:[%s3808 + $0x20] sm:$0xff]
    %v3814 = vld [vmem:[%s3808 + $0x28] sm:$0xff]
    %v3815 = vld [vmem:[%s3808 + $0x30] sm:$0xff]
    %v3816 = vld [vmem:[%s3808 + $0x38] sm:$0xff]
    %v3817 = vld [vmem:[%s3808 + $0x40] sm:$0xff]
    %v3818 = vld [vmem:[%s3808 + $0x48] sm:$0xff]
    %v3819 = vld [vmem:[%s3808 + $0x50] sm:$0xff]
    %v3820 = vld [vmem:[%s3808 + $0x58] sm:$0xff]
    %v3821 = vld [vmem:[%s3808 + $0x60] sm:$0xff]
    %v3822 = vld [vmem:[%s3808 + $0x68] sm:$0xff]
    %v3823 = vld [vmem:[%s3808 + $0x70] sm:$0xff]
    %v3824 = vld [vmem:[%s3808 + $0x78] sm:$0xff]
    %3825 = vmatprep.subr.mxu0 0.0
    %3826 = vmatpush1.msra.mxu0 %v3809
    %3827 = vmatprep.subr.mxu0 0.0
    %3828 = vmatpush1.msra.mxu0 %v3810
    %3829 = vmatprep.subr.mxu0 0.0
    %3830 = vmatpush1.msra.mxu0 %v3811
    %3831 = vmatprep.subr.mxu0 0.0
    %3832 = vmatpush1.msra.mxu0 %v3812
    %3833 = vmatprep.subr.mxu0 0.0
    %3834 = vmatpush1.msra.mxu0 %v3813
    %3835 = vmatprep.subr.mxu0 0.0
    %3836 = vmatpush1.msra.mxu0 %v3814
    %3837 = vmatprep.subr.mxu0 0.0
    %3838 = vmatpush1.msra.mxu0 %v3815
    %3839 = vmatprep.subr.mxu0 0.0
    %3840 = vmatpush1.msra.mxu0 %v3816
    %3841 = vmatprep.subr.mxu0 0.0
    %3842 = vmatpush1.msra.mxu0 %v3817
    %3843 = vmatprep.subr.mxu0 0.0
    %3844 = vmatpush1.msra.mxu0 %v3818
    %3845 = vmatprep.subr.mxu0 0.0
    %3846 = vmatpush1.msra.mxu0 %v3819
    %3847 = vmatprep.subr.mxu0 0.0
    %3848 = vmatpush1.msra.mxu0 %v3820
    %3849 = vmatprep.subr.mxu0 0.0
    %3850 = vmatpush1.msra.mxu0 %v3821
    %3851 = vmatprep.subr.mxu0 0.0
    %3852 = vmatpush1.msra.mxu0 %v3822
    %3853 = vmatprep.subr.mxu0 0.0
    %3854 = vmatpush1.msra.mxu0 %v3823
    %3855 = vmatprep.subr.mxu0 0.0
    %3856 = vmatpush1.msra.mxu0 %v3824
    %3857 = vmatprep.subr.mxu0 0.0
    %3858 = vmatpush1.msra.mxu0 0.0
    %3859 = vmatprep.subr.mxu0 0.0
    %3860 = vmatpush1.msra.mxu0 0.0
    %3861 = vmatprep.subr.mxu0 0.0
    %3862 = vmatpush1.msra.mxu0 0.0
    %3863 = vmatprep.subr.mxu0 0.0
    %3864 = vmatpush1.msra.mxu0 0.0
    %3865 = vmatprep.subr.mxu0 0.0
    %3866 = vmatpush1.msra.mxu0 0.0
    %3867 = vmatprep.subr.mxu0 0.0
    %3868 = vmatpush1.msra.mxu0 0.0
    %3869 = vmatprep.subr.mxu0 0.0
    %3870 = vmatpush1.msra.mxu0 0.0
    %3871 = vmatprep.subr.mxu0 0.0
    %3872 = vmatpush1.msra.mxu0 0.0
    %3873 = vmatprep.subr.mxu0 0.0
    %3874 = vmatpush1.msra.mxu0 0.0
    %3875 = vmatprep.subr.mxu0 0.0
    %3876 = vmatpush1.msra.mxu0 0.0
    %3877 = vmatprep.subr.mxu0 0.0
    %3878 = vmatpush1.msra.mxu0 0.0
    %3879 = vmatprep.subr.mxu0 0.0
    %3880 = vmatpush1.msra.mxu0 0.0
    %3881 = vmatprep.subr.mxu0 0.0
    %3882 = vmatpush1.msra.mxu0 0.0
    %3883 = vmatprep.subr.mxu0 0.0
    %3884 = vmatpush1.msra.mxu0 0.0
    %3885 = vmatprep.subr.mxu0 0.0
    %3886 = vmatpush1.msra.mxu0 0.0
    %3887 = vmatprep.subr.mxu0 0.0
    %3888 = vmatpush1.msra.mxu0 0.0
    %3889 = vmatprep.mubr.f32.mxu0 0.0
    %3890 = vmatmul.mubr.f32.gmra.mrb[0].mxu0 %v3798
    %v3891 = vpop.f32.mrb[0].mxu0
    %v3892 = vadd.f32 0.0, %v3891
    %v3893 = vpop.f32.mrb[0].mxu0
    %3894 = vmatprep.mubr.f32.mxu0 0.0
    %3895 = vmatmul.mubr.f32.gmra.mrb[0].mxu0 %v3799
    %v3896 = vpop.f32.mrb[0].mxu0
    %v3897 = vadd.f32 0.0, %v3896
    %v3898 = vpop.f32.mrb[0].mxu0
    %3899 = vmatprep.mubr.f32.mxu0 0.0
    %3900 = vmatmul.mubr.f32.gmra.mrb[0].mxu0 %v3800
    %v3901 = vpop.f32.mrb[0].mxu0
    %v3902 = vadd.f32 0.0, %v3901
    %v3903 = vpop.f32.mrb[0].mxu0
    %3904 = vmatprep.mubr.f32.mxu0 0.0
    %3905 = vmatmul.mubr.f32.gmra.mrb[0].mxu0 %v3801
    %v3906 = vpop.f32.mrb[0].mxu0
    %v3907 = vadd.f32 0.0, %v3906
    %v3908 = vpop.f32.mrb[0].mxu0
    %3909 = vmatprep.mubr.f32.mxu0 0.0
    %3910 = vmatmul.mubr.f32.gmra.mrb[0].mxu0 %v3802
    %v3911 = vpop.f32.mrb[0].mxu0
    %v3912 = vadd.f32 0.0, %v3911
    %v3913 = vpop.f32.mrb[0].mxu0
    %3914 = vmatprep.mubr.f32.mxu0 0.0
    %3915 = vmatmul.mubr.f32.gmra.mrb[0].mxu0 %v3803
    %v3916 = vpop.f32.mrb[0].mxu0
    %v3917 = vadd.f32 0.0, %v3916
    %v3918 = vpop.f32.mrb[0].mxu0
    %3919 = vmatprep.mubr.f32.mxu0 0.0
    %3920 = vmatmul.mubr.f32.gmra.mrb[0].mxu0 %v3804
    %v3921 = vpop.f32.mrb[0].mxu0
    %v3922 = vadd.f32 0.0, %v3921
    %v3923 = vpop.f32.mrb[0].mxu0
    %3924 = vmatprep.mubr.f32.mxu0 0.0
    %3925 = vmatmul.mubr.f32.gmra.mrb[0].mxu0 %v3805
    %v3926 = vpop.f32.mrb[0].mxu0
    %v3927 = vadd.f32 0.0, %v3926
    %v3928 = vpop.f32.mrb[0].mxu0
    %3929 = vmatprep.mubr.f32.mxu0 0.0
    %3930 = vmatmul.mubr.f32.gmra.mrb[0].mxu0 %v3806
    %v3931 = vpop.f32.mrb[0].mxu0
    %v3932 = vadd.f32 0.0, %v3931
    %v3933 = vpop.f32.mrb[0].mxu0
    %3934 = vmatprep.mubr.f32.mxu0 0.0
    %3935 = vmatmul.mubr.f32.gmra.mrb[0].mxu0 %v3807
    %v3936 = vpop.f32.mrb[0].mxu0
    %v3937 = vadd.f32 0.0, %v3936
    %v3938 = vpop.f32.mrb[0].mxu0
    %3939 = vdwg.mxu0
    %v3940 = vadd.f32 %v3786, %v3892
    %v3941 = vadd.f32 %v3787, %v3897
    %v3942 = vadd.f32 %v3788, %v3902
    %v3943 = vadd.f32 %v3789, %v3907
    %v3944 = vadd.f32 %v3790, %v3912
    %v3945 = vadd.f32 %v3791, %v3917
    %v3946 = vadd.f32 %v3792, %v3922
    %v3947 = vadd.f32 %v3793, %v3927
    %v3948 = vadd.f32 %v3794, %v3932
    %v3949 = vadd.f32 %v3795, %v3937
    %s3950 = sadd.s32 %s3045, 2
    %s3951 = smul.u32 %s3950, 104
    %s3952 = scalar_lea.vmem [#allocation2], %s3951
    %v3953 = vld [vmem:[%s3952] sm:$0xff]
    %v3954 = vld [vmem:[%s3952 + $0x8] sm:$0xff]
    %v3955 = vld [vmem:[%s3952 + $0x10] sm:$0xff]
    %v3956 = vld [vmem:[%s3952 + $0x18] sm:$0xff]
    %v3957 = vld [vmem:[%s3952 + $0x20] sm:$0xff]
    %v3958 = vld [vmem:[%s3952 + $0x28] sm:$0xff]
    %v3959 = vld [vmem:[%s3952 + $0x30] sm:$0xff]
    %v3960 = vld [vmem:[%s3952 + $0x38] sm:$0xff]
    %v3961 = vld [vmem:[%s3952 + $0x40] sm:$0xff]
    %v3962 = vld [vmem:[%s3952 + $0x48] sm:$0xff]
    %s3963 = scalar_lea.vmem %s3, 768
    %v3964 = vld [vmem:[%s3963] sm:$0xff]
    %v3965 = vld [vmem:[%s3963 + $0x8] sm:$0xff]
    %v3966 = vld [vmem:[%s3963 + $0x10] sm:$0xff]
    %v3967 = vld [vmem:[%s3963 + $0x18] sm:$0xff]
    %v3968 = vld [vmem:[%s3963 + $0x20] sm:$0xff]
    %v3969 = vld [vmem:[%s3963 + $0x28] sm:$0xff]
    %v3970 = vld [vmem:[%s3963 + $0x30] sm:$0xff]
    %v3971 = vld [vmem:[%s3963 + $0x38] sm:$0xff]
    %v3972 = vld [vmem:[%s3963 + $0x40] sm:$0xff]
    %v3973 = vld [vmem:[%s3963 + $0x48] sm:$0xff]
    %v3974 = vld [vmem:[%s3963 + $0x50] sm:$0xff]
    %v3975 = vld [vmem:[%s3963 + $0x58] sm:$0xff]
    %v3976 = vld [vmem:[%s3963 + $0x60] sm:$0xff]
    %v3977 = vld [vmem:[%s3963 + $0x68] sm:$0xff]
    %v3978 = vld [vmem:[%s3963 + $0x70] sm:$0xff]
    %v3979 = vld [vmem:[%s3963 + $0x78] sm:$0xff]
    %3980 = vmatprep.subr.mxu0 0.0
    %3981 = vmatpush1.msra.mxu0 %v3964
    %3982 = vmatprep.subr.mxu0 0.0
    %3983 = vmatpush1.msra.mxu0 %v3965
    %3984 = vmatprep.subr.mxu0 0.0
    %3985 = vmatpush1.msra.mxu0 %v3966
    %3986 = vmatprep.subr.mxu0 0.0
    %3987 = vmatpush1.msra.mxu0 %v3967
    %3988 = vmatprep.subr.mxu0 0.0
    %3989 = vmatpush1.msra.mxu0 %v3968
    %3990 = vmatprep.subr.mxu0 0.0
    %3991 = vmatpush1.msra.mxu0 %v3969
    %3992 = vmatprep.subr.mxu0 0.0
    %3993 = vmatpush1.msra.mxu0 %v3970
    %3994 = vmatprep.subr.mxu0 0.0
    %3995 = vmatpush1.msra.mxu0 %v3971
    %3996 = vmatprep.subr.mxu0 0.0
    %3997 = vmatpush1.msra.mxu0 %v3972
    %3998 = vmatprep.subr.mxu0 0.0
    %3999 = vmatpush1.msra.mxu0 %v3973
    %4000 = vmatprep.subr.mxu0 0.0
    %4001 = vmatpush1.msra.mxu0 %v3974
    %4002 = vmatprep.subr.mxu0 0.0
    %4003 = vmatpush1.msra.mxu0 %v3975
    %4004 = vmatprep.subr.mxu0 0.0
    %4005 = vmatpush1.msra.mxu0 %v3976
    %4006 = vmatprep.subr.mxu0 0.0
    %4007 = vmatpush1.msra.mxu0 %v3977
    %4008 = vmatprep.subr.mxu0 0.0
    %4009 = vmatpush1.msra.mxu0 %v3978
    %4010 = vmatprep.subr.mxu0 0.0
    %4011 = vmatpush1.msra.mxu0 %v3979
    %4012 = vmatprep.subr.mxu0 0.0
    %4013 = vmatpush1.msra.mxu0 0.0
    %4014 = vmatprep.subr.mxu0 0.0
    %4015 = vmatpush1.msra.mxu0 0.0
    %4016 = vmatprep.subr.mxu0 0.0
    %4017 = vmatpush1.msra.mxu0 0.0
    %4018 = vmatprep.subr.mxu0 0.0
    %4019 = vmatpush1.msra.mxu0 0.0
    %4020 = vmatprep.subr.mxu0 0.0
    %4021 = vmatpush1.msra.mxu0 0.0
    %4022 = vmatprep.subr.mxu0 0.0
    %4023 = vmatpush1.msra.mxu0 0.0
    %4024 = vmatprep.subr.mxu0 0.0
    %4025 = vmatpush1.msra.mxu0 0.0
    %4026 = vmatprep.subr.mxu0 0.0
    %4027 = vmatpush1.msra.mxu0 0.0
    %4028 = vmatprep.subr.mxu0 0.0
    %4029 = vmatpush1.msra.mxu0 0.0
    %4030 = vmatprep.subr.mxu0 0.0
    %4031 = vmatpush1.msra.mxu0 0.0
    %4032 = vmatprep.subr.mxu0 0.0
    %4033 = vmatpush1.msra.mxu0 0.0
    %4034 = vmatprep.subr.mxu0 0.0
    %4035 = vmatpush1.msra.mxu0 0.0
    %4036 = vmatprep.subr.mxu0 0.0
    %4037 = vmatpush1.msra.mxu0 0.0
    %4038 = vmatprep.subr.mxu0 0.0
    %4039 = vmatpush1.msra.mxu0 0.0
    %4040 = vmatprep.subr.mxu0 0.0
    %4041 = vmatpush1.msra.mxu0 0.0
    %4042 = vmatprep.subr.mxu0 0.0
    %4043 = vmatpush1.msra.mxu0 0.0
    %4044 = vmatprep.mubr.f32.mxu0 0.0
    %4045 = vmatmul.mubr.f32.gmra.mrb[0].mxu0 %v3953
    %v4046 = vpop.f32.mrb[0].mxu0
    %v4047 = vadd.f32 0.0, %v4046
    %v4048 = vpop.f32.mrb[0].mxu0
    %4049 = vmatprep.mubr.f32.mxu0 0.0
    %4050 = vmatmul.mubr.f32.gmra.mrb[0].mxu0 %v3954
    %v4051 = vpop.f32.mrb[0].mxu0
    %v4052 = vadd.f32 0.0, %v4051
    %v4053 = vpop.f32.mrb[0].mxu0
    %4054 = vmatprep.mubr.f32.mxu0 0.0
    %4055 = vmatmul.mubr.f32.gmra.mrb[0].mxu0 %v3955
    %v4056 = vpop.f32.mrb[0].mxu0
    %v4057 = vadd.f32 0.0, %v4056
    %v4058 = vpop.f32.mrb[0].mxu0
    %4059 = vmatprep.mubr.f32.mxu0 0.0
    %4060 = vmatmul.mubr.f32.gmra.mrb[0].mxu0 %v3956
    %v4061 = vpop.f32.mrb[0].mxu0
    %v4062 = vadd.f32 0.0, %v4061
    %v4063 = vpop.f32.mrb[0].mxu0
    %4064 = vmatprep.mubr.f32.mxu0 0.0
    %4065 = vmatmul.mubr.f32.gmra.mrb[0].mxu0 %v3957
    %v4066 = vpop.f32.mrb[0].mxu0
    %v4067 = vadd.f32 0.0, %v4066
    %v4068 = vpop.f32.mrb[0].mxu0
    %4069 = vmatprep.mubr.f32.mxu0 0.0
    %4070 = vmatmul.mubr.f32.gmra.mrb[0].mxu0 %v3958
    %v4071 = vpop.f32.mrb[0].mxu0
    %v4072 = vadd.f32 0.0, %v4071
    %v4073 = vpop.f32.mrb[0].mxu0
    %4074 = vmatprep.mubr.f32.mxu0 0.0
    %4075 = vmatmul.mubr.f32.gmra.mrb[0].mxu0 %v3959
    %v4076 = vpop.f32.mrb[0].mxu0
    %v4077 = vadd.f32 0.0, %v4076
    %v4078 = vpop.f32.mrb[0].mxu0
    %4079 = vmatprep.mubr.f32.mxu0 0.0
    %4080 = vmatmul.mubr.f32.gmra.mrb[0].mxu0 %v3960
    %v4081 = vpop.f32.mrb[0].mxu0
    %v4082 = vadd.f32 0.0, %v4081
    %v4083 = vpop.f32.mrb[0].mxu0
    %4084 = vmatprep.mubr.f32.mxu0 0.0
    %4085 = vmatmul.mubr.f32.gmra.mrb[0].mxu0 %v3961
    %v4086 = vpop.f32.mrb[0].mxu0
    %v4087 = vadd.f32 0.0, %v4086
    %v4088 = vpop.f32.mrb[0].mxu0
    %4089 = vmatprep.mubr.f32.mxu0 0.0
    %4090 = vmatmul.mubr.f32.gmra.mrb[0].mxu0 %v3962
    %v4091 = vpop.f32.mrb[0].mxu0
    %v4092 = vadd.f32 0.0, %v4091
    %v4093 = vpop.f32.mrb[0].mxu0
    %4094 = vdwg.mxu0
    %v4095 = vadd.f32 %v3940, %v4047
    %v4096 = vadd.f32 %v3941, %v4052
    %v4097 = vadd.f32 %v3942, %v4057
    %v4098 = vadd.f32 %v3943, %v4062
    %v4099 = vadd.f32 %v3944, %v4067
    %v4100 = vadd.f32 %v3945, %v4072
    %v4101 = vadd.f32 %v3946, %v4077
    %v4102 = vadd.f32 %v3947, %v4082
    %v4103 = vadd.f32 %v3948, %v4087
    %v4104 = vadd.f32 %v3949, %v4092
    %s4105 = sadd.s32 8, %s3951
    %s4106 = scalar_lea.vmem [#allocation2], %s4105
    %v4107 = vld [vmem:[%s4106] sm:$0xff]
    %v4108 = vld [vmem:[%s4106 + $0x8] sm:$0xff]
    %v4109 = vld [vmem:[%s4106 + $0x10] sm:$0xff]
    %v4110 = vld [vmem:[%s4106 + $0x18] sm:$0xff]
    %v4111 = vld [vmem:[%s4106 + $0x20] sm:$0xff]
    %v4112 = vld [vmem:[%s4106 + $0x28] sm:$0xff]
    %v4113 = vld [vmem:[%s4106 + $0x30] sm:$0xff]
    %v4114 = vld [vmem:[%s4106 + $0x38] sm:$0xff]
    %v4115 = vld [vmem:[%s4106 + $0x40] sm:$0xff]
    %v4116 = vld [vmem:[%s4106 + $0x48] sm:$0xff]
    %s4117 = scalar_lea.vmem %s3, 896
    %v4118 = vld [vmem:[%s4117] sm:$0xff]
    %v4119 = vld [vmem:[%s4117 + $0x8] sm:$0xff]
    %v4120 = vld [vmem:[%s4117 + $0x10] sm:$0xff]
    %v4121 = vld [vmem:[%s4117 + $0x18] sm:$0xff]
    %v4122 = vld [vmem:[%s4117 + $0x20] sm:$0xff]
    %v4123 = vld [vmem:[%s4117 + $0x28] sm:$0xff]
    %v4124 = vld [vmem:[%s4117 + $0x30] sm:$0xff]
    %v4125 = vld [vmem:[%s4117 + $0x38] sm:$0xff]
    %v4126 = vld [vmem:[%s4117 + $0x40] sm:$0xff]
    %v4127 = vld [vmem:[%s4117 + $0x48] sm:$0xff]
    %v4128 = vld [vmem:[%s4117 + $0x50] sm:$0xff]
    %v4129 = vld [vmem:[%s4117 + $0x58] sm:$0xff]
    %v4130 = vld [vmem:[%s4117 + $0x60] sm:$0xff]
    %v4131 = vld [vmem:[%s4117 + $0x68] sm:$0xff]
    %v4132 = vld [vmem:[%s4117 + $0x70] sm:$0xff]
    %v4133 = vld [vmem:[%s4117 + $0x78] sm:$0xff]
    %4134 = vmatprep.subr.mxu0 0.0
    %4135 = vmatpush1.msra.mxu0 %v4118
    %4136 = vmatprep.subr.mxu0 0.0
    %4137 = vmatpush1.msra.mxu0 %v4119
    %4138 = vmatprep.subr.mxu0 0.0
    %4139 = vmatpush1.msra.mxu0 %v4120
    %4140 = vmatprep.subr.mxu0 0.0
    %4141 = vmatpush1.msra.mxu0 %v4121
    %4142 = vmatprep.subr.mxu0 0.0
    %4143 = vmatpush1.msra.mxu0 %v4122
    %4144 = vmatprep.subr.mxu0 0.0
    %4145 = vmatpush1.msra.mxu0 %v4123
    %4146 = vmatprep.subr.mxu0 0.0
    %4147 = vmatpush1.msra.mxu0 %v4124
    %4148 = vmatprep.subr.mxu0 0.0
    %4149 = vmatpush1.msra.mxu0 %v4125
    %4150 = vmatprep.subr.mxu0 0.0
    %4151 = vmatpush1.msra.mxu0 %v4126
    %4152 = vmatprep.subr.mxu0 0.0
    %4153 = vmatpush1.msra.mxu0 %v4127
    %4154 = vmatprep.subr.mxu0 0.0
    %4155 = vmatpush1.msra.mxu0 %v4128
    %4156 = vmatprep.subr.mxu0 0.0
    %4157 = vmatpush1.msra.mxu0 %v4129
    %4158 = vmatprep.subr.mxu0 0.0
    %4159 = vmatpush1.msra.mxu0 %v4130
    %4160 = vmatprep.subr.mxu0 0.0
    %4161 = vmatpush1.msra.mxu0 %v4131
    %4162 = vmatprep.subr.mxu0 0.0
    %4163 = vmatpush1.msra.mxu0 %v4132
    %4164 = vmatprep.subr.mxu0 0.0
    %4165 = vmatpush1.msra.mxu0 %v4133
    %4166 = vmatprep.subr.mxu0 0.0
    %4167 = vmatpush1.msra.mxu0 0.0
    %4168 = vmatprep.subr.mxu0 0.0
    %4169 = vmatpush1.msra.mxu0 0.0
    %4170 = vmatprep.subr.mxu0 0.0
    %4171 = vmatpush1.msra.mxu0 0.0
    %4172 = vmatprep.subr.mxu0 0.0
    %4173 = vmatpush1.msra.mxu0 0.0
    %4174 = vmatprep.subr.mxu0 0.0
    %4175 = vmatpush1.msra.mxu0 0.0
    %4176 = vmatprep.subr.mxu0 0.0
    %4177 = vmatpush1.msra.mxu0 0.0
    %4178 = vmatprep.subr.mxu0 0.0
    %4179 = vmatpush1.msra.mxu0 0.0
    %4180 = vmatprep.subr.mxu0 0.0
    %4181 = vmatpush1.msra.mxu0 0.0
    %4182 = vmatprep.subr.mxu0 0.0
    %4183 = vmatpush1.msra.mxu0 0.0
    %4184 = vmatprep.subr.mxu0 0.0
    %4185 = vmatpush1.msra.mxu0 0.0
    %4186 = vmatprep.subr.mxu0 0.0
    %4187 = vmatpush1.msra.mxu0 0.0
    %4188 = vmatprep.subr.mxu0 0.0
    %4189 = vmatpush1.msra.mxu0 0.0
    %4190 = vmatprep.subr.mxu0 0.0
    %4191 = vmatpush1.msra.mxu0 0.0
    %4192 = vmatprep.subr.mxu0 0.0
    %4193 = vmatpush1.msra.mxu0 0.0
    %4194 = vmatprep.subr.mxu0 0.0
    %4195 = vmatpush1.msra.mxu0 0.0
    %4196 = vmatprep.subr.mxu0 0.0
    %4197 = vmatpush1.msra.mxu0 0.0
    %4198 = vmatprep.mubr.f32.mxu0 0.0
    %4199 = vmatmul.mubr.f32.gmra.mrb[0].mxu0 %v4107
    %v4200 = vpop.f32.mrb[0].mxu0
    %v4201 = vadd.f32 0.0, %v4200
    %v4202 = vpop.f32.mrb[0].mxu0
    %4203 = vmatprep.mubr.f32.mxu0 0.0
    %4204 = vmatmul.mubr.f32.gmra.mrb[0].mxu0 %v4108
    %v4205 = vpop.f32.mrb[0].mxu0
    %v4206 = vadd.f32 0.0, %v4205
    %v4207 = vpop.f32.mrb[0].mxu0
    %4208 = vmatprep.mubr.f32.mxu0 0.0
    %4209 = vmatmul.mubr.f32.gmra.mrb[0].mxu0 %v4109
    %v4210 = vpop.f32.mrb[0].mxu0
    %v4211 = vadd.f32 0.0, %v4210
    %v4212 = vpop.f32.mrb[0].mxu0
    %4213 = vmatprep.mubr.f32.mxu0 0.0
    %4214 = vmatmul.mubr.f32.gmra.mrb[0].mxu0 %v4110
    %v4215 = vpop.f32.mrb[0].mxu0
    %v4216 = vadd.f32 0.0, %v4215
    %v4217 = vpop.f32.mrb[0].mxu0
    %4218 = vmatprep.mubr.f32.mxu0 0.0
    %4219 = vmatmul.mubr.f32.gmra.mrb[0].mxu0 %v4111
    %v4220 = vpop.f32.mrb[0].mxu0
    %v4221 = vadd.f32 0.0, %v4220
    %v4222 = vpop.f32.mrb[0].mxu0
    %4223 = vmatprep.mubr.f32.mxu0 0.0
    %4224 = vmatmul.mubr.f32.gmra.mrb[0].mxu0 %v4112
    %v4225 = vpop.f32.mrb[0].mxu0
    %v4226 = vadd.f32 0.0, %v4225
    %v4227 = vpop.f32.mrb[0].mxu0
    %4228 = vmatprep.mubr.f32.mxu0 0.0
    %4229 = vmatmul.mubr.f32.gmra.mrb[0].mxu0 %v4113
    %v4230 = vpop.f32.mrb[0].mxu0
    %v4231 = vadd.f32 0.0, %v4230
    %v4232 = vpop.f32.mrb[0].mxu0
    %4233 = vmatprep.mubr.f32.mxu0 0.0
    %4234 = vmatmul.mubr.f32.gmra.mrb[0].mxu0 %v4114
    %v4235 = vpop.f32.mrb[0].mxu0
    %v4236 = vadd.f32 0.0, %v4235
    %v4237 = vpop.f32.mrb[0].mxu0
    %4238 = vmatprep.mubr.f32.mxu0 0.0
    %4239 = vmatmul.mubr.f32.gmra.mrb[0].mxu0 %v4115
    %v4240 = vpop.f32.mrb[0].mxu0
    %v4241 = vadd.f32 0.0, %v4240
    %v4242 = vpop.f32.mrb[0].mxu0
    %4243 = vmatprep.mubr.f32.mxu0 0.0
    %4244 = vmatmul.mubr.f32.gmra.mrb[0].mxu0 %v4116
    %v4245 = vpop.f32.mrb[0].mxu0
    %v4246 = vadd.f32 0.0, %v4245
    %v4247 = vpop.f32.mrb[0].mxu0
    %4248 = vdwg.mxu0
    %v4249 = vadd.f32 %v4095, %v4201
    %v4250 = vadd.f32 %v4096, %v4206
    %v4251 = vadd.f32 %v4097, %v4211
    %v4252 = vadd.f32 %v4098, %v4216
    %v4253 = vadd.f32 %v4099, %v4221
    %v4254 = vadd.f32 %v4100, %v4226
    %v4255 = vadd.f32 %v4101, %v4231
    %v4256 = vadd.f32 %v4102, %v4236
    %v4257 = vadd.f32 %v4103, %v4241
    %v4258 = vadd.f32 %v4104, %v4246
    %s4259 = sadd.s32 16, %s3951
    %s4260 = scalar_lea.vmem [#allocation2], %s4259
    %v4261 = vld [vmem:[%s4260] sm:$0xff]
    %v4262 = vld [vmem:[%s4260 + $0x8] sm:$0xff]
    %v4263 = vld [vmem:[%s4260 + $0x10] sm:$0xff]
    %v4264 = vld [vmem:[%s4260 + $0x18] sm:$0xff]
    %v4265 = vld [vmem:[%s4260 + $0x20] sm:$0xff]
    %v4266 = vld [vmem:[%s4260 + $0x28] sm:$0xff]
    %v4267 = vld [vmem:[%s4260 + $0x30] sm:$0xff]
    %v4268 = vld [vmem:[%s4260 + $0x38] sm:$0xff]
    %v4269 = vld [vmem:[%s4260 + $0x40] sm:$0xff]
    %v4270 = vld [vmem:[%s4260 + $0x48] sm:$0xff]
    %s4271 = scalar_lea.vmem %s3, 1024
    %v4272 = vld [vmem:[%s4271] sm:$0xff]
    %v4273 = vld [vmem:[%s4271 + $0x8] sm:$0xff]
    %v4274 = vld [vmem:[%s4271 + $0x10] sm:$0xff]
    %v4275 = vld [vmem:[%s4271 + $0x18] sm:$0xff]
    %v4276 = vld [vmem:[%s4271 + $0x20] sm:$0xff]
    %v4277 = vld [vmem:[%s4271 + $0x28] sm:$0xff]
    %v4278 = vld [vmem:[%s4271 + $0x30] sm:$0xff]
    %v4279 = vld [vmem:[%s4271 + $0x38] sm:$0xff]
    %v4280 = vld [vmem:[%s4271 + $0x40] sm:$0xff]
    %v4281 = vld [vmem:[%s4271 + $0x48] sm:$0xff]
    %v4282 = vld [vmem:[%s4271 + $0x50] sm:$0xff]
    %v4283 = vld [vmem:[%s4271 + $0x58] sm:$0xff]
    %v4284 = vld [vmem:[%s4271 + $0x60] sm:$0xff]
    %v4285 = vld [vmem:[%s4271 + $0x68] sm:$0xff]
    %v4286 = vld [vmem:[%s4271 + $0x70] sm:$0xff]
    %v4287 = vld [vmem:[%s4271 + $0x78] sm:$0xff]
    %4288 = vmatprep.subr.mxu0 0.0
    %4289 = vmatpush1.msra.mxu0 %v4272
    %4290 = vmatprep.subr.mxu0 0.0
    %4291 = vmatpush1.msra.mxu0 %v4273
    %4292 = vmatprep.subr.mxu0 0.0
    %4293 = vmatpush1.msra.mxu0 %v4274
    %4294 = vmatprep.subr.mxu0 0.0
    %4295 = vmatpush1.msra.mxu0 %v4275
    %4296 = vmatprep.subr.mxu0 0.0
    %4297 = vmatpush1.msra.mxu0 %v4276
    %4298 = vmatprep.subr.mxu0 0.0
    %4299 = vmatpush1.msra.mxu0 %v4277
    %4300 = vmatprep.subr.mxu0 0.0
    %4301 = vmatpush1.msra.mxu0 %v4278
    %4302 = vmatprep.subr.mxu0 0.0
    %4303 = vmatpush1.msra.mxu0 %v4279
    %4304 = vmatprep.subr.mxu0 0.0
    %4305 = vmatpush1.msra.mxu0 %v4280
    %4306 = vmatprep.subr.mxu0 0.0
    %4307 = vmatpush1.msra.mxu0 %v4281
    %4308 = vmatprep.subr.mxu0 0.0
    %4309 = vmatpush1.msra.mxu0 %v4282
    %4310 = vmatprep.subr.mxu0 0.0
    %4311 = vmatpush1.msra.mxu0 %v4283
    %4312 = vmatprep.subr.mxu0 0.0
    %4313 = vmatpush1.msra.mxu0 %v4284
    %4314 = vmatprep.subr.mxu0 0.0
    %4315 = vmatpush1.msra.mxu0 %v4285
    %4316 = vmatprep.subr.mxu0 0.0
    %4317 = vmatpush1.msra.mxu0 %v4286
    %4318 = vmatprep.subr.mxu0 0.0
    %4319 = vmatpush1.msra.mxu0 %v4287
    %4320 = vmatprep.subr.mxu0 0.0
    %4321 = vmatpush1.msra.mxu0 0.0
    %4322 = vmatprep.subr.mxu0 0.0
    %4323 = vmatpush1.msra.mxu0 0.0
    %4324 = vmatprep.subr.mxu0 0.0
    %4325 = vmatpush1.msra.mxu0 0.0
    %4326 = vmatprep.subr.mxu0 0.0
    %4327 = vmatpush1.msra.mxu0 0.0
    %4328 = vmatprep.subr.mxu0 0.0
    %4329 = vmatpush1.msra.mxu0 0.0
    %4330 = vmatprep.subr.mxu0 0.0
    %4331 = vmatpush1.msra.mxu0 0.0
    %4332 = vmatprep.subr.mxu0 0.0
    %4333 = vmatpush1.msra.mxu0 0.0
    %4334 = vmatprep.subr.mxu0 0.0
    %4335 = vmatpush1.msra.mxu0 0.0
    %4336 = vmatprep.subr.mxu0 0.0
    %4337 = vmatpush1.msra.mxu0 0.0
    %4338 = vmatprep.subr.mxu0 0.0
    %4339 = vmatpush1.msra.mxu0 0.0
    %4340 = vmatprep.subr.mxu0 0.0
    %4341 = vmatpush1.msra.mxu0 0.0
    %4342 = vmatprep.subr.mxu0 0.0
    %4343 = vmatpush1.msra.mxu0 0.0
    %4344 = vmatprep.subr.mxu0 0.0
    %4345 = vmatpush1.msra.mxu0 0.0
    %4346 = vmatprep.subr.mxu0 0.0
    %4347 = vmatpush1.msra.mxu0 0.0
    %4348 = vmatprep.subr.mxu0 0.0
    %4349 = vmatpush1.msra.mxu0 0.0
    %4350 = vmatprep.subr.mxu0 0.0
    %4351 = vmatpush1.msra.mxu0 0.0
    %4352 = vmatprep.mubr.f32.mxu0 0.0
    %4353 = vmatmul.mubr.f32.gmra.mrb[0].mxu0 %v4261
    %v4354 = vpop.f32.mrb[0].mxu0
    %v4355 = vadd.f32 0.0, %v4354
    %v4356 = vpop.f32.mrb[0].mxu0
    %4357 = vmatprep.mubr.f32.mxu0 0.0
    %4358 = vmatmul.mubr.f32.gmra.mrb[0].mxu0 %v4262
    %v4359 = vpop.f32.mrb[0].mxu0
    %v4360 = vadd.f32 0.0, %v4359
    %v4361 = vpop.f32.mrb[0].mxu0
    %4362 = vmatprep.mubr.f32.mxu0 0.0
    %4363 = vmatmul.mubr.f32.gmra.mrb[0].mxu0 %v4263
    %v4364 = vpop.f32.mrb[0].mxu0
    %v4365 = vadd.f32 0.0, %v4364
    %v4366 = vpop.f32.mrb[0].mxu0
    %4367 = vmatprep.mubr.f32.mxu0 0.0
    %4368 = vmatmul.mubr.f32.gmra.mrb[0].mxu0 %v4264
    %v4369 = vpop.f32.mrb[0].mxu0
    %v4370 = vadd.f32 0.0, %v4369
    %v4371 = vpop.f32.mrb[0].mxu0
    %4372 = vmatprep.mubr.f32.mxu0 0.0
    %4373 = vmatmul.mubr.f32.gmra.mrb[0].mxu0 %v4265
    %v4374 = vpop.f32.mrb[0].mxu0
    %v4375 = vadd.f32 0.0, %v4374
    %v4376 = vpop.f32.mrb[0].mxu0
    %4377 = vmatprep.mubr.f32.mxu0 0.0
    %4378 = vmatmul.mubr.f32.gmra.mrb[0].mxu0 %v4266
    %v4379 = vpop.f32.mrb[0].mxu0
    %v4380 = vadd.f32 0.0, %v4379
    %v4381 = vpop.f32.mrb[0].mxu0
    %4382 = vmatprep.mubr.f32.mxu0 0.0
    %4383 = vmatmul.mubr.f32.gmra.mrb[0].mxu0 %v4267
    %v4384 = vpop.f32.mrb[0].mxu0
    %v4385 = vadd.f32 0.0, %v4384
    %v4386 = vpop.f32.mrb[0].mxu0
    %4387 = vmatprep.mubr.f32.mxu0 0.0
    %4388 = vmatmul.mubr.f32.gmra.mrb[0].mxu0 %v4268
    %v4389 = vpop.f32.mrb[0].mxu0
    %v4390 = vadd.f32 0.0, %v4389
    %v4391 = vpop.f32.mrb[0].mxu0
    %4392 = vmatprep.mubr.f32.mxu0 0.0
    %4393 = vmatmul.mubr.f32.gmra.mrb[0].mxu0 %v4269
    %v4394 = vpop.f32.mrb[0].mxu0
    %v4395 = vadd.f32 0.0, %v4394
    %v4396 = vpop.f32.mrb[0].mxu0
    %4397 = vmatprep.mubr.f32.mxu0 0.0
    %4398 = vmatmul.mubr.f32.gmra.mrb[0].mxu0 %v4270
    %v4399 = vpop.f32.mrb[0].mxu0
    %v4400 = vadd.f32 0.0, %v4399
    %v4401 = vpop.f32.mrb[0].mxu0
    %4402 = vdwg.mxu0
    %v4403 = vadd.f32 %v4249, %v4355
    %v4404 = vadd.f32 %v4250, %v4360
    %v4405 = vadd.f32 %v4251, %v4365
    %v4406 = vadd.f32 %v4252, %v4370
    %v4407 = vadd.f32 %v4253, %v4375
    %v4408 = vadd.f32 %v4254, %v4380
    %v4409 = vadd.f32 %v4255, %v4385
    %v4410 = vadd.f32 %v4256, %v4390
    %v4411 = vadd.f32 %v4257, %v4395
    %v4412 = vadd.f32 %v4258, %v4400
    %v4413 = vmax.f32 %v4403, %v4404
    %v4414 = vmax.f32 %v4405, %v4406
    %v4415 = vmax.f32 %v4407, %v4408
    %v4416 = vmax.f32 %v4409, %v4410
    %v4417 = vmax.f32 %v4411, %v4412
    %4418 = vmatprep.subr.mxu0 0.0
    %4419 = vmatpush1.msra.mxu0 %v3087
    %4420 = vmatprep.subr.mxu0 0.0
    %4421 = vmatpush1.msra.mxu0 %v3088
    %4422 = vmatprep.subr.mxu0 0.0
    %4423 = vmatpush1.msra.mxu0 %v3089
    %4424 = vmatprep.subr.mxu0 0.0
    %4425 = vmatpush1.msra.mxu0 %v3090
    %4426 = vmatprep.subr.mxu0 0.0
    %4427 = vmatpush1.msra.mxu0 %v3091
    %4428 = vmatprep.subr.mxu0 0.0
    %4429 = vmatpush1.msra.mxu0 %v3092
    %4430 = vmatprep.subr.mxu0 0.0
    %4431 = vmatpush1.msra.mxu0 %v3093
    %4432 = vmatprep.subr.mxu0 0.0
    %4433 = vmatpush1.msra.mxu0 %v3094
    %4434 = vmatprep.subr.mxu0 0.0
    %4435 = vmatpush1.msra.mxu0 %v3095
    %4436 = vmatprep.subr.mxu0 0.0
    %4437 = vmatpush1.msra.mxu0 %v3096
    %4438 = vmatprep.subr.mxu0 0.0
    %4439 = vmatpush1.msra.mxu0 %v3097
    %4440 = vmatprep.subr.mxu0 0.0
    %4441 = vmatpush1.msra.mxu0 %v3098
    %4442 = vmatprep.subr.mxu0 0.0
    %4443 = vmatpush1.msra.mxu0 %v3099
    %4444 = vmatprep.subr.mxu0 0.0
    %4445 = vmatpush1.msra.mxu0 %v3100
    %4446 = vmatprep.subr.mxu0 0.0
    %4447 = vmatpush1.msra.mxu0 %v3101
    %4448 = vmatprep.subr.mxu0 0.0
    %4449 = vmatpush1.msra.mxu0 %v3102
    %4450 = vmatprep.subr.mxu0 0.0
    %4451 = vmatpush1.msra.mxu0 0.0
    %4452 = vmatprep.subr.mxu0 0.0
    %4453 = vmatpush1.msra.mxu0 0.0
    %4454 = vmatprep.subr.mxu0 0.0
    %4455 = vmatpush1.msra.mxu0 0.0
    %4456 = vmatprep.subr.mxu0 0.0
    %4457 = vmatpush1.msra.mxu0 0.0
    %4458 = vmatprep.subr.mxu0 0.0
    %4459 = vmatpush1.msra.mxu0 0.0
    %4460 = vmatprep.subr.mxu0 0.0
    %4461 = vmatpush1.msra.mxu0 0.0
    %4462 = vmatprep.subr.mxu0 0.0
    %4463 = vmatpush1.msra.mxu0 0.0
    %4464 = vmatprep.subr.mxu0 0.0
    %4465 = vmatpush1.msra.mxu0 0.0
    %4466 = vmatprep.subr.mxu0 0.0
    %4467 = vmatpush1.msra.mxu0 0.0
    %4468 = vmatprep.subr.mxu0 0.0
    %4469 = vmatpush1.msra.mxu0 0.0
    %4470 = vmatprep.subr.mxu0 0.0
    %4471 = vmatpush1.msra.mxu0 0.0
    %4472 = vmatprep.subr.mxu0 0.0
    %4473 = vmatpush1.msra.mxu0 0.0
    %4474 = vmatprep.subr.mxu0 0.0
    %4475 = vmatpush1.msra.mxu0 0.0
    %4476 = vmatprep.subr.mxu0 0.0
    %4477 = vmatpush1.msra.mxu0 0.0
    %4478 = vmatprep.subr.mxu0 0.0
    %4479 = vmatpush1.msra.mxu0 0.0
    %4480 = vmatprep.subr.mxu0 0.0
    %4481 = vmatpush1.msra.mxu0 0.0
    %4482 = vmatprep.mubr.f32.mxu0 0.0
    %4483 = vmatmul.mubr.f32.gmra.mrb[0].mxu0 %v3644
    %v4484 = vpop.f32.mrb[0].mxu0
    %v4485 = vadd.f32 0.0, %v4484
    %v4486 = vpop.f32.mrb[0].mxu0
    %4487 = vmatprep.mubr.f32.mxu0 0.0
    %4488 = vmatmul.mubr.f32.gmra.mrb[0].mxu0 %v3645
    %v4489 = vpop.f32.mrb[0].mxu0
    %v4490 = vadd.f32 0.0, %v4489
    %v4491 = vpop.f32.mrb[0].mxu0
    %4492 = vmatprep.mubr.f32.mxu0 0.0
    %4493 = vmatmul.mubr.f32.gmra.mrb[0].mxu0 %v3646
    %v4494 = vpop.f32.mrb[0].mxu0
    %v4495 = vadd.f32 0.0, %v4494
    %v4496 = vpop.f32.mrb[0].mxu0
    %4497 = vmatprep.mubr.f32.mxu0 0.0
    %4498 = vmatmul.mubr.f32.gmra.mrb[0].mxu0 %v3647
    %v4499 = vpop.f32.mrb[0].mxu0
    %v4500 = vadd.f32 0.0, %v4499
    %v4501 = vpop.f32.mrb[0].mxu0
    %4502 = vmatprep.mubr.f32.mxu0 0.0
    %4503 = vmatmul.mubr.f32.gmra.mrb[0].mxu0 %v3648
    %v4504 = vpop.f32.mrb[0].mxu0
    %v4505 = vadd.f32 0.0, %v4504
    %v4506 = vpop.f32.mrb[0].mxu0
    %4507 = vmatprep.mubr.f32.mxu0 0.0
    %4508 = vmatmul.mubr.f32.gmra.mrb[0].mxu0 %v3649
    %v4509 = vpop.f32.mrb[0].mxu0
    %v4510 = vadd.f32 0.0, %v4509
    %v4511 = vpop.f32.mrb[0].mxu0
    %4512 = vmatprep.mubr.f32.mxu0 0.0
    %4513 = vmatmul.mubr.f32.gmra.mrb[0].mxu0 %v3650
    %v4514 = vpop.f32.mrb[0].mxu0
    %v4515 = vadd.f32 0.0, %v4514
    %v4516 = vpop.f32.mrb[0].mxu0
    %4517 = vmatprep.mubr.f32.mxu0 0.0
    %4518 = vmatmul.mubr.f32.gmra.mrb[0].mxu0 %v3651
    %v4519 = vpop.f32.mrb[0].mxu0
    %v4520 = vadd.f32 0.0, %v4519
    %v4521 = vpop.f32.mrb[0].mxu0
    %4522 = vmatprep.mubr.f32.mxu0 0.0
    %4523 = vmatmul.mubr.f32.gmra.mrb[0].mxu0 %v3652
    %v4524 = vpop.f32.mrb[0].mxu0
    %v4525 = vadd.f32 0.0, %v4524
    %v4526 = vpop.f32.mrb[0].mxu0
    %4527 = vmatprep.mubr.f32.mxu0 0.0
    %4528 = vmatmul.mubr.f32.gmra.mrb[0].mxu0 %v3653
    %v4529 = vpop.f32.mrb[0].mxu0
    %v4530 = vadd.f32 0.0, %v4529
    %v4531 = vpop.f32.mrb[0].mxu0
    %4532 = vdwg.mxu0
    %4533 = vmatprep.subr.mxu0 0.0
    %4534 = vmatpush1.msra.mxu0 %v3058
    %4535 = vmatprep.subr.mxu0 0.0
    %4536 = vmatpush1.msra.mxu0 %v3059
    %4537 = vmatprep.subr.mxu0 0.0
    %4538 = vmatpush1.msra.mxu0 %v3060
    %4539 = vmatprep.subr.mxu0 0.0
    %4540 = vmatpush1.msra.mxu0 %v3061
    %4541 = vmatprep.subr.mxu0 0.0
    %4542 = vmatpush1.msra.mxu0 %v3062
    %4543 = vmatprep.subr.mxu0 0.0
    %4544 = vmatpush1.msra.mxu0 %v3063
    %4545 = vmatprep.subr.mxu0 0.0
    %4546 = vmatpush1.msra.mxu0 %v3064
    %4547 = vmatprep.subr.mxu0 0.0
    %4548 = vmatpush1.msra.mxu0 %v3065
    %4549 = vmatprep.subr.mxu0 0.0
    %4550 = vmatpush1.msra.mxu0 %v3066
    %4551 = vmatprep.subr.mxu0 0.0
    %4552 = vmatpush1.msra.mxu0 %v3067
    %4553 = vmatprep.subr.mxu0 0.0
    %4554 = vmatpush1.msra.mxu0 %v3068
    %4555 = vmatprep.subr.mxu0 0.0
    %4556 = vmatpush1.msra.mxu0 %v3069
    %4557 = vmatprep.subr.mxu0 0.0
    %4558 = vmatpush1.msra.mxu0 %v3070
    %4559 = vmatprep.subr.mxu0 0.0
    %4560 = vmatpush1.msra.mxu0 %v3071
    %4561 = vmatprep.subr.mxu0 0.0
    %4562 = vmatpush1.msra.mxu0 %v3072
    %4563 = vmatprep.subr.mxu0 0.0
    %4564 = vmatpush1.msra.mxu0 %v3073
    %4565 = vmatprep.subr.mxu0 0.0
    %4566 = vmatpush1.msra.mxu0 0.0
    %4567 = vmatprep.subr.mxu0 0.0
    %4568 = vmatpush1.msra.mxu0 0.0
    %4569 = vmatprep.subr.mxu0 0.0
    %4570 = vmatpush1.msra.mxu0 0.0
    %4571 = vmatprep.subr.mxu0 0.0
    %4572 = vmatpush1.msra.mxu0 0.0
    %4573 = vmatprep.subr.mxu0 0.0
    %4574 = vmatpush1.msra.mxu0 0.0
    %4575 = vmatprep.subr.mxu0 0.0
    %4576 = vmatpush1.msra.mxu0 0.0
    %4577 = vmatprep.subr.mxu0 0.0
    %4578 = vmatpush1.msra.mxu0 0.0
    %4579 = vmatprep.subr.mxu0 0.0
    %4580 = vmatpush1.msra.mxu0 0.0
    %4581 = vmatprep.subr.mxu0 0.0
    %4582 = vmatpush1.msra.mxu0 0.0
    %4583 = vmatprep.subr.mxu0 0.0
    %4584 = vmatpush1.msra.mxu0 0.0
    %4585 = vmatprep.subr.mxu0 0.0
    %4586 = vmatpush1.msra.mxu0 0.0
    %4587 = vmatprep.subr.mxu0 0.0
    %4588 = vmatpush1.msra.mxu0 0.0
    %4589 = vmatprep.subr.mxu0 0.0
    %4590 = vmatpush1.msra.mxu0 0.0
    %4591 = vmatprep.subr.mxu0 0.0
    %4592 = vmatpush1.msra.mxu0 0.0
    %4593 = vmatprep.subr.mxu0 0.0
    %4594 = vmatpush1.msra.mxu0 0.0
    %4595 = vmatprep.subr.mxu0 0.0
    %4596 = vmatpush1.msra.mxu0 0.0
    %4597 = vmatprep.mubr.f32.mxu0 0.0
    %4598 = vmatmul.mubr.f32.gmra.mrb[0].mxu0 %v3490
    %v4599 = vpop.f32.mrb[0].mxu0
    %v4600 = vadd.f32 %v4485, %v4599
    %v4601 = vpop.f32.mrb[0].mxu0
    %4602 = vmatprep.mubr.f32.mxu0 0.0
    %4603 = vmatmul.mubr.f32.gmra.mrb[0].mxu0 %v3491
    %v4604 = vpop.f32.mrb[0].mxu0
    %v4605 = vadd.f32 %v4490, %v4604
    %v4606 = vpop.f32.mrb[0].mxu0
    %4607 = vmatprep.mubr.f32.mxu0 0.0
    %4608 = vmatmul.mubr.f32.gmra.mrb[0].mxu0 %v3492
    %v4609 = vpop.f32.mrb[0].mxu0
    %v4610 = vadd.f32 %v4495, %v4609
    %v4611 = vpop.f32.mrb[0].mxu0
    %4612 = vmatprep.mubr.f32.mxu0 0.0
    %4613 = vmatmul.mubr.f32.gmra.mrb[0].mxu0 %v3493
    %v4614 = vpop.f32.mrb[0].mxu0
    %v4615 = vadd.f32 %v4500, %v4614
    %v4616 = vpop.f32.mrb[0].mxu0
    %4617 = vmatprep.mubr.f32.mxu0 0.0
    %4618 = vmatmul.mubr.f32.gmra.mrb[0].mxu0 %v3494
    %v4619 = vpop.f32.mrb[0].mxu0
    %v4620 = vadd.f32 %v4505, %v4619
    %v4621 = vpop.f32.mrb[0].mxu0
    %4622 = vmatprep.mubr.f32.mxu0 0.0
    %4623 = vmatmul.mubr.f32.gmra.mrb[0].mxu0 %v3495
    %v4624 = vpop.f32.mrb[0].mxu0
    %v4625 = vadd.f32 %v4510, %v4624
    %v4626 = vpop.f32.mrb[0].mxu0
    %4627 = vmatprep.mubr.f32.mxu0 0.0
    %4628 = vmatmul.mubr.f32.gmra.mrb[0].mxu0 %v3496
    %v4629 = vpop.f32.mrb[0].mxu0
    %v4630 = vadd.f32 %v4515, %v4629
    %v4631 = vpop.f32.mrb[0].mxu0
    %4632 = vmatprep.mubr.f32.mxu0 0.0
    %4633 = vmatmul.mubr.f32.gmra.mrb[0].mxu0 %v3497
    %v4634 = vpop.f32.mrb[0].mxu0
    %v4635 = vadd.f32 %v4520, %v4634
    %v4636 = vpop.f32.mrb[0].mxu0
    %4637 = vmatprep.mubr.f32.mxu0 0.0
    %4638 = vmatmul.mubr.f32.gmra.mrb[0].mxu0 %v3498
    %v4639 = vpop.f32.mrb[0].mxu0
    %v4640 = vadd.f32 %v4525, %v4639
    %v4641 = vpop.f32.mrb[0].mxu0
    %4642 = vmatprep.mubr.f32.mxu0 0.0
    %4643 = vmatmul.mubr.f32.gmra.mrb[0].mxu0 %v3499
    %v4644 = vpop.f32.mrb[0].mxu0
    %v4645 = vadd.f32 %v4530, %v4644
    %v4646 = vpop.f32.mrb[0].mxu0
    %4647 = vdwg.mxu0
    %4648 = vmatprep.subr.mxu0 0.0
    %4649 = vmatpush1.msra.mxu0 %v3346
    %4650 = vmatprep.subr.mxu0 0.0
    %4651 = vmatpush1.msra.mxu0 %v3347
    %4652 = vmatprep.subr.mxu0 0.0
    %4653 = vmatpush1.msra.mxu0 %v3348
    %4654 = vmatprep.subr.mxu0 0.0
    %4655 = vmatpush1.msra.mxu0 %v3349
    %4656 = vmatprep.subr.mxu0 0.0
    %4657 = vmatpush1.msra.mxu0 %v3350
    %4658 = vmatprep.subr.mxu0 0.0
    %4659 = vmatpush1.msra.mxu0 %v3351
    %4660 = vmatprep.subr.mxu0 0.0
    %4661 = vmatpush1.msra.mxu0 %v3352
    %4662 = vmatprep.subr.mxu0 0.0
    %4663 = vmatpush1.msra.mxu0 %v3353
    %4664 = vmatprep.subr.mxu0 0.0
    %4665 = vmatpush1.msra.mxu0 %v3354
    %4666 = vmatprep.subr.mxu0 0.0
    %4667 = vmatpush1.msra.mxu0 %v3355
    %4668 = vmatprep.subr.mxu0 0.0
    %4669 = vmatpush1.msra.mxu0 %v3356
    %4670 = vmatprep.subr.mxu0 0.0
    %4671 = vmatpush1.msra.mxu0 %v3357
    %4672 = vmatprep.subr.mxu0 0.0
    %4673 = vmatpush1.msra.mxu0 %v3358
    %4674 = vmatprep.subr.mxu0 0.0
    %4675 = vmatpush1.msra.mxu0 %v3359
    %4676 = vmatprep.subr.mxu0 0.0
    %4677 = vmatpush1.msra.mxu0 %v3360
    %4678 = vmatprep.subr.mxu0 0.0
    %4679 = vmatpush1.msra.mxu0 %v3361
    %4680 = vmatprep.subr.mxu0 0.0
    %4681 = vmatpush1.msra.mxu0 0.0
    %4682 = vmatprep.subr.mxu0 0.0
    %4683 = vmatpush1.msra.mxu0 0.0
    %4684 = vmatprep.subr.mxu0 0.0
    %4685 = vmatpush1.msra.mxu0 0.0
    %4686 = vmatprep.subr.mxu0 0.0
    %4687 = vmatpush1.msra.mxu0 0.0
    %4688 = vmatprep.subr.mxu0 0.0
    %4689 = vmatpush1.msra.mxu0 0.0
    %4690 = vmatprep.subr.mxu0 0.0
    %4691 = vmatpush1.msra.mxu0 0.0
    %4692 = vmatprep.subr.mxu0 0.0
    %4693 = vmatpush1.msra.mxu0 0.0
    %4694 = vmatprep.subr.mxu0 0.0
    %4695 = vmatpush1.msra.mxu0 0.0
    %4696 = vmatprep.subr.mxu0 0.0
    %4697 = vmatpush1.msra.mxu0 0.0
    %4698 = vmatprep.subr.mxu0 0.0
    %4699 = vmatpush1.msra.mxu0 0.0
    %4700 = vmatprep.subr.mxu0 0.0
    %4701 = vmatpush1.msra.mxu0 0.0
    %4702 = vmatprep.subr.mxu0 0.0
    %4703 = vmatpush1.msra.mxu0 0.0
    %4704 = vmatprep.subr.mxu0 0.0
    %4705 = vmatpush1.msra.mxu0 0.0
    %4706 = vmatprep.subr.mxu0 0.0
    %4707 = vmatpush1.msra.mxu0 0.0
    %4708 = vmatprep.subr.mxu0 0.0
    %4709 = vmatpush1.msra.mxu0 0.0
    %4710 = vmatprep.subr.mxu0 0.0
    %4711 = vmatpush1.msra.mxu0 0.0
    %4712 = vmatprep.mubr.f32.mxu0 0.0
    %4713 = vmatmul.mubr.f32.gmra.mrb[0].mxu0 %v3798
    %v4714 = vpop.f32.mrb[0].mxu0
    %v4715 = vadd.f32 0.0, %v4714
    %v4716 = vpop.f32.mrb[0].mxu0
    %4717 = vmatprep.mubr.f32.mxu0 0.0
    %4718 = vmatmul.mubr.f32.gmra.mrb[0].mxu0 %v3799
    %v4719 = vpop.f32.mrb[0].mxu0
    %v4720 = vadd.f32 0.0, %v4719
    %v4721 = vpop.f32.mrb[0].mxu0
    %4722 = vmatprep.mubr.f32.mxu0 0.0
    %4723 = vmatmul.mubr.f32.gmra.mrb[0].mxu0 %v3800
    %v4724 = vpop.f32.mrb[0].mxu0
    %v4725 = vadd.f32 0.0, %v4724
    %v4726 = vpop.f32.mrb[0].mxu0
    %4727 = vmatprep.mubr.f32.mxu0 0.0
    %4728 = vmatmul.mubr.f32.gmra.mrb[0].mxu0 %v3801
    %v4729 = vpop.f32.mrb[0].mxu0
    %v4730 = vadd.f32 0.0, %v4729
    %v4731 = vpop.f32.mrb[0].mxu0
    %4732 = vmatprep.mubr.f32.mxu0 0.0
    %4733 = vmatmul.mubr.f32.gmra.mrb[0].mxu0 %v3802
    %v4734 = vpop.f32.mrb[0].mxu0
    %v4735 = vadd.f32 0.0, %v4734
    %v4736 = vpop.f32.mrb[0].mxu0
    %4737 = vmatprep.mubr.f32.mxu0 0.0
    %4738 = vmatmul.mubr.f32.gmra.mrb[0].mxu0 %v3803
    %v4739 = vpop.f32.mrb[0].mxu0
    %v4740 = vadd.f32 0.0, %v4739
    %v4741 = vpop.f32.mrb[0].mxu0
    %4742 = vmatprep.mubr.f32.mxu0 0.0
    %4743 = vmatmul.mubr.f32.gmra.mrb[0].mxu0 %v3804
    %v4744 = vpop.f32.mrb[0].mxu0
    %v4745 = vadd.f32 0.0, %v4744
    %v4746 = vpop.f32.mrb[0].mxu0
    %4747 = vmatprep.mubr.f32.mxu0 0.0
    %4748 = vmatmul.mubr.f32.gmra.mrb[0].mxu0 %v3805
    %v4749 = vpop.f32.mrb[0].mxu0
    %v4750 = vadd.f32 0.0, %v4749
    %v4751 = vpop.f32.mrb[0].mxu0
    %4752 = vmatprep.mubr.f32.mxu0 0.0
    %4753 = vmatmul.mubr.f32.gmra.mrb[0].mxu0 %v3806
    %v4754 = vpop.f32.mrb[0].mxu0
    %v4755 = vadd.f32 0.0, %v4754
    %v4756 = vpop.f32.mrb[0].mxu0
    %4757 = vmatprep.mubr.f32.mxu0 0.0
    %4758 = vmatmul.mubr.f32.gmra.mrb[0].mxu0 %v3807
    %v4759 = vpop.f32.mrb[0].mxu0
    %v4760 = vadd.f32 0.0, %v4759
    %v4761 = vpop.f32.mrb[0].mxu0
    %4762 = vdwg.mxu0
    %v4763 = vadd.f32 %v4600, %v4715
    %v4764 = vadd.f32 %v4605, %v4720
    %v4765 = vadd.f32 %v4610, %v4725
    %v4766 = vadd.f32 %v4615, %v4730
    %v4767 = vadd.f32 %v4620, %v4735
    %v4768 = vadd.f32 %v4625, %v4740
    %v4769 = vadd.f32 %v4630, %v4745
    %v4770 = vadd.f32 %v4635, %v4750
    %v4771 = vadd.f32 %v4640, %v4755
    %v4772 = vadd.f32 %v4645, %v4760
    %4773 = vmatprep.subr.mxu0 0.0
    %4774 = vmatpush1.msra.mxu0 %v3501
    %4775 = vmatprep.subr.mxu0 0.0
    %4776 = vmatpush1.msra.mxu0 %v3502
    %4777 = vmatprep.subr.mxu0 0.0
    %4778 = vmatpush1.msra.mxu0 %v3503
    %4779 = vmatprep.subr.mxu0 0.0
    %4780 = vmatpush1.msra.mxu0 %v3504
    %4781 = vmatprep.subr.mxu0 0.0
    %4782 = vmatpush1.msra.mxu0 %v3505
    %4783 = vmatprep.subr.mxu0 0.0
    %4784 = vmatpush1.msra.mxu0 %v3506
    %4785 = vmatprep.subr.mxu0 0.0
    %4786 = vmatpush1.msra.mxu0 %v3507
    %4787 = vmatprep.subr.mxu0 0.0
    %4788 = vmatpush1.msra.mxu0 %v3508
    %4789 = vmatprep.subr.mxu0 0.0
    %4790 = vmatpush1.msra.mxu0 %v3509
    %4791 = vmatprep.subr.mxu0 0.0
    %4792 = vmatpush1.msra.mxu0 %v3510
    %4793 = vmatprep.subr.mxu0 0.0
    %4794 = vmatpush1.msra.mxu0 %v3511
    %4795 = vmatprep.subr.mxu0 0.0
    %4796 = vmatpush1.msra.mxu0 %v3512
    %4797 = vmatprep.subr.mxu0 0.0
    %4798 = vmatpush1.msra.mxu0 %v3513
    %4799 = vmatprep.subr.mxu0 0.0
    %4800 = vmatpush1.msra.mxu0 %v3514
    %4801 = vmatprep.subr.mxu0 0.0
    %4802 = vmatpush1.msra.mxu0 %v3515
    %4803 = vmatprep.subr.mxu0 0.0
    %4804 = vmatpush1.msra.mxu0 %v3516
    %4805 = vmatprep.subr.mxu0 0.0
    %4806 = vmatpush1.msra.mxu0 0.0
    %4807 = vmatprep.subr.mxu0 0.0
    %4808 = vmatpush1.msra.mxu0 0.0
    %4809 = vmatprep.subr.mxu0 0.0
    %4810 = vmatpush1.msra.mxu0 0.0
    %4811 = vmatprep.subr.mxu0 0.0
    %4812 = vmatpush1.msra.mxu0 0.0
    %4813 = vmatprep.subr.mxu0 0.0
    %4814 = vmatpush1.msra.mxu0 0.0
    %4815 = vmatprep.subr.mxu0 0.0
    %4816 = vmatpush1.msra.mxu0 0.0
    %4817 = vmatprep.subr.mxu0 0.0
    %4818 = vmatpush1.msra.mxu0 0.0
    %4819 = vmatprep.subr.mxu0 0.0
    %4820 = vmatpush1.msra.mxu0 0.0
    %4821 = vmatprep.subr.mxu0 0.0
    %4822 = vmatpush1.msra.mxu0 0.0
    %4823 = vmatprep.subr.mxu0 0.0
    %4824 = vmatpush1.msra.mxu0 0.0
    %4825 = vmatprep.subr.mxu0 0.0
    %4826 = vmatpush1.msra.mxu0 0.0
    %4827 = vmatprep.subr.mxu0 0.0
    %4828 = vmatpush1.msra.mxu0 0.0
    %4829 = vmatprep.subr.mxu0 0.0
    %4830 = vmatpush1.msra.mxu0 0.0
    %4831 = vmatprep.subr.mxu0 0.0
    %4832 = vmatpush1.msra.mxu0 0.0
    %4833 = vmatprep.subr.mxu0 0.0
    %4834 = vmatpush1.msra.mxu0 0.0
    %4835 = vmatprep.subr.mxu0 0.0
    %4836 = vmatpush1.msra.mxu0 0.0
    %4837 = vmatprep.mubr.f32.mxu0 0.0
    %4838 = vmatmul.mubr.f32.gmra.mrb[0].mxu0 %v3953
    %v4839 = vpop.f32.mrb[0].mxu0
    %v4840 = vadd.f32 0.0, %v4839
    %v4841 = vpop.f32.mrb[0].mxu0
    %4842 = vmatprep.mubr.f32.mxu0 0.0
    %4843 = vmatmul.mubr.f32.gmra.mrb[0].mxu0 %v3954
    %v4844 = vpop.f32.mrb[0].mxu0
    %v4845 = vadd.f32 0.0, %v4844
    %v4846 = vpop.f32.mrb[0].mxu0
    %4847 = vmatprep.mubr.f32.mxu0 0.0
    %4848 = vmatmul.mubr.f32.gmra.mrb[0].mxu0 %v3955
    %v4849 = vpop.f32.mrb[0].mxu0
    %v4850 = vadd.f32 0.0, %v4849
    %v4851 = vpop.f32.mrb[0].mxu0
    %4852 = vmatprep.mubr.f32.mxu0 0.0
    %4853 = vmatmul.mubr.f32.gmra.mrb[0].mxu0 %v3956
    %v4854 = vpop.f32.mrb[0].mxu0
    %v4855 = vadd.f32 0.0, %v4854
    %v4856 = vpop.f32.mrb[0].mxu0
    %4857 = vmatprep.mubr.f32.mxu0 0.0
    %4858 = vmatmul.mubr.f32.gmra.mrb[0].mxu0 %v3957
    %v4859 = vpop.f32.mrb[0].mxu0
    %v4860 = vadd.f32 0.0, %v4859
    %v4861 = vpop.f32.mrb[0].mxu0
    %4862 = vmatprep.mubr.f32.mxu0 0.0
    %4863 = vmatmul.mubr.f32.gmra.mrb[0].mxu0 %v3958
    %v4864 = vpop.f32.mrb[0].mxu0
    %v4865 = vadd.f32 0.0, %v4864
    %v4866 = vpop.f32.mrb[0].mxu0
    %4867 = vmatprep.mubr.f32.mxu0 0.0
    %4868 = vmatmul.mubr.f32.gmra.mrb[0].mxu0 %v3959
    %v4869 = vpop.f32.mrb[0].mxu0
    %v4870 = vadd.f32 0.0, %v4869
    %v4871 = vpop.f32.mrb[0].mxu0
    %4872 = vmatprep.mubr.f32.mxu0 0.0
    %4873 = vmatmul.mubr.f32.gmra.mrb[0].mxu0 %v3960
    %v4874 = vpop.f32.mrb[0].mxu0
    %v4875 = vadd.f32 0.0, %v4874
    %v4876 = vpop.f32.mrb[0].mxu0
    %4877 = vmatprep.mubr.f32.mxu0 0.0
    %4878 = vmatmul.mubr.f32.gmra.mrb[0].mxu0 %v3961
    %v4879 = vpop.f32.mrb[0].mxu0
    %v4880 = vadd.f32 0.0, %v4879
    %v4881 = vpop.f32.mrb[0].mxu0
    %4882 = vmatprep.mubr.f32.mxu0 0.0
    %4883 = vmatmul.mubr.f32.gmra.mrb[0].mxu0 %v3962
    %v4884 = vpop.f32.mrb[0].mxu0
    %v4885 = vadd.f32 0.0, %v4884
    %v4886 = vpop.f32.mrb[0].mxu0
    %4887 = vdwg.mxu0
    %v4888 = vadd.f32 %v4763, %v4840
    %v4889 = vadd.f32 %v4764, %v4845
    %v4890 = vadd.f32 %v4765, %v4850
    %v4891 = vadd.f32 %v4766, %v4855
    %v4892 = vadd.f32 %v4767, %v4860
    %v4893 = vadd.f32 %v4768, %v4865
    %v4894 = vadd.f32 %v4769, %v4870
    %v4895 = vadd.f32 %v4770, %v4875
    %v4896 = vadd.f32 %v4771, %v4880
    %v4897 = vadd.f32 %v4772, %v4885
    %4898 = vmatprep.subr.mxu0 0.0
    %4899 = vmatpush1.msra.mxu0 %v3655
    %4900 = vmatprep.subr.mxu0 0.0
    %4901 = vmatpush1.msra.mxu0 %v3656
    %4902 = vmatprep.subr.mxu0 0.0
    %4903 = vmatpush1.msra.mxu0 %v3657
    %4904 = vmatprep.subr.mxu0 0.0
    %4905 = vmatpush1.msra.mxu0 %v3658
    %4906 = vmatprep.subr.mxu0 0.0
    %4907 = vmatpush1.msra.mxu0 %v3659
    %4908 = vmatprep.subr.mxu0 0.0
    %4909 = vmatpush1.msra.mxu0 %v3660
    %4910 = vmatprep.subr.mxu0 0.0
    %4911 = vmatpush1.msra.mxu0 %v3661
    %4912 = vmatprep.subr.mxu0 0.0
    %4913 = vmatpush1.msra.mxu0 %v3662
    %4914 = vmatprep.subr.mxu0 0.0
    %4915 = vmatpush1.msra.mxu0 %v3663
    %4916 = vmatprep.subr.mxu0 0.0
    %4917 = vmatpush1.msra.mxu0 %v3664
    %4918 = vmatprep.subr.mxu0 0.0
    %4919 = vmatpush1.msra.mxu0 %v3665
    %4920 = vmatprep.subr.mxu0 0.0
    %4921 = vmatpush1.msra.mxu0 %v3666
    %4922 = vmatprep.subr.mxu0 0.0
    %4923 = vmatpush1.msra.mxu0 %v3667
    %4924 = vmatprep.subr.mxu0 0.0
    %4925 = vmatpush1.msra.mxu0 %v3668
    %4926 = vmatprep.subr.mxu0 0.0
    %4927 = vmatpush1.msra.mxu0 %v3669
    %4928 = vmatprep.subr.mxu0 0.0
    %4929 = vmatpush1.msra.mxu0 %v3670
    %4930 = vmatprep.subr.mxu0 0.0
    %4931 = vmatpush1.msra.mxu0 0.0
    %4932 = vmatprep.subr.mxu0 0.0
    %4933 = vmatpush1.msra.mxu0 0.0
    %4934 = vmatprep.subr.mxu0 0.0
    %4935 = vmatpush1.msra.mxu0 0.0
    %4936 = vmatprep.subr.mxu0 0.0
    %4937 = vmatpush1.msra.mxu0 0.0
    %4938 = vmatprep.subr.mxu0 0.0
    %4939 = vmatpush1.msra.mxu0 0.0
    %4940 = vmatprep.subr.mxu0 0.0
    %4941 = vmatpush1.msra.mxu0 0.0
    %4942 = vmatprep.subr.mxu0 0.0
    %4943 = vmatpush1.msra.mxu0 0.0
    %4944 = vmatprep.subr.mxu0 0.0
    %4945 = vmatpush1.msra.mxu0 0.0
    %4946 = vmatprep.subr.mxu0 0.0
    %4947 = vmatpush1.msra.mxu0 0.0
    %4948 = vmatprep.subr.mxu0 0.0
    %4949 = vmatpush1.msra.mxu0 0.0
    %4950 = vmatprep.subr.mxu0 0.0
    %4951 = vmatpush1.msra.mxu0 0.0
    %4952 = vmatprep.subr.mxu0 0.0
    %4953 = vmatpush1.msra.mxu0 0.0
    %4954 = vmatprep.subr.mxu0 0.0
    %4955 = vmatpush1.msra.mxu0 0.0
    %4956 = vmatprep.subr.mxu0 0.0
    %4957 = vmatpush1.msra.mxu0 0.0
    %4958 = vmatprep.subr.mxu0 0.0
    %4959 = vmatpush1.msra.mxu0 0.0
    %4960 = vmatprep.subr.mxu0 0.0
    %4961 = vmatpush1.msra.mxu0 0.0
    %4962 = vmatprep.mubr.f32.mxu0 0.0
    %4963 = vmatmul.mubr.f32.gmra.mrb[0].mxu0 %v4107
    %v4964 = vpop.f32.mrb[0].mxu0
    %v4965 = vadd.f32 0.0, %v4964
    %v4966 = vpop.f32.mrb[0].mxu0
    %4967 = vmatprep.mubr.f32.mxu0 0.0
    %4968 = vmatmul.mubr.f32.gmra.mrb[0].mxu0 %v4108
    %v4969 = vpop.f32.mrb[0].mxu0
    %v4970 = vadd.f32 0.0, %v4969
    %v4971 = vpop.f32.mrb[0].mxu0
    %4972 = vmatprep.mubr.f32.mxu0 0.0
    %4973 = vmatmul.mubr.f32.gmra.mrb[0].mxu0 %v4109
    %v4974 = vpop.f32.mrb[0].mxu0
    %v4975 = vadd.f32 0.0, %v4974
    %v4976 = vpop.f32.mrb[0].mxu0
    %4977 = vmatprep.mubr.f32.mxu0 0.0
    %4978 = vmatmul.mubr.f32.gmra.mrb[0].mxu0 %v4110
    %v4979 = vpop.f32.mrb[0].mxu0
    %v4980 = vadd.f32 0.0, %v4979
    %v4981 = vpop.f32.mrb[0].mxu0
    %4982 = vmatprep.mubr.f32.mxu0 0.0
    %4983 = vmatmul.mubr.f32.gmra.mrb[0].mxu0 %v4111
    %v4984 = vpop.f32.mrb[0].mxu0
    %v4985 = vadd.f32 0.0, %v4984
    %v4986 = vpop.f32.mrb[0].mxu0
    %4987 = vmatprep.mubr.f32.mxu0 0.0
    %4988 = vmatmul.mubr.f32.gmra.mrb[0].mxu0 %v4112
    %v4989 = vpop.f32.mrb[0].mxu0
    %v4990 = vadd.f32 0.0, %v4989
    %v4991 = vpop.f32.mrb[0].mxu0
    %4992 = vmatprep.mubr.f32.mxu0 0.0
    %4993 = vmatmul.mubr.f32.gmra.mrb[0].mxu0 %v4113
    %v4994 = vpop.f32.mrb[0].mxu0
    %v4995 = vadd.f32 0.0, %v4994
    %v4996 = vpop.f32.mrb[0].mxu0
    %4997 = vmatprep.mubr.f32.mxu0 0.0
    %4998 = vmatmul.mubr.f32.gmra.mrb[0].mxu0 %v4114
    %v4999 = vpop.f32.mrb[0].mxu0
    %v5000 = vadd.f32 0.0, %v4999
    %v5001 = vpop.f32.mrb[0].mxu0
    %5002 = vmatprep.mubr.f32.mxu0 0.0
    %5003 = vmatmul.mubr.f32.gmra.mrb[0].mxu0 %v4115
    %v5004 = vpop.f32.mrb[0].mxu0
    %v5005 = vadd.f32 0.0, %v5004
    %v5006 = vpop.f32.mrb[0].mxu0
    %5007 = vmatprep.mubr.f32.mxu0 0.0
    %5008 = vmatmul.mubr.f32.gmra.mrb[0].mxu0 %v4116
    %v5009 = vpop.f32.mrb[0].mxu0
    %v5010 = vadd.f32 0.0, %v5009
    %v5011 = vpop.f32.mrb[0].mxu0
    %5012 = vdwg.mxu0
    %v5013 = vadd.f32 %v4888, %v4965
    %v5014 = vadd.f32 %v4889, %v4970
    %v5015 = vadd.f32 %v4890, %v4975
    %v5016 = vadd.f32 %v4891, %v4980
    %v5017 = vadd.f32 %v4892, %v4985
    %v5018 = vadd.f32 %v4893, %v4990
    %v5019 = vadd.f32 %v4894, %v4995
    %v5020 = vadd.f32 %v4895, %v5000
    %v5021 = vadd.f32 %v4896, %v5005
    %v5022 = vadd.f32 %v4897, %v5010
    %5023 = vmatprep.subr.mxu0 0.0
    %5024 = vmatpush1.msra.mxu0 %v3809
    %5025 = vmatprep.subr.mxu0 0.0
    %5026 = vmatpush1.msra.mxu0 %v3810
    %5027 = vmatprep.subr.mxu0 0.0
    %5028 = vmatpush1.msra.mxu0 %v3811
    %5029 = vmatprep.subr.mxu0 0.0
    %5030 = vmatpush1.msra.mxu0 %v3812
    %5031 = vmatprep.subr.mxu0 0.0
    %5032 = vmatpush1.msra.mxu0 %v3813
    %5033 = vmatprep.subr.mxu0 0.0
    %5034 = vmatpush1.msra.mxu0 %v3814
    %5035 = vmatprep.subr.mxu0 0.0
    %5036 = vmatpush1.msra.mxu0 %v3815
    %5037 = vmatprep.subr.mxu0 0.0
    %5038 = vmatpush1.msra.mxu0 %v3816
    %5039 = vmatprep.subr.mxu0 0.0
    %5040 = vmatpush1.msra.mxu0 %v3817
    %5041 = vmatprep.subr.mxu0 0.0
    %5042 = vmatpush1.msra.mxu0 %v3818
    %5043 = vmatprep.subr.mxu0 0.0
    %5044 = vmatpush1.msra.mxu0 %v3819
    %5045 = vmatprep.subr.mxu0 0.0
    %5046 = vmatpush1.msra.mxu0 %v3820
    %5047 = vmatprep.subr.mxu0 0.0
    %5048 = vmatpush1.msra.mxu0 %v3821
    %5049 = vmatprep.subr.mxu0 0.0
    %5050 = vmatpush1.msra.mxu0 %v3822
    %5051 = vmatprep.subr.mxu0 0.0
    %5052 = vmatpush1.msra.mxu0 %v3823
    %5053 = vmatprep.subr.mxu0 0.0
    %5054 = vmatpush1.msra.mxu0 %v3824
    %5055 = vmatprep.subr.mxu0 0.0
    %5056 = vmatpush1.msra.mxu0 0.0
    %5057 = vmatprep.subr.mxu0 0.0
    %5058 = vmatpush1.msra.mxu0 0.0
    %5059 = vmatprep.subr.mxu0 0.0
    %5060 = vmatpush1.msra.mxu0 0.0
    %5061 = vmatprep.subr.mxu0 0.0
    %5062 = vmatpush1.msra.mxu0 0.0
    %5063 = vmatprep.subr.mxu0 0.0
    %5064 = vmatpush1.msra.mxu0 0.0
    %5065 = vmatprep.subr.mxu0 0.0
    %5066 = vmatpush1.msra.mxu0 0.0
    %5067 = vmatprep.subr.mxu0 0.0
    %5068 = vmatpush1.msra.mxu0 0.0
    %5069 = vmatprep.subr.mxu0 0.0
    %5070 = vmatpush1.msra.mxu0 0.0
    %5071 = vmatprep.subr.mxu0 0.0
    %5072 = vmatpush1.msra.mxu0 0.0
    %5073 = vmatprep.subr.mxu0 0.0
    %5074 = vmatpush1.msra.mxu0 0.0
    %5075 = vmatprep.subr.mxu0 0.0
    %5076 = vmatpush1.msra.mxu0 0.0
    %5077 = vmatprep.subr.mxu0 0.0
    %5078 = vmatpush1.msra.mxu0 0.0
    %5079 = vmatprep.subr.mxu0 0.0
    %5080 = vmatpush1.msra.mxu0 0.0
    %5081 = vmatprep.subr.mxu0 0.0
    %5082 = vmatpush1.msra.mxu0 0.0
    %5083 = vmatprep.subr.mxu0 0.0
    %5084 = vmatpush1.msra.mxu0 0.0
    %5085 = vmatprep.subr.mxu0 0.0
    %5086 = vmatpush1.msra.mxu0 0.0
    %5087 = vmatprep.mubr.f32.mxu0 0.0
    %5088 = vmatmul.mubr.f32.gmra.mrb[0].mxu0 %v4261
    %v5089 = vpop.f32.mrb[0].mxu0
    %v5090 = vadd.f32 0.0, %v5089
    %v5091 = vpop.f32.mrb[0].mxu0
    %5092 = vmatprep.mubr.f32.mxu0 0.0
    %5093 = vmatmul.mubr.f32.gmra.mrb[0].mxu0 %v4262
    %v5094 = vpop.f32.mrb[0].mxu0
    %v5095 = vadd.f32 0.0, %v5094
    %v5096 = vpop.f32.mrb[0].mxu0
    %5097 = vmatprep.mubr.f32.mxu0 0.0
    %5098 = vmatmul.mubr.f32.gmra.mrb[0].mxu0 %v4263
    %v5099 = vpop.f32.mrb[0].mxu0
    %v5100 = vadd.f32 0.0, %v5099
    %v5101 = vpop.f32.mrb[0].mxu0
    %5102 = vmatprep.mubr.f32.mxu0 0.0
    %5103 = vmatmul.mubr.f32.gmra.mrb[0].mxu0 %v4264
    %v5104 = vpop.f32.mrb[0].mxu0
    %v5105 = vadd.f32 0.0, %v5104
    %v5106 = vpop.f32.mrb[0].mxu0
    %5107 = vmatprep.mubr.f32.mxu0 0.0
    %5108 = vmatmul.mubr.f32.gmra.mrb[0].mxu0 %v4265
    %v5109 = vpop.f32.mrb[0].mxu0
    %v5110 = vadd.f32 0.0, %v5109
    %v5111 = vpop.f32.mrb[0].mxu0
    %5112 = vmatprep.mubr.f32.mxu0 0.0
    %5113 = vmatmul.mubr.f32.gmra.mrb[0].mxu0 %v4266
    %v5114 = vpop.f32.mrb[0].mxu0
    %v5115 = vadd.f32 0.0, %v5114
    %v5116 = vpop.f32.mrb[0].mxu0
    %5117 = vmatprep.mubr.f32.mxu0 0.0
    %5118 = vmatmul.mubr.f32.gmra.mrb[0].mxu0 %v4267
    %v5119 = vpop.f32.mrb[0].mxu0
    %v5120 = vadd.f32 0.0, %v5119
    %v5121 = vpop.f32.mrb[0].mxu0
    %5122 = vmatprep.mubr.f32.mxu0 0.0
    %5123 = vmatmul.mubr.f32.gmra.mrb[0].mxu0 %v4268
    %v5124 = vpop.f32.mrb[0].mxu0
    %v5125 = vadd.f32 0.0, %v5124
    %v5126 = vpop.f32.mrb[0].mxu0
    %5127 = vmatprep.mubr.f32.mxu0 0.0
    %5128 = vmatmul.mubr.f32.gmra.mrb[0].mxu0 %v4269
    %v5129 = vpop.f32.mrb[0].mxu0
    %v5130 = vadd.f32 0.0, %v5129
    %v5131 = vpop.f32.mrb[0].mxu0
    %5132 = vmatprep.mubr.f32.mxu0 0.0
    %5133 = vmatmul.mubr.f32.gmra.mrb[0].mxu0 %v4270
    %v5134 = vpop.f32.mrb[0].mxu0
    %v5135 = vadd.f32 0.0, %v5134
    %v5136 = vpop.f32.mrb[0].mxu0
    %5137 = vdwg.mxu0
    %v5138 = vadd.f32 %v5013, %v5090
    %v5139 = vadd.f32 %v5014, %v5095
    %v5140 = vadd.f32 %v5015, %v5100
    %v5141 = vadd.f32 %v5016, %v5105
    %v5142 = vadd.f32 %v5017, %v5110
    %v5143 = vadd.f32 %v5018, %v5115
    %v5144 = vadd.f32 %v5019, %v5120
    %v5145 = vadd.f32 %v5020, %v5125
    %v5146 = vadd.f32 %v5021, %v5130
    %v5147 = vadd.f32 %v5022, %v5135
    %s5148 = sadd.s32 %s3045, 3
    %s5149 = smul.u32 %s5148, 104
    %s5150 = scalar_lea.vmem [#allocation2], %s5149
    %v5151 = vld [vmem:[%s5150] sm:$0xff]
    %v5152 = vld [vmem:[%s5150 + $0x8] sm:$0xff]
    %v5153 = vld [vmem:[%s5150 + $0x10] sm:$0xff]
    %v5154 = vld [vmem:[%s5150 + $0x18] sm:$0xff]
    %v5155 = vld [vmem:[%s5150 + $0x20] sm:$0xff]
    %v5156 = vld [vmem:[%s5150 + $0x28] sm:$0xff]
    %v5157 = vld [vmem:[%s5150 + $0x30] sm:$0xff]
    %v5158 = vld [vmem:[%s5150 + $0x38] sm:$0xff]
    %v5159 = vld [vmem:[%s5150 + $0x40] sm:$0xff]
    %v5160 = vld [vmem:[%s5150 + $0x48] sm:$0xff]
    %5161 = vmatprep.subr.mxu0 0.0
    %5162 = vmatpush1.msra.mxu0 %v3964
    %5163 = vmatprep.subr.mxu0 0.0
    %5164 = vmatpush1.msra.mxu0 %v3965
    %5165 = vmatprep.subr.mxu0 0.0
    %5166 = vmatpush1.msra.mxu0 %v3966
    %5167 = vmatprep.subr.mxu0 0.0
    %5168 = vmatpush1.msra.mxu0 %v3967
    %5169 = vmatprep.subr.mxu0 0.0
    %5170 = vmatpush1.msra.mxu0 %v3968
    %5171 = vmatprep.subr.mxu0 0.0
    %5172 = vmatpush1.msra.mxu0 %v3969
    %5173 = vmatprep.subr.mxu0 0.0
    %5174 = vmatpush1.msra.mxu0 %v3970
    %5175 = vmatprep.subr.mxu0 0.0
    %5176 = vmatpush1.msra.mxu0 %v3971
    %5177 = vmatprep.subr.mxu0 0.0
    %5178 = vmatpush1.msra.mxu0 %v3972
    %5179 = vmatprep.subr.mxu0 0.0
    %5180 = vmatpush1.msra.mxu0 %v3973
    %5181 = vmatprep.subr.mxu0 0.0
    %5182 = vmatpush1.msra.mxu0 %v3974
    %5183 = vmatprep.subr.mxu0 0.0
    %5184 = vmatpush1.msra.mxu0 %v3975
    %5185 = vmatprep.subr.mxu0 0.0
    %5186 = vmatpush1.msra.mxu0 %v3976
    %5187 = vmatprep.subr.mxu0 0.0
    %5188 = vmatpush1.msra.mxu0 %v3977
    %5189 = vmatprep.subr.mxu0 0.0
    %5190 = vmatpush1.msra.mxu0 %v3978
    %5191 = vmatprep.subr.mxu0 0.0
    %5192 = vmatpush1.msra.mxu0 %v3979
    %5193 = vmatprep.subr.mxu0 0.0
    %5194 = vmatpush1.msra.mxu0 0.0
    %5195 = vmatprep.subr.mxu0 0.0
    %5196 = vmatpush1.msra.mxu0 0.0
    %5197 = vmatprep.subr.mxu0 0.0
    %5198 = vmatpush1.msra.mxu0 0.0
    %5199 = vmatprep.subr.mxu0 0.0
    %5200 = vmatpush1.msra.mxu0 0.0
    %5201 = vmatprep.subr.mxu0 0.0
    %5202 = vmatpush1.msra.mxu0 0.0
    %5203 = vmatprep.subr.mxu0 0.0
    %5204 = vmatpush1.msra.mxu0 0.0
    %5205 = vmatprep.subr.mxu0 0.0
    %5206 = vmatpush1.msra.mxu0 0.0
    %5207 = vmatprep.subr.mxu0 0.0
    %5208 = vmatpush1.msra.mxu0 0.0
    %5209 = vmatprep.subr.mxu0 0.0
    %5210 = vmatpush1.msra.mxu0 0.0
    %5211 = vmatprep.subr.mxu0 0.0
    %5212 = vmatpush1.msra.mxu0 0.0
    %5213 = vmatprep.subr.mxu0 0.0
    %5214 = vmatpush1.msra.mxu0 0.0
    %5215 = vmatprep.subr.mxu0 0.0
    %5216 = vmatpush1.msra.mxu0 0.0
    %5217 = vmatprep.subr.mxu0 0.0
    %5218 = vmatpush1.msra.mxu0 0.0
    %5219 = vmatprep.subr.mxu0 0.0
    %5220 = vmatpush1.msra.mxu0 0.0
    %5221 = vmatprep.subr.mxu0 0.0
    %5222 = vmatpush1.msra.mxu0 0.0
    %5223 = vmatprep.subr.mxu0 0.0
    %5224 = vmatpush1.msra.mxu0 0.0
    %5225 = vmatprep.mubr.f32.mxu0 0.0
    %5226 = vmatmul.mubr.f32.gmra.mrb[0].mxu0 %v5151
    %v5227 = vpop.f32.mrb[0].mxu0
    %v5228 = vadd.f32 0.0, %v5227
    %v5229 = vpop.f32.mrb[0].mxu0
    %5230 = vmatprep.mubr.f32.mxu0 0.0
    %5231 = vmatmul.mubr.f32.gmra.mrb[0].mxu0 %v5152
    %v5232 = vpop.f32.mrb[0].mxu0
    %v5233 = vadd.f32 0.0, %v5232
    %v5234 = vpop.f32.mrb[0].mxu0
    %5235 = vmatprep.mubr.f32.mxu0 0.0
    %5236 = vmatmul.mubr.f32.gmra.mrb[0].mxu0 %v5153
    %v5237 = vpop.f32.mrb[0].mxu0
    %v5238 = vadd.f32 0.0, %v5237
    %v5239 = vpop.f32.mrb[0].mxu0
    %5240 = vmatprep.mubr.f32.mxu0 0.0
    %5241 = vmatmul.mubr.f32.gmra.mrb[0].mxu0 %v5154
    %v5242 = vpop.f32.mrb[0].mxu0
    %v5243 = vadd.f32 0.0, %v5242
    %v5244 = vpop.f32.mrb[0].mxu0
    %5245 = vmatprep.mubr.f32.mxu0 0.0
    %5246 = vmatmul.mubr.f32.gmra.mrb[0].mxu0 %v5155
    %v5247 = vpop.f32.mrb[0].mxu0
    %v5248 = vadd.f32 0.0, %v5247
    %v5249 = vpop.f32.mrb[0].mxu0
    %5250 = vmatprep.mubr.f32.mxu0 0.0
    %5251 = vmatmul.mubr.f32.gmra.mrb[0].mxu0 %v5156
    %v5252 = vpop.f32.mrb[0].mxu0
    %v5253 = vadd.f32 0.0, %v5252
    %v5254 = vpop.f32.mrb[0].mxu0
    %5255 = vmatprep.mubr.f32.mxu0 0.0
    %5256 = vmatmul.mubr.f32.gmra.mrb[0].mxu0 %v5157
    %v5257 = vpop.f32.mrb[0].mxu0
    %v5258 = vadd.f32 0.0, %v5257
    %v5259 = vpop.f32.mrb[0].mxu0
    %5260 = vmatprep.mubr.f32.mxu0 0.0
    %5261 = vmatmul.mubr.f32.gmra.mrb[0].mxu0 %v5158
    %v5262 = vpop.f32.mrb[0].mxu0
    %v5263 = vadd.f32 0.0, %v5262
    %v5264 = vpop.f32.mrb[0].mxu0
    %5265 = vmatprep.mubr.f32.mxu0 0.0
    %5266 = vmatmul.mubr.f32.gmra.mrb[0].mxu0 %v5159
    %v5267 = vpop.f32.mrb[0].mxu0
    %v5268 = vadd.f32 0.0, %v5267
    %v5269 = vpop.f32.mrb[0].mxu0
    %5270 = vmatprep.mubr.f32.mxu0 0.0
    %5271 = vmatmul.mubr.f32.gmra.mrb[0].mxu0 %v5160
    %v5272 = vpop.f32.mrb[0].mxu0
    %v5273 = vadd.f32 0.0, %v5272
    %v5274 = vpop.f32.mrb[0].mxu0
    %5275 = vdwg.mxu0
    %v5276 = vadd.f32 %v5138, %v5228
    %v5277 = vadd.f32 %v5139, %v5233
    %v5278 = vadd.f32 %v5140, %v5238
    %v5279 = vadd.f32 %v5141, %v5243
    %v5280 = vadd.f32 %v5142, %v5248
    %v5281 = vadd.f32 %v5143, %v5253
    %v5282 = vadd.f32 %v5144, %v5258
    %v5283 = vadd.f32 %v5145, %v5263
    %v5284 = vadd.f32 %v5146, %v5268
    %v5285 = vadd.f32 %v5147, %v5273
    %s5286 = sadd.s32 8, %s5149
    %s5287 = scalar_lea.vmem [#allocation2], %s5286
    %v5288 = vld [vmem:[%s5287] sm:$0xff]
    %v5289 = vld [vmem:[%s5287 + $0x8] sm:$0xff]
    %v5290 = vld [vmem:[%s5287 + $0x10] sm:$0xff]
    %v5291 = vld [vmem:[%s5287 + $0x18] sm:$0xff]
    %v5292 = vld [vmem:[%s5287 + $0x20] sm:$0xff]
    %v5293 = vld [vmem:[%s5287 + $0x28] sm:$0xff]
    %v5294 = vld [vmem:[%s5287 + $0x30] sm:$0xff]
    %v5295 = vld [vmem:[%s5287 + $0x38] sm:$0xff]
    %v5296 = vld [vmem:[%s5287 + $0x40] sm:$0xff]
    %v5297 = vld [vmem:[%s5287 + $0x48] sm:$0xff]
    %5298 = vmatprep.subr.mxu0 0.0
    %5299 = vmatpush1.msra.mxu0 %v4118
    %5300 = vmatprep.subr.mxu0 0.0
    %5301 = vmatpush1.msra.mxu0 %v4119
    %5302 = vmatprep.subr.mxu0 0.0
    %5303 = vmatpush1.msra.mxu0 %v4120
    %5304 = vmatprep.subr.mxu0 0.0
    %5305 = vmatpush1.msra.mxu0 %v4121
    %5306 = vmatprep.subr.mxu0 0.0
    %5307 = vmatpush1.msra.mxu0 %v4122
    %5308 = vmatprep.subr.mxu0 0.0
    %5309 = vmatpush1.msra.mxu0 %v4123
    %5310 = vmatprep.subr.mxu0 0.0
    %5311 = vmatpush1.msra.mxu0 %v4124
    %5312 = vmatprep.subr.mxu0 0.0
    %5313 = vmatpush1.msra.mxu0 %v4125
    %5314 = vmatprep.subr.mxu0 0.0
    %5315 = vmatpush1.msra.mxu0 %v4126
    %5316 = vmatprep.subr.mxu0 0.0
    %5317 = vmatpush1.msra.mxu0 %v4127
    %5318 = vmatprep.subr.mxu0 0.0
    %5319 = vmatpush1.msra.mxu0 %v4128
    %5320 = vmatprep.subr.mxu0 0.0
    %5321 = vmatpush1.msra.mxu0 %v4129
    %5322 = vmatprep.subr.mxu0 0.0
    %5323 = vmatpush1.msra.mxu0 %v4130
    %5324 = vmatprep.subr.mxu0 0.0
    %5325 = vmatpush1.msra.mxu0 %v4131
    %5326 = vmatprep.subr.mxu0 0.0
    %5327 = vmatpush1.msra.mxu0 %v4132
    %5328 = vmatprep.subr.mxu0 0.0
    %5329 = vmatpush1.msra.mxu0 %v4133
    %5330 = vmatprep.subr.mxu0 0.0
    %5331 = vmatpush1.msra.mxu0 0.0
    %5332 = vmatprep.subr.mxu0 0.0
    %5333 = vmatpush1.msra.mxu0 0.0
    %5334 = vmatprep.subr.mxu0 0.0
    %5335 = vmatpush1.msra.mxu0 0.0
    %5336 = vmatprep.subr.mxu0 0.0
    %5337 = vmatpush1.msra.mxu0 0.0
    %5338 = vmatprep.subr.mxu0 0.0
    %5339 = vmatpush1.msra.mxu0 0.0
    %5340 = vmatprep.subr.mxu0 0.0
    %5341 = vmatpush1.msra.mxu0 0.0
    %5342 = vmatprep.subr.mxu0 0.0
    %5343 = vmatpush1.msra.mxu0 0.0
    %5344 = vmatprep.subr.mxu0 0.0
    %5345 = vmatpush1.msra.mxu0 0.0
    %5346 = vmatprep.subr.mxu0 0.0
    %5347 = vmatpush1.msra.mxu0 0.0
    %5348 = vmatprep.subr.mxu0 0.0
    %5349 = vmatpush1.msra.mxu0 0.0
    %5350 = vmatprep.subr.mxu0 0.0
    %5351 = vmatpush1.msra.mxu0 0.0
    %5352 = vmatprep.subr.mxu0 0.0
    %5353 = vmatpush1.msra.mxu0 0.0
    %5354 = vmatprep.subr.mxu0 0.0
    %5355 = vmatpush1.msra.mxu0 0.0
    %5356 = vmatprep.subr.mxu0 0.0
    %5357 = vmatpush1.msra.mxu0 0.0
    %5358 = vmatprep.subr.mxu0 0.0
    %5359 = vmatpush1.msra.mxu0 0.0
    %5360 = vmatprep.subr.mxu0 0.0
    %5361 = vmatpush1.msra.mxu0 0.0
    %5362 = vmatprep.mubr.f32.mxu0 0.0
    %5363 = vmatmul.mubr.f32.gmra.mrb[0].mxu0 %v5288
    %v5364 = vpop.f32.mrb[0].mxu0
    %v5365 = vadd.f32 0.0, %v5364
    %v5366 = vpop.f32.mrb[0].mxu0
    %5367 = vmatprep.mubr.f32.mxu0 0.0
    %5368 = vmatmul.mubr.f32.gmra.mrb[0].mxu0 %v5289
    %v5369 = vpop.f32.mrb[0].mxu0
    %v5370 = vadd.f32 0.0, %v5369
    %v5371 = vpop.f32.mrb[0].mxu0
    %5372 = vmatprep.mubr.f32.mxu0 0.0
    %5373 = vmatmul.mubr.f32.gmra.mrb[0].mxu0 %v5290
    %v5374 = vpop.f32.mrb[0].mxu0
    %v5375 = vadd.f32 0.0, %v5374
    %v5376 = vpop.f32.mrb[0].mxu0
    %5377 = vmatprep.mubr.f32.mxu0 0.0
    %5378 = vmatmul.mubr.f32.gmra.mrb[0].mxu0 %v5291
    %v5379 = vpop.f32.mrb[0].mxu0
    %v5380 = vadd.f32 0.0, %v5379
    %v5381 = vpop.f32.mrb[0].mxu0
    %5382 = vmatprep.mubr.f32.mxu0 0.0
    %5383 = vmatmul.mubr.f32.gmra.mrb[0].mxu0 %v5292
    %v5384 = vpop.f32.mrb[0].mxu0
    %v5385 = vadd.f32 0.0, %v5384
    %v5386 = vpop.f32.mrb[0].mxu0
    %5387 = vmatprep.mubr.f32.mxu0 0.0
    %5388 = vmatmul.mubr.f32.gmra.mrb[0].mxu0 %v5293
    %v5389 = vpop.f32.mrb[0].mxu0
    %v5390 = vadd.f32 0.0, %v5389
    %v5391 = vpop.f32.mrb[0].mxu0
    %5392 = vmatprep.mubr.f32.mxu0 0.0
    %5393 = vmatmul.mubr.f32.gmra.mrb[0].mxu0 %v5294
    %v5394 = vpop.f32.mrb[0].mxu0
    %v5395 = vadd.f32 0.0, %v5394
    %v5396 = vpop.f32.mrb[0].mxu0
    %5397 = vmatprep.mubr.f32.mxu0 0.0
    %5398 = vmatmul.mubr.f32.gmra.mrb[0].mxu0 %v5295
    %v5399 = vpop.f32.mrb[0].mxu0
    %v5400 = vadd.f32 0.0, %v5399
    %v5401 = vpop.f32.mrb[0].mxu0
    %5402 = vmatprep.mubr.f32.mxu0 0.0
    %5403 = vmatmul.mubr.f32.gmra.mrb[0].mxu0 %v5296
    %v5404 = vpop.f32.mrb[0].mxu0
    %v5405 = vadd.f32 0.0, %v5404
    %v5406 = vpop.f32.mrb[0].mxu0
    %5407 = vmatprep.mubr.f32.mxu0 0.0
    %5408 = vmatmul.mubr.f32.gmra.mrb[0].mxu0 %v5297
    %v5409 = vpop.f32.mrb[0].mxu0
    %v5410 = vadd.f32 0.0, %v5409
    %v5411 = vpop.f32.mrb[0].mxu0
    %5412 = vdwg.mxu0
    %v5413 = vadd.f32 %v5276, %v5365
    %v5414 = vadd.f32 %v5277, %v5370
    %v5415 = vadd.f32 %v5278, %v5375
    %v5416 = vadd.f32 %v5279, %v5380
    %v5417 = vadd.f32 %v5280, %v5385
    %v5418 = vadd.f32 %v5281, %v5390
    %v5419 = vadd.f32 %v5282, %v5395
    %v5420 = vadd.f32 %v5283, %v5400
    %v5421 = vadd.f32 %v5284, %v5405
    %v5422 = vadd.f32 %v5285, %v5410
    %s5423 = sadd.s32 16, %s5149
    %s5424 = scalar_lea.vmem [#allocation2], %s5423
    %v5425 = vld [vmem:[%s5424] sm:$0xff]
    %v5426 = vld [vmem:[%s5424 + $0x8] sm:$0xff]
    %v5427 = vld [vmem:[%s5424 + $0x10] sm:$0xff]
    %v5428 = vld [vmem:[%s5424 + $0x18] sm:$0xff]
    %v5429 = vld [vmem:[%s5424 + $0x20] sm:$0xff]
    %v5430 = vld [vmem:[%s5424 + $0x28] sm:$0xff]
    %v5431 = vld [vmem:[%s5424 + $0x30] sm:$0xff]
    %v5432 = vld [vmem:[%s5424 + $0x38] sm:$0xff]
    %v5433 = vld [vmem:[%s5424 + $0x40] sm:$0xff]
    %v5434 = vld [vmem:[%s5424 + $0x48] sm:$0xff]
    %5435 = vmatprep.subr.mxu0 0.0
    %5436 = vmatpush1.msra.mxu0 %v4272
    %5437 = vmatprep.subr.mxu0 0.0
    %5438 = vmatpush1.msra.mxu0 %v4273
    %5439 = vmatprep.subr.mxu0 0.0
    %5440 = vmatpush1.msra.mxu0 %v4274
    %5441 = vmatprep.subr.mxu0 0.0
    %5442 = vmatpush1.msra.mxu0 %v4275
    %5443 = vmatprep.subr.mxu0 0.0
    %5444 = vmatpush1.msra.mxu0 %v4276
    %5445 = vmatprep.subr.mxu0 0.0
    %5446 = vmatpush1.msra.mxu0 %v4277
    %5447 = vmatprep.subr.mxu0 0.0
    %5448 = vmatpush1.msra.mxu0 %v4278
    %5449 = vmatprep.subr.mxu0 0.0
    %5450 = vmatpush1.msra.mxu0 %v4279
    %5451 = vmatprep.subr.mxu0 0.0
    %5452 = vmatpush1.msra.mxu0 %v4280
    %5453 = vmatprep.subr.mxu0 0.0
    %5454 = vmatpush1.msra.mxu0 %v4281
    %5455 = vmatprep.subr.mxu0 0.0
    %5456 = vmatpush1.msra.mxu0 %v4282
    %5457 = vmatprep.subr.mxu0 0.0
    %5458 = vmatpush1.msra.mxu0 %v4283
    %5459 = vmatprep.subr.mxu0 0.0
    %5460 = vmatpush1.msra.mxu0 %v4284
    %5461 = vmatprep.subr.mxu0 0.0
    %5462 = vmatpush1.msra.mxu0 %v4285
    %5463 = vmatprep.subr.mxu0 0.0
    %5464 = vmatpush1.msra.mxu0 %v4286
    %5465 = vmatprep.subr.mxu0 0.0
    %5466 = vmatpush1.msra.mxu0 %v4287
    %5467 = vmatprep.subr.mxu0 0.0
    %5468 = vmatpush1.msra.mxu0 0.0
    %5469 = vmatprep.subr.mxu0 0.0
    %5470 = vmatpush1.msra.mxu0 0.0
    %5471 = vmatprep.subr.mxu0 0.0
    %5472 = vmatpush1.msra.mxu0 0.0
    %5473 = vmatprep.subr.mxu0 0.0
    %5474 = vmatpush1.msra.mxu0 0.0
    %5475 = vmatprep.subr.mxu0 0.0
    %5476 = vmatpush1.msra.mxu0 0.0
    %5477 = vmatprep.subr.mxu0 0.0
    %5478 = vmatpush1.msra.mxu0 0.0
    %5479 = vmatprep.subr.mxu0 0.0
    %5480 = vmatpush1.msra.mxu0 0.0
    %5481 = vmatprep.subr.mxu0 0.0
    %5482 = vmatpush1.msra.mxu0 0.0
    %5483 = vmatprep.subr.mxu0 0.0
    %5484 = vmatpush1.msra.mxu0 0.0
    %5485 = vmatprep.subr.mxu0 0.0
    %5486 = vmatpush1.msra.mxu0 0.0
    %5487 = vmatprep.subr.mxu0 0.0
    %5488 = vmatpush1.msra.mxu0 0.0
    %5489 = vmatprep.subr.mxu0 0.0
    %5490 = vmatpush1.msra.mxu0 0.0
    %5491 = vmatprep.subr.mxu0 0.0
    %5492 = vmatpush1.msra.mxu0 0.0
    %5493 = vmatprep.subr.mxu0 0.0
    %5494 = vmatpush1.msra.mxu0 0.0
    %5495 = vmatprep.subr.mxu0 0.0
    %5496 = vmatpush1.msra.mxu0 0.0
    %5497 = vmatprep.subr.mxu0 0.0
    %5498 = vmatpush1.msra.mxu0 0.0
    %5499 = vmatprep.mubr.f32.mxu0 0.0
    %5500 = vmatmul.mubr.f32.gmra.mrb[0].mxu0 %v5425
    %v5501 = vpop.f32.mrb[0].mxu0
    %v5502 = vadd.f32 0.0, %v5501
    %v5503 = vpop.f32.mrb[0].mxu0
    %5504 = vmatprep.mubr.f32.mxu0 0.0
    %5505 = vmatmul.mubr.f32.gmra.mrb[0].mxu0 %v5426
    %v5506 = vpop.f32.mrb[0].mxu0
    %v5507 = vadd.f32 0.0, %v5506
    %v5508 = vpop.f32.mrb[0].mxu0
    %5509 = vmatprep.mubr.f32.mxu0 0.0
    %5510 = vmatmul.mubr.f32.gmra.mrb[0].mxu0 %v5427
    %v5511 = vpop.f32.mrb[0].mxu0
    %v5512 = vadd.f32 0.0, %v5511
    %v5513 = vpop.f32.mrb[0].mxu0
    %5514 = vmatprep.mubr.f32.mxu0 0.0
    %5515 = vmatmul.mubr.f32.gmra.mrb[0].mxu0 %v5428
    %v5516 = vpop.f32.mrb[0].mxu0
    %v5517 = vadd.f32 0.0, %v5516
    %v5518 = vpop.f32.mrb[0].mxu0
    %5519 = vmatprep.mubr.f32.mxu0 0.0
    %5520 = vmatmul.mubr.f32.gmra.mrb[0].mxu0 %v5429
    %v5521 = vpop.f32.mrb[0].mxu0
    %v5522 = vadd.f32 0.0, %v5521
    %v5523 = vpop.f32.mrb[0].mxu0
    %5524 = vmatprep.mubr.f32.mxu0 0.0
    %5525 = vmatmul.mubr.f32.gmra.mrb[0].mxu0 %v5430
    %v5526 = vpop.f32.mrb[0].mxu0
    %v5527 = vadd.f32 0.0, %v5526
    %v5528 = vpop.f32.mrb[0].mxu0
    %5529 = vmatprep.mubr.f32.mxu0 0.0
    %5530 = vmatmul.mubr.f32.gmra.mrb[0].mxu0 %v5431
    %v5531 = vpop.f32.mrb[0].mxu0
    %v5532 = vadd.f32 0.0, %v5531
    %v5533 = vpop.f32.mrb[0].mxu0
    %5534 = vmatprep.mubr.f32.mxu0 0.0
    %5535 = vmatmul.mubr.f32.gmra.mrb[0].mxu0 %v5432
    %v5536 = vpop.f32.mrb[0].mxu0
    %v5537 = vadd.f32 0.0, %v5536
    %v5538 = vpop.f32.mrb[0].mxu0
    %5539 = vmatprep.mubr.f32.mxu0 0.0
    %5540 = vmatmul.mubr.f32.gmra.mrb[0].mxu0 %v5433
    %v5541 = vpop.f32.mrb[0].mxu0
    %v5542 = vadd.f32 0.0, %v5541
    %v5543 = vpop.f32.mrb[0].mxu0
    %5544 = vmatprep.mubr.f32.mxu0 0.0
    %5545 = vmatmul.mubr.f32.gmra.mrb[0].mxu0 %v5434
    %v5546 = vpop.f32.mrb[0].mxu0
    %v5547 = vadd.f32 0.0, %v5546
    %v5548 = vpop.f32.mrb[0].mxu0
    %5549 = vdwg.mxu0
    %v5550 = vadd.f32 %v5413, %v5502
    %v5551 = vadd.f32 %v5414, %v5507
    %v5552 = vadd.f32 %v5415, %v5512
    %v5553 = vadd.f32 %v5416, %v5517
    %v5554 = vadd.f32 %v5417, %v5522
    %v5555 = vadd.f32 %v5418, %v5527
    %v5556 = vadd.f32 %v5419, %v5532
    %v5557 = vadd.f32 %v5420, %v5537
    %v5558 = vadd.f32 %v5421, %v5542
    %v5559 = vadd.f32 %v5422, %v5547
    %v5560 = vmax.f32 %v5550, %v5551
    %v5561 = vmax.f32 %v5552, %v5553
    %v5562 = vmax.f32 %v5554, %v5555
    %v5563 = vmax.f32 %v5556, %v5557
    %v5564 = vmax.f32 %v5558, %v5559
    %v5565 = vmax.f32 %v4413, %v5560
    %v5566 = vmax.f32 %v4414, %v5561
    %v5567 = vmax.f32 %v4415, %v5562
    %v5568 = vmax.f32 %v4416, %v5563
    %v5569 = vmax.f32 %v4417, %v5564
    %v5570 = vld [vmem:[%s4] sm:$0x1]
    %v5572 = vlaneseq
    %v5573 = vshrl.u32 %v5572, 7
    %v5574 = vsub.s32 0, %v5573
    %v5575 = vrot.slane %v5570, %v5574
    %v5577 = vadd.f32 %v5565, %v5575
    %v5578 = vadd.f32 %v5566, %v5575
    %v5579 = vadd.f32 %v5567, %v5575
    %v5580 = vadd.f32 %v5568, %v5575
    %v5581 = vadd.f32 %v5569, %v5575
    %v5582 = vmax.f32 %v5577, 0.0
    %v5583 = vmax.f32 %v5578, 0.0
    %v5584 = vmax.f32 %v5579, 0.0
    %v5585 = vmax.f32 %v5580, 0.0
    %v5586 = vmax.f32 %v5581, 0.0
    %s5587 = smul.u32 %s3039, 5
    %s5588 = smul.u32 %s5587, 128
    %s5589 = scalar_lea.vmem %s5, %s5588
    %v5590 = vld [vmem:[%s5589] sm:$0xff]
    %v5591 = vld [vmem:[%s5589 + $0x8] sm:$0xff]
    %v5592 = vld [vmem:[%s5589 + $0x10] sm:$0xff]
    %v5593 = vld [vmem:[%s5589 + $0x18] sm:$0xff]
    %v5594 = vld [vmem:[%s5589 + $0x20] sm:$0xff]
    %v5595 = vld [vmem:[%s5589 + $0x28] sm:$0xff]
    %v5596 = vld [vmem:[%s5589 + $0x30] sm:$0xff]
    %v5597 = vld [vmem:[%s5589 + $0x38] sm:$0xff]
    %v5598 = vld [vmem:[%s5589 + $0x40] sm:$0xff]
    %v5599 = vld [vmem:[%s5589 + $0x48] sm:$0xff]
    %v5600 = vld [vmem:[%s5589 + $0x50] sm:$0xff]
    %v5601 = vld [vmem:[%s5589 + $0x58] sm:$0xff]
    %v5602 = vld [vmem:[%s5589 + $0x60] sm:$0xff]
    %v5603 = vld [vmem:[%s5589 + $0x68] sm:$0xff]
    %v5604 = vld [vmem:[%s5589 + $0x70] sm:$0xff]
    %v5605 = vld [vmem:[%s5589 + $0x78] sm:$0xff]
    %5606 = vmatprep.subr.mxu0 0.0
    %5607 = vmatpush1.msra.mxu0 %v5590
    %5608 = vmatprep.subr.mxu0 0.0
    %5609 = vmatpush1.msra.mxu0 %v5591
    %5610 = vmatprep.subr.mxu0 0.0
    %5611 = vmatpush1.msra.mxu0 %v5592
    %5612 = vmatprep.subr.mxu0 0.0
    %5613 = vmatpush1.msra.mxu0 %v5593
    %5614 = vmatprep.subr.mxu0 0.0
    %5615 = vmatpush1.msra.mxu0 %v5594
    %5616 = vmatprep.subr.mxu0 0.0
    %5617 = vmatpush1.msra.mxu0 %v5595
    %5618 = vmatprep.subr.mxu0 0.0
    %5619 = vmatpush1.msra.mxu0 %v5596
    %5620 = vmatprep.subr.mxu0 0.0
    %5621 = vmatpush1.msra.mxu0 %v5597
    %5622 = vmatprep.subr.mxu0 0.0
    %5623 = vmatpush1.msra.mxu0 %v5598
    %5624 = vmatprep.subr.mxu0 0.0
    %5625 = vmatpush1.msra.mxu0 %v5599
    %5626 = vmatprep.subr.mxu0 0.0
    %5627 = vmatpush1.msra.mxu0 %v5600
    %5628 = vmatprep.subr.mxu0 0.0
    %5629 = vmatpush1.msra.mxu0 %v5601
    %5630 = vmatprep.subr.mxu0 0.0
    %5631 = vmatpush1.msra.mxu0 %v5602
    %5632 = vmatprep.subr.mxu0 0.0
    %5633 = vmatpush1.msra.mxu0 %v5603
    %5634 = vmatprep.subr.mxu0 0.0
    %5635 = vmatpush1.msra.mxu0 %v5604
    %5636 = vmatprep.subr.mxu0 0.0
    %5637 = vmatpush1.msra.mxu0 %v5605
    %5638 = vmatprep.subr.mxu0 0.0
    %5639 = vmatpush1.msra.mxu0 0.0
    %5640 = vmatprep.subr.mxu0 0.0
    %5641 = vmatpush1.msra.mxu0 0.0
    %5642 = vmatprep.subr.mxu0 0.0
    %5643 = vmatpush1.msra.mxu0 0.0
    %5644 = vmatprep.subr.mxu0 0.0
    %5645 = vmatpush1.msra.mxu0 0.0
    %5646 = vmatprep.subr.mxu0 0.0
    %5647 = vmatpush1.msra.mxu0 0.0
    %5648 = vmatprep.subr.mxu0 0.0
    %5649 = vmatpush1.msra.mxu0 0.0
    %5650 = vmatprep.subr.mxu0 0.0
    %5651 = vmatpush1.msra.mxu0 0.0
    %5652 = vmatprep.subr.mxu0 0.0
    %5653 = vmatpush1.msra.mxu0 0.0
    %5654 = vmatprep.subr.mxu0 0.0
    %5655 = vmatpush1.msra.mxu0 0.0
    %5656 = vmatprep.subr.mxu0 0.0
    %5657 = vmatpush1.msra.mxu0 0.0
    %5658 = vmatprep.subr.mxu0 0.0
    %5659 = vmatpush1.msra.mxu0 0.0
    %5660 = vmatprep.subr.mxu0 0.0
    %5661 = vmatpush1.msra.mxu0 0.0
    %5662 = vmatprep.subr.mxu0 0.0
    %5663 = vmatpush1.msra.mxu0 0.0
    %5664 = vmatprep.subr.mxu0 0.0
    %5665 = vmatpush1.msra.mxu0 0.0
    %5666 = vmatprep.subr.mxu0 0.0
    %5667 = vmatpush1.msra.mxu0 0.0
    %5668 = vmatprep.subr.mxu0 0.0
    %5669 = vmatpush1.msra.mxu0 0.0
    %5670 = vmatprep.mubr.f32.mxu0 0.0
    %5671 = vmatmul.mubr.f32.gmra.mrb[0].mxu0 %v5582
    %v5672 = vpop.f32.mrb[0].mxu0
    %v5673 = vadd.f32 0.0, %v5672
    %v5674 = vpop.f32.mrb[0].mxu0
    %5675 = vdwg.mxu0
    %v5676 = vadd.f32 %v3044, %v5673
    %s5677 = sadd.s32 %s5587, 1
    %s5678 = smul.u32 %s5677, 128
    %s5679 = scalar_lea.vmem %s5, %s5678
    %v5680 = vld [vmem:[%s5679] sm:$0xff]
    %v5681 = vld [vmem:[%s5679 + $0x8] sm:$0xff]
    %v5682 = vld [vmem:[%s5679 + $0x10] sm:$0xff]
    %v5683 = vld [vmem:[%s5679 + $0x18] sm:$0xff]
    %v5684 = vld [vmem:[%s5679 + $0x20] sm:$0xff]
    %v5685 = vld [vmem:[%s5679 + $0x28] sm:$0xff]
    %v5686 = vld [vmem:[%s5679 + $0x30] sm:$0xff]
    %v5687 = vld [vmem:[%s5679 + $0x38] sm:$0xff]
    %v5688 = vld [vmem:[%s5679 + $0x40] sm:$0xff]
    %v5689 = vld [vmem:[%s5679 + $0x48] sm:$0xff]
    %v5690 = vld [vmem:[%s5679 + $0x50] sm:$0xff]
    %v5691 = vld [vmem:[%s5679 + $0x58] sm:$0xff]
    %v5692 = vld [vmem:[%s5679 + $0x60] sm:$0xff]
    %v5693 = vld [vmem:[%s5679 + $0x68] sm:$0xff]
    %v5694 = vld [vmem:[%s5679 + $0x70] sm:$0xff]
    %v5695 = vld [vmem:[%s5679 + $0x78] sm:$0xff]
    %5696 = vmatprep.subr.mxu0 0.0
    %5697 = vmatpush1.msra.mxu0 %v5680
    %5698 = vmatprep.subr.mxu0 0.0
    %5699 = vmatpush1.msra.mxu0 %v5681
    %5700 = vmatprep.subr.mxu0 0.0
    %5701 = vmatpush1.msra.mxu0 %v5682
    %5702 = vmatprep.subr.mxu0 0.0
    %5703 = vmatpush1.msra.mxu0 %v5683
    %5704 = vmatprep.subr.mxu0 0.0
    %5705 = vmatpush1.msra.mxu0 %v5684
    %5706 = vmatprep.subr.mxu0 0.0
    %5707 = vmatpush1.msra.mxu0 %v5685
    %5708 = vmatprep.subr.mxu0 0.0
    %5709 = vmatpush1.msra.mxu0 %v5686
    %5710 = vmatprep.subr.mxu0 0.0
    %5711 = vmatpush1.msra.mxu0 %v5687
    %5712 = vmatprep.subr.mxu0 0.0
    %5713 = vmatpush1.msra.mxu0 %v5688
    %5714 = vmatprep.subr.mxu0 0.0
    %5715 = vmatpush1.msra.mxu0 %v5689
    %5716 = vmatprep.subr.mxu0 0.0
    %5717 = vmatpush1.msra.mxu0 %v5690
    %5718 = vmatprep.subr.mxu0 0.0
    %5719 = vmatpush1.msra.mxu0 %v5691
    %5720 = vmatprep.subr.mxu0 0.0
    %5721 = vmatpush1.msra.mxu0 %v5692
    %5722 = vmatprep.subr.mxu0 0.0
    %5723 = vmatpush1.msra.mxu0 %v5693
    %5724 = vmatprep.subr.mxu0 0.0
    %5725 = vmatpush1.msra.mxu0 %v5694
    %5726 = vmatprep.subr.mxu0 0.0
    %5727 = vmatpush1.msra.mxu0 %v5695
    %5728 = vmatprep.subr.mxu0 0.0
    %5729 = vmatpush1.msra.mxu0 0.0
    %5730 = vmatprep.subr.mxu0 0.0
    %5731 = vmatpush1.msra.mxu0 0.0
    %5732 = vmatprep.subr.mxu0 0.0
    %5733 = vmatpush1.msra.mxu0 0.0
    %5734 = vmatprep.subr.mxu0 0.0
    %5735 = vmatpush1.msra.mxu0 0.0
    %5736 = vmatprep.subr.mxu0 0.0
    %5737 = vmatpush1.msra.mxu0 0.0
    %5738 = vmatprep.subr.mxu0 0.0
    %5739 = vmatpush1.msra.mxu0 0.0
    %5740 = vmatprep.subr.mxu0 0.0
    %5741 = vmatpush1.msra.mxu0 0.0
    %5742 = vmatprep.subr.mxu0 0.0
    %5743 = vmatpush1.msra.mxu0 0.0
    %5744 = vmatprep.subr.mxu0 0.0
    %5745 = vmatpush1.msra.mxu0 0.0
    %5746 = vmatprep.subr.mxu0 0.0
    %5747 = vmatpush1.msra.mxu0 0.0
    %5748 = vmatprep.subr.mxu0 0.0
    %5749 = vmatpush1.msra.mxu0 0.0
    %5750 = vmatprep.subr.mxu0 0.0
    %5751 = vmatpush1.msra.mxu0 0.0
    %5752 = vmatprep.subr.mxu0 0.0
    %5753 = vmatpush1.msra.mxu0 0.0
    %5754 = vmatprep.subr.mxu0 0.0
    %5755 = vmatpush1.msra.mxu0 0.0
    %5756 = vmatprep.subr.mxu0 0.0
    %5757 = vmatpush1.msra.mxu0 0.0
    %5758 = vmatprep.subr.mxu0 0.0
    %5759 = vmatpush1.msra.mxu0 0.0
    %5760 = vmatprep.mubr.f32.mxu0 0.0
    %5761 = vmatmul.mubr.f32.gmra.mrb[0].mxu0 %v5583
    %v5762 = vpop.f32.mrb[0].mxu0
    %v5763 = vadd.f32 0.0, %v5762
    %v5764 = vpop.f32.mrb[0].mxu0
    %5765 = vdwg.mxu0
    %v5766 = vadd.f32 %v5676, %v5763
    %s5767 = sadd.s32 %s5587, 2
    %s5768 = smul.u32 %s5767, 128
    %s5769 = scalar_lea.vmem %s5, %s5768
    %v5770 = vld [vmem:[%s5769] sm:$0xff]
    %v5771 = vld [vmem:[%s5769 + $0x8] sm:$0xff]
    %v5772 = vld [vmem:[%s5769 + $0x10] sm:$0xff]
    %v5773 = vld [vmem:[%s5769 + $0x18] sm:$0xff]
    %v5774 = vld [vmem:[%s5769 + $0x20] sm:$0xff]
    %v5775 = vld [vmem:[%s5769 + $0x28] sm:$0xff]
    %v5776 = vld [vmem:[%s5769 + $0x30] sm:$0xff]
    %v5777 = vld [vmem:[%s5769 + $0x38] sm:$0xff]
    %v5778 = vld [vmem:[%s5769 + $0x40] sm:$0xff]
    %v5779 = vld [vmem:[%s5769 + $0x48] sm:$0xff]
    %v5780 = vld [vmem:[%s5769 + $0x50] sm:$0xff]
    %v5781 = vld [vmem:[%s5769 + $0x58] sm:$0xff]
    %v5782 = vld [vmem:[%s5769 + $0x60] sm:$0xff]
    %v5783 = vld [vmem:[%s5769 + $0x68] sm:$0xff]
    %v5784 = vld [vmem:[%s5769 + $0x70] sm:$0xff]
    %v5785 = vld [vmem:[%s5769 + $0x78] sm:$0xff]
    %5786 = vmatprep.subr.mxu0 0.0
    %5787 = vmatpush1.msra.mxu0 %v5770
    %5788 = vmatprep.subr.mxu0 0.0
    %5789 = vmatpush1.msra.mxu0 %v5771
    %5790 = vmatprep.subr.mxu0 0.0
    %5791 = vmatpush1.msra.mxu0 %v5772
    %5792 = vmatprep.subr.mxu0 0.0
    %5793 = vmatpush1.msra.mxu0 %v5773
    %5794 = vmatprep.subr.mxu0 0.0
    %5795 = vmatpush1.msra.mxu0 %v5774
    %5796 = vmatprep.subr.mxu0 0.0
    %5797 = vmatpush1.msra.mxu0 %v5775
    %5798 = vmatprep.subr.mxu0 0.0
    %5799 = vmatpush1.msra.mxu0 %v5776
    %5800 = vmatprep.subr.mxu0 0.0
    %5801 = vmatpush1.msra.mxu0 %v5777
    %5802 = vmatprep.subr.mxu0 0.0
    %5803 = vmatpush1.msra.mxu0 %v5778
    %5804 = vmatprep.subr.mxu0 0.0
    %5805 = vmatpush1.msra.mxu0 %v5779
    %5806 = vmatprep.subr.mxu0 0.0
    %5807 = vmatpush1.msra.mxu0 %v5780
    %5808 = vmatprep.subr.mxu0 0.0
    %5809 = vmatpush1.msra.mxu0 %v5781
    %5810 = vmatprep.subr.mxu0 0.0
    %5811 = vmatpush1.msra.mxu0 %v5782
    %5812 = vmatprep.subr.mxu0 0.0
    %5813 = vmatpush1.msra.mxu0 %v5783
    %5814 = vmatprep.subr.mxu0 0.0
    %5815 = vmatpush1.msra.mxu0 %v5784
    %5816 = vmatprep.subr.mxu0 0.0
    %5817 = vmatpush1.msra.mxu0 %v5785
    %5818 = vmatprep.subr.mxu0 0.0
    %5819 = vmatpush1.msra.mxu0 0.0
    %5820 = vmatprep.subr.mxu0 0.0
    %5821 = vmatpush1.msra.mxu0 0.0
    %5822 = vmatprep.subr.mxu0 0.0
    %5823 = vmatpush1.msra.mxu0 0.0
    %5824 = vmatprep.subr.mxu0 0.0
    %5825 = vmatpush1.msra.mxu0 0.0
    %5826 = vmatprep.subr.mxu0 0.0
    %5827 = vmatpush1.msra.mxu0 0.0
    %5828 = vmatprep.subr.mxu0 0.0
    %5829 = vmatpush1.msra.mxu0 0.0
    %5830 = vmatprep.subr.mxu0 0.0
    %5831 = vmatpush1.msra.mxu0 0.0
    %5832 = vmatprep.subr.mxu0 0.0
    %5833 = vmatpush1.msra.mxu0 0.0
    %5834 = vmatprep.subr.mxu0 0.0
    %5835 = vmatpush1.msra.mxu0 0.0
    %5836 = vmatprep.subr.mxu0 0.0
    %5837 = vmatpush1.msra.mxu0 0.0
    %5838 = vmatprep.subr.mxu0 0.0
    %5839 = vmatpush1.msra.mxu0 0.0
    %5840 = vmatprep.subr.mxu0 0.0
    %5841 = vmatpush1.msra.mxu0 0.0
    %5842 = vmatprep.subr.mxu0 0.0
    %5843 = vmatpush1.msra.mxu0 0.0
    %5844 = vmatprep.subr.mxu0 0.0
    %5845 = vmatpush1.msra.mxu0 0.0
    %5846 = vmatprep.subr.mxu0 0.0
    %5847 = vmatpush1.msra.mxu0 0.0
    %5848 = vmatprep.subr.mxu0 0.0
    %5849 = vmatpush1.msra.mxu0 0.0
    %5850 = vmatprep.mubr.f32.mxu0 0.0
    %5851 = vmatmul.mubr.f32.gmra.mrb[0].mxu0 %v5584
    %v5852 = vpop.f32.mrb[0].mxu0
    %v5853 = vadd.f32 0.0, %v5852
    %v5854 = vpop.f32.mrb[0].mxu0
    %5855 = vdwg.mxu0
    %v5856 = vadd.f32 %v5766, %v5853
    %s5857 = sadd.s32 %s5587, 3
    %s5858 = smul.u32 %s5857, 128
    %s5859 = scalar_lea.vmem %s5, %s5858
    %v5860 = vld [vmem:[%s5859] sm:$0xff]
    %v5861 = vld [vmem:[%s5859 + $0x8] sm:$0xff]
    %v5862 = vld [vmem:[%s5859 + $0x10] sm:$0xff]
    %v5863 = vld [vmem:[%s5859 + $0x18] sm:$0xff]
    %v5864 = vld [vmem:[%s5859 + $0x20] sm:$0xff]
    %v5865 = vld [vmem:[%s5859 + $0x28] sm:$0xff]
    %v5866 = vld [vmem:[%s5859 + $0x30] sm:$0xff]
    %v5867 = vld [vmem:[%s5859 + $0x38] sm:$0xff]
    %v5868 = vld [vmem:[%s5859 + $0x40] sm:$0xff]
    %v5869 = vld [vmem:[%s5859 + $0x48] sm:$0xff]
    %v5870 = vld [vmem:[%s5859 + $0x50] sm:$0xff]
    %v5871 = vld [vmem:[%s5859 + $0x58] sm:$0xff]
    %v5872 = vld [vmem:[%s5859 + $0x60] sm:$0xff]
    %v5873 = vld [vmem:[%s5859 + $0x68] sm:$0xff]
    %v5874 = vld [vmem:[%s5859 + $0x70] sm:$0xff]
    %v5875 = vld [vmem:[%s5859 + $0x78] sm:$0xff]
    %5876 = vmatprep.subr.mxu0 0.0
    %5877 = vmatpush1.msra.mxu0 %v5860
    %5878 = vmatprep.subr.mxu0 0.0
    %5879 = vmatpush1.msra.mxu0 %v5861
    %5880 = vmatprep.subr.mxu0 0.0
    %5881 = vmatpush1.msra.mxu0 %v5862
    %5882 = vmatprep.subr.mxu0 0.0
    %5883 = vmatpush1.msra.mxu0 %v5863
    %5884 = vmatprep.subr.mxu0 0.0
    %5885 = vmatpush1.msra.mxu0 %v5864
    %5886 = vmatprep.subr.mxu0 0.0
    %5887 = vmatpush1.msra.mxu0 %v5865
    %5888 = vmatprep.subr.mxu0 0.0
    %5889 = vmatpush1.msra.mxu0 %v5866
    %5890 = vmatprep.subr.mxu0 0.0
    %5891 = vmatpush1.msra.mxu0 %v5867
    %5892 = vmatprep.subr.mxu0 0.0
    %5893 = vmatpush1.msra.mxu0 %v5868
    %5894 = vmatprep.subr.mxu0 0.0
    %5895 = vmatpush1.msra.mxu0 %v5869
    %5896 = vmatprep.subr.mxu0 0.0
    %5897 = vmatpush1.msra.mxu0 %v5870
    %5898 = vmatprep.subr.mxu0 0.0
    %5899 = vmatpush1.msra.mxu0 %v5871
    %5900 = vmatprep.subr.mxu0 0.0
    %5901 = vmatpush1.msra.mxu0 %v5872
    %5902 = vmatprep.subr.mxu0 0.0
    %5903 = vmatpush1.msra.mxu0 %v5873
    %5904 = vmatprep.subr.mxu0 0.0
    %5905 = vmatpush1.msra.mxu0 %v5874
    %5906 = vmatprep.subr.mxu0 0.0
    %5907 = vmatpush1.msra.mxu0 %v5875
    %5908 = vmatprep.subr.mxu0 0.0
    %5909 = vmatpush1.msra.mxu0 0.0
    %5910 = vmatprep.subr.mxu0 0.0
    %5911 = vmatpush1.msra.mxu0 0.0
    %5912 = vmatprep.subr.mxu0 0.0
    %5913 = vmatpush1.msra.mxu0 0.0
    %5914 = vmatprep.subr.mxu0 0.0
    %5915 = vmatpush1.msra.mxu0 0.0
    %5916 = vmatprep.subr.mxu0 0.0
    %5917 = vmatpush1.msra.mxu0 0.0
    %5918 = vmatprep.subr.mxu0 0.0
    %5919 = vmatpush1.msra.mxu0 0.0
    %5920 = vmatprep.subr.mxu0 0.0
    %5921 = vmatpush1.msra.mxu0 0.0
    %5922 = vmatprep.subr.mxu0 0.0
    %5923 = vmatpush1.msra.mxu0 0.0
    %5924 = vmatprep.subr.mxu0 0.0
    %5925 = vmatpush1.msra.mxu0 0.0
    %5926 = vmatprep.subr.mxu0 0.0
    %5927 = vmatpush1.msra.mxu0 0.0
    %5928 = vmatprep.subr.mxu0 0.0
    %5929 = vmatpush1.msra.mxu0 0.0
    %5930 = vmatprep.subr.mxu0 0.0
    %5931 = vmatpush1.msra.mxu0 0.0
    %5932 = vmatprep.subr.mxu0 0.0
    %5933 = vmatpush1.msra.mxu0 0.0
    %5934 = vmatprep.subr.mxu0 0.0
    %5935 = vmatpush1.msra.mxu0 0.0
    %5936 = vmatprep.subr.mxu0 0.0
    %5937 = vmatpush1.msra.mxu0 0.0
    %5938 = vmatprep.subr.mxu0 0.0
    %5939 = vmatpush1.msra.mxu0 0.0
    %5940 = vmatprep.mubr.f32.mxu0 0.0
    %5941 = vmatmul.mubr.f32.gmra.mrb[0].mxu0 %v5585
    %v5942 = vpop.f32.mrb[0].mxu0
    %v5943 = vadd.f32 0.0, %v5942
    %v5944 = vpop.f32.mrb[0].mxu0
    %5945 = vdwg.mxu0
    %v5946 = vadd.f32 %v5856, %v5943
    %s5947 = sadd.s32 %s5587, 4
    %s5948 = smul.u32 %s5947, 128
    %s5949 = scalar_lea.vmem %s5, %s5948
    %v5950 = vld [vmem:[%s5949] sm:$0xff]
    %v5951 = vld [vmem:[%s5949 + $0x8] sm:$0xff]
    %v5952 = vld [vmem:[%s5949 + $0x10] sm:$0xff]
    %v5953 = vld [vmem:[%s5949 + $0x18] sm:$0xff]
    %v5954 = vld [vmem:[%s5949 + $0x20] sm:$0xff]
    %v5955 = vld [vmem:[%s5949 + $0x28] sm:$0xff]
    %v5956 = vld [vmem:[%s5949 + $0x30] sm:$0xff]
    %v5957 = vld [vmem:[%s5949 + $0x38] sm:$0xff]
    %v5958 = vld [vmem:[%s5949 + $0x40] sm:$0xff]
    %v5959 = vld [vmem:[%s5949 + $0x48] sm:$0xff]
    %v5960 = vld [vmem:[%s5949 + $0x50] sm:$0xff]
    %v5961 = vld [vmem:[%s5949 + $0x58] sm:$0xff]
    %v5962 = vld [vmem:[%s5949 + $0x60] sm:$0xff]
    %v5963 = vld [vmem:[%s5949 + $0x68] sm:$0xff]
    %v5964 = vld [vmem:[%s5949 + $0x70] sm:$0xff]
    %v5965 = vld [vmem:[%s5949 + $0x78] sm:$0xff]
    %5966 = vmatprep.subr.mxu0 0.0
    %5967 = vmatpush1.msra.mxu0 %v5950
    %5968 = vmatprep.subr.mxu0 0.0
    %5969 = vmatpush1.msra.mxu0 %v5951
    %5970 = vmatprep.subr.mxu0 0.0
    %5971 = vmatpush1.msra.mxu0 %v5952
    %5972 = vmatprep.subr.mxu0 0.0
    %5973 = vmatpush1.msra.mxu0 %v5953
    %5974 = vmatprep.subr.mxu0 0.0
    %5975 = vmatpush1.msra.mxu0 %v5954
    %5976 = vmatprep.subr.mxu0 0.0
    %5977 = vmatpush1.msra.mxu0 %v5955
    %5978 = vmatprep.subr.mxu0 0.0
    %5979 = vmatpush1.msra.mxu0 %v5956
    %5980 = vmatprep.subr.mxu0 0.0
    %5981 = vmatpush1.msra.mxu0 %v5957
    %5982 = vmatprep.subr.mxu0 0.0
    %5983 = vmatpush1.msra.mxu0 %v5958
    %5984 = vmatprep.subr.mxu0 0.0
    %5985 = vmatpush1.msra.mxu0 %v5959
    %5986 = vmatprep.subr.mxu0 0.0
    %5987 = vmatpush1.msra.mxu0 %v5960
    %5988 = vmatprep.subr.mxu0 0.0
    %5989 = vmatpush1.msra.mxu0 %v5961
    %5990 = vmatprep.subr.mxu0 0.0
    %5991 = vmatpush1.msra.mxu0 %v5962
    %5992 = vmatprep.subr.mxu0 0.0
    %5993 = vmatpush1.msra.mxu0 %v5963
    %5994 = vmatprep.subr.mxu0 0.0
    %5995 = vmatpush1.msra.mxu0 %v5964
    %5996 = vmatprep.subr.mxu0 0.0
    %5997 = vmatpush1.msra.mxu0 %v5965
    %5998 = vmatprep.subr.mxu0 0.0
    %5999 = vmatpush1.msra.mxu0 0.0
    %6000 = vmatprep.subr.mxu0 0.0
    %6001 = vmatpush1.msra.mxu0 0.0
    %6002 = vmatprep.subr.mxu0 0.0
    %6003 = vmatpush1.msra.mxu0 0.0
    %6004 = vmatprep.subr.mxu0 0.0
    %6005 = vmatpush1.msra.mxu0 0.0
    %6006 = vmatprep.subr.mxu0 0.0
    %6007 = vmatpush1.msra.mxu0 0.0
    %6008 = vmatprep.subr.mxu0 0.0
    %6009 = vmatpush1.msra.mxu0 0.0
    %6010 = vmatprep.subr.mxu0 0.0
    %6011 = vmatpush1.msra.mxu0 0.0
    %6012 = vmatprep.subr.mxu0 0.0
    %6013 = vmatpush1.msra.mxu0 0.0
    %6014 = vmatprep.subr.mxu0 0.0
    %6015 = vmatpush1.msra.mxu0 0.0
    %6016 = vmatprep.subr.mxu0 0.0
    %6017 = vmatpush1.msra.mxu0 0.0
    %6018 = vmatprep.subr.mxu0 0.0
    %6019 = vmatpush1.msra.mxu0 0.0
    %6020 = vmatprep.subr.mxu0 0.0
    %6021 = vmatpush1.msra.mxu0 0.0
    %6022 = vmatprep.subr.mxu0 0.0
    %6023 = vmatpush1.msra.mxu0 0.0
    %6024 = vmatprep.subr.mxu0 0.0
    %6025 = vmatpush1.msra.mxu0 0.0
    %6026 = vmatprep.subr.mxu0 0.0
    %6027 = vmatpush1.msra.mxu0 0.0
    %6028 = vmatprep.subr.mxu0 0.0
    %6029 = vmatpush1.msra.mxu0 0.0
    %6030 = vmatprep.mubr.f32.mxu0 0.0
    %6031 = vmatmul.mubr.f32.gmra.mrb[0].mxu0 %v5586
    %v6032 = vpop.f32.mrb[0].mxu0
    %v6033 = vadd.f32 0.0, %v6032
    %v6034 = vpop.f32.mrb[0].mxu0
    %6035 = vdwg.mxu0
    %v6036 = vadd.f32 %v5946, %v6033
  $region57: #{lenet_forward.1} parent=0 // loop_footer
    %s3043 = sadd.s32 1, %s3039
  $region58: #{lenet_forward.1} parent=0 // loop_footer_branch
    %3038 = sbr.rel target = $region54
  $region59: #{lenet_forward.1} parent=0 // loop_exit
    _
  %v6037 = vld [vmem:[%s6] sm:$0x1]
  %v6039 = vlaneseq
  %v6040 = vshrl.u32 %v6039, 7
  %v6041 = vsub.s32 0, %v6040
  %v6042 = vrot.slane %v6037, %v6041
  %v6044 = vadd.f32 %v3044, %v6042
  %v6045 = vmax.f32 %v6044, 0.0
  %v6046 = vld [vmem:[%s7] sm:$0xff]
  %v6047 = vld [vmem:[%s7 + $0x8] sm:$0xff]
  %v6048 = vld [vmem:[%s7 + $0x10] sm:$0xff]
  %v6049 = vld [vmem:[%s7 + $0x18] sm:$0xff]
  %v6050 = vld [vmem:[%s7 + $0x20] sm:$0xff]
  %v6051 = vld [vmem:[%s7 + $0x28] sm:$0xff]
  %v6052 = vld [vmem:[%s7 + $0x30] sm:$0xff]
  %v6053 = vld [vmem:[%s7 + $0x38] sm:$0xff]
  %v6054 = vld [vmem:[%s7 + $0x40] sm:$0xff]
  %v6055 = vld [vmem:[%s7 + $0x48] sm:$0xff]
  %v6056 = vld [vmem:[%s7 + $0x50] sm:$0xff]
  %v6057 = vld [vmem:[%s7 + $0x58] sm:$0xff]
  %v6058 = vld [vmem:[%s7 + $0x60] sm:$0xff]
  %v6059 = vld [vmem:[%s7 + $0x68] sm:$0xff]
  %v6060 = vld [vmem:[%s7 + $0x70] sm:$0xff]
  %v6061 = vld [vmem:[%s7 + $0x78] sm:$0xff]
  %v6062 = vld [vmem:[%s8] sm:$0x1]
  %v6064 = vlaneseq
  %v6065 = vshrl.u32 %v6064, 7
  %v6066 = vsub.s32 0, %v6065
  %v6067 = vrot.slane %v6062, %v6066
  %6069 = vmatprep.subr.mxu0 0.0
  %6070 = vmatpush1.msra.mxu0 %v6046
  %6071 = vmatprep.subr.mxu0 0.0
  %6072 = vmatpush1.msra.mxu0 %v6047
  %6073 = vmatprep.subr.mxu0 0.0
  %6074 = vmatpush1.msra.mxu0 %v6048
  %6075 = vmatprep.subr.mxu0 0.0
  %6076 = vmatpush1.msra.mxu0 %v6049
  %6077 = vmatprep.subr.mxu0 0.0
  %6078 = vmatpush1.msra.mxu0 %v6050
  %6079 = vmatprep.subr.mxu0 0.0
  %6080 = vmatpush1.msra.mxu0 %v6051
  %6081 = vmatprep.subr.mxu0 0.0
  %6082 = vmatpush1.msra.mxu0 %v6052
  %6083 = vmatprep.subr.mxu0 0.0
  %6084 = vmatpush1.msra.mxu0 %v6053
  %6085 = vmatprep.subr.mxu0 0.0
  %6086 = vmatpush1.msra.mxu0 %v6054
  %6087 = vmatprep.subr.mxu0 0.0
  %6088 = vmatpush1.msra.mxu0 %v6055
  %6089 = vmatprep.subr.mxu0 0.0
  %6090 = vmatpush1.msra.mxu0 %v6056
  %6091 = vmatprep.subr.mxu0 0.0
  %6092 = vmatpush1.msra.mxu0 %v6057
  %6093 = vmatprep.subr.mxu0 0.0
  %6094 = vmatpush1.msra.mxu0 %v6058
  %6095 = vmatprep.subr.mxu0 0.0
  %6096 = vmatpush1.msra.mxu0 %v6059
  %6097 = vmatprep.subr.mxu0 0.0
  %6098 = vmatpush1.msra.mxu0 %v6060
  %6099 = vmatprep.subr.mxu0 0.0
  %6100 = vmatpush1.msra.mxu0 %v6061
  %6101 = vmatprep.subr.mxu0 0.0
  %6102 = vmatpush1.msra.mxu0 0.0
  %6103 = vmatprep.subr.mxu0 0.0
  %6104 = vmatpush1.msra.mxu0 0.0
  %6105 = vmatprep.subr.mxu0 0.0
  %6106 = vmatpush1.msra.mxu0 0.0
  %6107 = vmatprep.subr.mxu0 0.0
  %6108 = vmatpush1.msra.mxu0 0.0
  %6109 = vmatprep.subr.mxu0 0.0
  %6110 = vmatpush1.msra.mxu0 0.0
  %6111 = vmatprep.subr.mxu0 0.0
  %6112 = vmatpush1.msra.mxu0 0.0
  %6113 = vmatprep.subr.mxu0 0.0
  %6114 = vmatpush1.msra.mxu0 0.0
  %6115 = vmatprep.subr.mxu0 0.0
  %6116 = vmatpush1.msra.mxu0 0.0
  %6117 = vmatprep.subr.mxu0 0.0
  %6118 = vmatpush1.msra.mxu0 0.0
  %6119 = vmatprep.subr.mxu0 0.0
  %6120 = vmatpush1.msra.mxu0 0.0
  %6121 = vmatprep.subr.mxu0 0.0
  %6122 = vmatpush1.msra.mxu0 0.0
  %6123 = vmatprep.subr.mxu0 0.0
  %6124 = vmatpush1.msra.mxu0 0.0
  %6125 = vmatprep.subr.mxu0 0.0
  %6126 = vmatpush1.msra.mxu0 0.0
  %6127 = vmatprep.subr.mxu0 0.0
  %6128 = vmatpush1.msra.mxu0 0.0
  %6129 = vmatprep.subr.mxu0 0.0
  %6130 = vmatpush1.msra.mxu0 0.0
  %6131 = vmatprep.subr.mxu0 0.0
  %6132 = vmatpush1.msra.mxu0 0.0
  %6133 = vmatprep.mubr.f32.mxu0 0.0
  %6134 = vmatmul.mubr.f32.gmra.mrb[0].mxu0 %v6045
  %v6135 = vpop.f32.mrb[0].mxu0
  %v6136 = vadd.f32 %v6067, %v6135
  %v6137 = vpop.f32.mrb[0].mxu0
  %6138 = vdwg.mxu0
  %v6139 = vmax.f32 %v6136, 0.0
  %v6140 = vld [vmem:[%s9] sm:$0xff]
  %v6141 = vld [vmem:[%s9 + $0x8] sm:$0xff]
  %v6142 = vld [vmem:[%s9 + $0x10] sm:$0xff]
  %v6143 = vld [vmem:[%s9 + $0x18] sm:$0xff]
  %v6144 = vld [vmem:[%s9 + $0x20] sm:$0xff]
  %v6145 = vld [vmem:[%s9 + $0x28] sm:$0xff]
  %v6146 = vld [vmem:[%s9 + $0x30] sm:$0xff]
  %v6147 = vld [vmem:[%s9 + $0x38] sm:$0xff]
  %v6148 = vld [vmem:[%s9 + $0x40] sm:$0xff]
  %v6149 = vld [vmem:[%s9 + $0x48] sm:$0xff]
  %v6150 = vld [vmem:[%s9 + $0x50] sm:$0xff]
  %v6151 = vld [vmem:[%s9 + $0x58] sm:$0xff]
  %v6152 = vld [vmem:[%s9 + $0x60] sm:$0xff]
  %v6153 = vld [vmem:[%s9 + $0x68] sm:$0xff]
  %v6154 = vld [vmem:[%s9 + $0x70] sm:$0xff]
  %v6155 = vld [vmem:[%s9 + $0x78] sm:$0xff]
  %v6156 = vld [vmem:[%s10] sm:$0x1]
  %v6158 = vlaneseq
  %v6159 = vshrl.u32 %v6158, 7
  %v6160 = vsub.s32 0, %v6159
  %v6161 = vrot.slane %v6156, %v6160
  %6163 = vmatprep.subr.mxu0 0.0
  %6164 = vmatpush1.msra.mxu0 %v6140
  %6165 = vmatprep.subr.mxu0 0.0
  %6166 = vmatpush1.msra.mxu0 %v6141
  %6167 = vmatprep.subr.mxu0 0.0
  %6168 = vmatpush1.msra.mxu0 %v6142
  %6169 = vmatprep.subr.mxu0 0.0
  %6170 = vmatpush1.msra.mxu0 %v6143
  %6171 = vmatprep.subr.mxu0 0.0
  %6172 = vmatpush1.msra.mxu0 %v6144
  %6173 = vmatprep.subr.mxu0 0.0
  %6174 = vmatpush1.msra.mxu0 %v6145
  %6175 = vmatprep.subr.mxu0 0.0
  %6176 = vmatpush1.msra.mxu0 %v6146
  %6177 = vmatprep.subr.mxu0 0.0
  %6178 = vmatpush1.msra.mxu0 %v6147
  %6179 = vmatprep.subr.mxu0 0.0
  %6180 = vmatpush1.msra.mxu0 %v6148
  %6181 = vmatprep.subr.mxu0 0.0
  %6182 = vmatpush1.msra.mxu0 %v6149
  %6183 = vmatprep.subr.mxu0 0.0
  %6184 = vmatpush1.msra.mxu0 %v6150
  %6185 = vmatprep.subr.mxu0 0.0
  %6186 = vmatpush1.msra.mxu0 %v6151
  %6187 = vmatprep.subr.mxu0 0.0
  %6188 = vmatpush1.msra.mxu0 %v6152
  %6189 = vmatprep.subr.mxu0 0.0
  %6190 = vmatpush1.msra.mxu0 %v6153
  %6191 = vmatprep.subr.mxu0 0.0
  %6192 = vmatpush1.msra.mxu0 %v6154
  %6193 = vmatprep.subr.mxu0 0.0
  %6194 = vmatpush1.msra.mxu0 %v6155
  %6195 = vmatprep.subr.mxu0 0.0
  %6196 = vmatpush1.msra.mxu0 0.0
  %6197 = vmatprep.subr.mxu0 0.0
  %6198 = vmatpush1.msra.mxu0 0.0
  %6199 = vmatprep.subr.mxu0 0.0
  %6200 = vmatpush1.msra.mxu0 0.0
  %6201 = vmatprep.subr.mxu0 0.0
  %6202 = vmatpush1.msra.mxu0 0.0
  %6203 = vmatprep.subr.mxu0 0.0
  %6204 = vmatpush1.msra.mxu0 0.0
  %6205 = vmatprep.subr.mxu0 0.0
  %6206 = vmatpush1.msra.mxu0 0.0
  %6207 = vmatprep.subr.mxu0 0.0
  %6208 = vmatpush1.msra.mxu0 0.0
  %6209 = vmatprep.subr.mxu0 0.0
  %6210 = vmatpush1.msra.mxu0 0.0
  %6211 = vmatprep.subr.mxu0 0.0
  %6212 = vmatpush1.msra.mxu0 0.0
  %6213 = vmatprep.subr.mxu0 0.0
  %6214 = vmatpush1.msra.mxu0 0.0
  %6215 = vmatprep.subr.mxu0 0.0
  %6216 = vmatpush1.msra.mxu0 0.0
  %6217 = vmatprep.subr.mxu0 0.0
  %6218 = vmatpush1.msra.mxu0 0.0
  %6219 = vmatprep.subr.mxu0 0.0
  %6220 = vmatpush1.msra.mxu0 0.0
  %6221 = vmatprep.subr.mxu0 0.0
  %6222 = vmatpush1.msra.mxu0 0.0
  %6223 = vmatprep.subr.mxu0 0.0
  %6224 = vmatpush1.msra.mxu0 0.0
  %6225 = vmatprep.subr.mxu0 0.0
  %6226 = vmatpush1.msra.mxu0 0.0
  %6227 = vmatprep.mubr.f32.mxu0 0.0
  %6228 = vmatmul.mubr.f32.gmra.mrb[0].mxu0 %v6139
  %v6229 = vpop.f32.mrb[0].mxu0
  %v6230 = vadd.f32 %v6161, %v6229
  %v6231 = vpop.f32.mrb[0].mxu0
  %6232 = vdwg.mxu0
  %6233 = vst [vmem:[%s11] sm:$0xff] %v6230
  // Predicated region
  $region60: #{lenet_forward.1} parent=0 // pred_check
    _
  $region61: #{lenet_forward.1} parent=0 // pred_check_branch
    %6235 = sbr.rel (0) target = $region63
  $region62: #{lenet_forward.1} parent=0 // pred_region
    _
  $region63: #{lenet_forward.1} parent=0 // pred_fallthru
    _
  // Predicated region
  $region64: #{lenet_forward.1} parent=0 // pred_check
    _
  $region65: #{lenet_forward.1} parent=0 // pred_check_branch
    %6237 = sbr.rel (0) target = $region67
  $region66: #{lenet_forward.1} parent=0 // pred_region
    _
  $region67: #{lenet_forward.1} parent=0 // pred_fallthru
    _

</llo_original>
